<compile_context>
chip_gen: v7x
topology: tpu7x:2x2x1
jax: 0.10.0
libtpu: 0.0.40
codegen_flags: <defaults>
</compile_context>

<pallas_src>
import math
from functools import partial

import jax
import jax.numpy as jnp
from jax.experimental import pallas as pl
from jax.experimental.pallas import tpu as pltpu


# ----------------------------------------------------------------------------
# Helpers
# ----------------------------------------------------------------------------

def _pick_tile(dim, candidates):
    """Largest candidate that exactly divides `dim`, else the full extent."""
    for c in candidates:
        if c <= dim and dim % c == 0:
            return c
    return dim


def _erf(x):
    # Abramowitz & Stegun 7.1.26 rational approximation, |abs err| < 1.5e-7.
    a1, a2, a3, a4, a5 = 0.254829592, -0.284496736, 1.421413741, -1.453152027, 1.061405429
    pp = 0.3275911
    ax = jnp.abs(x)
    t = 1.0 / (1.0 + pp * ax)
    poly = ((((a5 * t + a4) * t + a3) * t + a2) * t + a1) * t
    y = 1.0 - poly * jnp.exp(-ax * ax)
    return jnp.where(x >= 0.0, y, -y)


def _gelu_exact(x):
    # Matches torch nn.GELU() default (erf-based) to fp32 precision.
    return 0.5 * x * (1.0 + _erf(x * (1.0 / math.sqrt(2.0))))


# ----------------------------------------------------------------------------
# Fused, tiled linear kernel:  y = [ + residual] act( LN(x) @ W + b )
# ----------------------------------------------------------------------------

def _fused_linear_kernel(*refs, nk, fuse_ln, eps, act, fuse_res,
                         use_acc, use_ln_scratch):
    it = iter(refs)
    x_ref = next(it)
    w_ref = next(it)
    b_ref = next(it)
    g_ref = next(it) if fuse_ln else None
    be_ref = next(it) if fuse_ln else None
    r_ref = next(it) if fuse_res else None
    o_ref = next(it)
    acc_ref = next(it) if use_acc else None
    xln_ref = next(it) if use_ln_scratch else None

    kk = pl.program_id(2)

    if use_acc:
        @pl.when(kk == 0)
        def _():
            acc_ref[...] = jnp.zeros_like(acc_ref)

    def ln_lhs_bf16():
        # LayerNorm over the (full, un-tiled) K axis; statistics in fp32.
        xf = x_ref[...].astype(jnp.float32)
        mu = jnp.mean(xf, axis=-1, keepdims=True)
        var = jnp.mean(jnp.square(xf - mu), axis=-1, keepdims=True)
        xf = (xf - mu) * jax.lax.rsqrt(var + eps)
        xf = xf * g_ref[...] + be_ref[...]
        return xf.astype(jnp.bfloat16)

    if use_ln_scratch:
        # LN + bf16 cast done once per row-block, reused across all N tiles.
        @pl.when(pl.program_id(1) == 0)
        def _():
            xln_ref[...] = ln_lhs_bf16()
        lhs = xln_ref[...]
    elif fuse_ln:
        lhs = ln_lhs_bf16()
    else:
        lhs = x_ref[...].astype(jnp.bfloat16)

    # bf16 operands on the MXU, fp32 accumulation.
    part = jnp.dot(lhs, w_ref[...].astype(jnp.bfloat16),
                   preferred_element_type=jnp.float32)

    def epilogue(acc_f32):
        y = acc_f32 + b_ref[...]
        if act == "gelu":
            y = _gelu_exact(y)
        if fuse_res:
            y = y + r_ref[...].astype(jnp.float32)   # residual add in fp32
        return y.astype(o_ref.dtype)

    if use_acc:
        acc_ref[...] += part

        @pl.when(kk == nk - 1)
        def _():
            o_ref[...] = epilogue(acc_ref[...])
    else:
        # nk == 1: skip the accumulator round-trip entirely.
        o_ref[...] = epilogue(part)


def _select_tiles(M, K, N, fuse_ln):
    tm = _pick_tile(M, (1024, 512, 256, 128, 64))
    tn = _pick_tile(N, (512, 256, 128))
    tk = K if fuse_ln else _pick_tile(K, (1024, 512, 256, 128))

    def vmem_est(tm_, tn_, tk_):
        b = 2 * tm_ * tk_ * 4            # LHS (fp32 worst case), double-buffered
        b += 2 * tk_ * tn_ * 2           # bf16 weights, double-buffered
        b += 2 * tm_ * tn_ * 4           # output
        b += 2 * tm_ * tn_ * 4           # optional residual
        b += tm_ * tn_ * 4               # fp32 accumulator
        if fuse_ln:
            b += tm_ * K * 2             # LN'd bf16 LHS scratch
        return b

    budget = 24 * 1024 * 1024            # comfortably under v7x's default scoped VMEM
    while vmem_est(tm, tn, tk) > budget and tm > 128 and tm % 2 == 0 and M % (tm // 2) == 0:
        tm //= 2
    while vmem_est(tm, tn, tk) > budget and tn > 128 and tn % 2 == 0 and N % (tn // 2) == 0:
        tn //= 2
    while (vmem_est(tm, tn, tk) > budget and not fuse_ln
           and tk > 128 and tk % 2 == 0 and K % (tk // 2) == 0):
        tk //= 2
    return tm, tn, tk


def fused_linear(x, w, b, *, gamma=None, beta=None, eps=1e-6, act=None,
                 residual=None, out_dtype=jnp.float32):
    """x: (M, K) fp32/bf16 activations, w: (K, N) bf16 weights, b/gamma/beta fp32.

    Tiled over (M//tm, N//tn, K//tk) with an fp32 VMEM accumulator (skipped when
    nk == 1).  When a LayerNorm is fused the K axis stays un-tiled and the LN'd
    bf16 LHS is cached in a VMEM scratch across N tiles.
    """
    M, K = x.shape
    Kw, N = w.shape
    assert Kw == K
    fuse_ln = gamma is not None
    fuse_res = residual is not None

    tm, tn, tk = _select_tiles(M, K, N, fuse_ln)
    nk = K // tk
    nj = N // tn
    grid = (M // tm, nj, nk)

    use_acc = nk > 1
    use_ln_scratch = fuse_ln and nj > 1

    in_specs = [
        pl.BlockSpec((tm, tk), lambda i, j, k: (i, k)),     # x
        pl.BlockSpec((tk, tn), lambda i, j, k: (k, j)),     # W
        pl.BlockSpec((1, tn), lambda i, j, k: (0, j)),      # bias
    ]
    args = [x, w, b.reshape(1, N)]
    if fuse_ln:
        in_specs += [pl.BlockSpec((1, tk), lambda i, j, k: (0, k)),   # gamma
                     pl.BlockSpec((1, tk), lambda i, j, k: (0, k))]   # beta
        args += [gamma.reshape(1, K), beta.reshape(1, K)]
    if fuse_res:
        in_specs.append(pl.BlockSpec((tm, tn), lambda i, j, k: (i, j)))
        args.append(residual)

    scratch_shapes = []
    if use_acc:
        scratch_shapes.append(pltpu.VMEM((tm, tn), jnp.float32))
    if use_ln_scratch:
        scratch_shapes.append(pltpu.VMEM((tm, K), jnp.bfloat16))

    if use_ln_scratch:
        # N tiles must be visited in order (j == 0 fills the LN scratch).
        dims = ("parallel", "arbitrary", "arbitrary")
    else:
        dims = ("parallel", "parallel", "arbitrary")

    out_itemsize = jnp.dtype(out_dtype).itemsize
    bytes_accessed = (x.size * x.dtype.itemsize + w.size * w.dtype.itemsize
                      + b.size * 4 + M * N * out_itemsize)
    if fuse_res:
        bytes_accessed += residual.size * residual.dtype.itemsize
    cost = pl.CostEstimate(
        flops=int(2 * M * N * K),
        transcendentals=int(M * N if act == "gelu" else 0),
        bytes_accessed=int(bytes_accessed))

    kernel = partial(_fused_linear_kernel, nk=nk, fuse_ln=fuse_ln, eps=eps,
                     act=act, fuse_res=fuse_res, use_acc=use_acc,
                     use_ln_scratch=use_ln_scratch)
    return pl.pallas_call(
        kernel,
        grid=grid,
        in_specs=in_specs,
        out_specs=pl.BlockSpec((tm, tn), lambda i, j, k: (i, j)),
        out_shape=jax.ShapeDtypeStruct((M, N), out_dtype),
        scratch_shapes=scratch_shapes,
        compiler_params=pltpu.CompilerParams(dimension_semantics=dims),
        cost_estimate=cost,
    )(*args)


# ----------------------------------------------------------------------------
# Multi-head attention core: G sequences (all heads) per grid step
# ----------------------------------------------------------------------------

def _pick_group(Bn, Nn, d3):
    """Largest divisor G of Bn such that G*Nn rows stay small enough for VMEM
    and (when possible) at least 2 grid steps remain for the 2-TC chips."""
    max_rows = 512
    vmem_budget = 6 * 1024 * 1024
    best = 1
    for g in range(1, Bn + 1):
        if Bn % g:
            continue
        if Bn >= 2 and Bn // g < 2:
            continue
        if g * Nn > max_rows:
            continue
        # double-buffered qkv input + output block (bf16)
        if 2 * g * Nn * d3 * 2 + 2 * g * Nn * (d3 // 3) * 2 > vmem_budget:
            continue
        best = g
    return best


def _heads_per_store(num_heads, hd):
    """Largest divisor of num_heads whose combined width stays within 128 lanes."""
    best = 1
    for hg in range(1, num_heads + 1):
        if num_heads % hg == 0 and hd * hg <= 128:
            best = hg
    return best


def _attn_core_kernel(qkv_ref, o_ref, *, num_heads, scale, heads_per_store):
    x = qkv_ref[...].astype(jnp.bfloat16)      # (G, N, 3D)
    d3 = x.shape[-1]
    d = d3 // 3
    hd = d // num_heads
    for h0 in range(0, num_heads, heads_per_store):
        outs = []
        for h in range(h0, h0 + heads_per_store):     # static unroll within group
            qh = x[:, :, h * hd:(h + 1) * hd]
            kh = x[:, :, d + h * hd:d + (h + 1) * hd]
            vh = x[:, :, 2 * d + h * hd:2 * d + (h + 1) * hd]
            # G-batched matmuls; fp32 scores/softmax statistics.
            s = jnp.einsum('gnd,gmd->gnm', qh, kh,
                           preferred_element_type=jnp.float32) * scale
            s = s - jnp.max(s, axis=-1, keepdims=True)
            e = jnp.exp(s)
            l = jnp.sum(e, axis=-1, keepdims=True)
            oh = jnp.einsum('gnm,gmd->gnd', e.astype(jnp.bfloat16), vh,
                            preferred_element_type=jnp.float32)
            # normalize the (G, N, hd) output instead of the (G, N, N) prob tile
            outs.append(oh * pl.reciprocal(l, approx=True))
        grp = outs[0] if len(outs) == 1 else jnp.concatenate(outs, axis=-1)
        o_ref[:, :, h0 * hd:(h0 + heads_per_store) * hd] = grp.astype(o_ref.dtype)


def attention_core(qkv, num_heads, scale, out_dtype=jnp.bfloat16):
    """qkv: (Bn, N, 3D) fused QKV activations -> (Bn, N, D) attention output."""
    Bn, Nn, D3 = qkv.shape
    D = D3 // 3
    hd = D // num_heads
    G = _pick_group(Bn, Nn, D3)
    hg = _heads_per_store(num_heads, hd)

    cost = pl.CostEstimate(
        flops=int(4 * Bn * num_heads * Nn * Nn * hd),
        transcendentals=int(Bn * num_heads * Nn * Nn),
        bytes_accessed=int(qkv.size * qkv.dtype.itemsize
                           + Bn * Nn * D * jnp.dtype(out_dtype).itemsize))

    return pl.pallas_call(
        partial(_attn_core_kernel, num_heads=num_heads, scale=scale,
                heads_per_store=hg),
        grid=(Bn // G,),
        in_specs=[pl.BlockSpec((G, Nn, D3), lambda i: (i, 0, 0))],
        out_specs=pl.BlockSpec((G, Nn, D), lambda i: (i, 0, 0)),
        out_shape=jax.ShapeDtypeStruct((Bn, Nn, D), out_dtype),
        compiler_params=pltpu.CompilerParams(dimension_semantics=("parallel",)),
        cost_estimate=cost,
    )(qkv)


# ----------------------------------------------------------------------------
# Model pieces (glue in plain JAX, compute in the kernels above)
# ----------------------------------------------------------------------------

def attention_block(x2d, p, num_heads, *, gamma, beta, eps, Bn, Nn,
                    out_dtype=jnp.float32):
    """Fused LN -> qkv -> multi-head softmax attention -> proj.

    x2d: (Bn*Nn, D) token slab in (batch, token) row order.
    Returns (Bn*Nn, D) projected attention output (pre-residual).
    """
    D = x2d.shape[-1]
    hd = D // num_heads
    scale = hd ** (-0.5)
    qkv = fused_linear(x2d, p["qkv_w"], p["qkv_b"], gamma=gamma, beta=beta,
                       eps=eps, out_dtype=jnp.bfloat16)          # (M, 3D) bf16 slab
    attn = attention_core(qkv.reshape(Bn, Nn, 3 * D), num_heads, scale)   # bf16
    return fused_linear(attn.reshape(Bn * Nn, D), p["proj_w"], p["proj_b"],
                        out_dtype=out_dtype)


def block_forward(x, p, B, T, W, num_heads, eps=1e-6):
    """Block with attention_type='divided_space_time' (DropPath/Dropout = identity)."""
    _, L, D = x.shape
    N = (L - 1) // T
    H = N // W

    # --- temporal attention ---------------------------------------------------
    # 'b (h w t) m -> (b h w) t m' is a pure reshape (h, w, t order preserved).
    xt_in2d = x[:, 1:, :].reshape(B * N * T, D)
    res_t = attention_block(xt_in2d, p["tattn"], num_heads,
                            gamma=p["tnorm1_w"], beta=p["tnorm1_b"], eps=eps,
                            Bn=B * H * W, Nn=T, out_dtype=jnp.bfloat16)
    # temporal_fc + residual add fused into one kernel; residual stream stays fp32
    xt2d = fused_linear(res_t, p["tfc_w"], p["tfc_b"], residual=xt_in2d,
                        out_dtype=jnp.float32)
    xt = xt2d.reshape(B, N * T, D)

    # --- spatial attention ------------------------------------------------------
    init_cls = x[:, 0:1, :]                                             # (B, 1, D)
    cls_tok = jnp.repeat(init_cls, T, axis=1).reshape(B * T, 1, D)
    xs = xt.reshape(B, H, W, T, D)
    xs = jnp.transpose(xs, (0, 3, 1, 2, 4)).reshape(B * T, H * W, D)    # b (h w t) -> (b t)(h w)
    xs = jnp.concatenate([cls_tok, xs], axis=1)                         # (B*T, N+1, D)
    Ns = N + 1
    res_s = attention_block(xs.reshape(B * T * Ns, D), p["attn"], num_heads,
                            gamma=p["norm1_w"], beta=p["norm1_b"], eps=eps,
                            Bn=B * T, Nn=Ns, out_dtype=jnp.float32)
    res_s = res_s.reshape(B * T, Ns, D)
    cls_out = res_s[:, 0, :].reshape(B, T, D).mean(axis=1, keepdims=True)   # (B, 1, D)
    res_sp = res_s[:, 1:, :].reshape(B, T, H, W, D)
    res_sp = jnp.transpose(res_sp, (0, 2, 3, 1, 4)).reshape(B, N * T, D)    # (b t)(h w) -> b (h w t)

    x = jnp.concatenate([init_cls, xt], axis=1) + jnp.concatenate([cls_out, res_sp], axis=1)

    # --- MLP (LN + fc1 + GELU fused; fc2 + residual fused) ---------------------
    x2d = x.reshape(B * L, D)
    h = fused_linear(x2d, p["fc1_w"], p["fc1_b"],
                     gamma=p["norm2_w"], beta=p["norm2_b"], eps=eps,
                     act="gelu", out_dtype=jnp.bfloat16)
    out = fused_linear(h, p["fc2_w"], p["fc2_b"], residual=x2d,
                       out_dtype=jnp.float32)
    return out.reshape(B, L, D)


def patch_embed(x_btchw, w2d, conv_b, patch):
    """Conv2d(kernel=stride=patch) expressed as patchify + tiled Pallas matmul."""
    BT, C, Himg, Wimg = x_btchw.shape
    Hp, Wp = Himg // patch, Wimg // patch
    xp = x_btchw.reshape(BT, C, Hp, patch, Wp, patch)
    xp = jnp.transpose(xp, (0, 2, 4, 1, 3, 5)).reshape(BT * Hp * Wp, C * patch * patch)
    D = w2d.shape[1]
    y = fused_linear(xp, w2d, conv_b)                                   # (BT*Hp*Wp, D) fp32
    return y.reshape(BT, Hp * Wp, D), Wp


def timepsformer_forward(x, params, *, num_heads, patch_size, eps=1e-6):
    """Full TimePSformer forward (attention_type='divided_space_time', eval mode)."""
    B, C, T, Himg, Wimg = x.shape
    x_bt = jnp.transpose(x, (0, 2, 1, 3, 4)).reshape(B * T, C, Himg, Wimg)   # b c t h w -> (b t) c h w
    x_pe, Wp = patch_embed(x_bt, params["conv_w2d"], params["conv_b"], patch_size)
    BT, N, D = x_pe.shape

    cls = jnp.broadcast_to(params["cls_token"], (BT, 1, D))
    xseq = jnp.concatenate([cls, x_pe], axis=1) + params["pos_embed"]         # (BT, N+1, D)

    # time embedding (mirrors the exact PyTorch rearrange path)
    cls_tokens = xseq[:B, 0, :][:, None, :]                                   # (B, 1, D)
    xt = xseq[:, 1:, :].reshape(B, T, N, D)
    xt = jnp.transpose(xt, (0, 2, 1, 3)).reshape(B * N, T, D)                 # (b t) n m -> (b n) t m
    xt = xt + params["time_embed"]
    xt = xt.reshape(B, N * T, D)                                              # (b n) t m -> b (n t) m
    xx = jnp.concatenate([cls_tokens, xt], axis=1)                            # (B, N*T+1, D)

    for blk in params["blocks"]:
        xx = block_forward(xx, blk, B, T, Wp, num_heads, eps=eps)

    # final LayerNorm is per-token and only the cls token feeds the head,
    # so fuse LN + head linear on the cls rows only.
    cls_final = xx[:, 0, :]                                                   # (B, D)
    logits = fused_linear(cls_final, params["head_w"], params["head_b"],
                          gamma=params["norm_w"], beta=params["norm_b"], eps=eps)
    return logits


# ----------------------------------------------------------------------------
# Deterministic parameter construction (mirrors the module's __init__ shapes)
# ----------------------------------------------------------------------------

def init_params(key, *, embed_dim, depth, num_heads, mlp_ratio, in_chans,
                patch_size, num_patches, num_frames, num_classes):
    D = embed_dim
    hidden = int(D * mlp_ratio)
    keys = iter(jax.random.split(key, 256))

    def nrm(shape, std=0.02, dtype=jnp.float32):
        return (jax.random.normal(next(keys), shape, jnp.float32) * std).astype(dtype)

    wdt = jnp.bfloat16   # matmul weights in bf16; fp32 accumulation inside the kernels

    params = {
        # patch-embed conv stored pre-flattened as a (C*p*p, D) matmul weight
        "conv_w2d": nrm((in_chans * patch_size * patch_size, D), dtype=wdt),
        "conv_b": jnp.zeros((D,), jnp.float32),
        "cls_token": nrm((1, 1, D)),
        "pos_embed": nrm((1, num_patches + 1, D)),
        "time_embed": nrm((1, num_frames, D)),
        "norm_w": jnp.ones((D,), jnp.float32),
        "norm_b": jnp.zeros((D,), jnp.float32),
        "head_w": nrm((D, num_classes), dtype=wdt),
        "head_b": jnp.zeros((num_classes,), jnp.float32),
        "blocks": [],
    }
    for i in range(depth):
        blk = {
            "norm1_w": jnp.ones((D,), jnp.float32), "norm1_b": jnp.zeros((D,), jnp.float32),
            "tnorm1_w": jnp.ones((D,), jnp.float32), "tnorm1_b": jnp.zeros((D,), jnp.float32),
            "norm2_w": jnp.ones((D,), jnp.float32), "norm2_b": jnp.zeros((D,), jnp.float32),
            "attn": {
                "qkv_w": nrm((D, 3 * D), dtype=wdt), "qkv_b": jnp.zeros((3 * D,), jnp.float32),
                "proj_w": nrm((D, D), dtype=wdt), "proj_b": jnp.zeros((D,), jnp.float32),
            },
            "tattn": {
                "qkv_w": nrm((D, 3 * D), dtype=wdt), "qkv_b": jnp.zeros((3 * D,), jnp.float32),
                "proj_w": nrm((D, D), dtype=wdt), "proj_b": jnp.zeros((D,), jnp.float32),
            },
            # temporal_fc is zero-initialized for blocks > 0, as in the PyTorch __init__
            "tfc_w": nrm((D, D), dtype=wdt) if i == 0 else jnp.zeros((D, D), wdt),
            "tfc_b": jnp.zeros((D,), jnp.float32),
            "fc1_w": nrm((D, hidden), dtype=wdt), "fc1_b": jnp.zeros((hidden,), jnp.float32),
            "fc2_w": nrm((hidden, D), dtype=wdt), "fc2_b": jnp.zeros((D,), jnp.float32),
        }
        params["blocks"].append(blk)
    return params


# ----------------------------------------------------------------------------
# Driver
# ----------------------------------------------------------------------------

if __name__ == "__main__":
    # Small shapes consistent with the module's forward:
    #   batch=2, in_chans=3, frames=4, img=16, patch=8  -> 2x2 patch grid (N=4)
    #   embed_dim=32, heads=4 (head_dim=8), depth=2, mlp_ratio=4, classes=8
    B, C_in, T, IMG, PATCH = 2, 3, 4, 16, 8
    EMBED, HEADS, DEPTH, MLP_RATIO, NUM_CLASSES = 32, 4, 2, 4.0, 8
    NUM_PATCHES = (IMG // PATCH) * (IMG // PATCH)

    key = jax.random.PRNGKey(0)
    k_param, k_x = jax.random.split(key)
    params = init_params(
        k_param, embed_dim=EMBED, depth=DEPTH, num_heads=HEADS, mlp_ratio=MLP_RATIO,
        in_chans=C_in, patch_size=PATCH, num_patches=NUM_PATCHES,
        num_frames=T, num_classes=NUM_CLASSES)

    x = jax.random.normal(k_x, (B, C_in, T, IMG, IMG), jnp.float32)  # NCTHW, like PyTorch

    fwd = jax.jit(lambda inp: timepsformer_forward(
        inp, params, num_heads=HEADS, patch_size=PATCH))

    out = fwd(x)
    jax.block_until_ready(out)
    assert out.shape == (B, NUM_CLASSES), out.shape

    print("KERNEL_OK")
</pallas_src>

<mosaic_0001>
module attributes {stable_mosaic.version = 11 : i64} {
  func.func @_fused_linear_kernel(%arg0: i32, %arg1: i32, %arg2: i32, %arg3: memref<32x192xf32, #tpu.memory_space<vmem>>, %arg4: memref<192x32xbf16, #tpu.memory_space<vmem>>, %arg5: memref<1x32xf32, #tpu.memory_space<vmem>>, %arg6: memref<32x32xf32, #tpu.memory_space<vmem>>) attributes {dimension_semantics = [#tpu.dimension_semantics<parallel>, #tpu.dimension_semantics<parallel>, #tpu.dimension_semantics<arbitrary>], iteration_bounds = array<i64: 1, 1, 1>, scalar_prefetch = 0 : i64, scratch_operands = 0 : i64, tpu.core_type = #tpu.core_type<tc>, window_params = [{transform_indices = @transform_0, window_bounds = array<i64: 32, 192>}, {transform_indices = @transform_1, window_bounds = array<i64: 192, 32>}, {transform_indices = @transform_2, window_bounds = array<i64: 1, 32>}, {transform_indices = @transform_3, window_bounds = array<i64: 32, 32>}]} {
    %c0 = arith.constant 0 : index
    %c0_0 = arith.constant 0 : index
    %0 = vector.load %arg3[%c0, %c0_0] : memref<32x192xf32, #tpu.memory_space<vmem>>, vector<32x192xf32>
    %1 = arith.truncf %0 : vector<32x192xf32> to vector<32x192xbf16>
    %c0_1 = arith.constant 0 : index
    %c0_2 = arith.constant 0 : index
    %2 = vector.load %arg4[%c0_1, %c0_2] : memref<192x32xbf16, #tpu.memory_space<vmem>>, vector<192x32xbf16>
    %cst = arith.constant dense<0.000000e+00> : vector<32x32xf32>
    %3 = tpu.matmul %1, %2, %cst {dimension_numbers = #tpu.dot_dimension_numbers<[1], [0], [0], [1], [0, 0, 1, 1], [], []>} : vector<32x192xbf16>, vector<192x32xbf16>, vector<32x32xf32> -> vector<32x32xf32>
    %c0_3 = arith.constant 0 : index
    %c0_4 = arith.constant 0 : index
    %4 = vector.load %arg5[%c0_3, %c0_4] : memref<1x32xf32, #tpu.memory_space<vmem>>, vector<1x32xf32>
    %5 = vector.broadcast %4 : vector<1x32xf32> to vector<32x32xf32>
    %6 = arith.addf %3, %5 : vector<32x32xf32>
    %c0_5 = arith.constant 0 : index
    %c0_6 = arith.constant 0 : index
    %7 = vector.load %arg6[%c0_5, %c0_6] : memref<32x32xf32, #tpu.memory_space<vmem>>, vector<32x32xf32>
    tpu.vector_store %arg6[%c0_5, %c0_6], %6 {strides = array<i32>} : memref<32x32xf32, #tpu.memory_space<vmem>>, vector<32x32xf32>,
    return
  }
  func.func @transform_0(%arg0: i32, %arg1: i32, %arg2: i32) -> (i32, i32) {
    %c0_i32 = arith.constant 0 : i32
    return %arg0, %arg2 : i32, i32
  }
  func.func @transform_1(%arg0: i32, %arg1: i32, %arg2: i32) -> (i32, i32) {
    %c0_i32 = arith.constant 0 : i32
    return %arg2, %arg1 : i32, i32
  }
  func.func @transform_2(%arg0: i32, %arg1: i32, %arg2: i32) -> (i32, i32) {
    %c0_i32 = arith.constant 0 : i32
    %c0_i32_0 = arith.constant 0 : i32
    return %c0_i32, %arg1 : i32, i32
  }
  func.func @transform_3(%arg0: i32, %arg1: i32, %arg2: i32) -> (i32, i32) {
    %c0_i32 = arith.constant 0 : i32
    return %arg0, %arg1 : i32, i32
  }
}

module attributes {stable_mosaic.version = 11 : i64} {
  func.func @_fused_linear_kernel(%arg0: i32, %arg1: i32, %arg2: i32, %arg3: memref<32x32xf32, #tpu.memory_space<vmem>>, %arg4: memref<32x96xbf16, #tpu.memory_space<vmem>>, %arg5: memref<1x96xf32, #tpu.memory_space<vmem>>, %arg6: memref<1x32xf32, #tpu.memory_space<vmem>>, %arg7: memref<1x32xf32, #tpu.memory_space<vmem>>, %arg8: memref<32x96xbf16, #tpu.memory_space<vmem>>) attributes {dimension_semantics = [#tpu.dimension_semantics<parallel>, #tpu.dimension_semantics<parallel>, #tpu.dimension_semantics<arbitrary>], iteration_bounds = array<i64: 1, 1, 1>, scalar_prefetch = 0 : i64, scratch_operands = 0 : i64, tpu.core_type = #tpu.core_type<tc>, window_params = [{transform_indices = @transform_0, window_bounds = array<i64: 32, 32>}, {transform_indices = @transform_1, window_bounds = array<i64: 32, 96>}, {transform_indices = @transform_2, window_bounds = array<i64: 1, 96>}, {transform_indices = @transform_3, window_bounds = array<i64: 1, 32>}, {transform_indices = @transform_4, window_bounds = array<i64: 1, 32>}, {transform_indices = @transform_5, window_bounds = array<i64: 32, 96>}]} {
    %c0 = arith.constant 0 : index
    %c0_0 = arith.constant 0 : index
    %0 = vector.load %arg3[%c0, %c0_0] : memref<32x32xf32, #tpu.memory_space<vmem>>, vector<32x32xf32>
    %cst = arith.constant dense<0.000000e+00> : vector<32xf32>
    %1 = vector.multi_reduction <add>, %0, %cst [1] : vector<32x32xf32> to vector<32xf32>
    %2 = vector.shape_cast %1 : vector<32xf32> to vector<32x1xf32>
    %cst_1 = arith.constant 3.200000e+01 : f32
    %3 = vector.broadcast %cst_1 : f32 to vector<32x1xf32>
    %4 = arith.divf %2, %3 : vector<32x1xf32>
    %5 = vector.broadcast %4 : vector<32x1xf32> to vector<32x32xf32>
    %6 = arith.subf %0, %5 : vector<32x32xf32>
    %7 = arith.mulf %6, %6 : vector<32x32xf32>
    %cst_2 = arith.constant dense<0.000000e+00> : vector<32xf32>
    %8 = vector.multi_reduction <add>, %7, %cst_2 [1] : vector<32x32xf32> to vector<32xf32>
    %9 = vector.shape_cast %8 : vector<32xf32> to vector<32x1xf32>
    %cst_3 = arith.constant 3.200000e+01 : f32
    %10 = vector.broadcast %cst_3 : f32 to vector<32x1xf32>
    %11 = arith.divf %9, %10 : vector<32x1xf32>
    %12 = vector.broadcast %4 : vector<32x1xf32> to vector<32x32xf32>
    %13 = arith.subf %0, %12 : vector<32x32xf32>
    %cst_4 = arith.constant 9.99999997E-7 : f32
    %14 = vector.broadcast %cst_4 : f32 to vector<32x1xf32>
    %15 = arith.addf %11, %14 : vector<32x1xf32>
    %16 = math.rsqrt %15 : vector<32x1xf32>
    %17 = vector.broadcast %16 : vector<32x1xf32> to vector<32x32xf32>
    %18 = arith.mulf %13, %17 : vector<32x32xf32>
    %c0_5 = arith.constant 0 : index
    %c0_6 = arith.constant 0 : index
    %19 = vector.load %arg6[%c0_5, %c0_6] : memref<1x32xf32, #tpu.memory_space<vmem>>, vector<1x32xf32>
    %20 = vector.broadcast %19 : vector<1x32xf32> to vector<32x32xf32>
    %21 = arith.mulf %18, %20 : vector<32x32xf32>
    %c0_7 = arith.constant 0 : index
    %c0_8 = arith.constant 0 : index
    %22 = vector.load %arg7[%c0_7, %c0_8] : memref<1x32xf32, #tpu.memory_space<vmem>>, vector<1x32xf32>
    %23 = vector.broadcast %22 : vector<1x32xf32> to vector<32x32xf32>
    %24 = arith.addf %21, %23 : vector<32x32xf32>
    %25 = arith.truncf %24 : vector<32x32xf32> to vector<32x32xbf16>
    %c0_9 = arith.constant 0 : index
    %c0_10 = arith.constant 0 : index
    %26 = vector.load %arg4[%c0_9, %c0_10] : memref<32x96xbf16, #tpu.memory_space<vmem>>, vector<32x96xbf16>
    %cst_11 = arith.constant dense<0.000000e+00> : vector<32x96xf32>
    %27 = tpu.matmul %25, %26, %cst_11 {dimension_numbers = #tpu.dot_dimension_numbers<[1], [0], [0], [1], [0, 0, 1, 1], [], []>} : vector<32x32xbf16>, vector<32x96xbf16>, vector<32x96xf32> -> vector<32x96xf32>
    %c0_12 = arith.constant 0 : index
    %c0_13 = arith.constant 0 : index
    %28 = vector.load %arg5[%c0_12, %c0_13] : memref<1x96xf32, #tpu.memory_space<vmem>>, vector<1x96xf32>
    %29 = vector.broadcast %28 : vector<1x96xf32> to vector<32x96xf32>
    %30 = arith.addf %27, %29 : vector<32x96xf32>
    %31 = arith.truncf %30 : vector<32x96xf32> to vector<32x96xbf16>
    %c0_14 = arith.constant 0 : index
    %c0_15 = arith.constant 0 : index
    %32 = vector.load %arg8[%c0_14, %c0_15] : memref<32x96xbf16, #tpu.memory_space<vmem>>, vector<32x96xbf16>
    tpu.vector_store %arg8[%c0_14, %c0_15], %31 {strides = array<i32>} : memref<32x96xbf16, #tpu.memory_space<vmem>>, vector<32x96xbf16>,
    return
  }
  func.func @transform_0(%arg0: i32, %arg1: i32, %arg2: i32) -> (i32, i32) {
    %c0_i32 = arith.constant 0 : i32
    return %arg0, %arg2 : i32, i32
  }
  func.func @transform_1(%arg0: i32, %arg1: i32, %arg2: i32) -> (i32, i32) {
    %c0_i32 = arith.constant 0 : i32
    return %arg2, %arg1 : i32, i32
  }
  func.func @transform_2(%arg0: i32, %arg1: i32, %arg2: i32) -> (i32, i32) {
    %c0_i32 = arith.constant 0 : i32
    %c0_i32_0 = arith.constant 0 : i32
    return %c0_i32, %arg1 : i32, i32
  }
  func.func @transform_3(%arg0: i32, %arg1: i32, %arg2: i32) -> (i32, i32) {
    %c0_i32 = arith.constant 0 : i32
    %c0_i32_0 = arith.constant 0 : i32
    return %c0_i32, %arg2 : i32, i32
  }
  func.func @transform_4(%arg0: i32, %arg1: i32, %arg2: i32) -> (i32, i32) {
    %c0_i32 = arith.constant 0 : i32
    %c0_i32_0 = arith.constant 0 : i32
    return %c0_i32, %arg2 : i32, i32
  }
  func.func @transform_5(%arg0: i32, %arg1: i32, %arg2: i32) -> (i32, i32) {
    %c0_i32 = arith.constant 0 : i32
    return %arg0, %arg1 : i32, i32
  }
}

module attributes {stable_mosaic.version = 11 : i64} {
  func.func @_attn_core_kernel(%arg0: i32, %arg1: memref<4x4x96xbf16, #tpu.memory_space<vmem>>, %arg2: memref<4x4x32xbf16, #tpu.memory_space<vmem>>) attributes {dimension_semantics = [#tpu.dimension_semantics<parallel>], iteration_bounds = array<i64: 2>, scalar_prefetch = 0 : i64, scratch_operands = 0 : i64, tpu.core_type = #tpu.core_type<tc>, window_params = [{transform_indices = @transform_0, window_bounds = array<i64: 4, 4, 96>}, {transform_indices = @transform_1, window_bounds = array<i64: 4, 4, 32>}]} {
    %c0 = arith.constant 0 : index
    %c0_0 = arith.constant 0 : index
    %c0_1 = arith.constant 0 : index
    %0 = vector.load %arg1[%c0, %c0_0, %c0_1] : memref<4x4x96xbf16, #tpu.memory_space<vmem>>, vector<4x4x96xbf16>
    %1 = vector.extract_strided_slice %0 {offsets = [0, 0, 0], sizes = [4, 4, 8], strides = [1, 1, 1]} : vector<4x4x96xbf16> to vector<4x4x8xbf16>
    %2 = vector.extract_strided_slice %0 {offsets = [0, 0, 32], sizes = [4, 4, 8], strides = [1, 1, 1]} : vector<4x4x96xbf16> to vector<4x4x8xbf16>
    %3 = vector.extract_strided_slice %0 {offsets = [0, 0, 64], sizes = [4, 4, 8], strides = [1, 1, 1]} : vector<4x4x96xbf16> to vector<4x4x8xbf16>
    "tpu.trace_start"() <{level = 10 : i32, message = "gnd,gmd->gnm"}> : () -> ()
    %cst = arith.constant dense<0.000000e+00> : vector<4x4x4xf32>
    %4 = tpu.matmul %1, %2, %cst {dimension_numbers = #tpu.dot_dimension_numbers<[2], [2], [1], [1], [0, 0, 0, 1, 1, 1], [0], [0]>} : vector<4x4x8xbf16>, vector<4x4x8xbf16>, vector<4x4x4xf32> -> vector<4x4x4xf32>
    "tpu.trace_stop"() : () -> ()
    %cst_2 = arith.constant 0.353553385 : f32
    %5 = vector.broadcast %cst_2 : f32 to vector<4x4x4xf32>
    %6 = arith.mulf %4, %5 : vector<4x4x4xf32>
    %cst_3 = arith.constant dense<0xFF800000> : vector<4x4xf32>
    %7 = vector.multi_reduction <maximumf>, %6, %cst_3 [2] : vector<4x4x4xf32> to vector<4x4xf32>
    %8 = vector.shape_cast %7 : vector<4x4xf32> to vector<4x4x1xf32>
    %9 = vector.broadcast %8 : vector<4x4x1xf32> to vector<4x4x4xf32>
    %10 = arith.subf %6, %9 : vector<4x4x4xf32>
    %11 = math.exp %10 : vector<4x4x4xf32>
    %cst_4 = arith.constant dense<0.000000e+00> : vector<4x4xf32>
    %12 = vector.multi_reduction <add>, %11, %cst_4 [2] : vector<4x4x4xf32> to vector<4x4xf32>
    %13 = vector.shape_cast %12 : vector<4x4xf32> to vector<4x4x1xf32>
    %14 = arith.truncf %11 : vector<4x4x4xf32> to vector<4x4x4xbf16>
    "tpu.trace_start"() <{level = 10 : i32, message = "gnm,gmd->gnd"}> : () -> ()
    %cst_5 = arith.constant dense<0.000000e+00> : vector<4x4x8xf32>
    %15 = tpu.matmul %14, %3, %cst_5 {dimension_numbers = #tpu.dot_dimension_numbers<[2], [1], [1], [2], [0, 0, 0, 1, 1, 2], [0], [0]>} : vector<4x4x4xbf16>, vector<4x4x8xbf16>, vector<4x4x8xf32> -> vector<4x4x8xf32>
    "tpu.trace_stop"() : () -> ()
    %16 = tpu.reciprocal %13 {approx = true} : vector<4x4x1xf32> -> vector<4x4x1xf32>
    %17 = vector.broadcast %16 : vector<4x4x1xf32> to vector<4x4x8xf32>
    %18 = arith.mulf %15, %17 : vector<4x4x8xf32>
    %19 = vector.extract_strided_slice %0 {offsets = [0, 0, 8], sizes = [4, 4, 8], strides = [1, 1, 1]} : vector<4x4x96xbf16> to vector<4x4x8xbf16>
    %20 = vector.extract_strided_slice %0 {offsets = [0, 0, 40], sizes = [4, 4, 8], strides = [1, 1, 1]} : vector<4x4x96xbf16> to vector<4x4x8xbf16>
    %21 = vector.extract_strided_slice %0 {offsets = [0, 0, 72], sizes = [4, 4, 8], strides = [1, 1, 1]} : vector<4x4x96xbf16> to vector<4x4x8xbf16>
    "tpu.trace_start"() <{level = 10 : i32, message = "gnd,gmd->gnm"}> : () -> ()
    %cst_6 = arith.constant dense<0.000000e+00> : vector<4x4x4xf32>
    %22 = tpu.matmul %19, %20, %cst_6 {dimension_numbers = #tpu.dot_dimension_numbers<[2], [2], [1], [1], [0, 0, 0, 1, 1, 1], [0], [0]>} : vector<4x4x8xbf16>, vector<4x4x8xbf16>, vector<4x4x4xf32> -> vector<4x4x4xf32>
    "tpu.trace_stop"() : () -> ()
    %cst_7 = arith.constant 0.353553385 : f32
    %23 = vector.broadcast %cst_7 : f32 to vector<4x4x4xf32>
    %24 = arith.mulf %22, %23 : vector<4x4x4xf32>
    %cst_8 = arith.constant dense<0xFF800000> : vector<4x4xf32>
    %25 = vector.multi_reduction <maximumf>, %24, %cst_8 [2] : vector<4x4x4xf32> to vector<4x4xf32>
    %26 = vector.shape_cast %25 : vector<4x4xf32> to vector<4x4x1xf32>
    %27 = vector.broadcast %26 : vector<4x4x1xf32> to vector<4x4x4xf32>
    %28 = arith.subf %24, %27 : vector<4x4x4xf32>
    %29 = math.exp %28 : vector<4x4x4xf32>
    %cst_9 = arith.constant dense<0.000000e+00> : vector<4x4xf32>
    %30 = vector.multi_reduction <add>, %29, %cst_9 [2] : vector<4x4x4xf32> to vector<4x4xf32>
    %31 = vector.shape_cast %30 : vector<4x4xf32> to vector<4x4x1xf32>
    %32 = arith.truncf %29 : vector<4x4x4xf32> to vector<4x4x4xbf16>
    "tpu.trace_start"() <{level = 10 : i32, message = "gnm,gmd->gnd"}> : () -> ()
    %cst_10 = arith.constant dense<0.000000e+00> : vector<4x4x8xf32>
    %33 = tpu.matmul %32, %21, %cst_10 {dimension_numbers = #tpu.dot_dimension_numbers<[2], [1], [1], [2], [0, 0, 0, 1, 1, 2], [0], [0]>} : vector<4x4x4xbf16>, vector<4x4x8xbf16>, vector<4x4x8xf32> -> vector<4x4x8xf32>
    "tpu.trace_stop"() : () -> ()
    %34 = tpu.reciprocal %31 {approx = true} : vector<4x4x1xf32> -> vector<4x4x1xf32>
    %35 = vector.broadcast %34 : vector<4x4x1xf32> to vector<4x4x8xf32>
    %36 = arith.mulf %33, %35 : vector<4x4x8xf32>
    %37 = vector.extract_strided_slice %0 {offsets = [0, 0, 16], sizes = [4, 4, 8], strides = [1, 1, 1]} : vector<4x4x96xbf16> to vector<4x4x8xbf16>
    %38 = vector.extract_strided_slice %0 {offsets = [0, 0, 48], sizes = [4, 4, 8], strides = [1, 1, 1]} : vector<4x4x96xbf16> to vector<4x4x8xbf16>
    %39 = vector.extract_strided_slice %0 {offsets = [0, 0, 80], sizes = [4, 4, 8], strides = [1, 1, 1]} : vector<4x4x96xbf16> to vector<4x4x8xbf16>
    "tpu.trace_start"() <{level = 10 : i32, message = "gnd,gmd->gnm"}> : () -> ()
    %cst_11 = arith.constant dense<0.000000e+00> : vector<4x4x4xf32>
    %40 = tpu.matmul %37, %38, %cst_11 {dimension_numbers = #tpu.dot_dimension_numbers<[2], [2], [1], [1], [0, 0, 0, 1, 1, 1], [0], [0]>} : vector<4x4x8xbf16>, vector<4x4x8xbf16>, vector<4x4x4xf32> -> vector<4x4x4xf32>
    "tpu.trace_stop"() : () -> ()
    %cst_12 = arith.constant 0.353553385 : f32
    %41 = vector.broadcast %cst_12 : f32 to vector<4x4x4xf32>
    %42 = arith.mulf %40, %41 : vector<4x4x4xf32>
    %cst_13 = arith.constant dense<0xFF800000> : vector<4x4xf32>
    %43 = vector.multi_reduction <maximumf>, %42, %cst_13 [2] : vector<4x4x4xf32> to vector<4x4xf32>
    %44 = vector.shape_cast %43 : vector<4x4xf32> to vector<4x4x1xf32>
    %45 = vector.broadcast %44 : vector<4x4x1xf32> to vector<4x4x4xf32>
    %46 = arith.subf %42, %45 : vector<4x4x4xf32>
    %47 = math.exp %46 : vector<4x4x4xf32>
    %cst_14 = arith.constant dense<0.000000e+00> : vector<4x4xf32>
    %48 = vector.multi_reduction <add>, %47, %cst_14 [2] : vector<4x4x4xf32> to vector<4x4xf32>
    %49 = vector.shape_cast %48 : vector<4x4xf32> to vector<4x4x1xf32>
    %50 = arith.truncf %47 : vector<4x4x4xf32> to vector<4x4x4xbf16>
    "tpu.trace_start"() <{level = 10 : i32, message = "gnm,gmd->gnd"}> : () -> ()
    %cst_15 = arith.constant dense<0.000000e+00> : vector<4x4x8xf32>
    %51 = tpu.matmul %50, %39, %cst_15 {dimension_numbers = #tpu.dot_dimension_numbers<[2], [1], [1], [2], [0, 0, 0, 1, 1, 2], [0], [0]>} : vector<4x4x4xbf16>, vector<4x4x8xbf16>, vector<4x4x8xf32> -> vector<4x4x8xf32>
    "tpu.trace_stop"() : () -> ()
    %52 = tpu.reciprocal %49 {approx = true} : vector<4x4x1xf32> -> vector<4x4x1xf32>
    %53 = vector.broadcast %52 : vector<4x4x1xf32> to vector<4x4x8xf32>
    %54 = arith.mulf %51, %53 : vector<4x4x8xf32>
    %55 = vector.extract_strided_slice %0 {offsets = [0, 0, 24], sizes = [4, 4, 8], strides = [1, 1, 1]} : vector<4x4x96xbf16> to vector<4x4x8xbf16>
    %56 = vector.extract_strided_slice %0 {offsets = [0, 0, 56], sizes = [4, 4, 8], strides = [1, 1, 1]} : vector<4x4x96xbf16> to vector<4x4x8xbf16>
    %57 = vector.extract_strided_slice %0 {offsets = [0, 0, 88], sizes = [4, 4, 8], strides = [1, 1, 1]} : vector<4x4x96xbf16> to vector<4x4x8xbf16>
    "tpu.trace_start"() <{level = 10 : i32, message = "gnd,gmd->gnm"}> : () -> ()
    %cst_16 = arith.constant dense<0.000000e+00> : vector<4x4x4xf32>
    %58 = tpu.matmul %55, %56, %cst_16 {dimension_numbers = #tpu.dot_dimension_numbers<[2], [2], [1], [1], [0, 0, 0, 1, 1, 1], [0], [0]>} : vector<4x4x8xbf16>, vector<4x4x8xbf16>, vector<4x4x4xf32> -> vector<4x4x4xf32>
    "tpu.trace_stop"() : () -> ()
    %cst_17 = arith.constant 0.353553385 : f32
    %59 = vector.broadcast %cst_17 : f32 to vector<4x4x4xf32>
    %60 = arith.mulf %58, %59 : vector<4x4x4xf32>
    %cst_18 = arith.constant dense<0xFF800000> : vector<4x4xf32>
    %61 = vector.multi_reduction <maximumf>, %60, %cst_18 [2] : vector<4x4x4xf32> to vector<4x4xf32>
    %62 = vector.shape_cast %61 : vector<4x4xf32> to vector<4x4x1xf32>
    %63 = vector.broadcast %62 : vector<4x4x1xf32> to vector<4x4x4xf32>
    %64 = arith.subf %60, %63 : vector<4x4x4xf32>
    %65 = math.exp %64 : vector<4x4x4xf32>
    %cst_19 = arith.constant dense<0.000000e+00> : vector<4x4xf32>
    %66 = vector.multi_reduction <add>, %65, %cst_19 [2] : vector<4x4x4xf32> to vector<4x4xf32>
    %67 = vector.shape_cast %66 : vector<4x4xf32> to vector<4x4x1xf32>
    %68 = arith.truncf %65 : vector<4x4x4xf32> to vector<4x4x4xbf16>
    "tpu.trace_start"() <{level = 10 : i32, message = "gnm,gmd->gnd"}> : () -> ()
    %cst_20 = arith.constant dense<0.000000e+00> : vector<4x4x8xf32>
    %69 = tpu.matmul %68, %57, %cst_20 {dimension_numbers = #tpu.dot_dimension_numbers<[2], [1], [1], [2], [0, 0, 0, 1, 1, 2], [0], [0]>} : vector<4x4x4xbf16>, vector<4x4x8xbf16>, vector<4x4x8xf32> -> vector<4x4x8xf32>
    "tpu.trace_stop"() : () -> ()
    %70 = tpu.reciprocal %67 {approx = true} : vector<4x4x1xf32> -> vector<4x4x1xf32>
    %71 = vector.broadcast %70 : vector<4x4x1xf32> to vector<4x4x8xf32>
    %72 = arith.mulf %69, %71 : vector<4x4x8xf32>
    %73 = tpu.concatenate %18, %36, %54, %72 in 2 : vector<4x4x8xf32>, vector<4x4x8xf32>, vector<4x4x8xf32>, vector<4x4x8xf32> -> vector<4x4x32xf32>
    %74 = arith.truncf %73 : vector<4x4x32xf32> to vector<4x4x32xbf16>
    %c0_21 = arith.constant 0 : index
    %c0_22 = arith.constant 0 : index
    %c0_23 = arith.constant 0 : index
    %75 = vector.load %arg2[%c0_21, %c0_22, %c0_23] : memref<4x4x32xbf16, #tpu.memory_space<vmem>>, vector<4x4x32xbf16>
    tpu.vector_store %arg2[%c0_21, %c0_22, %c0_23], %74 {strides = array<i32>} : memref<4x4x32xbf16, #tpu.memory_space<vmem>>, vector<4x4x32xbf16>,
    return
  }
  func.func @transform_0(%arg0: i32) -> (i32, i32, i32) {
    %c0_i32 = arith.constant 0 : i32
    %c0_i32_0 = arith.constant 0 : i32
    %c0_i32_1 = arith.constant 0 : i32
    return %arg0, %c0_i32, %c0_i32_0 : i32, i32, i32
  }
  func.func @transform_1(%arg0: i32) -> (i32, i32, i32) {
    %c0_i32 = arith.constant 0 : i32
    %c0_i32_0 = arith.constant 0 : i32
    %c0_i32_1 = arith.constant 0 : i32
    return %arg0, %c0_i32, %c0_i32_0 : i32, i32, i32
  }
}

module attributes {stable_mosaic.version = 11 : i64} {
  func.func @_fused_linear_kernel(%arg0: i32, %arg1: i32, %arg2: i32, %arg3: memref<32x32xbf16, #tpu.memory_space<vmem>>, %arg4: memref<32x32xbf16, #tpu.memory_space<vmem>>, %arg5: memref<1x32xf32, #tpu.memory_space<vmem>>, %arg6: memref<32x32xbf16, #tpu.memory_space<vmem>>) attributes {dimension_semantics = [#tpu.dimension_semantics<parallel>, #tpu.dimension_semantics<parallel>, #tpu.dimension_semantics<arbitrary>], iteration_bounds = array<i64: 1, 1, 1>, scalar_prefetch = 0 : i64, scratch_operands = 0 : i64, tpu.core_type = #tpu.core_type<tc>, window_params = [{transform_indices = @transform_0, window_bounds = array<i64: 32, 32>}, {transform_indices = @transform_1, window_bounds = array<i64: 32, 32>}, {transform_indices = @transform_2, window_bounds = array<i64: 1, 32>}, {transform_indices = @transform_3, window_bounds = array<i64: 32, 32>}]} {
    %c0 = arith.constant 0 : index
    %c0_0 = arith.constant 0 : index
    %0 = vector.load %arg3[%c0, %c0_0] : memref<32x32xbf16, #tpu.memory_space<vmem>>, vector<32x32xbf16>
    %c0_1 = arith.constant 0 : index
    %c0_2 = arith.constant 0 : index
    %1 = vector.load %arg4[%c0_1, %c0_2] : memref<32x32xbf16, #tpu.memory_space<vmem>>, vector<32x32xbf16>
    %cst = arith.constant dense<0.000000e+00> : vector<32x32xf32>
    %2 = tpu.matmul %0, %1, %cst {dimension_numbers = #tpu.dot_dimension_numbers<[1], [0], [0], [1], [0, 0, 1, 1], [], []>} : vector<32x32xbf16>, vector<32x32xbf16>, vector<32x32xf32> -> vector<32x32xf32>
    %c0_3 = arith.constant 0 : index
    %c0_4 = arith.constant 0 : index
    %3 = vector.load %arg5[%c0_3, %c0_4] : memref<1x32xf32, #tpu.memory_space<vmem>>, vector<1x32xf32>
    %4 = vector.broadcast %3 : vector<1x32xf32> to vector<32x32xf32>
    %5 = arith.addf %2, %4 : vector<32x32xf32>
    %6 = arith.truncf %5 : vector<32x32xf32> to vector<32x32xbf16>
    %c0_5 = arith.constant 0 : index
    %c0_6 = arith.constant 0 : index
    %7 = vector.load %arg6[%c0_5, %c0_6] : memref<32x32xbf16, #tpu.memory_space<vmem>>, vector<32x32xbf16>
    tpu.vector_store %arg6[%c0_5, %c0_6], %6 {strides = array<i32>} : memref<32x32xbf16, #tpu.memory_space<vmem>>, vector<32x32xbf16>,
    return
  }
  func.func @transform_0(%arg0: i32, %arg1: i32, %arg2: i32) -> (i32, i32) {
    %c0_i32 = arith.constant 0 : i32
    return %arg0, %arg2 : i32, i32
  }
  func.func @transform_1(%arg0: i32, %arg1: i32, %arg2: i32) -> (i32, i32) {
    %c0_i32 = arith.constant 0 : i32
    return %arg2, %arg1 : i32, i32
  }
  func.func @transform_2(%arg0: i32, %arg1: i32, %arg2: i32) -> (i32, i32) {
    %c0_i32 = arith.constant 0 : i32
    %c0_i32_0 = arith.constant 0 : i32
    return %c0_i32, %arg1 : i32, i32
  }
  func.func @transform_3(%arg0: i32, %arg1: i32, %arg2: i32) -> (i32, i32) {
    %c0_i32 = arith.constant 0 : i32
    return %arg0, %arg1 : i32, i32
  }
}

module attributes {stable_mosaic.version = 11 : i64} {
  func.func @_fused_linear_kernel(%arg0: i32, %arg1: i32, %arg2: i32, %arg3: memref<32x32xbf16, #tpu.memory_space<vmem>>, %arg4: memref<32x32xbf16, #tpu.memory_space<vmem>>, %arg5: memref<1x32xf32, #tpu.memory_space<vmem>>, %arg6: memref<32x32xf32, #tpu.memory_space<vmem>>, %arg7: memref<32x32xf32, #tpu.memory_space<vmem>>) attributes {dimension_semantics = [#tpu.dimension_semantics<parallel>, #tpu.dimension_semantics<parallel>, #tpu.dimension_semantics<arbitrary>], iteration_bounds = array<i64: 1, 1, 1>, scalar_prefetch = 0 : i64, scratch_operands = 0 : i64, tpu.core_type = #tpu.core_type<tc>, window_params = [{transform_indices = @transform_0, window_bounds = array<i64: 32, 32>}, {transform_indices = @transform_1, window_bounds = array<i64: 32, 32>}, {transform_indices = @transform_2, window_bounds = array<i64: 1, 32>}, {transform_indices = @transform_3, window_bounds = array<i64: 32, 32>}, {transform_indices = @transform_4, window_bounds = array<i64: 32, 32>}]} {
    %c0 = arith.constant 0 : index
    %c0_0 = arith.constant 0 : index
    %0 = vector.load %arg3[%c0, %c0_0] : memref<32x32xbf16, #tpu.memory_space<vmem>>, vector<32x32xbf16>
    %c0_1 = arith.constant 0 : index
    %c0_2 = arith.constant 0 : index
    %1 = vector.load %arg4[%c0_1, %c0_2] : memref<32x32xbf16, #tpu.memory_space<vmem>>, vector<32x32xbf16>
    %cst = arith.constant dense<0.000000e+00> : vector<32x32xf32>
    %2 = tpu.matmul %0, %1, %cst {dimension_numbers = #tpu.dot_dimension_numbers<[1], [0], [0], [1], [0, 0, 1, 1], [], []>} : vector<32x32xbf16>, vector<32x32xbf16>, vector<32x32xf32> -> vector<32x32xf32>
    %c0_3 = arith.constant 0 : index
    %c0_4 = arith.constant 0 : index
    %3 = vector.load %arg5[%c0_3, %c0_4] : memref<1x32xf32, #tpu.memory_space<vmem>>, vector<1x32xf32>
    %4 = vector.broadcast %3 : vector<1x32xf32> to vector<32x32xf32>
    %5 = arith.addf %2, %4 : vector<32x32xf32>
    %c0_5 = arith.constant 0 : index
    %c0_6 = arith.constant 0 : index
    %6 = vector.load %arg6[%c0_5, %c0_6] : memref<32x32xf32, #tpu.memory_space<vmem>>, vector<32x32xf32>
    %7 = arith.addf %5, %6 : vector<32x32xf32>
    %c0_7 = arith.constant 0 : index
    %c0_8 = arith.constant 0 : index
    %8 = vector.load %arg7[%c0_7, %c0_8] : memref<32x32xf32, #tpu.memory_space<vmem>>, vector<32x32xf32>
    tpu.vector_store %arg7[%c0_7, %c0_8], %7 {strides = array<i32>} : memref<32x32xf32, #tpu.memory_space<vmem>>, vector<32x32xf32>,
    return
  }
  func.func @transform_0(%arg0: i32, %arg1: i32, %arg2: i32) -> (i32, i32) {
    %c0_i32 = arith.constant 0 : i32
    return %arg0, %arg2 : i32, i32
  }
  func.func @transform_1(%arg0: i32, %arg1: i32, %arg2: i32) -> (i32, i32) {
    %c0_i32 = arith.constant 0 : i32
    return %arg2, %arg1 : i32, i32
  }
  func.func @transform_2(%arg0: i32, %arg1: i32, %arg2: i32) -> (i32, i32) {
    %c0_i32 = arith.constant 0 : i32
    %c0_i32_0 = arith.constant 0 : i32
    return %c0_i32, %arg1 : i32, i32
  }
  func.func @transform_3(%arg0: i32, %arg1: i32, %arg2: i32) -> (i32, i32) {
    %c0_i32 = arith.constant 0 : i32
    return %arg0, %arg1 : i32, i32
  }
  func.func @transform_4(%arg0: i32, %arg1: i32, %arg2: i32) -> (i32, i32) {
    %c0_i32 = arith.constant 0 : i32
    return %arg0, %arg1 : i32, i32
  }
}

module attributes {stable_mosaic.version = 11 : i64} {
  func.func @_fused_linear_kernel(%arg0: i32, %arg1: i32, %arg2: i32, %arg3: memref<40x32xf32, #tpu.memory_space<vmem>>, %arg4: memref<32x96xbf16, #tpu.memory_space<vmem>>, %arg5: memref<1x96xf32, #tpu.memory_space<vmem>>, %arg6: memref<1x32xf32, #tpu.memory_space<vmem>>, %arg7: memref<1x32xf32, #tpu.memory_space<vmem>>, %arg8: memref<40x96xbf16, #tpu.memory_space<vmem>>) attributes {dimension_semantics = [#tpu.dimension_semantics<parallel>, #tpu.dimension_semantics<parallel>, #tpu.dimension_semantics<arbitrary>], iteration_bounds = array<i64: 1, 1, 1>, scalar_prefetch = 0 : i64, scratch_operands = 0 : i64, tpu.core_type = #tpu.core_type<tc>, window_params = [{transform_indices = @transform_0, window_bounds = array<i64: 40, 32>}, {transform_indices = @transform_1, window_bounds = array<i64: 32, 96>}, {transform_indices = @transform_2, window_bounds = array<i64: 1, 96>}, {transform_indices = @transform_3, window_bounds = array<i64: 1, 32>}, {transform_indices = @transform_4, window_bounds = array<i64: 1, 32>}, {transform_indices = @transform_5, window_bounds = array<i64: 40, 96>}]} {
    %c0 = arith.constant 0 : index
    %c0_0 = arith.constant 0 : index
    %0 = vector.load %arg3[%c0, %c0_0] : memref<40x32xf32, #tpu.memory_space<vmem>>, vector<40x32xf32>
    %cst = arith.constant dense<0.000000e+00> : vector<40xf32>
    %1 = vector.multi_reduction <add>, %0, %cst [1] : vector<40x32xf32> to vector<40xf32>
    %2 = vector.shape_cast %1 : vector<40xf32> to vector<40x1xf32>
    %cst_1 = arith.constant 3.200000e+01 : f32
    %3 = vector.broadcast %cst_1 : f32 to vector<40x1xf32>
    %4 = arith.divf %2, %3 : vector<40x1xf32>
    %5 = vector.broadcast %4 : vector<40x1xf32> to vector<40x32xf32>
    %6 = arith.subf %0, %5 : vector<40x32xf32>
    %7 = arith.mulf %6, %6 : vector<40x32xf32>
    %cst_2 = arith.constant dense<0.000000e+00> : vector<40xf32>
    %8 = vector.multi_reduction <add>, %7, %cst_2 [1] : vector<40x32xf32> to vector<40xf32>
    %9 = vector.shape_cast %8 : vector<40xf32> to vector<40x1xf32>
    %cst_3 = arith.constant 3.200000e+01 : f32
    %10 = vector.broadcast %cst_3 : f32 to vector<40x1xf32>
    %11 = arith.divf %9, %10 : vector<40x1xf32>
    %12 = vector.broadcast %4 : vector<40x1xf32> to vector<40x32xf32>
    %13 = arith.subf %0, %12 : vector<40x32xf32>
    %cst_4 = arith.constant 9.99999997E-7 : f32
    %14 = vector.broadcast %cst_4 : f32 to vector<40x1xf32>
    %15 = arith.addf %11, %14 : vector<40x1xf32>
    %16 = math.rsqrt %15 : vector<40x1xf32>
    %17 = vector.broadcast %16 : vector<40x1xf32> to vector<40x32xf32>
    %18 = arith.mulf %13, %17 : vector<40x32xf32>
    %c0_5 = arith.constant 0 : index
    %c0_6 = arith.constant 0 : index
    %19 = vector.load %arg6[%c0_5, %c0_6] : memref<1x32xf32, #tpu.memory_space<vmem>>, vector<1x32xf32>
    %20 = vector.broadcast %19 : vector<1x32xf32> to vector<40x32xf32>
    %21 = arith.mulf %18, %20 : vector<40x32xf32>
    %c0_7 = arith.constant 0 : index
    %c0_8 = arith.constant 0 : index
    %22 = vector.load %arg7[%c0_7, %c0_8] : memref<1x32xf32, #tpu.memory_space<vmem>>, vector<1x32xf32>
    %23 = vector.broadcast %22 : vector<1x32xf32> to vector<40x32xf32>
    %24 = arith.addf %21, %23 : vector<40x32xf32>
    %25 = arith.truncf %24 : vector<40x32xf32> to vector<40x32xbf16>
    %c0_9 = arith.constant 0 : index
    %c0_10 = arith.constant 0 : index
    %26 = vector.load %arg4[%c0_9, %c0_10] : memref<32x96xbf16, #tpu.memory_space<vmem>>, vector<32x96xbf16>
    %cst_11 = arith.constant dense<0.000000e+00> : vector<40x96xf32>
    %27 = tpu.matmul %25, %26, %cst_11 {dimension_numbers = #tpu.dot_dimension_numbers<[1], [0], [0], [1], [0, 0, 1, 1], [], []>} : vector<40x32xbf16>, vector<32x96xbf16>, vector<40x96xf32> -> vector<40x96xf32>
    %c0_12 = arith.constant 0 : index
    %c0_13 = arith.constant 0 : index
    %28 = vector.load %arg5[%c0_12, %c0_13] : memref<1x96xf32, #tpu.memory_space<vmem>>, vector<1x96xf32>
    %29 = vector.broadcast %28 : vector<1x96xf32> to vector<40x96xf32>
    %30 = arith.addf %27, %29 : vector<40x96xf32>
    %31 = arith.truncf %30 : vector<40x96xf32> to vector<40x96xbf16>
    %c0_14 = arith.constant 0 : index
    %c0_15 = arith.constant 0 : index
    %32 = vector.load %arg8[%c0_14, %c0_15] : memref<40x96xbf16, #tpu.memory_space<vmem>>, vector<40x96xbf16>
    tpu.vector_store %arg8[%c0_14, %c0_15], %31 {strides = array<i32>} : memref<40x96xbf16, #tpu.memory_space<vmem>>, vector<40x96xbf16>,
    return
  }
  func.func @transform_0(%arg0: i32, %arg1: i32, %arg2: i32) -> (i32, i32) {
    %c0_i32 = arith.constant 0 : i32
    return %arg0, %arg2 : i32, i32
  }
  func.func @transform_1(%arg0: i32, %arg1: i32, %arg2: i32) -> (i32, i32) {
    %c0_i32 = arith.constant 0 : i32
    return %arg2, %arg1 : i32, i32
  }
  func.func @transform_2(%arg0: i32, %arg1: i32, %arg2: i32) -> (i32, i32) {
    %c0_i32 = arith.constant 0 : i32
    %c0_i32_0 = arith.constant 0 : i32
    return %c0_i32, %arg1 : i32, i32
  }
  func.func @transform_3(%arg0: i32, %arg1: i32, %arg2: i32) -> (i32, i32) {
    %c0_i32 = arith.constant 0 : i32
    %c0_i32_0 = arith.constant 0 : i32
    return %c0_i32, %arg2 : i32, i32
  }
  func.func @transform_4(%arg0: i32, %arg1: i32, %arg2: i32) -> (i32, i32) {
    %c0_i32 = arith.constant 0 : i32
    %c0_i32_0 = arith.constant 0 : i32
    return %c0_i32, %arg2 : i32, i32
  }
  func.func @transform_5(%arg0: i32, %arg1: i32, %arg2: i32) -> (i32, i32) {
    %c0_i32 = arith.constant 0 : i32
    return %arg0, %arg1 : i32, i32
  }
}

module attributes {stable_mosaic.version = 11 : i64} {
  func.func @_attn_core_kernel(%arg0: i32, %arg1: memref<4x5x96xbf16, #tpu.memory_space<vmem>>, %arg2: memref<4x5x32xbf16, #tpu.memory_space<vmem>>) attributes {dimension_semantics = [#tpu.dimension_semantics<parallel>], iteration_bounds = array<i64: 2>, scalar_prefetch = 0 : i64, scratch_operands = 0 : i64, tpu.core_type = #tpu.core_type<tc>, window_params = [{transform_indices = @transform_0, window_bounds = array<i64: 4, 5, 96>}, {transform_indices = @transform_1, window_bounds = array<i64: 4, 5, 32>}]} {
    %c0 = arith.constant 0 : index
    %c0_0 = arith.constant 0 : index
    %c0_1 = arith.constant 0 : index
    %0 = vector.load %arg1[%c0, %c0_0, %c0_1] : memref<4x5x96xbf16, #tpu.memory_space<vmem>>, vector<4x5x96xbf16>
    %1 = vector.extract_strided_slice %0 {offsets = [0, 0, 0], sizes = [4, 5, 8], strides = [1, 1, 1]} : vector<4x5x96xbf16> to vector<4x5x8xbf16>
    %2 = vector.extract_strided_slice %0 {offsets = [0, 0, 32], sizes = [4, 5, 8], strides = [1, 1, 1]} : vector<4x5x96xbf16> to vector<4x5x8xbf16>
    %3 = vector.extract_strided_slice %0 {offsets = [0, 0, 64], sizes = [4, 5, 8], strides = [1, 1, 1]} : vector<4x5x96xbf16> to vector<4x5x8xbf16>
    "tpu.trace_start"() <{level = 10 : i32, message = "gnd,gmd->gnm"}> : () -> ()
    %cst = arith.constant dense<0.000000e+00> : vector<4x5x5xf32>
    %4 = tpu.matmul %1, %2, %cst {dimension_numbers = #tpu.dot_dimension_numbers<[2], [2], [1], [1], [0, 0, 0, 1, 1, 1], [0], [0]>} : vector<4x5x8xbf16>, vector<4x5x8xbf16>, vector<4x5x5xf32> -> vector<4x5x5xf32>
    "tpu.trace_stop"() : () -> ()
    %cst_2 = arith.constant 0.353553385 : f32
    %5 = vector.broadcast %cst_2 : f32 to vector<4x5x5xf32>
    %6 = arith.mulf %4, %5 : vector<4x5x5xf32>
    %cst_3 = arith.constant dense<0xFF800000> : vector<4x5xf32>
    %7 = vector.multi_reduction <maximumf>, %6, %cst_3 [2] : vector<4x5x5xf32> to vector<4x5xf32>
    %8 = vector.shape_cast %7 : vector<4x5xf32> to vector<4x5x1xf32>
    %9 = vector.broadcast %8 : vector<4x5x1xf32> to vector<4x5x5xf32>
    %10 = arith.subf %6, %9 : vector<4x5x5xf32>
    %11 = math.exp %10 : vector<4x5x5xf32>
    %cst_4 = arith.constant dense<0.000000e+00> : vector<4x5xf32>
    %12 = vector.multi_reduction <add>, %11, %cst_4 [2] : vector<4x5x5xf32> to vector<4x5xf32>
    %13 = vector.shape_cast %12 : vector<4x5xf32> to vector<4x5x1xf32>
    %14 = arith.truncf %11 : vector<4x5x5xf32> to vector<4x5x5xbf16>
    "tpu.trace_start"() <{level = 10 : i32, message = "gnm,gmd->gnd"}> : () -> ()
    %cst_5 = arith.constant dense<0.000000e+00> : vector<4x5x8xf32>
    %15 = tpu.matmul %14, %3, %cst_5 {dimension_numbers = #tpu.dot_dimension_numbers<[2], [1], [1], [2], [0, 0, 0, 1, 1, 2], [0], [0]>} : vector<4x5x5xbf16>, vector<4x5x8xbf16>, vector<4x5x8xf32> -> vector<4x5x8xf32>
    "tpu.trace_stop"() : () -> ()
    %16 = tpu.reciprocal %13 {approx = true} : vector<4x5x1xf32> -> vector<4x5x1xf32>
    %17 = vector.broadcast %16 : vector<4x5x1xf32> to vector<4x5x8xf32>
    %18 = arith.mulf %15, %17 : vector<4x5x8xf32>
    %19 = vector.extract_strided_slice %0 {offsets = [0, 0, 8], sizes = [4, 5, 8], strides = [1, 1, 1]} : vector<4x5x96xbf16> to vector<4x5x8xbf16>
    %20 = vector.extract_strided_slice %0 {offsets = [0, 0, 40], sizes = [4, 5, 8], strides = [1, 1, 1]} : vector<4x5x96xbf16> to vector<4x5x8xbf16>
    %21 = vector.extract_strided_slice %0 {offsets = [0, 0, 72], sizes = [4, 5, 8], strides = [1, 1, 1]} : vector<4x5x96xbf16> to vector<4x5x8xbf16>
    "tpu.trace_start"() <{level = 10 : i32, message = "gnd,gmd->gnm"}> : () -> ()
    %cst_6 = arith.constant dense<0.000000e+00> : vector<4x5x5xf32>
    %22 = tpu.matmul %19, %20, %cst_6 {dimension_numbers = #tpu.dot_dimension_numbers<[2], [2], [1], [1], [0, 0, 0, 1, 1, 1], [0], [0]>} : vector<4x5x8xbf16>, vector<4x5x8xbf16>, vector<4x5x5xf32> -> vector<4x5x5xf32>
    "tpu.trace_stop"() : () -> ()
    %cst_7 = arith.constant 0.353553385 : f32
    %23 = vector.broadcast %cst_7 : f32 to vector<4x5x5xf32>
    %24 = arith.mulf %22, %23 : vector<4x5x5xf32>
    %cst_8 = arith.constant dense<0xFF800000> : vector<4x5xf32>
    %25 = vector.multi_reduction <maximumf>, %24, %cst_8 [2] : vector<4x5x5xf32> to vector<4x5xf32>
    %26 = vector.shape_cast %25 : vector<4x5xf32> to vector<4x5x1xf32>
    %27 = vector.broadcast %26 : vector<4x5x1xf32> to vector<4x5x5xf32>
    %28 = arith.subf %24, %27 : vector<4x5x5xf32>
    %29 = math.exp %28 : vector<4x5x5xf32>
    %cst_9 = arith.constant dense<0.000000e+00> : vector<4x5xf32>
    %30 = vector.multi_reduction <add>, %29, %cst_9 [2] : vector<4x5x5xf32> to vector<4x5xf32>
    %31 = vector.shape_cast %30 : vector<4x5xf32> to vector<4x5x1xf32>
    %32 = arith.truncf %29 : vector<4x5x5xf32> to vector<4x5x5xbf16>
    "tpu.trace_start"() <{level = 10 : i32, message = "gnm,gmd->gnd"}> : () -> ()
    %cst_10 = arith.constant dense<0.000000e+00> : vector<4x5x8xf32>
    %33 = tpu.matmul %32, %21, %cst_10 {dimension_numbers = #tpu.dot_dimension_numbers<[2], [1], [1], [2], [0, 0, 0, 1, 1, 2], [0], [0]>} : vector<4x5x5xbf16>, vector<4x5x8xbf16>, vector<4x5x8xf32> -> vector<4x5x8xf32>
    "tpu.trace_stop"() : () -> ()
    %34 = tpu.reciprocal %31 {approx = true} : vector<4x5x1xf32> -> vector<4x5x1xf32>
    %35 = vector.broadcast %34 : vector<4x5x1xf32> to vector<4x5x8xf32>
    %36 = arith.mulf %33, %35 : vector<4x5x8xf32>
    %37 = vector.extract_strided_slice %0 {offsets = [0, 0, 16], sizes = [4, 5, 8], strides = [1, 1, 1]} : vector<4x5x96xbf16> to vector<4x5x8xbf16>
    %38 = vector.extract_strided_slice %0 {offsets = [0, 0, 48], sizes = [4, 5, 8], strides = [1, 1, 1]} : vector<4x5x96xbf16> to vector<4x5x8xbf16>
    %39 = vector.extract_strided_slice %0 {offsets = [0, 0, 80], sizes = [4, 5, 8], strides = [1, 1, 1]} : vector<4x5x96xbf16> to vector<4x5x8xbf16>
    "tpu.trace_start"() <{level = 10 : i32, message = "gnd,gmd->gnm"}> : () -> ()
    %cst_11 = arith.constant dense<0.000000e+00> : vector<4x5x5xf32>
    %40 = tpu.matmul %37, %38, %cst_11 {dimension_numbers = #tpu.dot_dimension_numbers<[2], [2], [1], [1], [0, 0, 0, 1, 1, 1], [0], [0]>} : vector<4x5x8xbf16>, vector<4x5x8xbf16>, vector<4x5x5xf32> -> vector<4x5x5xf32>
    "tpu.trace_stop"() : () -> ()
    %cst_12 = arith.constant 0.353553385 : f32
    %41 = vector.broadcast %cst_12 : f32 to vector<4x5x5xf32>
    %42 = arith.mulf %40, %41 : vector<4x5x5xf32>
    %cst_13 = arith.constant dense<0xFF800000> : vector<4x5xf32>
    %43 = vector.multi_reduction <maximumf>, %42, %cst_13 [2] : vector<4x5x5xf32> to vector<4x5xf32>
    %44 = vector.shape_cast %43 : vector<4x5xf32> to vector<4x5x1xf32>
    %45 = vector.broadcast %44 : vector<4x5x1xf32> to vector<4x5x5xf32>
    %46 = arith.subf %42, %45 : vector<4x5x5xf32>
    %47 = math.exp %46 : vector<4x5x5xf32>
    %cst_14 = arith.constant dense<0.000000e+00> : vector<4x5xf32>
    %48 = vector.multi_reduction <add>, %47, %cst_14 [2] : vector<4x5x5xf32> to vector<4x5xf32>
    %49 = vector.shape_cast %48 : vector<4x5xf32> to vector<4x5x1xf32>
    %50 = arith.truncf %47 : vector<4x5x5xf32> to vector<4x5x5xbf16>
    "tpu.trace_start"() <{level = 10 : i32, message = "gnm,gmd->gnd"}> : () -> ()
    %cst_15 = arith.constant dense<0.000000e+00> : vector<4x5x8xf32>
    %51 = tpu.matmul %50, %39, %cst_15 {dimension_numbers = #tpu.dot_dimension_numbers<[2], [1], [1], [2], [0, 0, 0, 1, 1, 2], [0], [0]>} : vector<4x5x5xbf16>, vector<4x5x8xbf16>, vector<4x5x8xf32> -> vector<4x5x8xf32>
    "tpu.trace_stop"() : () -> ()
    %52 = tpu.reciprocal %49 {approx = true} : vector<4x5x1xf32> -> vector<4x5x1xf32>
    %53 = vector.broadcast %52 : vector<4x5x1xf32> to vector<4x5x8xf32>
    %54 = arith.mulf %51, %53 : vector<4x5x8xf32>
    %55 = vector.extract_strided_slice %0 {offsets = [0, 0, 24], sizes = [4, 5, 8], strides = [1, 1, 1]} : vector<4x5x96xbf16> to vector<4x5x8xbf16>
    %56 = vector.extract_strided_slice %0 {offsets = [0, 0, 56], sizes = [4, 5, 8], strides = [1, 1, 1]} : vector<4x5x96xbf16> to vector<4x5x8xbf16>
    %57 = vector.extract_strided_slice %0 {offsets = [0, 0, 88], sizes = [4, 5, 8], strides = [1, 1, 1]} : vector<4x5x96xbf16> to vector<4x5x8xbf16>
    "tpu.trace_start"() <{level = 10 : i32, message = "gnd,gmd->gnm"}> : () -> ()
    %cst_16 = arith.constant dense<0.000000e+00> : vector<4x5x5xf32>
    %58 = tpu.matmul %55, %56, %cst_16 {dimension_numbers = #tpu.dot_dimension_numbers<[2], [2], [1], [1], [0, 0, 0, 1, 1, 1], [0], [0]>} : vector<4x5x8xbf16>, vector<4x5x8xbf16>, vector<4x5x5xf32> -> vector<4x5x5xf32>
    "tpu.trace_stop"() : () -> ()
    %cst_17 = arith.constant 0.353553385 : f32
    %59 = vector.broadcast %cst_17 : f32 to vector<4x5x5xf32>
    %60 = arith.mulf %58, %59 : vector<4x5x5xf32>
    %cst_18 = arith.constant dense<0xFF800000> : vector<4x5xf32>
    %61 = vector.multi_reduction <maximumf>, %60, %cst_18 [2] : vector<4x5x5xf32> to vector<4x5xf32>
    %62 = vector.shape_cast %61 : vector<4x5xf32> to vector<4x5x1xf32>
    %63 = vector.broadcast %62 : vector<4x5x1xf32> to vector<4x5x5xf32>
    %64 = arith.subf %60, %63 : vector<4x5x5xf32>
    %65 = math.exp %64 : vector<4x5x5xf32>
    %cst_19 = arith.constant dense<0.000000e+00> : vector<4x5xf32>
    %66 = vector.multi_reduction <add>, %65, %cst_19 [2] : vector<4x5x5xf32> to vector<4x5xf32>
    %67 = vector.shape_cast %66 : vector<4x5xf32> to vector<4x5x1xf32>
    %68 = arith.truncf %65 : vector<4x5x5xf32> to vector<4x5x5xbf16>
    "tpu.trace_start"() <{level = 10 : i32, message = "gnm,gmd->gnd"}> : () -> ()
    %cst_20 = arith.constant dense<0.000000e+00> : vector<4x5x8xf32>
    %69 = tpu.matmul %68, %57, %cst_20 {dimension_numbers = #tpu.dot_dimension_numbers<[2], [1], [1], [2], [0, 0, 0, 1, 1, 2], [0], [0]>} : vector<4x5x5xbf16>, vector<4x5x8xbf16>, vector<4x5x8xf32> -> vector<4x5x8xf32>
    "tpu.trace_stop"() : () -> ()
    %70 = tpu.reciprocal %67 {approx = true} : vector<4x5x1xf32> -> vector<4x5x1xf32>
    %71 = vector.broadcast %70 : vector<4x5x1xf32> to vector<4x5x8xf32>
    %72 = arith.mulf %69, %71 : vector<4x5x8xf32>
    %73 = tpu.concatenate %18, %36, %54, %72 in 2 : vector<4x5x8xf32>, vector<4x5x8xf32>, vector<4x5x8xf32>, vector<4x5x8xf32> -> vector<4x5x32xf32>
    %74 = arith.truncf %73 : vector<4x5x32xf32> to vector<4x5x32xbf16>
    %c0_21 = arith.constant 0 : index
    %c0_22 = arith.constant 0 : index
    %c0_23 = arith.constant 0 : index
    %75 = vector.load %arg2[%c0_21, %c0_22, %c0_23] : memref<4x5x32xbf16, #tpu.memory_space<vmem>>, vector<4x5x32xbf16>
    tpu.vector_store %arg2[%c0_21, %c0_22, %c0_23], %74 {strides = array<i32>} : memref<4x5x32xbf16, #tpu.memory_space<vmem>>, vector<4x5x32xbf16>,
    return
  }
  func.func @transform_0(%arg0: i32) -> (i32, i32, i32) {
    %c0_i32 = arith.constant 0 : i32
    %c0_i32_0 = arith.constant 0 : i32
    %c0_i32_1 = arith.constant 0 : i32
    return %arg0, %c0_i32, %c0_i32_0 : i32, i32, i32
  }
  func.func @transform_1(%arg0: i32) -> (i32, i32, i32) {
    %c0_i32 = arith.constant 0 : i32
    %c0_i32_0 = arith.constant 0 : i32
    %c0_i32_1 = arith.constant 0 : i32
    return %arg0, %c0_i32, %c0_i32_0 : i32, i32, i32
  }
}

module attributes {stable_mosaic.version = 11 : i64} {
  func.func @_fused_linear_kernel(%arg0: i32, %arg1: i32, %arg2: i32, %arg3: memref<40x32xbf16, #tpu.memory_space<vmem>>, %arg4: memref<32x32xbf16, #tpu.memory_space<vmem>>, %arg5: memref<1x32xf32, #tpu.memory_space<vmem>>, %arg6: memref<40x32xf32, #tpu.memory_space<vmem>>) attributes {dimension_semantics = [#tpu.dimension_semantics<parallel>, #tpu.dimension_semantics<parallel>, #tpu.dimension_semantics<arbitrary>], iteration_bounds = array<i64: 1, 1, 1>, scalar_prefetch = 0 : i64, scratch_operands = 0 : i64, tpu.core_type = #tpu.core_type<tc>, window_params = [{transform_indices = @transform_0, window_bounds = array<i64: 40, 32>}, {transform_indices = @transform_1, window_bounds = array<i64: 32, 32>}, {transform_indices = @transform_2, window_bounds = array<i64: 1, 32>}, {transform_indices = @transform_3, window_bounds = array<i64: 40, 32>}]} {
    %c0 = arith.constant 0 : index
    %c0_0 = arith.constant 0 : index
    %0 = vector.load %arg3[%c0, %c0_0] : memref<40x32xbf16, #tpu.memory_space<vmem>>, vector<40x32xbf16>
    %c0_1 = arith.constant 0 : index
    %c0_2 = arith.constant 0 : index
    %1 = vector.load %arg4[%c0_1, %c0_2] : memref<32x32xbf16, #tpu.memory_space<vmem>>, vector<32x32xbf16>
    %cst = arith.constant dense<0.000000e+00> : vector<40x32xf32>
    %2 = tpu.matmul %0, %1, %cst {dimension_numbers = #tpu.dot_dimension_numbers<[1], [0], [0], [1], [0, 0, 1, 1], [], []>} : vector<40x32xbf16>, vector<32x32xbf16>, vector<40x32xf32> -> vector<40x32xf32>
    %c0_3 = arith.constant 0 : index
    %c0_4 = arith.constant 0 : index
    %3 = vector.load %arg5[%c0_3, %c0_4] : memref<1x32xf32, #tpu.memory_space<vmem>>, vector<1x32xf32>
    %4 = vector.broadcast %3 : vector<1x32xf32> to vector<40x32xf32>
    %5 = arith.addf %2, %4 : vector<40x32xf32>
    %c0_5 = arith.constant 0 : index
    %c0_6 = arith.constant 0 : index
    %6 = vector.load %arg6[%c0_5, %c0_6] : memref<40x32xf32, #tpu.memory_space<vmem>>, vector<40x32xf32>
    tpu.vector_store %arg6[%c0_5, %c0_6], %5 {strides = array<i32>} : memref<40x32xf32, #tpu.memory_space<vmem>>, vector<40x32xf32>,
    return
  }
  func.func @transform_0(%arg0: i32, %arg1: i32, %arg2: i32) -> (i32, i32) {
    %c0_i32 = arith.constant 0 : i32
    return %arg0, %arg2 : i32, i32
  }
  func.func @transform_1(%arg0: i32, %arg1: i32, %arg2: i32) -> (i32, i32) {
    %c0_i32 = arith.constant 0 : i32
    return %arg2, %arg1 : i32, i32
  }
  func.func @transform_2(%arg0: i32, %arg1: i32, %arg2: i32) -> (i32, i32) {
    %c0_i32 = arith.constant 0 : i32
    %c0_i32_0 = arith.constant 0 : i32
    return %c0_i32, %arg1 : i32, i32
  }
  func.func @transform_3(%arg0: i32, %arg1: i32, %arg2: i32) -> (i32, i32) {
    %c0_i32 = arith.constant 0 : i32
    return %arg0, %arg1 : i32, i32
  }
}

module attributes {stable_mosaic.version = 11 : i64} {
  func.func @_fused_linear_kernel(%arg0: i32, %arg1: i32, %arg2: i32, %arg3: memref<34x128xbf16, #tpu.memory_space<vmem>>, %arg4: memref<128x32xbf16, #tpu.memory_space<vmem>>, %arg5: memref<1x32xf32, #tpu.memory_space<vmem>>, %arg6: memref<34x32xf32, #tpu.memory_space<vmem>>, %arg7: memref<34x32xf32, #tpu.memory_space<vmem>>) attributes {dimension_semantics = [#tpu.dimension_semantics<parallel>, #tpu.dimension_semantics<parallel>, #tpu.dimension_semantics<arbitrary>], iteration_bounds = array<i64: 1, 1, 1>, scalar_prefetch = 0 : i64, scratch_operands = 0 : i64, tpu.core_type = #tpu.core_type<tc>, window_params = [{transform_indices = @transform_0, window_bounds = array<i64: 34, 128>}, {transform_indices = @transform_1, window_bounds = array<i64: 128, 32>}, {transform_indices = @transform_2, window_bounds = array<i64: 1, 32>}, {transform_indices = @transform_3, window_bounds = array<i64: 34, 32>}, {transform_indices = @transform_4, window_bounds = array<i64: 34, 32>}]} {
    %c0 = arith.constant 0 : index
    %c0_0 = arith.constant 0 : index
    %0 = vector.load %arg3[%c0, %c0_0] : memref<34x128xbf16, #tpu.memory_space<vmem>>, vector<34x128xbf16>
    %c0_1 = arith.constant 0 : index
    %c0_2 = arith.constant 0 : index
    %1 = vector.load %arg4[%c0_1, %c0_2] : memref<128x32xbf16, #tpu.memory_space<vmem>>, vector<128x32xbf16>
    %cst = arith.constant dense<0.000000e+00> : vector<34x32xf32>
    %2 = tpu.matmul %0, %1, %cst {dimension_numbers = #tpu.dot_dimension_numbers<[1], [0], [0], [1], [0, 0, 1, 1], [], []>} : vector<34x128xbf16>, vector<128x32xbf16>, vector<34x32xf32> -> vector<34x32xf32>
    %c0_3 = arith.constant 0 : index
    %c0_4 = arith.constant 0 : index
    %3 = vector.load %arg5[%c0_3, %c0_4] : memref<1x32xf32, #tpu.memory_space<vmem>>, vector<1x32xf32>
    %4 = vector.broadcast %3 : vector<1x32xf32> to vector<34x32xf32>
    %5 = arith.addf %2, %4 : vector<34x32xf32>
    %c0_5 = arith.constant 0 : index
    %c0_6 = arith.constant 0 : index
    %6 = vector.load %arg6[%c0_5, %c0_6] : memref<34x32xf32, #tpu.memory_space<vmem>>, vector<34x32xf32>
    %7 = arith.addf %5, %6 : vector<34x32xf32>
    %c0_7 = arith.constant 0 : index
    %c0_8 = arith.constant 0 : index
    %8 = vector.load %arg7[%c0_7, %c0_8] : memref<34x32xf32, #tpu.memory_space<vmem>>, vector<34x32xf32>
    tpu.vector_store %arg7[%c0_7, %c0_8], %7 {strides = array<i32>} : memref<34x32xf32, #tpu.memory_space<vmem>>, vector<34x32xf32>,
    return
  }
  func.func @transform_0(%arg0: i32, %arg1: i32, %arg2: i32) -> (i32, i32) {
    %c0_i32 = arith.constant 0 : i32
    return %arg0, %arg2 : i32, i32
  }
  func.func @transform_1(%arg0: i32, %arg1: i32, %arg2: i32) -> (i32, i32) {
    %c0_i32 = arith.constant 0 : i32
    return %arg2, %arg1 : i32, i32
  }
  func.func @transform_2(%arg0: i32, %arg1: i32, %arg2: i32) -> (i32, i32) {
    %c0_i32 = arith.constant 0 : i32
    %c0_i32_0 = arith.constant 0 : i32
    return %c0_i32, %arg1 : i32, i32
  }
  func.func @transform_3(%arg0: i32, %arg1: i32, %arg2: i32) -> (i32, i32) {
    %c0_i32 = arith.constant 0 : i32
    return %arg0, %arg1 : i32, i32
  }
  func.func @transform_4(%arg0: i32, %arg1: i32, %arg2: i32) -> (i32, i32) {
    %c0_i32 = arith.constant 0 : i32
    return %arg0, %arg1 : i32, i32
  }
}

module attributes {stable_mosaic.version = 11 : i64} {
  func.func @_fused_linear_kernel(%arg0: i32, %arg1: i32, %arg2: i32, %arg3: memref<34x32xf32, #tpu.memory_space<vmem>>, %arg4: memref<32x128xbf16, #tpu.memory_space<vmem>>, %arg5: memref<1x128xf32, #tpu.memory_space<vmem>>, %arg6: memref<1x32xf32, #tpu.memory_space<vmem>>, %arg7: memref<1x32xf32, #tpu.memory_space<vmem>>, %arg8: memref<34x128xbf16, #tpu.memory_space<vmem>>) attributes {dimension_semantics = [#tpu.dimension_semantics<parallel>, #tpu.dimension_semantics<parallel>, #tpu.dimension_semantics<arbitrary>], iteration_bounds = array<i64: 1, 1, 1>, scalar_prefetch = 0 : i64, scratch_operands = 0 : i64, tpu.core_type = #tpu.core_type<tc>, window_params = [{transform_indices = @transform_0, window_bounds = array<i64: 34, 32>}, {transform_indices = @transform_1, window_bounds = array<i64: 32, 128>}, {transform_indices = @transform_2, window_bounds = array<i64: 1, 128>}, {transform_indices = @transform_3, window_bounds = array<i64: 1, 32>}, {transform_indices = @transform_4, window_bounds = array<i64: 1, 32>}, {transform_indices = @transform_5, window_bounds = array<i64: 34, 128>}]} {
    %c0 = arith.constant 0 : index
    %c0_0 = arith.constant 0 : index
    %0 = vector.load %arg3[%c0, %c0_0] : memref<34x32xf32, #tpu.memory_space<vmem>>, vector<34x32xf32>
    %cst = arith.constant dense<0.000000e+00> : vector<34xf32>
    %1 = vector.multi_reduction <add>, %0, %cst [1] : vector<34x32xf32> to vector<34xf32>
    %2 = vector.shape_cast %1 : vector<34xf32> to vector<34x1xf32>
    %cst_1 = arith.constant 3.200000e+01 : f32
    %3 = vector.broadcast %cst_1 : f32 to vector<34x1xf32>
    %4 = arith.divf %2, %3 : vector<34x1xf32>
    %5 = vector.broadcast %4 : vector<34x1xf32> to vector<34x32xf32>
    %6 = arith.subf %0, %5 : vector<34x32xf32>
    %7 = arith.mulf %6, %6 : vector<34x32xf32>
    %cst_2 = arith.constant dense<0.000000e+00> : vector<34xf32>
    %8 = vector.multi_reduction <add>, %7, %cst_2 [1] : vector<34x32xf32> to vector<34xf32>
    %9 = vector.shape_cast %8 : vector<34xf32> to vector<34x1xf32>
    %cst_3 = arith.constant 3.200000e+01 : f32
    %10 = vector.broadcast %cst_3 : f32 to vector<34x1xf32>
    %11 = arith.divf %9, %10 : vector<34x1xf32>
    %12 = vector.broadcast %4 : vector<34x1xf32> to vector<34x32xf32>
    %13 = arith.subf %0, %12 : vector<34x32xf32>
    %cst_4 = arith.constant 9.99999997E-7 : f32
    %14 = vector.broadcast %cst_4 : f32 to vector<34x1xf32>
    %15 = arith.addf %11, %14 : vector<34x1xf32>
    %16 = math.rsqrt %15 : vector<34x1xf32>
    %17 = vector.broadcast %16 : vector<34x1xf32> to vector<34x32xf32>
    %18 = arith.mulf %13, %17 : vector<34x32xf32>
    %c0_5 = arith.constant 0 : index
    %c0_6 = arith.constant 0 : index
    %19 = vector.load %arg6[%c0_5, %c0_6] : memref<1x32xf32, #tpu.memory_space<vmem>>, vector<1x32xf32>
    %20 = vector.broadcast %19 : vector<1x32xf32> to vector<34x32xf32>
    %21 = arith.mulf %18, %20 : vector<34x32xf32>
    %c0_7 = arith.constant 0 : index
    %c0_8 = arith.constant 0 : index
    %22 = vector.load %arg7[%c0_7, %c0_8] : memref<1x32xf32, #tpu.memory_space<vmem>>, vector<1x32xf32>
    %23 = vector.broadcast %22 : vector<1x32xf32> to vector<34x32xf32>
    %24 = arith.addf %21, %23 : vector<34x32xf32>
    %25 = arith.truncf %24 : vector<34x32xf32> to vector<34x32xbf16>
    %c0_9 = arith.constant 0 : index
    %c0_10 = arith.constant 0 : index
    %26 = vector.load %arg4[%c0_9, %c0_10] : memref<32x128xbf16, #tpu.memory_space<vmem>>, vector<32x128xbf16>
    %cst_11 = arith.constant dense<0.000000e+00> : vector<34x128xf32>
    %27 = tpu.matmul %25, %26, %cst_11 {dimension_numbers = #tpu.dot_dimension_numbers<[1], [0], [0], [1], [0, 0, 1, 1], [], []>} : vector<34x32xbf16>, vector<32x128xbf16>, vector<34x128xf32> -> vector<34x128xf32>
    %c0_12 = arith.constant 0 : index
    %c0_13 = arith.constant 0 : index
    %28 = vector.load %arg5[%c0_12, %c0_13] : memref<1x128xf32, #tpu.memory_space<vmem>>, vector<1x128xf32>
    %29 = vector.broadcast %28 : vector<1x128xf32> to vector<34x128xf32>
    %30 = arith.addf %27, %29 : vector<34x128xf32>
    %cst_14 = arith.constant 5.000000e-01 : f32
    %31 = vector.broadcast %cst_14 : f32 to vector<34x128xf32>
    %32 = arith.mulf %31, %30 : vector<34x128xf32>
    %cst_15 = arith.constant 0.707106769 : f32
    %33 = vector.broadcast %cst_15 : f32 to vector<34x128xf32>
    %34 = arith.mulf %30, %33 : vector<34x128xf32>
    %35 = math.absf %34 : vector<34x128xf32>
    %cst_16 = arith.constant 0.327591091 : f32
    %36 = vector.broadcast %cst_16 : f32 to vector<34x128xf32>
    %37 = arith.mulf %36, %35 : vector<34x128xf32>
    %cst_17 = arith.constant 1.000000e+00 : f32
    %38 = vector.broadcast %cst_17 : f32 to vector<34x128xf32>
    %39 = arith.addf %38, %37 : vector<34x128xf32>
    %cst_18 = arith.constant 1.000000e+00 : f32
    %40 = vector.broadcast %cst_18 : f32 to vector<34x128xf32>
    %41 = arith.divf %40, %39 : vector<34x128xf32>
    %cst_19 = arith.constant 1.06140542 : f32
    %42 = vector.broadcast %cst_19 : f32 to vector<34x128xf32>
    %43 = arith.mulf %42, %41 : vector<34x128xf32>
    %cst_20 = arith.constant -1.45315206 : f32
    %44 = vector.broadcast %cst_20 : f32 to vector<34x128xf32>
    %45 = arith.addf %43, %44 : vector<34x128xf32>
    %46 = arith.mulf %45, %41 : vector<34x128xf32>
    %cst_21 = arith.constant 1.42141378 : f32
    %47 = vector.broadcast %cst_21 : f32 to vector<34x128xf32>
    %48 = arith.addf %46, %47 : vector<34x128xf32>
    %49 = arith.mulf %48, %41 : vector<34x128xf32>
    %cst_22 = arith.constant -0.284496725 : f32
    %50 = vector.broadcast %cst_22 : f32 to vector<34x128xf32>
    %51 = arith.addf %49, %50 : vector<34x128xf32>
    %52 = arith.mulf %51, %41 : vector<34x128xf32>
    %cst_23 = arith.constant 0.254829586 : f32
    %53 = vector.broadcast %cst_23 : f32 to vector<34x128xf32>
    %54 = arith.addf %52, %53 : vector<34x128xf32>
    %55 = arith.mulf %54, %41 : vector<34x128xf32>
    %cst_24 = arith.constant 0.000000e+00 : f32
    %56 = vector.broadcast %cst_24 : f32 to vector<34x128xf32>
    %57 = arith.subf %56, %35 : vector<34x128xf32>
    %58 = arith.mulf %57, %35 : vector<34x128xf32>
    %59 = math.exp %58 : vector<34x128xf32>
    %60 = arith.mulf %55, %59 : vector<34x128xf32>
    %cst_25 = arith.constant 1.000000e+00 : f32
    %61 = vector.broadcast %cst_25 : f32 to vector<34x128xf32>
    %62 = arith.subf %61, %60 : vector<34x128xf32>
    %cst_26 = arith.constant 0.000000e+00 : f32
    %63 = vector.broadcast %cst_26 : f32 to vector<34x128xf32>
    %64 = arith.cmpf oge, %34, %63 : vector<34x128xf32>
    %cst_27 = arith.constant 0.000000e+00 : f32
    %65 = vector.broadcast %cst_27 : f32 to vector<34x128xf32>
    %66 = arith.subf %65, %62 : vector<34x128xf32>
    %67 = arith.select %64, %62, %66 : vector<34x128xi1>, vector<34x128xf32>
    %cst_28 = arith.constant 1.000000e+00 : f32
    %68 = vector.broadcast %cst_28 : f32 to vector<34x128xf32>
    %69 = arith.addf %68, %67 : vector<34x128xf32>
    %70 = arith.mulf %32, %69 : vector<34x128xf32>
    %71 = arith.truncf %70 : vector<34x128xf32> to vector<34x128xbf16>
    %c0_29 = arith.constant 0 : index
    %c0_30 = arith.constant 0 : index
    %72 = vector.load %arg8[%c0_29, %c0_30] : memref<34x128xbf16, #tpu.memory_space<vmem>>, vector<34x128xbf16>
    tpu.vector_store %arg8[%c0_29, %c0_30], %71 {strides = array<i32>} : memref<34x128xbf16, #tpu.memory_space<vmem>>, vector<34x128xbf16>,
    return
  }
  func.func @transform_0(%arg0: i32, %arg1: i32, %arg2: i32) -> (i32, i32) {
    %c0_i32 = arith.constant 0 : i32
    return %arg0, %arg2 : i32, i32
  }
  func.func @transform_1(%arg0: i32, %arg1: i32, %arg2: i32) -> (i32, i32) {
    %c0_i32 = arith.constant 0 : i32
    return %arg2, %arg1 : i32, i32
  }
  func.func @transform_2(%arg0: i32, %arg1: i32, %arg2: i32) -> (i32, i32) {
    %c0_i32 = arith.constant 0 : i32
    %c0_i32_0 = arith.constant 0 : i32
    return %c0_i32, %arg1 : i32, i32
  }
  func.func @transform_3(%arg0: i32, %arg1: i32, %arg2: i32) -> (i32, i32) {
    %c0_i32 = arith.constant 0 : i32
    %c0_i32_0 = arith.constant 0 : i32
    return %c0_i32, %arg2 : i32, i32
  }
  func.func @transform_4(%arg0: i32, %arg1: i32, %arg2: i32) -> (i32, i32) {
    %c0_i32 = arith.constant 0 : i32
    %c0_i32_0 = arith.constant 0 : i32
    return %c0_i32, %arg2 : i32, i32
  }
  func.func @transform_5(%arg0: i32, %arg1: i32, %arg2: i32) -> (i32, i32) {
    %c0_i32 = arith.constant 0 : i32
    return %arg0, %arg1 : i32, i32
  }
}

module attributes {stable_mosaic.version = 11 : i64} {
  func.func @_fused_linear_kernel(%arg0: i32, %arg1: i32, %arg2: i32, %arg3: memref<2x32xf32, #tpu.memory_space<vmem>>, %arg4: memref<32x8xbf16, #tpu.memory_space<vmem>>, %arg5: memref<1x8xf32, #tpu.memory_space<vmem>>, %arg6: memref<1x32xf32, #tpu.memory_space<vmem>>, %arg7: memref<1x32xf32, #tpu.memory_space<vmem>>, %arg8: memref<2x8xf32, #tpu.memory_space<vmem>>) attributes {dimension_semantics = [#tpu.dimension_semantics<parallel>, #tpu.dimension_semantics<parallel>, #tpu.dimension_semantics<arbitrary>], iteration_bounds = array<i64: 1, 1, 1>, scalar_prefetch = 0 : i64, scratch_operands = 0 : i64, tpu.core_type = #tpu.core_type<tc>, window_params = [{transform_indices = @transform_0, window_bounds = array<i64: 2, 32>}, {transform_indices = @transform_1, window_bounds = array<i64: 32, 8>}, {transform_indices = @transform_2, window_bounds = array<i64: 1, 8>}, {transform_indices = @transform_3, window_bounds = array<i64: 1, 32>}, {transform_indices = @transform_4, window_bounds = array<i64: 1, 32>}, {transform_indices = @transform_5, window_bounds = array<i64: 2, 8>}]} {
    %c0 = arith.constant 0 : index
    %c0_0 = arith.constant 0 : index
    %0 = vector.load %arg3[%c0, %c0_0] : memref<2x32xf32, #tpu.memory_space<vmem>>, vector<2x32xf32>
    %cst = arith.constant dense<0.000000e+00> : vector<2xf32>
    %1 = vector.multi_reduction <add>, %0, %cst [1] : vector<2x32xf32> to vector<2xf32>
    %2 = vector.shape_cast %1 : vector<2xf32> to vector<2x1xf32>
    %cst_1 = arith.constant 3.200000e+01 : f32
    %3 = vector.broadcast %cst_1 : f32 to vector<2x1xf32>
    %4 = arith.divf %2, %3 : vector<2x1xf32>
    %5 = vector.broadcast %4 : vector<2x1xf32> to vector<2x32xf32>
    %6 = arith.subf %0, %5 : vector<2x32xf32>
    %7 = arith.mulf %6, %6 : vector<2x32xf32>
    %cst_2 = arith.constant dense<0.000000e+00> : vector<2xf32>
    %8 = vector.multi_reduction <add>, %7, %cst_2 [1] : vector<2x32xf32> to vector<2xf32>
    %9 = vector.shape_cast %8 : vector<2xf32> to vector<2x1xf32>
    %cst_3 = arith.constant 3.200000e+01 : f32
    %10 = vector.broadcast %cst_3 : f32 to vector<2x1xf32>
    %11 = arith.divf %9, %10 : vector<2x1xf32>
    %12 = vector.broadcast %4 : vector<2x1xf32> to vector<2x32xf32>
    %13 = arith.subf %0, %12 : vector<2x32xf32>
    %cst_4 = arith.constant 9.99999997E-7 : f32
    %14 = vector.broadcast %cst_4 : f32 to vector<2x1xf32>
    %15 = arith.addf %11, %14 : vector<2x1xf32>
    %16 = math.rsqrt %15 : vector<2x1xf32>
    %17 = vector.broadcast %16 : vector<2x1xf32> to vector<2x32xf32>
    %18 = arith.mulf %13, %17 : vector<2x32xf32>
    %c0_5 = arith.constant 0 : index
    %c0_6 = arith.constant 0 : index
    %19 = vector.load %arg6[%c0_5, %c0_6] : memref<1x32xf32, #tpu.memory_space<vmem>>, vector<1x32xf32>
    %20 = vector.broadcast %19 : vector<1x32xf32> to vector<2x32xf32>
    %21 = arith.mulf %18, %20 : vector<2x32xf32>
    %c0_7 = arith.constant 0 : index
    %c0_8 = arith.constant 0 : index
    %22 = vector.load %arg7[%c0_7, %c0_8] : memref<1x32xf32, #tpu.memory_space<vmem>>, vector<1x32xf32>
    %23 = vector.broadcast %22 : vector<1x32xf32> to vector<2x32xf32>
    %24 = arith.addf %21, %23 : vector<2x32xf32>
    %25 = arith.truncf %24 : vector<2x32xf32> to vector<2x32xbf16>
    %c0_9 = arith.constant 0 : index
    %c0_10 = arith.constant 0 : index
    %26 = vector.load %arg4[%c0_9, %c0_10] : memref<32x8xbf16, #tpu.memory_space<vmem>>, vector<32x8xbf16>
    %cst_11 = arith.constant dense<0.000000e+00> : vector<2x8xf32>
    %27 = tpu.matmul %25, %26, %cst_11 {dimension_numbers = #tpu.dot_dimension_numbers<[1], [0], [0], [1], [0, 0, 1, 1], [], []>} : vector<2x32xbf16>, vector<32x8xbf16>, vector<2x8xf32> -> vector<2x8xf32>
    %c0_12 = arith.constant 0 : index
    %c0_13 = arith.constant 0 : index
    %28 = vector.load %arg5[%c0_12, %c0_13] : memref<1x8xf32, #tpu.memory_space<vmem>>, vector<1x8xf32>
    %29 = vector.broadcast %28 : vector<1x8xf32> to vector<2x8xf32>
    %30 = arith.addf %27, %29 : vector<2x8xf32>
    %c0_14 = arith.constant 0 : index
    %c0_15 = arith.constant 0 : index
    %31 = vector.load %arg8[%c0_14, %c0_15] : memref<2x8xf32, #tpu.memory_space<vmem>>, vector<2x8xf32>
    tpu.vector_store %arg8[%c0_14, %c0_15], %30 {strides = array<i32>} : memref<2x8xf32, #tpu.memory_space<vmem>>, vector<2x8xf32>,
    return
  }
  func.func @transform_0(%arg0: i32, %arg1: i32, %arg2: i32) -> (i32, i32) {
    %c0_i32 = arith.constant 0 : i32
    return %arg0, %arg2 : i32, i32
  }
  func.func @transform_1(%arg0: i32, %arg1: i32, %arg2: i32) -> (i32, i32) {
    %c0_i32 = arith.constant 0 : i32
    return %arg2, %arg1 : i32, i32
  }
  func.func @transform_2(%arg0: i32, %arg1: i32, %arg2: i32) -> (i32, i32) {
    %c0_i32 = arith.constant 0 : i32
    %c0_i32_0 = arith.constant 0 : i32
    return %c0_i32, %arg1 : i32, i32
  }
  func.func @transform_3(%arg0: i32, %arg1: i32, %arg2: i32) -> (i32, i32) {
    %c0_i32 = arith.constant 0 : i32
    %c0_i32_0 = arith.constant 0 : i32
    return %c0_i32, %arg2 : i32, i32
  }
  func.func @transform_4(%arg0: i32, %arg1: i32, %arg2: i32) -> (i32, i32) {
    %c0_i32 = arith.constant 0 : i32
    %c0_i32_0 = arith.constant 0 : i32
    return %c0_i32, %arg2 : i32, i32
  }
  func.func @transform_5(%arg0: i32, %arg1: i32, %arg2: i32) -> (i32, i32) {
    %c0_i32 = arith.constant 0 : i32
    return %arg0, %arg1 : i32, i32
  }
}

</mosaic_0001>

<llo_original>
// kernel: _lambda_.21
$region0: #{_lambda_.21}
  #allocation0 [shape = 'u32[]', space=smem, size = 0x4, offset = 0x4, fixed_abs, tag = 'smem constant byte address 0x4 - core index']
  #allocation1 [shape = 'u32[144,128]{1,0:T(1,128)}', space=vmem, size = 0x12000, scoped, tag = 'internal scratch']
  %s0 = inlined_call_operand.vmem [shape: f32[32,32], index: 0, kind: input, shape index: {}]
  %s1 = inlined_call_operand.vmem [shape: bf16[32,96], index: 1, kind: input, shape index: {}]
  %s2 = inlined_call_operand.vmem [shape: f32[1,96], index: 2, kind: input, shape index: {}]
  %s3 = inlined_call_operand.vmem [shape: f32[1,32], index: 3, kind: input, shape index: {}]
  %s4 = inlined_call_operand.vmem [shape: f32[1,32], index: 4, kind: input, shape index: {}]
  %s5 = inlined_call_operand.vmem [shape: bf16[32,96], index: 5, kind: output, shape index: {}]
  %s6 = sld [smem:[#allocation0]]
  $region30: #{_lambda_.21} parent=0
    _
  %s8 = ssub.s32 1, %s6
  %s9 = scalar_select 0, %s8, %s6
  // Predicated region
  $region2: #{_lambda_.21} parent=0 // pred_check
    _
  $region3: #{_lambda_.21} parent=0 // pred_check_branch
    %11 = sbr.rel (0) target = $region5
  $region4: #{_lambda_.21} parent=0 // pred_region
    _
  $region5: #{_lambda_.21} parent=0 // pred_fallthru
    _
  // Predicated region
  $region6: #{_lambda_.21} parent=0 // pred_check
    _
  $region7: #{_lambda_.21} parent=0 // pred_check_branch
    %13 = sbr.rel (0) target = $region9
  $region8: #{_lambda_.21} parent=0 // pred_region
    _
  $region9: #{_lambda_.21} parent=0 // pred_fallthru
    _
  // Predicated region
  $region10: #{_lambda_.21} parent=0 // pred_check
    _
  $region11: #{_lambda_.21} parent=0 // pred_check_branch
    %15 = sbr.rel (0) target = $region13
  $region12: #{_lambda_.21} parent=0 // pred_region
    _
  $region13: #{_lambda_.21} parent=0 // pred_fallthru
    _
  // Predicated region
  $region14: #{_lambda_.21} parent=0 // pred_check
    _
  $region15: #{_lambda_.21} parent=0 // pred_check_branch
    %17 = sbr.rel (0) target = $region17
  $region16: #{_lambda_.21} parent=0 // pred_region
    _
  $region17: #{_lambda_.21} parent=0 // pred_fallthru
    _
  // Predicated region
  $region18: #{_lambda_.21} parent=0 // pred_check
    _
  $region19: #{_lambda_.21} parent=0 // pred_check_branch
    %19 = sbr.rel (0) target = $region21
  $region20: #{_lambda_.21} parent=0 // pred_region
    _
  $region21: #{_lambda_.21} parent=0 // pred_fallthru
    _
  %v21 = vld [vmem:[%s0] sm:$0xff]
  %v22 = vld [vmem:[%s0 + $0x8] sm:$0xff]
  %v23 = vld [vmem:[%s0 + $0x10] sm:$0xff]
  %v24 = vld [vmem:[%s0 + $0x18] sm:$0xff]
  %vm25 = vcmask 261120
  %v26 = vsel %vm25, %v21, 0.0
  %27 = vadd.xlane.f32.xlu0 %v26
  %v28 = vpop.xlane.xlu0 %27
  %v29 = vsel %vm25, %v22, 0.0
  %30 = vadd.xlane.f32.xlu0 %v29
  %v31 = vpop.xlane.xlu0 %30
  %v32 = vsel %vm25, %v23, 0.0
  %33 = vadd.xlane.f32.xlu0 %v32
  %v34 = vpop.xlane.xlu0 %33
  %v35 = vsel %vm25, %v24, 0.0
  %36 = vadd.xlane.f32.xlu0 %v35
  %v37 = vpop.xlane.xlu0 %36
  %v38 = vrcp.pop 32.0
  %v39 = vmul.f32 %v28, %v38
  %v40 = vmul.f32 %v31, %v38
  %v41 = vmul.f32 %v34, %v38
  %v42 = vmul.f32 %v37, %v38
  %v43 = vsub.f32 %v21, %v39
  %v44 = vsub.f32 %v22, %v40
  %v45 = vsub.f32 %v23, %v41
  %v46 = vsub.f32 %v24, %v42
  %v47 = vmul.f32 %v43, %v43
  %v48 = vmul.f32 %v44, %v44
  %v49 = vmul.f32 %v45, %v45
  %v50 = vmul.f32 %v46, %v46
  %v51 = vsel %vm25, %v47, 0.0
  %52 = vadd.xlane.f32.xlu0 %v51
  %v53 = vpop.xlane.xlu0 %52
  %v54 = vsel %vm25, %v48, 0.0
  %55 = vadd.xlane.f32.xlu0 %v54
  %v56 = vpop.xlane.xlu0 %55
  %v57 = vsel %vm25, %v49, 0.0
  %58 = vadd.xlane.f32.xlu0 %v57
  %v59 = vpop.xlane.xlu0 %58
  %v60 = vsel %vm25, %v50, 0.0
  %61 = vadd.xlane.f32.xlu0 %v60
  %v62 = vpop.xlane.xlu0 %61
  %v63 = vmul.f32 %v53, %v38
  %v64 = vmul.f32 %v56, %v38
  %v65 = vmul.f32 %v59, %v38
  %v66 = vmul.f32 %v62, %v38
  %v67 = vadd.f32 %v63, 1e-06
  %v68 = vadd.f32 %v64, 1e-06
  %v69 = vadd.f32 %v65, 1e-06
  %v70 = vadd.f32 %v66, 1e-06
  %v71 = vrsqrt.pop %v67
  %v72 = vrsqrt.pop %v68
  %v73 = vrsqrt.pop %v69
  %v74 = vrsqrt.pop %v70
  %v75 = vmul.f32 %v43, %v71
  %v76 = vmul.f32 %v44, %v72
  %v77 = vmul.f32 %v45, %v73
  %v78 = vmul.f32 %v46, %v74
  %v79 = vld [vmem:[%s3] sm:$0x1]
  %v81 = vlaneseq
  %v82 = vshrl.u32 %v81, 7
  %v83 = vsub.s32 0, %v82
  %v84 = vrot.slane %v79, %v83
  %v86 = vmul.f32 %v75, %v84
  %v87 = vmul.f32 %v76, %v84
  %v88 = vmul.f32 %v77, %v84
  %v89 = vmul.f32 %v78, %v84
  %v90 = vld [vmem:[%s4] sm:$0x1]
  %v92 = vlaneseq
  %v93 = vshrl.u32 %v92, 7
  %v94 = vsub.s32 0, %v93
  %v95 = vrot.slane %v90, %v94
  %v97 = vadd.f32 %v86, %v95
  %v98 = vadd.f32 %v87, %v95
  %v99 = vadd.f32 %v88, %v95
  %v100 = vadd.f32 %v89, %v95
  %v101 = vpack.c.bf16 %v98, %v97
  %v102 = vpack.c.bf16 %v100, %v99
  %v103 = vld [vmem:[%s1] sm:$0xf]
  %v104 = vld [vmem:[%s1 + $0x4] sm:$0xf]
  %v105 = vld [vmem:[%s1 + $0x8] sm:$0xf]
  %v106 = vld [vmem:[%s1 + $0xc] sm:$0xf]
  %v107 = vld [vmem:[%s2] sm:$0x1]
  %v109 = vlaneseq
  %v110 = vshrl.u32 %v109, 7
  %v111 = vsub.s32 0, %v110
  %v112 = vrot.slane %v107, %v111
  %v118 = vunpack.c.l.b16 %v103
  %v119 = vunpack.c.l.b16 %v104
  %v120 = vunpack.c.l.b16 %v105
  %v121 = vunpack.c.l.b16 %v106
  %v122 = vpack.c.b16 %v119, %v118
  %v123 = vpack.c.b16 %v121, %v120
  %v127 = vsel %vm25, %v101, 0
  %v130 = vsel %vm25, %v102, 0
  %132 = vmatprep.subr.bf16.mxu0 0
  %133 = vmatpush1.bf16.msra.mxu0 %v122
  %134 = vmatprep.subr.bf16.mxu0 0
  %135 = vmatpush1.bf16.msra.mxu0 %v123
  %136 = vmatprep.subr.bf16.mxu0 0
  %137 = vmatpush1.bf16.msra.mxu0 0
  %138 = vmatprep.subr.bf16.mxu0 0
  %139 = vmatpush1.bf16.msra.mxu0 0
  %140 = vmatprep.subr.bf16.mxu0 0
  %141 = vmatpush1.bf16.msra.mxu0 0
  %142 = vmatprep.subr.bf16.mxu0 0
  %143 = vmatpush1.bf16.msra.mxu0 0
  %144 = vmatprep.subr.bf16.mxu0 0
  %145 = vmatpush1.bf16.msra.mxu0 0
  %146 = vmatprep.subr.bf16.mxu0 0
  %147 = vmatpush1.bf16.msra.mxu0 0
  %148 = vmatprep.subr.bf16.mxu0 0
  %149 = vmatpush1.bf16.msra.mxu0 0
  %150 = vmatprep.subr.bf16.mxu0 0
  %151 = vmatpush1.bf16.msra.mxu0 0
  %152 = vmatprep.subr.bf16.mxu0 0
  %153 = vmatpush1.bf16.msra.mxu0 0
  %154 = vmatprep.subr.bf16.mxu0 0
  %155 = vmatpush1.bf16.msra.mxu0 0
  %156 = vmatprep.subr.bf16.mxu0 0
  %157 = vmatpush1.bf16.msra.mxu0 0
  %158 = vmatprep.subr.bf16.mxu0 0
  %159 = vmatpush1.bf16.msra.mxu0 0
  %160 = vmatprep.subr.bf16.mxu0 0
  %161 = vmatpush1.bf16.msra.mxu0 0
  %162 = vmatprep.subr.bf16.mxu0 0
  %163 = vmatpush1.bf16.msra.mxu0 0
  %164 = vmatprep.mubr.bf16.mxu0 0
  %165 = vmatmul.mubr.bf16.gmra.mrb[0].mxu0 %v127
  %v166 = vpop.f32.mrb[0].mxu0
  %v167 = vadd.f32 %v112, %v166
  %v168 = vpop.f32.mrb[0].mxu0
  %v169 = vpop.f32.mrb[0].mxu0
  %v170 = vadd.f32 %v112, %v169
  %v171 = vpop.f32.mrb[0].mxu0
  %172 = vmatprep.mubr.bf16.mxu0 0
  %173 = vmatmul.mubr.bf16.gmra.mrb[0].mxu0 %v130
  %v174 = vpop.f32.mrb[0].mxu0
  %v175 = vadd.f32 %v112, %v174
  %v176 = vpop.f32.mrb[0].mxu0
  %v177 = vpop.f32.mrb[0].mxu0
  %v178 = vadd.f32 %v112, %v177
  %v179 = vpop.f32.mrb[0].mxu0
  %180 = vdwg.mxu0
  %v181 = vpack.c.bf16 %v170, %v167
  %v182 = vpack.c.bf16 %v178, %v175
  %v185 = vunpack.c.l.b16 %v181
  %v186 = vunpack.c.h.b16 %v181
  %v187 = vunpack.c.l.b16 %v182
  %v188 = vunpack.c.h.b16 %v182
  %v189 = vpack.c.b16 %v185, %v185
  %v190 = vpack.c.b16 %v186, %v186
  %v191 = vpack.c.b16 %v187, %v187
  %v192 = vpack.c.b16 %v188, %v188
  %vm197 = vcmask 781312
  %198 = vst.msk [vmem:[%s5] sm:$0xf] %vm197, %v189
  %199 = vst.msk [vmem:[%s5 + $0x4] sm:$0xf] %vm197, %v190
  %200 = vst.msk [vmem:[%s5 + $0x8] sm:$0xf] %vm197, %v191
  %201 = vst.msk [vmem:[%s5 + $0xc] sm:$0xf] %vm197, %v192
  // Predicated region
  $region22: #{_lambda_.21} parent=0 // pred_check
    _
  $region23: #{_lambda_.21} parent=0 // pred_check_branch
    %203 = sbr.rel (0) target = $region25
  $region24: #{_lambda_.21} parent=0 // pred_region
    _
  $region25: #{_lambda_.21} parent=0 // pred_fallthru
    _
  // Predicated region
  $region26: #{_lambda_.21} parent=0 // pred_check
    _
  $region27: #{_lambda_.21} parent=0 // pred_check_branch
    %205 = sbr.rel (0) target = $region29
  $region28: #{_lambda_.21} parent=0 // pred_region
    _
  $region29: #{_lambda_.21} parent=0 // pred_fallthru
    _

// kernel: _lambda_.20
$region0: #{_lambda_.20}
  #allocation0 [shape = 'u32[]', space=smem, size = 0x4, offset = 0x4, fixed_abs, tag = 'smem constant byte address 0x4 - core index']
  #allocation1 [shape = 'u32[144,128]{1,0:T(1,128)}', space=vmem, size = 0x12000, scoped, tag = 'internal scratch']
  %s0 = inlined_call_operand.vmem [shape: f32[32,192], index: 0, kind: input, shape index: {}]
  %s1 = inlined_call_operand.vmem [shape: bf16[192,32], index: 1, kind: input, shape index: {}]
  %s2 = inlined_call_operand.vmem [shape: f32[1,32], index: 2, kind: input, shape index: {}]
  %s3 = inlined_call_operand.vmem [shape: f32[32,32], index: 3, kind: output, shape index: {}]
  %s4 = sld [smem:[#allocation0]]
  $region22: #{_lambda_.20} parent=0
    _
  %s6 = ssub.s32 1, %s4
  %s7 = scalar_select 0, %s6, %s4
  // Predicated region
  $region2: #{_lambda_.20} parent=0 // pred_check
    _
  $region3: #{_lambda_.20} parent=0 // pred_check_branch
    %9 = sbr.rel (0) target = $region5
  $region4: #{_lambda_.20} parent=0 // pred_region
    _
  $region5: #{_lambda_.20} parent=0 // pred_fallthru
    _
  // Predicated region
  $region6: #{_lambda_.20} parent=0 // pred_check
    _
  $region7: #{_lambda_.20} parent=0 // pred_check_branch
    %11 = sbr.rel (0) target = $region9
  $region8: #{_lambda_.20} parent=0 // pred_region
    _
  $region9: #{_lambda_.20} parent=0 // pred_fallthru
    _
  // Predicated region
  $region10: #{_lambda_.20} parent=0 // pred_check
    _
  $region11: #{_lambda_.20} parent=0 // pred_check_branch
    %13 = sbr.rel (0) target = $region13
  $region12: #{_lambda_.20} parent=0 // pred_region
    _
  $region13: #{_lambda_.20} parent=0 // pred_fallthru
    _
  %v15 = vld [vmem:[%s0] sm:$0xff]
  %v16 = vld [vmem:[%s0 + $0x8] sm:$0xff]
  %v17 = vld [vmem:[%s0 + $0x10] sm:$0xff]
  %v18 = vld [vmem:[%s0 + $0x18] sm:$0xff]
  %v19 = vld [vmem:[%s0 + $0x20] sm:$0xff]
  %v20 = vld [vmem:[%s0 + $0x28] sm:$0xff]
  %v21 = vld [vmem:[%s0 + $0x30] sm:$0xff]
  %v22 = vld [vmem:[%s0 + $0x38] sm:$0xff]
  %v23 = vpack.c.bf16 %v17, %v15
  %v24 = vpack.c.bf16 %v18, %v16
  %v25 = vpack.c.bf16 %v21, %v19
  %v26 = vpack.c.bf16 %v22, %v20
  %v27 = vld [vmem:[%s1] sm:$0xf]
  %v28 = vld [vmem:[%s1 + $0x4] sm:$0xf]
  %v29 = vld [vmem:[%s1 + $0x8] sm:$0xf]
  %v30 = vld [vmem:[%s1 + $0xc] sm:$0xf]
  %v31 = vld [vmem:[%s1 + $0x10] sm:$0xf]
  %v32 = vld [vmem:[%s1 + $0x14] sm:$0xf]
  %v33 = vld [vmem:[%s1 + $0x18] sm:$0xf]
  %v34 = vld [vmem:[%s1 + $0x1c] sm:$0xf]
  %v35 = vld [vmem:[%s1 + $0x20] sm:$0xf]
  %v36 = vld [vmem:[%s1 + $0x24] sm:$0xf]
  %v37 = vld [vmem:[%s1 + $0x28] sm:$0xf]
  %v38 = vld [vmem:[%s1 + $0x2c] sm:$0xf]
  %v39 = vld [vmem:[%s1 + $0x30] sm:$0xf]
  %v40 = vld [vmem:[%s1 + $0x34] sm:$0xf]
  %v41 = vld [vmem:[%s1 + $0x38] sm:$0xf]
  %v42 = vld [vmem:[%s1 + $0x3c] sm:$0xf]
  %v43 = vld [vmem:[%s1 + $0x40] sm:$0xf]
  %v44 = vld [vmem:[%s1 + $0x44] sm:$0xf]
  %v45 = vld [vmem:[%s1 + $0x48] sm:$0xf]
  %v46 = vld [vmem:[%s1 + $0x4c] sm:$0xf]
  %v47 = vld [vmem:[%s1 + $0x50] sm:$0xf]
  %v48 = vld [vmem:[%s1 + $0x54] sm:$0xf]
  %v49 = vld [vmem:[%s1 + $0x58] sm:$0xf]
  %v50 = vld [vmem:[%s1 + $0x5c] sm:$0xf]
  %v51 = vld [vmem:[%s2] sm:$0x1]
  %v53 = vlaneseq
  %v54 = vshrl.u32 %v53, 7
  %v55 = vsub.s32 0, %v54
  %v56 = vrot.slane %v51, %v55
  %v82 = vunpack.c.l.b16 %v27
  %v83 = vunpack.c.l.b16 %v28
  %v84 = vunpack.c.l.b16 %v29
  %v85 = vunpack.c.l.b16 %v30
  %v86 = vunpack.c.l.b16 %v31
  %v87 = vunpack.c.l.b16 %v32
  %v88 = vunpack.c.l.b16 %v33
  %v89 = vunpack.c.l.b16 %v34
  %v90 = vunpack.c.l.b16 %v35
  %v91 = vunpack.c.l.b16 %v36
  %v92 = vunpack.c.l.b16 %v37
  %v93 = vunpack.c.l.b16 %v38
  %v94 = vunpack.c.l.b16 %v39
  %v95 = vunpack.c.l.b16 %v40
  %v96 = vunpack.c.l.b16 %v41
  %v97 = vunpack.c.l.b16 %v42
  %v98 = vunpack.c.l.b16 %v43
  %v99 = vunpack.c.l.b16 %v44
  %v100 = vunpack.c.l.b16 %v45
  %v101 = vunpack.c.l.b16 %v46
  %v102 = vunpack.c.l.b16 %v47
  %v103 = vunpack.c.l.b16 %v48
  %v104 = vunpack.c.l.b16 %v49
  %v105 = vunpack.c.l.b16 %v50
  %v106 = vpack.c.b16 %v83, %v82
  %v107 = vpack.c.b16 %v85, %v84
  %v108 = vpack.c.b16 %v87, %v86
  %v109 = vpack.c.b16 %v89, %v88
  %v110 = vpack.c.b16 %v91, %v90
  %v111 = vpack.c.b16 %v93, %v92
  %v112 = vpack.c.b16 %v95, %v94
  %v113 = vpack.c.b16 %v97, %v96
  %v114 = vpack.c.b16 %v99, %v98
  %v115 = vpack.c.b16 %v101, %v100
  %v116 = vpack.c.b16 %v103, %v102
  %v117 = vpack.c.b16 %v105, %v104
  %vm130 = vcmask 523264
  %v132 = vsel %vm130, %v24, 0
  %v135 = vsel %vm130, %v26, 0
  %137 = vmatprep.subr.bf16.mxu0 0
  %138 = vmatpush1.bf16.msra.mxu0 %v106
  %139 = vmatprep.subr.bf16.mxu0 0
  %140 = vmatpush1.bf16.msra.mxu0 %v107
  %141 = vmatprep.subr.bf16.mxu0 0
  %142 = vmatpush1.bf16.msra.mxu0 %v108
  %143 = vmatprep.subr.bf16.mxu0 0
  %144 = vmatpush1.bf16.msra.mxu0 %v109
  %145 = vmatprep.subr.bf16.mxu0 0
  %146 = vmatpush1.bf16.msra.mxu0 %v110
  %147 = vmatprep.subr.bf16.mxu0 0
  %148 = vmatpush1.bf16.msra.mxu0 %v111
  %149 = vmatprep.subr.bf16.mxu0 0
  %150 = vmatpush1.bf16.msra.mxu0 %v112
  %151 = vmatprep.subr.bf16.mxu0 0
  %152 = vmatpush1.bf16.msra.mxu0 %v113
  %153 = vmatprep.subr.bf16.mxu0 0
  %154 = vmatpush1.bf16.msra.mxu0 %v114
  %155 = vmatprep.subr.bf16.mxu0 0
  %156 = vmatpush1.bf16.msra.mxu0 %v115
  %157 = vmatprep.subr.bf16.mxu0 0
  %158 = vmatpush1.bf16.msra.mxu0 %v116
  %159 = vmatprep.subr.bf16.mxu0 0
  %160 = vmatpush1.bf16.msra.mxu0 %v117
  %161 = vmatprep.subr.bf16.mxu0 0
  %162 = vmatpush1.bf16.msra.mxu0 0
  %163 = vmatprep.subr.bf16.mxu0 0
  %164 = vmatpush1.bf16.msra.mxu0 0
  %165 = vmatprep.subr.bf16.mxu0 0
  %166 = vmatpush1.bf16.msra.mxu0 0
  %167 = vmatprep.subr.bf16.mxu0 0
  %168 = vmatpush1.bf16.msra.mxu0 0
  %169 = vmatprep.mubr.bf16.mxu0 %v132
  %170 = vmatmul.mubr.bf16.gmra.mrb[0].mxu0 %v23
  %v171 = vpop.f32.mrb[0].mxu0
  %v172 = vadd.f32 %v56, %v171
  %v173 = vpop.f32.mrb[0].mxu0
  %v174 = vpop.f32.mrb[0].mxu0
  %v175 = vadd.f32 %v56, %v174
  %v176 = vpop.f32.mrb[0].mxu0
  %177 = vmatprep.mubr.bf16.mxu0 %v135
  %178 = vmatmul.mubr.bf16.gmra.mrb[0].mxu0 %v25
  %v179 = vpop.f32.mrb[0].mxu0
  %v180 = vadd.f32 %v56, %v179
  %v181 = vpop.f32.mrb[0].mxu0
  %v182 = vpop.f32.mrb[0].mxu0
  %v183 = vadd.f32 %v56, %v182
  %v184 = vpop.f32.mrb[0].mxu0
  %185 = vdwg.mxu0
  %vm186 = vcmask 261120
  %187 = vst.msk [vmem:[%s3] sm:$0xff] %vm186, %v172
  %188 = vst.msk [vmem:[%s3 + $0x8] sm:$0xff] %vm186, %v175
  %189 = vst.msk [vmem:[%s3 + $0x10] sm:$0xff] %vm186, %v180
  %190 = vst.msk [vmem:[%s3 + $0x18] sm:$0xff] %vm186, %v183
  // Predicated region
  $region14: #{_lambda_.20} parent=0 // pred_check
    _
  $region15: #{_lambda_.20} parent=0 // pred_check_branch
    %192 = sbr.rel (0) target = $region17
  $region16: #{_lambda_.20} parent=0 // pred_region
    _
  $region17: #{_lambda_.20} parent=0 // pred_fallthru
    _
  // Predicated region
  $region18: #{_lambda_.20} parent=0 // pred_check
    _
  $region19: #{_lambda_.20} parent=0 // pred_check_branch
    %194 = sbr.rel (0) target = $region21
  $region20: #{_lambda_.20} parent=0 // pred_region
    _
  $region21: #{_lambda_.20} parent=0 // pred_fallthru
    _

// kernel: _lambda_.23
$region0: #{_lambda_.23}
  #allocation0 [shape = 'u32[]', space=smem, size = 0x4, offset = 0x4, fixed_abs, tag = 'smem constant byte address 0x4 - core index']
  #allocation1 [shape = 'u32[144,128]{1,0:T(1,128)}', space=vmem, size = 0x12000, scoped, tag = 'internal scratch']
  %s0 = inlined_call_operand.vmem [shape: bf16[32,32], index: 0, kind: input, shape index: {}]
  %s1 = inlined_call_operand.vmem [shape: bf16[32,32], index: 1, kind: input, shape index: {}]
  %s2 = inlined_call_operand.vmem [shape: f32[1,32], index: 2, kind: input, shape index: {}]
  %s3 = inlined_call_operand.vmem [shape: bf16[32,32], index: 3, kind: output, shape index: {}]
  %s4 = sld [smem:[#allocation0]]
  $region22: #{_lambda_.23} parent=0
    _
  %s6 = ssub.s32 1, %s4
  %s7 = scalar_select 0, %s6, %s4
  // Predicated region
  $region2: #{_lambda_.23} parent=0 // pred_check
    _
  $region3: #{_lambda_.23} parent=0 // pred_check_branch
    %9 = sbr.rel (0) target = $region5
  $region4: #{_lambda_.23} parent=0 // pred_region
    _
  $region5: #{_lambda_.23} parent=0 // pred_fallthru
    _
  // Predicated region
  $region6: #{_lambda_.23} parent=0 // pred_check
    _
  $region7: #{_lambda_.23} parent=0 // pred_check_branch
    %11 = sbr.rel (0) target = $region9
  $region8: #{_lambda_.23} parent=0 // pred_region
    _
  $region9: #{_lambda_.23} parent=0 // pred_fallthru
    _
  // Predicated region
  $region10: #{_lambda_.23} parent=0 // pred_check
    _
  $region11: #{_lambda_.23} parent=0 // pred_check_branch
    %13 = sbr.rel (0) target = $region13
  $region12: #{_lambda_.23} parent=0 // pred_region
    _
  $region13: #{_lambda_.23} parent=0 // pred_fallthru
    _
  %v15 = vld [vmem:[%s0] sm:$0xf]
  %v16 = vld [vmem:[%s0 + $0x4] sm:$0xf]
  %v17 = vld [vmem:[%s0 + $0x8] sm:$0xf]
  %v18 = vld [vmem:[%s0 + $0xc] sm:$0xf]
  %v19 = vld [vmem:[%s1] sm:$0xf]
  %v20 = vld [vmem:[%s1 + $0x4] sm:$0xf]
  %v21 = vld [vmem:[%s1 + $0x8] sm:$0xf]
  %v22 = vld [vmem:[%s1 + $0xc] sm:$0xf]
  %v23 = vld [vmem:[%s2] sm:$0x1]
  %v25 = vlaneseq
  %v26 = vshrl.u32 %v25, 7
  %v27 = vsub.s32 0, %v26
  %v28 = vrot.slane %v23, %v27
  %v34 = vunpack.c.l.b16 %v15
  %v35 = vunpack.c.l.b16 %v16
  %v36 = vunpack.c.l.b16 %v17
  %v37 = vunpack.c.l.b16 %v18
  %v38 = vpack.c.b16 %v35, %v34
  %v39 = vpack.c.b16 %v37, %v36
  %v44 = vunpack.c.l.b16 %v19
  %v45 = vunpack.c.l.b16 %v20
  %v46 = vunpack.c.l.b16 %v21
  %v47 = vunpack.c.l.b16 %v22
  %v48 = vpack.c.b16 %v45, %v44
  %v49 = vpack.c.b16 %v47, %v46
  %vm52 = vcmask 261120
  %v54 = vsel %vm52, %v38, 0
  %v57 = vsel %vm52, %v39, 0
  %59 = vmatprep.subr.bf16.mxu0 0
  %60 = vmatpush1.bf16.msra.mxu0 %v48
  %61 = vmatprep.subr.bf16.mxu0 0
  %62 = vmatpush1.bf16.msra.mxu0 %v49
  %63 = vmatprep.subr.bf16.mxu0 0
  %64 = vmatpush1.bf16.msra.mxu0 0
  %65 = vmatprep.subr.bf16.mxu0 0
  %66 = vmatpush1.bf16.msra.mxu0 0
  %67 = vmatprep.subr.bf16.mxu0 0
  %68 = vmatpush1.bf16.msra.mxu0 0
  %69 = vmatprep.subr.bf16.mxu0 0
  %70 = vmatpush1.bf16.msra.mxu0 0
  %71 = vmatprep.subr.bf16.mxu0 0
  %72 = vmatpush1.bf16.msra.mxu0 0
  %73 = vmatprep.subr.bf16.mxu0 0
  %74 = vmatpush1.bf16.msra.mxu0 0
  %75 = vmatprep.subr.bf16.mxu0 0
  %76 = vmatpush1.bf16.msra.mxu0 0
  %77 = vmatprep.subr.bf16.mxu0 0
  %78 = vmatpush1.bf16.msra.mxu0 0
  %79 = vmatprep.subr.bf16.mxu0 0
  %80 = vmatpush1.bf16.msra.mxu0 0
  %81 = vmatprep.subr.bf16.mxu0 0
  %82 = vmatpush1.bf16.msra.mxu0 0
  %83 = vmatprep.subr.bf16.mxu0 0
  %84 = vmatpush1.bf16.msra.mxu0 0
  %85 = vmatprep.subr.bf16.mxu0 0
  %86 = vmatpush1.bf16.msra.mxu0 0
  %87 = vmatprep.subr.bf16.mxu0 0
  %88 = vmatpush1.bf16.msra.mxu0 0
  %89 = vmatprep.subr.bf16.mxu0 0
  %90 = vmatpush1.bf16.msra.mxu0 0
  %91 = vmatprep.mubr.bf16.mxu0 0
  %92 = vmatmul.mubr.bf16.gmra.mrb[0].mxu0 %v54
  %v93 = vpop.f32.mrb[0].mxu0
  %v94 = vadd.f32 %v28, %v93
  %v95 = vpop.f32.mrb[0].mxu0
  %v96 = vpop.f32.mrb[0].mxu0
  %v97 = vadd.f32 %v28, %v96
  %v98 = vpop.f32.mrb[0].mxu0
  %99 = vmatprep.mubr.bf16.mxu0 0
  %100 = vmatmul.mubr.bf16.gmra.mrb[0].mxu0 %v57
  %v101 = vpop.f32.mrb[0].mxu0
  %v102 = vadd.f32 %v28, %v101
  %v103 = vpop.f32.mrb[0].mxu0
  %v104 = vpop.f32.mrb[0].mxu0
  %v105 = vadd.f32 %v28, %v104
  %v106 = vpop.f32.mrb[0].mxu0
  %107 = vdwg.mxu0
  %v108 = vpack.c.bf16 %v97, %v94
  %v109 = vpack.c.bf16 %v105, %v102
  %v112 = vunpack.c.l.b16 %v108
  %v113 = vunpack.c.h.b16 %v108
  %v114 = vunpack.c.l.b16 %v109
  %v115 = vunpack.c.h.b16 %v109
  %v116 = vpack.c.b16 %v112, %v112
  %v117 = vpack.c.b16 %v113, %v113
  %v118 = vpack.c.b16 %v114, %v114
  %v119 = vpack.c.b16 %v115, %v115
  %vm124 = vcmask 257024
  %125 = vst.msk [vmem:[%s3] sm:$0xf] %vm124, %v116
  %126 = vst.msk [vmem:[%s3 + $0x4] sm:$0xf] %vm124, %v117
  %127 = vst.msk [vmem:[%s3 + $0x8] sm:$0xf] %vm124, %v118
  %128 = vst.msk [vmem:[%s3 + $0xc] sm:$0xf] %vm124, %v119
  // Predicated region
  $region14: #{_lambda_.23} parent=0 // pred_check
    _
  $region15: #{_lambda_.23} parent=0 // pred_check_branch
    %130 = sbr.rel (0) target = $region17
  $region16: #{_lambda_.23} parent=0 // pred_region
    _
  $region17: #{_lambda_.23} parent=0 // pred_fallthru
    _
  // Predicated region
  $region18: #{_lambda_.23} parent=0 // pred_check
    _
  $region19: #{_lambda_.23} parent=0 // pred_check_branch
    %132 = sbr.rel (0) target = $region21
  $region20: #{_lambda_.23} parent=0 // pred_region
    _
  $region21: #{_lambda_.23} parent=0 // pred_fallthru
    _

// kernel: _lambda_.24
$region0: #{_lambda_.24}
  #allocation0 [shape = 'u32[]', space=smem, size = 0x4, offset = 0x4, fixed_abs, tag = 'smem constant byte address 0x4 - core index']
  #allocation1 [shape = 'u32[144,128]{1,0:T(1,128)}', space=vmem, size = 0x12000, scoped, tag = 'internal scratch']
  %s0 = inlined_call_operand.vmem [shape: bf16[32,32], index: 0, kind: input, shape index: {}]
  %s1 = inlined_call_operand.vmem [shape: bf16[32,32], index: 1, kind: input, shape index: {}]
  %s2 = inlined_call_operand.vmem [shape: f32[1,32], index: 2, kind: input, shape index: {}]
  %s3 = inlined_call_operand.vmem [shape: f32[32,32], index: 3, kind: input, shape index: {}]
  %s4 = inlined_call_operand.vmem [shape: f32[32,32], index: 4, kind: output, shape index: {}]
  %s5 = sld [smem:[#allocation0]]
  $region26: #{_lambda_.24} parent=0
    _
  %s7 = ssub.s32 1, %s5
  %s8 = scalar_select 0, %s7, %s5
  // Predicated region
  $region2: #{_lambda_.24} parent=0 // pred_check
    _
  $region3: #{_lambda_.24} parent=0 // pred_check_branch
    %10 = sbr.rel (0) target = $region5
  $region4: #{_lambda_.24} parent=0 // pred_region
    _
  $region5: #{_lambda_.24} parent=0 // pred_fallthru
    _
  // Predicated region
  $region6: #{_lambda_.24} parent=0 // pred_check
    _
  $region7: #{_lambda_.24} parent=0 // pred_check_branch
    %12 = sbr.rel (0) target = $region9
  $region8: #{_lambda_.24} parent=0 // pred_region
    _
  $region9: #{_lambda_.24} parent=0 // pred_fallthru
    _
  // Predicated region
  $region10: #{_lambda_.24} parent=0 // pred_check
    _
  $region11: #{_lambda_.24} parent=0 // pred_check_branch
    %14 = sbr.rel (0) target = $region13
  $region12: #{_lambda_.24} parent=0 // pred_region
    _
  $region13: #{_lambda_.24} parent=0 // pred_fallthru
    _
  // Predicated region
  $region14: #{_lambda_.24} parent=0 // pred_check
    _
  $region15: #{_lambda_.24} parent=0 // pred_check_branch
    %16 = sbr.rel (0) target = $region17
  $region16: #{_lambda_.24} parent=0 // pred_region
    _
  $region17: #{_lambda_.24} parent=0 // pred_fallthru
    _
  %v18 = vld [vmem:[%s0] sm:$0xf]
  %v19 = vld [vmem:[%s0 + $0x4] sm:$0xf]
  %v20 = vld [vmem:[%s0 + $0x8] sm:$0xf]
  %v21 = vld [vmem:[%s0 + $0xc] sm:$0xf]
  %v22 = vld [vmem:[%s1] sm:$0xf]
  %v23 = vld [vmem:[%s1 + $0x4] sm:$0xf]
  %v24 = vld [vmem:[%s1 + $0x8] sm:$0xf]
  %v25 = vld [vmem:[%s1 + $0xc] sm:$0xf]
  %v26 = vld [vmem:[%s2] sm:$0x1]
  %v28 = vlaneseq
  %v29 = vshrl.u32 %v28, 7
  %v30 = vsub.s32 0, %v29
  %v31 = vrot.slane %v26, %v30
  %v37 = vunpack.c.l.b16 %v18
  %v38 = vunpack.c.l.b16 %v19
  %v39 = vunpack.c.l.b16 %v20
  %v40 = vunpack.c.l.b16 %v21
  %v41 = vpack.c.b16 %v38, %v37
  %v42 = vpack.c.b16 %v40, %v39
  %v47 = vunpack.c.l.b16 %v22
  %v48 = vunpack.c.l.b16 %v23
  %v49 = vunpack.c.l.b16 %v24
  %v50 = vunpack.c.l.b16 %v25
  %v51 = vpack.c.b16 %v48, %v47
  %v52 = vpack.c.b16 %v50, %v49
  %vm55 = vcmask 261120
  %v57 = vsel %vm55, %v41, 0
  %v60 = vsel %vm55, %v42, 0
  %62 = vmatprep.subr.bf16.mxu0 0
  %63 = vmatpush1.bf16.msra.mxu0 %v51
  %64 = vmatprep.subr.bf16.mxu0 0
  %65 = vmatpush1.bf16.msra.mxu0 %v52
  %66 = vmatprep.subr.bf16.mxu0 0
  %67 = vmatpush1.bf16.msra.mxu0 0
  %68 = vmatprep.subr.bf16.mxu0 0
  %69 = vmatpush1.bf16.msra.mxu0 0
  %70 = vmatprep.subr.bf16.mxu0 0
  %71 = vmatpush1.bf16.msra.mxu0 0
  %72 = vmatprep.subr.bf16.mxu0 0
  %73 = vmatpush1.bf16.msra.mxu0 0
  %74 = vmatprep.subr.bf16.mxu0 0
  %75 = vmatpush1.bf16.msra.mxu0 0
  %76 = vmatprep.subr.bf16.mxu0 0
  %77 = vmatpush1.bf16.msra.mxu0 0
  %78 = vmatprep.subr.bf16.mxu0 0
  %79 = vmatpush1.bf16.msra.mxu0 0
  %80 = vmatprep.subr.bf16.mxu0 0
  %81 = vmatpush1.bf16.msra.mxu0 0
  %82 = vmatprep.subr.bf16.mxu0 0
  %83 = vmatpush1.bf16.msra.mxu0 0
  %84 = vmatprep.subr.bf16.mxu0 0
  %85 = vmatpush1.bf16.msra.mxu0 0
  %86 = vmatprep.subr.bf16.mxu0 0
  %87 = vmatpush1.bf16.msra.mxu0 0
  %88 = vmatprep.subr.bf16.mxu0 0
  %89 = vmatpush1.bf16.msra.mxu0 0
  %90 = vmatprep.subr.bf16.mxu0 0
  %91 = vmatpush1.bf16.msra.mxu0 0
  %92 = vmatprep.subr.bf16.mxu0 0
  %93 = vmatpush1.bf16.msra.mxu0 0
  %94 = vmatprep.mubr.bf16.mxu0 0
  %95 = vmatmul.mubr.bf16.gmra.mrb[0].mxu0 %v57
  %v96 = vpop.f32.mrb[0].mxu0
  %v97 = vadd.f32 %v31, %v96
  %v98 = vpop.f32.mrb[0].mxu0
  %v99 = vpop.f32.mrb[0].mxu0
  %v100 = vadd.f32 %v31, %v99
  %v101 = vpop.f32.mrb[0].mxu0
  %102 = vmatprep.mubr.bf16.mxu0 0
  %103 = vmatmul.mubr.bf16.gmra.mrb[0].mxu0 %v60
  %v104 = vpop.f32.mrb[0].mxu0
  %v105 = vadd.f32 %v31, %v104
  %v106 = vpop.f32.mrb[0].mxu0
  %v107 = vpop.f32.mrb[0].mxu0
  %v108 = vadd.f32 %v31, %v107
  %v109 = vpop.f32.mrb[0].mxu0
  %110 = vdwg.mxu0
  %v111 = vld [vmem:[%s3] sm:$0xff]
  %v112 = vld [vmem:[%s3 + $0x8] sm:$0xff]
  %v113 = vld [vmem:[%s3 + $0x10] sm:$0xff]
  %v114 = vld [vmem:[%s3 + $0x18] sm:$0xff]
  %v115 = vadd.f32 %v97, %v111
  %v116 = vadd.f32 %v100, %v112
  %v117 = vadd.f32 %v105, %v113
  %v118 = vadd.f32 %v108, %v114
  %119 = vst.msk [vmem:[%s4] sm:$0xff] %vm55, %v115
  %120 = vst.msk [vmem:[%s4 + $0x8] sm:$0xff] %vm55, %v116
  %121 = vst.msk [vmem:[%s4 + $0x10] sm:$0xff] %vm55, %v117
  %122 = vst.msk [vmem:[%s4 + $0x18] sm:$0xff] %vm55, %v118
  // Predicated region
  $region18: #{_lambda_.24} parent=0 // pred_check
    _
  $region19: #{_lambda_.24} parent=0 // pred_check_branch
    %124 = sbr.rel (0) target = $region21
  $region20: #{_lambda_.24} parent=0 // pred_region
    _
  $region21: #{_lambda_.24} parent=0 // pred_fallthru
    _
  // Predicated region
  $region22: #{_lambda_.24} parent=0 // pred_check
    _
  $region23: #{_lambda_.24} parent=0 // pred_check_branch
    %126 = sbr.rel (0) target = $region25
  $region24: #{_lambda_.24} parent=0 // pred_region
    _
  $region25: #{_lambda_.24} parent=0 // pred_fallthru
    _

// kernel: _lambda_.22
$region0: #{_lambda_.22}
  #allocation0 [shape = 'u32[]', space=smem, size = 0x4, offset = 0x4, fixed_abs, tag = 'smem constant byte address 0x4 - core index']
  #allocation1 [shape = 'u32[144,128]{1,0:T(1,128)}', space=vmem, size = 0x12000, scoped, tag = 'internal scratch']
  %s0 = inlined_call_operand.vmem [shape: bf16[8,4,96], index: 0, kind: input, shape index: {}]
  %s1 = inlined_call_operand.vmem [shape: bf16[8,4,32], index: 1, kind: output, shape index: {}]
  %s2 = sld [smem:[#allocation0]]
  $region37: #{_lambda_.22} parent=0
    _
  %s4 = ssub.s32 1, %s2
  %s5 = scalar_select 0, %s4, %s2
  loop: start=0, step=1, limit=4
  $region2: #{_lambda_.22} parent=0 // loop_pre_header
    _
  $region3: #{_lambda_.22} parent=0 // loop_header
    %s7 = sphi 0, %s11
    %p8 = scmp.ge.s32.totalorder %s7, 4
    %s17 = sphi 0, %s19
    %s20 = sphi 0, %s17
    %s21 = sphi 0, %s20
    %s37 = sphi 0, %s21
    %s43 = sphi 0, %s45
    %s46 = sphi 0, %s43
    %s47 = sphi 0, %s46
    %s63 = sphi 0, %s47
  $region4: #{_lambda_.22} parent=0 // loop_header_branch
    %10 = sbr.rel (%p8) target = $region8
  $region5: #{_lambda_.22} parent=0 // loop_body
    %s12 = ssub.s32 %s7, 1
    %s13 = ssub.s32 %s7, 2
    %s14 = sadd.s32 %s7, 1
    %s15 = ssub.s32 %s7, %s14
    %p16 = scmp.eq.s32.totalorder %s15, 0
    %s18 = sadd.s32 %s17, 1
    %s19 = scalar_select %p16, %s17, %s18
    %p22 = pneg %p16
    %p23 = scmp.eq.s32.totalorder %s7, 1
    %p24 = por %p22, %p23
    %p25 = scmp.ne.s32.totalorder %s17, %s20
    %p26 = scmp.eq.s32.totalorder %s7, 0
    %p27 = por %p25, %p26
    %p28 = scmp.ne.s32.totalorder %s17, %s20
    %p29 = scmp.eq.s32.totalorder %s12, 1
    %p30 = por %p28, %p29
    %p31 = scmp.ne.s32.totalorder %s20, %s21
    %p32 = scmp.eq.s32.totalorder %s12, 0
    %p33 = por %p31, %p32
    %p34 = scmp.ne.s32.totalorder %s20, %s21
    %p35 = scmp.eq.s32.totalorder %s13, 1
    %p36 = por %p34, %p35
    %p38 = scmp.ne.s32.totalorder %s21, %s37
    %p39 = scmp.eq.s32.totalorder %s13, 0
    %p40 = por %p38, %p39
    %s41 = ssub.s32 %s7, %s14
    %p42 = scmp.eq.s32.totalorder %s41, 0
    %s44 = sadd.s32 %s43, 1
    %s45 = scalar_select %p42, %s43, %s44
    %p48 = pneg %p42
    %p49 = scmp.eq.s32.totalorder %s7, 1
    %p50 = por %p48, %p49
    %p51 = scmp.ne.s32.totalorder %s43, %s46
    %p52 = scmp.eq.s32.totalorder %s7, 0
    %p53 = por %p51, %p52
    %p54 = scmp.ne.s32.totalorder %s43, %s46
    %p55 = scmp.eq.s32.totalorder %s12, 1
    %p56 = por %p54, %p55
    %p57 = scmp.ne.s32.totalorder %s46, %s47
    %p58 = scmp.eq.s32.totalorder %s12, 0
    %p59 = por %p57, %p58
    %p60 = scmp.ne.s32.totalorder %s46, %s47
    %p61 = scmp.eq.s32.totalorder %s13, 1
    %p62 = por %p60, %p61
    %p64 = scmp.ne.s32.totalorder %s47, %s63
    %p65 = scmp.eq.s32.totalorder %s13, 0
    %p66 = por %p64, %p65
    %p67 = scmp.le.s32.totalorder 1, %s7
    %p68 = scmp.lt.s32.totalorder %s7, 3
    %p69 = pnand %p67, %p68
    %p70 = pneg %p69
    // Predicated region
    $region9: #{_lambda_.22} parent=5 // pred_check
      _
    $region10: #{_lambda_.22} parent=5 // pred_check_branch
      %72 = sbr.rel (%p69) target = $region12
    $region11: #{_lambda_.22} parent=5 // pred_region
      %s73 = ssub.s32 %s7, 1
    $region12: #{_lambda_.22} parent=5 // pred_fallthru
      _
    %p74 = scmp.lt.s32.totalorder %s7, 2
    // Predicated region
    $region13: #{_lambda_.22} parent=5 // pred_check
      %p75 = pneg %p74
    $region14: #{_lambda_.22} parent=5 // pred_check_branch
      %77 = sbr.rel (%p75) target = $region16
    $region15: #{_lambda_.22} parent=5 // pred_region
      // Predicated region
      $region17: #{_lambda_.22} parent=15 // pred_check
        %p78 = pneg %p27
      $region18: #{_lambda_.22} parent=15 // pred_check_branch
        %80 = sbr.rel (%p78) target = $region20
      $region19: #{_lambda_.22} parent=15 // pred_region
        %s81 = smul.u32 4, %s7
        %p82 = scmp.lt.s32.totalorder %s81, 7
        %s83 = scalar_select %p82, %s81, 7
        %s84 = smul.addr %s83, 2
        %s85 = scalar_lea.vmem %s0, %s84
        %s86 = smul.u32 4, %s7
      $region20: #{_lambda_.22} parent=15 // pred_fallthru
        _
    $region16: #{_lambda_.22} parent=5 // pred_fallthru
      _
    %p87 = scmp.le.s32.totalorder 1, %s7
    %p88 = scmp.lt.s32.totalorder %s7, 3
    %p89 = pnand %p87, %p88
    %p90 = pneg %p89
    // Predicated region
    $region21: #{_lambda_.22} parent=5 // pred_check
      _
    $region22: #{_lambda_.22} parent=5 // pred_check_branch
      %92 = sbr.rel (%p89) target = $region24
    $region23: #{_lambda_.22} parent=5 // pred_region
      %s93 = ssub.s32 %s7, 1
      %s94 = smul.u32 4, %s12
      %p95 = scmp.lt.s32.totalorder %s94, 7
      %s96 = scalar_select %p95, %s94, 7
      %s97 = smul.addr %s96, 2
      %s98 = scalar_lea.vmem %s0, %s97
      %p99 = pneg %p33
      %p100 = pneg %p30
      %p101 = pneg %p59
      %p102 = pneg %p56
      %s103 = smul.u32 4, %s12
      %p104 = scmp.lt.s32.totalorder %s103, 7
      %s105 = scalar_select %p104, %s103, 7
      %s106 = smul.addr %s105, 2
      %s107 = scalar_lea.vmem %s1, %s106
      %s108 = smul.u32 4, %s12
      %p109 = scmp.lt.s32.totalorder %s108, 7
      %s110 = scalar_select %p109, %s108, 7
      %s111 = smul.addr %s110, 2
      %s112 = scalar_lea.vmem %s0, %s111
      %s113 = smul.u32 4, %s12
      %s114 = smul.u32 4, %s12
      %p115 = scmp.lt.s32.totalorder %s114, 7
      %s116 = scalar_select %p115, %s114, 7
      %s117 = smul.addr %s116, 2
      %s118 = scalar_lea.vmem %s1, %s117
      %s119 = smul.u32 4, %s12
      %v121 = vld [vmem:[%s112] sm:$0x3]
      %v122 = vld [vmem:[%s112 + $0x2] sm:$0x3]
      %v123 = vld [vmem:[%s112 + $0x4] sm:$0x3]
      %v124 = vld [vmem:[%s112 + $0x6] sm:$0x3]
      %v127 = vunpack.c.l.s4 1983009808
      %v128 = vunpack.c.0.s8 %v127
      %v129 = vlaneseq
      %v130 = vshrl.u32 %v129, 7
      %v131 = vsub.s32 %v128, %v130
      %v132 = vrot.slane %v121, %v131
      %133 = vrot.lane.b32.xlu0 %v132, 96
      %v134 = vpop.permute.xlu0 %133
      %vm135 = vcmask 64512
      %v137 = vsel %vm135, %v121, 0
      %v140 = vsel %vm135, %v134, 0
      %142 = vmatprep.subr.bf16.mxu0 0
      %143 = vmatpush1.bf16.xpose.msra.mxu0 %v140
      %144 = vmatprep.subr.bf16.mxu0 0
      %145 = vmatpush1.bf16.xpose.msra.mxu0 0
      %146 = vmatprep.subr.bf16.mxu0 0
      %147 = vmatpush1.bf16.xpose.msra.mxu0 0
      %148 = vmatprep.subr.bf16.mxu0 0
      %149 = vmatpush1.bf16.xpose.msra.mxu0 0
      %150 = vmatprep.subr.bf16.mxu0 0
      %151 = vmatpush1.bf16.xpose.msra.mxu0 0
      %152 = vmatprep.subr.bf16.mxu0 0
      %153 = vmatpush1.bf16.xpose.msra.mxu0 0
      %154 = vmatprep.subr.bf16.mxu0 0
      %155 = vmatpush1.bf16.xpose.msra.mxu0 0
      %156 = vmatprep.subr.bf16.mxu0 0
      %157 = vmatpush1.bf16.xpose.msra.mxu0 0
      %158 = vmatprep.subr.bf16.mxu0 0
      %159 = vmatpush1.bf16.xpose.msra.mxu0 0
      %160 = vmatprep.subr.bf16.mxu0 0
      %161 = vmatpush1.bf16.xpose.msra.mxu0 0
      %162 = vmatprep.subr.bf16.mxu0 0
      %163 = vmatpush1.bf16.xpose.msra.mxu0 0
      %164 = vmatprep.subr.bf16.mxu0 0
      %165 = vmatpush1.bf16.xpose.msra.mxu0 0
      %166 = vmatprep.subr.bf16.mxu0 0
      %167 = vmatpush1.bf16.xpose.msra.mxu0 0
      %168 = vmatprep.subr.bf16.mxu0 0
      %169 = vmatpush1.bf16.xpose.msra.mxu0 0
      %170 = vmatprep.subr.bf16.mxu0 0
      %171 = vmatpush1.bf16.xpose.msra.mxu0 0
      %172 = vmatprep.subr.bf16.mxu0 0
      %173 = vmatpush1.bf16.xpose.msra.mxu0 0
      %174 = vmatprep.mubr.bf16.mxu0 0
      %175 = vmatmul.mubr.bf16.gmra.mrb[0].mxu0 %v137
      %v176 = vpop.f32.mrb[0].mxu0
      %v177 = vadd.f32 0.0, %v176
      %v178 = vpop.f32.mrb[0].mxu0
      %v179 = vpop.f32.mrb[0].mxu0
      %v180 = vpop.f32.mrb[0].mxu0
      %181 = vdwg.mxu0
      %v184 = vunpack.c.l.s4 1983009808
      %v185 = vunpack.c.0.s8 %v184
      %v186 = vlaneseq
      %v187 = vshrl.u32 %v186, 7
      %v188 = vsub.s32 %v185, %v187
      %v189 = vrot.slane %v122, %v188
      %190 = vrot.lane.b32.xlu0 %v189, 96
      %v191 = vpop.permute.xlu0 %190
      %v193 = vsel %vm135, %v122, 0
      %v196 = vsel %vm135, %v191, 0
      %198 = vmatprep.subr.bf16.mxu0 0
      %199 = vmatpush1.bf16.xpose.msra.mxu0 %v196
      %200 = vmatprep.subr.bf16.mxu0 0
      %201 = vmatpush1.bf16.xpose.msra.mxu0 0
      %202 = vmatprep.subr.bf16.mxu0 0
      %203 = vmatpush1.bf16.xpose.msra.mxu0 0
      %204 = vmatprep.subr.bf16.mxu0 0
      %205 = vmatpush1.bf16.xpose.msra.mxu0 0
      %206 = vmatprep.subr.bf16.mxu0 0
      %207 = vmatpush1.bf16.xpose.msra.mxu0 0
      %208 = vmatprep.subr.bf16.mxu0 0
      %209 = vmatpush1.bf16.xpose.msra.mxu0 0
      %210 = vmatprep.subr.bf16.mxu0 0
      %211 = vmatpush1.bf16.xpose.msra.mxu0 0
      %212 = vmatprep.subr.bf16.mxu0 0
      %213 = vmatpush1.bf16.xpose.msra.mxu0 0
      %214 = vmatprep.subr.bf16.mxu0 0
      %215 = vmatpush1.bf16.xpose.msra.mxu0 0
      %216 = vmatprep.subr.bf16.mxu0 0
      %217 = vmatpush1.bf16.xpose.msra.mxu0 0
      %218 = vmatprep.subr.bf16.mxu0 0
      %219 = vmatpush1.bf16.xpose.msra.mxu0 0
      %220 = vmatprep.subr.bf16.mxu0 0
      %221 = vmatpush1.bf16.xpose.msra.mxu0 0
      %222 = vmatprep.subr.bf16.mxu0 0
      %223 = vmatpush1.bf16.xpose.msra.mxu0 0
      %224 = vmatprep.subr.bf16.mxu0 0
      %225 = vmatpush1.bf16.xpose.msra.mxu0 0
      %226 = vmatprep.subr.bf16.mxu0 0
      %227 = vmatpush1.bf16.xpose.msra.mxu0 0
      %228 = vmatprep.subr.bf16.mxu0 0
      %229 = vmatpush1.bf16.xpose.msra.mxu0 0
      %230 = vmatprep.mubr.bf16.mxu0 0
      %231 = vmatmul.mubr.bf16.gmra.mrb[0].mxu0 %v193
      %v232 = vpop.f32.mrb[0].mxu0
      %v233 = vadd.f32 0.0, %v232
      %v234 = vpop.f32.mrb[0].mxu0
      %v235 = vpop.f32.mrb[0].mxu0
      %v236 = vpop.f32.mrb[0].mxu0
      %237 = vdwg.mxu0
      %v240 = vunpack.c.l.s4 1983009808
      %v241 = vunpack.c.0.s8 %v240
      %v242 = vlaneseq
      %v243 = vshrl.u32 %v242, 7
      %v244 = vsub.s32 %v241, %v243
      %v245 = vrot.slane %v123, %v244
      %246 = vrot.lane.b32.xlu0 %v245, 96
      %v247 = vpop.permute.xlu0 %246
      %v249 = vsel %vm135, %v123, 0
      %v252 = vsel %vm135, %v247, 0
      %254 = vmatprep.subr.bf16.mxu0 0
      %255 = vmatpush1.bf16.xpose.msra.mxu0 %v252
      %256 = vmatprep.subr.bf16.mxu0 0
      %257 = vmatpush1.bf16.xpose.msra.mxu0 0
      %258 = vmatprep.subr.bf16.mxu0 0
      %259 = vmatpush1.bf16.xpose.msra.mxu0 0
      %260 = vmatprep.subr.bf16.mxu0 0
      %261 = vmatpush1.bf16.xpose.msra.mxu0 0
      %262 = vmatprep.subr.bf16.mxu0 0
      %263 = vmatpush1.bf16.xpose.msra.mxu0 0
      %264 = vmatprep.subr.bf16.mxu0 0
      %265 = vmatpush1.bf16.xpose.msra.mxu0 0
      %266 = vmatprep.subr.bf16.mxu0 0
      %267 = vmatpush1.bf16.xpose.msra.mxu0 0
      %268 = vmatprep.subr.bf16.mxu0 0
      %269 = vmatpush1.bf16.xpose.msra.mxu0 0
      %270 = vmatprep.subr.bf16.mxu0 0
      %271 = vmatpush1.bf16.xpose.msra.mxu0 0
      %272 = vmatprep.subr.bf16.mxu0 0
      %273 = vmatpush1.bf16.xpose.msra.mxu0 0
      %274 = vmatprep.subr.bf16.mxu0 0
      %275 = vmatpush1.bf16.xpose.msra.mxu0 0
      %276 = vmatprep.subr.bf16.mxu0 0
      %277 = vmatpush1.bf16.xpose.msra.mxu0 0
      %278 = vmatprep.subr.bf16.mxu0 0
      %279 = vmatpush1.bf16.xpose.msra.mxu0 0
      %280 = vmatprep.subr.bf16.mxu0 0
      %281 = vmatpush1.bf16.xpose.msra.mxu0 0
      %282 = vmatprep.subr.bf16.mxu0 0
      %283 = vmatpush1.bf16.xpose.msra.mxu0 0
      %284 = vmatprep.subr.bf16.mxu0 0
      %285 = vmatpush1.bf16.xpose.msra.mxu0 0
      %286 = vmatprep.mubr.bf16.mxu0 0
      %287 = vmatmul.mubr.bf16.gmra.mrb[0].mxu0 %v249
      %v288 = vpop.f32.mrb[0].mxu0
      %v289 = vadd.f32 0.0, %v288
      %v290 = vpop.f32.mrb[0].mxu0
      %v291 = vpop.f32.mrb[0].mxu0
      %v292 = vpop.f32.mrb[0].mxu0
      %293 = vdwg.mxu0
      %v296 = vunpack.c.l.s4 1983009808
      %v297 = vunpack.c.0.s8 %v296
      %v298 = vlaneseq
      %v299 = vshrl.u32 %v298, 7
      %v300 = vsub.s32 %v297, %v299
      %v301 = vrot.slane %v124, %v300
      %302 = vrot.lane.b32.xlu0 %v301, 96
      %v303 = vpop.permute.xlu0 %302
      %v305 = vsel %vm135, %v124, 0
      %v308 = vsel %vm135, %v303, 0
      %310 = vmatprep.subr.bf16.mxu0 0
      %311 = vmatpush1.bf16.xpose.msra.mxu0 %v308
      %312 = vmatprep.subr.bf16.mxu0 0
      %313 = vmatpush1.bf16.xpose.msra.mxu0 0
      %314 = vmatprep.subr.bf16.mxu0 0
      %315 = vmatpush1.bf16.xpose.msra.mxu0 0
      %316 = vmatprep.subr.bf16.mxu0 0
      %317 = vmatpush1.bf16.xpose.msra.mxu0 0
      %318 = vmatprep.subr.bf16.mxu0 0
      %319 = vmatpush1.bf16.xpose.msra.mxu0 0
      %320 = vmatprep.subr.bf16.mxu0 0
      %321 = vmatpush1.bf16.xpose.msra.mxu0 0
      %322 = vmatprep.subr.bf16.mxu0 0
      %323 = vmatpush1.bf16.xpose.msra.mxu0 0
      %324 = vmatprep.subr.bf16.mxu0 0
      %325 = vmatpush1.bf16.xpose.msra.mxu0 0
      %326 = vmatprep.subr.bf16.mxu0 0
      %327 = vmatpush1.bf16.xpose.msra.mxu0 0
      %328 = vmatprep.subr.bf16.mxu0 0
      %329 = vmatpush1.bf16.xpose.msra.mxu0 0
      %330 = vmatprep.subr.bf16.mxu0 0
      %331 = vmatpush1.bf16.xpose.msra.mxu0 0
      %332 = vmatprep.subr.bf16.mxu0 0
      %333 = vmatpush1.bf16.xpose.msra.mxu0 0
      %334 = vmatprep.subr.bf16.mxu0 0
      %335 = vmatpush1.bf16.xpose.msra.mxu0 0
      %336 = vmatprep.subr.bf16.mxu0 0
      %337 = vmatpush1.bf16.xpose.msra.mxu0 0
      %338 = vmatprep.subr.bf16.mxu0 0
      %339 = vmatpush1.bf16.xpose.msra.mxu0 0
      %340 = vmatprep.subr.bf16.mxu0 0
      %341 = vmatpush1.bf16.xpose.msra.mxu0 0
      %342 = vmatprep.mubr.bf16.mxu0 0
      %343 = vmatmul.mubr.bf16.gmra.mrb[0].mxu0 %v305
      %v344 = vpop.f32.mrb[0].mxu0
      %v345 = vadd.f32 0.0, %v344
      %v346 = vpop.f32.mrb[0].mxu0
      %v347 = vpop.f32.mrb[0].mxu0
      %v348 = vpop.f32.mrb[0].mxu0
      %349 = vdwg.mxu0
      %v350 = vmul.f32 %v177, 0.35355338
      %v351 = vmul.f32 %v233, 0.35355338
      %v352 = vmul.f32 %v289, 0.35355338
      %v353 = vmul.f32 %v345, 0.35355338
      %vm354 = vcmask 27648
      %v355 = vsel %vm354, %v350, -inf
      %356 = vmax.xlane.f32.xlu0 %v355
      %v357 = vpop.xlane.xlu0 %356
      %v358 = vsel %vm354, %v351, -inf
      %359 = vmax.xlane.f32.xlu0 %v358
      %v360 = vpop.xlane.xlu0 %359
      %v361 = vsel %vm354, %v352, -inf
      %362 = vmax.xlane.f32.xlu0 %v361
      %v363 = vpop.xlane.xlu0 %362
      %v364 = vsel %vm354, %v353, -inf
      %365 = vmax.xlane.f32.xlu0 %v364
      %v366 = vpop.xlane.xlu0 %365
      %v367 = vsub.f32 %v350, %v357
      %v368 = vsub.f32 %v351, %v360
      %v369 = vsub.f32 %v352, %v363
      %v370 = vsub.f32 %v353, %v366
      %v371 = vmul.f32 %v367, 1.442695
      %v372 = vpow.pop %v371
      %v373 = vmul.f32 %v368, 1.442695
      %v374 = vpow.pop %v373
      %v375 = vmul.f32 %v369, 1.442695
      %v376 = vpow.pop %v375
      %v377 = vmul.f32 %v370, 1.442695
      %v378 = vpow.pop %v377
      %v379 = vsel %vm354, %v372, 0.0
      %380 = vadd.xlane.f32.xlu0 %v379
      %v381 = vpop.xlane.xlu0 %380
      %v382 = vsel %vm354, %v374, 0.0
      %383 = vadd.xlane.f32.xlu0 %v382
      %v384 = vpop.xlane.xlu0 %383
      %v385 = vsel %vm354, %v376, 0.0
      %386 = vadd.xlane.f32.xlu0 %v385
      %v387 = vpop.xlane.xlu0 %386
      %v388 = vsel %vm354, %v378, 0.0
      %389 = vadd.xlane.f32.xlu0 %v388
      %v390 = vpop.xlane.xlu0 %389
      %v391 = vpack.c.bf16 %v372, %v372
      %v392 = vpack.c.bf16 %v374, %v374
      %v393 = vpack.c.bf16 %v376, %v376
      %v394 = vpack.c.bf16 %v378, %v378
      %395 = vrot.lane.b32.xlu0 %v132, 64
      %v396 = vpop.permute.xlu0 %395
      %vm397 = vcmask 31744
      %v399 = vsel %vm397, %v391, 0
      %vm401 = vcmask 1041408
      %v403 = vsel %vm401, %v396, 0
      %405 = vmatprep.subr.bf16.mxu0 0
      %406 = vmatpush1.bf16.msra.mxu0 %v403
      %407 = vmatprep.subr.bf16.mxu0 0
      %408 = vmatpush1.bf16.msra.mxu0 0
      %409 = vmatprep.subr.bf16.mxu0 0
      %410 = vmatpush1.bf16.msra.mxu0 0
      %411 = vmatprep.subr.bf16.mxu0 0
      %412 = vmatpush1.bf16.msra.mxu0 0
      %413 = vmatprep.subr.bf16.mxu0 0
      %414 = vmatpush1.bf16.msra.mxu0 0
      %415 = vmatprep.subr.bf16.mxu0 0
      %416 = vmatpush1.bf16.msra.mxu0 0
      %417 = vmatprep.subr.bf16.mxu0 0
      %418 = vmatpush1.bf16.msra.mxu0 0
      %419 = vmatprep.subr.bf16.mxu0 0
      %420 = vmatpush1.bf16.msra.mxu0 0
      %421 = vmatprep.subr.bf16.mxu0 0
      %422 = vmatpush1.bf16.msra.mxu0 0
      %423 = vmatprep.subr.bf16.mxu0 0
      %424 = vmatpush1.bf16.msra.mxu0 0
      %425 = vmatprep.subr.bf16.mxu0 0
      %426 = vmatpush1.bf16.msra.mxu0 0
      %427 = vmatprep.subr.bf16.mxu0 0
      %428 = vmatpush1.bf16.msra.mxu0 0
      %429 = vmatprep.subr.bf16.mxu0 0
      %430 = vmatpush1.bf16.msra.mxu0 0
      %431 = vmatprep.subr.bf16.mxu0 0
      %432 = vmatpush1.bf16.msra.mxu0 0
      %433 = vmatprep.subr.bf16.mxu0 0
      %434 = vmatpush1.bf16.msra.mxu0 0
      %435 = vmatprep.subr.bf16.mxu0 0
      %436 = vmatpush1.bf16.msra.mxu0 0
      %437 = vmatprep.mubr.bf16.mxu0 0
      %438 = vmatmul.mubr.bf16.gmra.mrb[0].mxu0 %v399
      %v439 = vpop.f32.mrb[0].mxu0
      %v440 = vadd.f32 0.0, %v439
      %v441 = vpop.f32.mrb[0].mxu0
      %v442 = vpop.f32.mrb[0].mxu0
      %v443 = vpop.f32.mrb[0].mxu0
      %444 = vdwg.mxu0
      %445 = vrot.lane.b32.xlu0 %v189, 64
      %v446 = vpop.permute.xlu0 %445
      %v448 = vsel %vm397, %v392, 0
      %v451 = vsel %vm401, %v446, 0
      %453 = vmatprep.subr.bf16.mxu0 0
      %454 = vmatpush1.bf16.msra.mxu0 %v451
      %455 = vmatprep.subr.bf16.mxu0 0
      %456 = vmatpush1.bf16.msra.mxu0 0
      %457 = vmatprep.subr.bf16.mxu0 0
      %458 = vmatpush1.bf16.msra.mxu0 0
      %459 = vmatprep.subr.bf16.mxu0 0
      %460 = vmatpush1.bf16.msra.mxu0 0
      %461 = vmatprep.subr.bf16.mxu0 0
      %462 = vmatpush1.bf16.msra.mxu0 0
      %463 = vmatprep.subr.bf16.mxu0 0
      %464 = vmatpush1.bf16.msra.mxu0 0
      %465 = vmatprep.subr.bf16.mxu0 0
      %466 = vmatpush1.bf16.msra.mxu0 0
      %467 = vmatprep.subr.bf16.mxu0 0
      %468 = vmatpush1.bf16.msra.mxu0 0
      %469 = vmatprep.subr.bf16.mxu0 0
      %470 = vmatpush1.bf16.msra.mxu0 0
      %471 = vmatprep.subr.bf16.mxu0 0
      %472 = vmatpush1.bf16.msra.mxu0 0
      %473 = vmatprep.subr.bf16.mxu0 0
      %474 = vmatpush1.bf16.msra.mxu0 0
      %475 = vmatprep.subr.bf16.mxu0 0
      %476 = vmatpush1.bf16.msra.mxu0 0
      %477 = vmatprep.subr.bf16.mxu0 0
      %478 = vmatpush1.bf16.msra.mxu0 0
      %479 = vmatprep.subr.bf16.mxu0 0
      %480 = vmatpush1.bf16.msra.mxu0 0
      %481 = vmatprep.subr.bf16.mxu0 0
      %482 = vmatpush1.bf16.msra.mxu0 0
      %483 = vmatprep.subr.bf16.mxu0 0
      %484 = vmatpush1.bf16.msra.mxu0 0
      %485 = vmatprep.mubr.bf16.mxu0 0
      %486 = vmatmul.mubr.bf16.gmra.mrb[0].mxu0 %v448
      %v487 = vpop.f32.mrb[0].mxu0
      %v488 = vadd.f32 0.0, %v487
      %v489 = vpop.f32.mrb[0].mxu0
      %v490 = vpop.f32.mrb[0].mxu0
      %v491 = vpop.f32.mrb[0].mxu0
      %492 = vdwg.mxu0
      %493 = vrot.lane.b32.xlu0 %v245, 64
      %v494 = vpop.permute.xlu0 %493
      %v496 = vsel %vm397, %v393, 0
      %v499 = vsel %vm401, %v494, 0
      %501 = vmatprep.subr.bf16.mxu0 0
      %502 = vmatpush1.bf16.msra.mxu0 %v499
      %503 = vmatprep.subr.bf16.mxu0 0
      %504 = vmatpush1.bf16.msra.mxu0 0
      %505 = vmatprep.subr.bf16.mxu0 0
      %506 = vmatpush1.bf16.msra.mxu0 0
      %507 = vmatprep.subr.bf16.mxu0 0
      %508 = vmatpush1.bf16.msra.mxu0 0
      %509 = vmatprep.subr.bf16.mxu0 0
      %510 = vmatpush1.bf16.msra.mxu0 0
      %511 = vmatprep.subr.bf16.mxu0 0
      %512 = vmatpush1.bf16.msra.mxu0 0
      %513 = vmatprep.subr.bf16.mxu0 0
      %514 = vmatpush1.bf16.msra.mxu0 0
      %515 = vmatprep.subr.bf16.mxu0 0
      %516 = vmatpush1.bf16.msra.mxu0 0
      %517 = vmatprep.subr.bf16.mxu0 0
      %518 = vmatpush1.bf16.msra.mxu0 0
      %519 = vmatprep.subr.bf16.mxu0 0
      %520 = vmatpush1.bf16.msra.mxu0 0
      %521 = vmatprep.subr.bf16.mxu0 0
      %522 = vmatpush1.bf16.msra.mxu0 0
      %523 = vmatprep.subr.bf16.mxu0 0
      %524 = vmatpush1.bf16.msra.mxu0 0
      %525 = vmatprep.subr.bf16.mxu0 0
      %526 = vmatpush1.bf16.msra.mxu0 0
      %527 = vmatprep.subr.bf16.mxu0 0
      %528 = vmatpush1.bf16.msra.mxu0 0
      %529 = vmatprep.subr.bf16.mxu0 0
      %530 = vmatpush1.bf16.msra.mxu0 0
      %531 = vmatprep.subr.bf16.mxu0 0
      %532 = vmatpush1.bf16.msra.mxu0 0
      %533 = vmatprep.mubr.bf16.mxu0 0
      %534 = vmatmul.mubr.bf16.gmra.mrb[0].mxu0 %v496
      %v535 = vpop.f32.mrb[0].mxu0
      %v536 = vadd.f32 0.0, %v535
      %v537 = vpop.f32.mrb[0].mxu0
      %v538 = vpop.f32.mrb[0].mxu0
      %v539 = vpop.f32.mrb[0].mxu0
      %540 = vdwg.mxu0
      %541 = vrot.lane.b32.xlu0 %v301, 64
      %v542 = vpop.permute.xlu0 %541
      %v544 = vsel %vm397, %v394, 0
      %v547 = vsel %vm401, %v542, 0
      %549 = vmatprep.subr.bf16.mxu0 0
      %550 = vmatpush1.bf16.msra.mxu0 %v547
      %551 = vmatprep.subr.bf16.mxu0 0
      %552 = vmatpush1.bf16.msra.mxu0 0
      %553 = vmatprep.subr.bf16.mxu0 0
      %554 = vmatpush1.bf16.msra.mxu0 0
      %555 = vmatprep.subr.bf16.mxu0 0
      %556 = vmatpush1.bf16.msra.mxu0 0
      %557 = vmatprep.subr.bf16.mxu0 0
      %558 = vmatpush1.bf16.msra.mxu0 0
      %559 = vmatprep.subr.bf16.mxu0 0
      %560 = vmatpush1.bf16.msra.mxu0 0
      %561 = vmatprep.subr.bf16.mxu0 0
      %562 = vmatpush1.bf16.msra.mxu0 0
      %563 = vmatprep.subr.bf16.mxu0 0
      %564 = vmatpush1.bf16.msra.mxu0 0
      %565 = vmatprep.subr.bf16.mxu0 0
      %566 = vmatpush1.bf16.msra.mxu0 0
      %567 = vmatprep.subr.bf16.mxu0 0
      %568 = vmatpush1.bf16.msra.mxu0 0
      %569 = vmatprep.subr.bf16.mxu0 0
      %570 = vmatpush1.bf16.msra.mxu0 0
      %571 = vmatprep.subr.bf16.mxu0 0
      %572 = vmatpush1.bf16.msra.mxu0 0
      %573 = vmatprep.subr.bf16.mxu0 0
      %574 = vmatpush1.bf16.msra.mxu0 0
      %575 = vmatprep.subr.bf16.mxu0 0
      %576 = vmatpush1.bf16.msra.mxu0 0
      %577 = vmatprep.subr.bf16.mxu0 0
      %578 = vmatpush1.bf16.msra.mxu0 0
      %579 = vmatprep.subr.bf16.mxu0 0
      %580 = vmatpush1.bf16.msra.mxu0 0
      %581 = vmatprep.mubr.bf16.mxu0 0
      %582 = vmatmul.mubr.bf16.gmra.mrb[0].mxu0 %v544
      %v583 = vpop.f32.mrb[0].mxu0
      %v584 = vadd.f32 0.0, %v583
      %v585 = vpop.f32.mrb[0].mxu0
      %v586 = vpop.f32.mrb[0].mxu0
      %v587 = vpop.f32.mrb[0].mxu0
      %588 = vdwg.mxu0
      %v589 = vrcp.pop %v381
      %v590 = vrcp.pop %v384
      %v591 = vrcp.pop %v387
      %v592 = vrcp.pop %v390
      %v593 = vmul.f32 %v440, %v589
      %v594 = vmul.f32 %v488, %v590
      %v595 = vmul.f32 %v536, %v591
      %v596 = vmul.f32 %v584, %v592
      %597 = vrot.lane.b32.xlu0 %v132, 120
      %v598 = vpop.permute.xlu0 %597
      %599 = vrot.lane.b32.xlu0 %v132, 88
      %v600 = vpop.permute.xlu0 %599
      %v602 = vsel %vm135, %v598, 0
      %v605 = vsel %vm135, %v600, 0
      %607 = vmatprep.subr.bf16.mxu0 0
      %608 = vmatpush1.bf16.xpose.msra.mxu0 %v605
      %609 = vmatprep.subr.bf16.mxu0 0
      %610 = vmatpush1.bf16.xpose.msra.mxu0 0
      %611 = vmatprep.subr.bf16.mxu0 0
      %612 = vmatpush1.bf16.xpose.msra.mxu0 0
      %613 = vmatprep.subr.bf16.mxu0 0
      %614 = vmatpush1.bf16.xpose.msra.mxu0 0
      %615 = vmatprep.subr.bf16.mxu0 0
      %616 = vmatpush1.bf16.xpose.msra.mxu0 0
      %617 = vmatprep.subr.bf16.mxu0 0
      %618 = vmatpush1.bf16.xpose.msra.mxu0 0
      %619 = vmatprep.subr.bf16.mxu0 0
      %620 = vmatpush1.bf16.xpose.msra.mxu0 0
      %621 = vmatprep.subr.bf16.mxu0 0
      %622 = vmatpush1.bf16.xpose.msra.mxu0 0
      %623 = vmatprep.subr.bf16.mxu0 0
      %624 = vmatpush1.bf16.xpose.msra.mxu0 0
      %625 = vmatprep.subr.bf16.mxu0 0
      %626 = vmatpush1.bf16.xpose.msra.mxu0 0
      %627 = vmatprep.subr.bf16.mxu0 0
      %628 = vmatpush1.bf16.xpose.msra.mxu0 0
      %629 = vmatprep.subr.bf16.mxu0 0
      %630 = vmatpush1.bf16.xpose.msra.mxu0 0
      %631 = vmatprep.subr.bf16.mxu0 0
      %632 = vmatpush1.bf16.xpose.msra.mxu0 0
      %633 = vmatprep.subr.bf16.mxu0 0
      %634 = vmatpush1.bf16.xpose.msra.mxu0 0
      %635 = vmatprep.subr.bf16.mxu0 0
      %636 = vmatpush1.bf16.xpose.msra.mxu0 0
      %637 = vmatprep.subr.bf16.mxu0 0
      %638 = vmatpush1.bf16.xpose.msra.mxu0 0
      %639 = vmatprep.mubr.bf16.mxu0 0
      %640 = vmatmul.mubr.bf16.gmra.mrb[0].mxu0 %v602
      %v641 = vpop.f32.mrb[0].mxu0
      %v642 = vadd.f32 0.0, %v641
      %v643 = vpop.f32.mrb[0].mxu0
      %v644 = vpop.f32.mrb[0].mxu0
      %v645 = vpop.f32.mrb[0].mxu0
      %646 = vdwg.mxu0
      %647 = vrot.lane.b32.xlu0 %v189, 120
      %v648 = vpop.permute.xlu0 %647
      %649 = vrot.lane.b32.xlu0 %v189, 88
      %v650 = vpop.permute.xlu0 %649
      %v652 = vsel %vm135, %v648, 0
      %v655 = vsel %vm135, %v650, 0
      %657 = vmatprep.subr.bf16.mxu0 0
      %658 = vmatpush1.bf16.xpose.msra.mxu0 %v655
      %659 = vmatprep.subr.bf16.mxu0 0
      %660 = vmatpush1.bf16.xpose.msra.mxu0 0
      %661 = vmatprep.subr.bf16.mxu0 0
      %662 = vmatpush1.bf16.xpose.msra.mxu0 0
      %663 = vmatprep.subr.bf16.mxu0 0
      %664 = vmatpush1.bf16.xpose.msra.mxu0 0
      %665 = vmatprep.subr.bf16.mxu0 0
      %666 = vmatpush1.bf16.xpose.msra.mxu0 0
      %667 = vmatprep.subr.bf16.mxu0 0
      %668 = vmatpush1.bf16.xpose.msra.mxu0 0
      %669 = vmatprep.subr.bf16.mxu0 0
      %670 = vmatpush1.bf16.xpose.msra.mxu0 0
      %671 = vmatprep.subr.bf16.mxu0 0
      %672 = vmatpush1.bf16.xpose.msra.mxu0 0
      %673 = vmatprep.subr.bf16.mxu0 0
      %674 = vmatpush1.bf16.xpose.msra.mxu0 0
      %675 = vmatprep.subr.bf16.mxu0 0
      %676 = vmatpush1.bf16.xpose.msra.mxu0 0
      %677 = vmatprep.subr.bf16.mxu0 0
      %678 = vmatpush1.bf16.xpose.msra.mxu0 0
      %679 = vmatprep.subr.bf16.mxu0 0
      %680 = vmatpush1.bf16.xpose.msra.mxu0 0
      %681 = vmatprep.subr.bf16.mxu0 0
      %682 = vmatpush1.bf16.xpose.msra.mxu0 0
      %683 = vmatprep.subr.bf16.mxu0 0
      %684 = vmatpush1.bf16.xpose.msra.mxu0 0
      %685 = vmatprep.subr.bf16.mxu0 0
      %686 = vmatpush1.bf16.xpose.msra.mxu0 0
      %687 = vmatprep.subr.bf16.mxu0 0
      %688 = vmatpush1.bf16.xpose.msra.mxu0 0
      %689 = vmatprep.mubr.bf16.mxu0 0
      %690 = vmatmul.mubr.bf16.gmra.mrb[0].mxu0 %v652
      %v691 = vpop.f32.mrb[0].mxu0
      %v692 = vadd.f32 0.0, %v691
      %v693 = vpop.f32.mrb[0].mxu0
      %v694 = vpop.f32.mrb[0].mxu0
      %v695 = vpop.f32.mrb[0].mxu0
      %696 = vdwg.mxu0
      %697 = vrot.lane.b32.xlu0 %v245, 120
      %v698 = vpop.permute.xlu0 %697
      %699 = vrot.lane.b32.xlu0 %v245, 88
      %v700 = vpop.permute.xlu0 %699
      %v702 = vsel %vm135, %v698, 0
      %v705 = vsel %vm135, %v700, 0
      %707 = vmatprep.subr.bf16.mxu0 0
      %708 = vmatpush1.bf16.xpose.msra.mxu0 %v705
      %709 = vmatprep.subr.bf16.mxu0 0
      %710 = vmatpush1.bf16.xpose.msra.mxu0 0
      %711 = vmatprep.subr.bf16.mxu0 0
      %712 = vmatpush1.bf16.xpose.msra.mxu0 0
      %713 = vmatprep.subr.bf16.mxu0 0
      %714 = vmatpush1.bf16.xpose.msra.mxu0 0
      %715 = vmatprep.subr.bf16.mxu0 0
      %716 = vmatpush1.bf16.xpose.msra.mxu0 0
      %717 = vmatprep.subr.bf16.mxu0 0
      %718 = vmatpush1.bf16.xpose.msra.mxu0 0
      %719 = vmatprep.subr.bf16.mxu0 0
      %720 = vmatpush1.bf16.xpose.msra.mxu0 0
      %721 = vmatprep.subr.bf16.mxu0 0
      %722 = vmatpush1.bf16.xpose.msra.mxu0 0
      %723 = vmatprep.subr.bf16.mxu0 0
      %724 = vmatpush1.bf16.xpose.msra.mxu0 0
      %725 = vmatprep.subr.bf16.mxu0 0
      %726 = vmatpush1.bf16.xpose.msra.mxu0 0
      %727 = vmatprep.subr.bf16.mxu0 0
      %728 = vmatpush1.bf16.xpose.msra.mxu0 0
      %729 = vmatprep.subr.bf16.mxu0 0
      %730 = vmatpush1.bf16.xpose.msra.mxu0 0
      %731 = vmatprep.subr.bf16.mxu0 0
      %732 = vmatpush1.bf16.xpose.msra.mxu0 0
      %733 = vmatprep.subr.bf16.mxu0 0
      %734 = vmatpush1.bf16.xpose.msra.mxu0 0
      %735 = vmatprep.subr.bf16.mxu0 0
      %736 = vmatpush1.bf16.xpose.msra.mxu0 0
      %737 = vmatprep.subr.bf16.mxu0 0
      %738 = vmatpush1.bf16.xpose.msra.mxu0 0
      %739 = vmatprep.mubr.bf16.mxu0 0
      %740 = vmatmul.mubr.bf16.gmra.mrb[0].mxu0 %v702
      %v741 = vpop.f32.mrb[0].mxu0
      %v742 = vadd.f32 0.0, %v741
      %v743 = vpop.f32.mrb[0].mxu0
      %v744 = vpop.f32.mrb[0].mxu0
      %v745 = vpop.f32.mrb[0].mxu0
      %746 = vdwg.mxu0
      %747 = vrot.lane.b32.xlu0 %v301, 120
      %v748 = vpop.permute.xlu0 %747
      %749 = vrot.lane.b32.xlu0 %v301, 88
      %v750 = vpop.permute.xlu0 %749
      %v752 = vsel %vm135, %v748, 0
      %v755 = vsel %vm135, %v750, 0
      %757 = vmatprep.subr.bf16.mxu0 0
      %758 = vmatpush1.bf16.xpose.msra.mxu0 %v755
      %759 = vmatprep.subr.bf16.mxu0 0
      %760 = vmatpush1.bf16.xpose.msra.mxu0 0
      %761 = vmatprep.subr.bf16.mxu0 0
      %762 = vmatpush1.bf16.xpose.msra.mxu0 0
      %763 = vmatprep.subr.bf16.mxu0 0
      %764 = vmatpush1.bf16.xpose.msra.mxu0 0
      %765 = vmatprep.subr.bf16.mxu0 0
      %766 = vmatpush1.bf16.xpose.msra.mxu0 0
      %767 = vmatprep.subr.bf16.mxu0 0
      %768 = vmatpush1.bf16.xpose.msra.mxu0 0
      %769 = vmatprep.subr.bf16.mxu0 0
      %770 = vmatpush1.bf16.xpose.msra.mxu0 0
      %771 = vmatprep.subr.bf16.mxu0 0
      %772 = vmatpush1.bf16.xpose.msra.mxu0 0
      %773 = vmatprep.subr.bf16.mxu0 0
      %774 = vmatpush1.bf16.xpose.msra.mxu0 0
      %775 = vmatprep.subr.bf16.mxu0 0
      %776 = vmatpush1.bf16.xpose.msra.mxu0 0
      %777 = vmatprep.subr.bf16.mxu0 0
      %778 = vmatpush1.bf16.xpose.msra.mxu0 0
      %779 = vmatprep.subr.bf16.mxu0 0
      %780 = vmatpush1.bf16.xpose.msra.mxu0 0
      %781 = vmatprep.subr.bf16.mxu0 0
      %782 = vmatpush1.bf16.xpose.msra.mxu0 0
      %783 = vmatprep.subr.bf16.mxu0 0
      %784 = vmatpush1.bf16.xpose.msra.mxu0 0
      %785 = vmatprep.subr.bf16.mxu0 0
      %786 = vmatpush1.bf16.xpose.msra.mxu0 0
      %787 = vmatprep.subr.bf16.mxu0 0
      %788 = vmatpush1.bf16.xpose.msra.mxu0 0
      %789 = vmatprep.mubr.bf16.mxu0 0
      %790 = vmatmul.mubr.bf16.gmra.mrb[0].mxu0 %v752
      %v791 = vpop.f32.mrb[0].mxu0
      %v792 = vadd.f32 0.0, %v791
      %v793 = vpop.f32.mrb[0].mxu0
      %v794 = vpop.f32.mrb[0].mxu0
      %v795 = vpop.f32.mrb[0].mxu0
      %796 = vdwg.mxu0
      %v797 = vmul.f32 %v642, 0.35355338
      %v798 = vmul.f32 %v692, 0.35355338
      %v799 = vmul.f32 %v742, 0.35355338
      %v800 = vmul.f32 %v792, 0.35355338
      %v801 = vsel %vm354, %v797, -inf
      %802 = vmax.xlane.f32.xlu0 %v801
      %v803 = vpop.xlane.xlu0 %802
      %v804 = vsel %vm354, %v798, -inf
      %805 = vmax.xlane.f32.xlu0 %v804
      %v806 = vpop.xlane.xlu0 %805
      %v807 = vsel %vm354, %v799, -inf
      %808 = vmax.xlane.f32.xlu0 %v807
      %v809 = vpop.xlane.xlu0 %808
      %v810 = vsel %vm354, %v800, -inf
      %811 = vmax.xlane.f32.xlu0 %v810
      %v812 = vpop.xlane.xlu0 %811
      %v813 = vsub.f32 %v797, %v803
      %v814 = vsub.f32 %v798, %v806
      %v815 = vsub.f32 %v799, %v809
      %v816 = vsub.f32 %v800, %v812
      %v817 = vmul.f32 %v813, 1.442695
      %v818 = vpow.pop %v817
      %v819 = vmul.f32 %v814, 1.442695
      %v820 = vpow.pop %v819
      %v821 = vmul.f32 %v815, 1.442695
      %v822 = vpow.pop %v821
      %v823 = vmul.f32 %v816, 1.442695
      %v824 = vpow.pop %v823
      %v825 = vsel %vm354, %v818, 0.0
      %826 = vadd.xlane.f32.xlu0 %v825
      %v827 = vpop.xlane.xlu0 %826
      %v828 = vsel %vm354, %v820, 0.0
      %829 = vadd.xlane.f32.xlu0 %v828
      %v830 = vpop.xlane.xlu0 %829
      %v831 = vsel %vm354, %v822, 0.0
      %832 = vadd.xlane.f32.xlu0 %v831
      %v833 = vpop.xlane.xlu0 %832
      %v834 = vsel %vm354, %v824, 0.0
      %835 = vadd.xlane.f32.xlu0 %v834
      %v836 = vpop.xlane.xlu0 %835
      %v837 = vpack.c.bf16 %v818, %v818
      %v838 = vpack.c.bf16 %v820, %v820
      %v839 = vpack.c.bf16 %v822, %v822
      %v840 = vpack.c.bf16 %v824, %v824
      %841 = vrot.lane.b32.xlu0 %v132, 56
      %v842 = vpop.permute.xlu0 %841
      %v844 = vsel %vm397, %v837, 0
      %v847 = vsel %vm401, %v842, 0
      %849 = vmatprep.subr.bf16.mxu0 0
      %850 = vmatpush1.bf16.msra.mxu0 %v847
      %851 = vmatprep.subr.bf16.mxu0 0
      %852 = vmatpush1.bf16.msra.mxu0 0
      %853 = vmatprep.subr.bf16.mxu0 0
      %854 = vmatpush1.bf16.msra.mxu0 0
      %855 = vmatprep.subr.bf16.mxu0 0
      %856 = vmatpush1.bf16.msra.mxu0 0
      %857 = vmatprep.subr.bf16.mxu0 0
      %858 = vmatpush1.bf16.msra.mxu0 0
      %859 = vmatprep.subr.bf16.mxu0 0
      %860 = vmatpush1.bf16.msra.mxu0 0
      %861 = vmatprep.subr.bf16.mxu0 0
      %862 = vmatpush1.bf16.msra.mxu0 0
      %863 = vmatprep.subr.bf16.mxu0 0
      %864 = vmatpush1.bf16.msra.mxu0 0
      %865 = vmatprep.subr.bf16.mxu0 0
      %866 = vmatpush1.bf16.msra.mxu0 0
      %867 = vmatprep.subr.bf16.mxu0 0
      %868 = vmatpush1.bf16.msra.mxu0 0
      %869 = vmatprep.subr.bf16.mxu0 0
      %870 = vmatpush1.bf16.msra.mxu0 0
      %871 = vmatprep.subr.bf16.mxu0 0
      %872 = vmatpush1.bf16.msra.mxu0 0
      %873 = vmatprep.subr.bf16.mxu0 0
      %874 = vmatpush1.bf16.msra.mxu0 0
      %875 = vmatprep.subr.bf16.mxu0 0
      %876 = vmatpush1.bf16.msra.mxu0 0
      %877 = vmatprep.subr.bf16.mxu0 0
      %878 = vmatpush1.bf16.msra.mxu0 0
      %879 = vmatprep.subr.bf16.mxu0 0
      %880 = vmatpush1.bf16.msra.mxu0 0
      %881 = vmatprep.mubr.bf16.mxu0 0
      %882 = vmatmul.mubr.bf16.gmra.mrb[0].mxu0 %v844
      %v883 = vpop.f32.mrb[0].mxu0
      %v884 = vadd.f32 0.0, %v883
      %v885 = vpop.f32.mrb[0].mxu0
      %v886 = vpop.f32.mrb[0].mxu0
      %v887 = vpop.f32.mrb[0].mxu0
      %888 = vdwg.mxu0
      %889 = vrot.lane.b32.xlu0 %v189, 56
      %v890 = vpop.permute.xlu0 %889
      %v892 = vsel %vm397, %v838, 0
      %v895 = vsel %vm401, %v890, 0
      %897 = vmatprep.subr.bf16.mxu0 0
      %898 = vmatpush1.bf16.msra.mxu0 %v895
      %899 = vmatprep.subr.bf16.mxu0 0
      %900 = vmatpush1.bf16.msra.mxu0 0
      %901 = vmatprep.subr.bf16.mxu0 0
      %902 = vmatpush1.bf16.msra.mxu0 0
      %903 = vmatprep.subr.bf16.mxu0 0
      %904 = vmatpush1.bf16.msra.mxu0 0
      %905 = vmatprep.subr.bf16.mxu0 0
      %906 = vmatpush1.bf16.msra.mxu0 0
      %907 = vmatprep.subr.bf16.mxu0 0
      %908 = vmatpush1.bf16.msra.mxu0 0
      %909 = vmatprep.subr.bf16.mxu0 0
      %910 = vmatpush1.bf16.msra.mxu0 0
      %911 = vmatprep.subr.bf16.mxu0 0
      %912 = vmatpush1.bf16.msra.mxu0 0
      %913 = vmatprep.subr.bf16.mxu0 0
      %914 = vmatpush1.bf16.msra.mxu0 0
      %915 = vmatprep.subr.bf16.mxu0 0
      %916 = vmatpush1.bf16.msra.mxu0 0
      %917 = vmatprep.subr.bf16.mxu0 0
      %918 = vmatpush1.bf16.msra.mxu0 0
      %919 = vmatprep.subr.bf16.mxu0 0
      %920 = vmatpush1.bf16.msra.mxu0 0
      %921 = vmatprep.subr.bf16.mxu0 0
      %922 = vmatpush1.bf16.msra.mxu0 0
      %923 = vmatprep.subr.bf16.mxu0 0
      %924 = vmatpush1.bf16.msra.mxu0 0
      %925 = vmatprep.subr.bf16.mxu0 0
      %926 = vmatpush1.bf16.msra.mxu0 0
      %927 = vmatprep.subr.bf16.mxu0 0
      %928 = vmatpush1.bf16.msra.mxu0 0
      %929 = vmatprep.mubr.bf16.mxu0 0
      %930 = vmatmul.mubr.bf16.gmra.mrb[0].mxu0 %v892
      %v931 = vpop.f32.mrb[0].mxu0
      %v932 = vadd.f32 0.0, %v931
      %v933 = vpop.f32.mrb[0].mxu0
      %v934 = vpop.f32.mrb[0].mxu0
      %v935 = vpop.f32.mrb[0].mxu0
      %936 = vdwg.mxu0
      %937 = vrot.lane.b32.xlu0 %v245, 56
      %v938 = vpop.permute.xlu0 %937
      %v940 = vsel %vm397, %v839, 0
      %v943 = vsel %vm401, %v938, 0
      %945 = vmatprep.subr.bf16.mxu0 0
      %946 = vmatpush1.bf16.msra.mxu0 %v943
      %947 = vmatprep.subr.bf16.mxu0 0
      %948 = vmatpush1.bf16.msra.mxu0 0
      %949 = vmatprep.subr.bf16.mxu0 0
      %950 = vmatpush1.bf16.msra.mxu0 0
      %951 = vmatprep.subr.bf16.mxu0 0
      %952 = vmatpush1.bf16.msra.mxu0 0
      %953 = vmatprep.subr.bf16.mxu0 0
      %954 = vmatpush1.bf16.msra.mxu0 0
      %955 = vmatprep.subr.bf16.mxu0 0
      %956 = vmatpush1.bf16.msra.mxu0 0
      %957 = vmatprep.subr.bf16.mxu0 0
      %958 = vmatpush1.bf16.msra.mxu0 0
      %959 = vmatprep.subr.bf16.mxu0 0
      %960 = vmatpush1.bf16.msra.mxu0 0
      %961 = vmatprep.subr.bf16.mxu0 0
      %962 = vmatpush1.bf16.msra.mxu0 0
      %963 = vmatprep.subr.bf16.mxu0 0
      %964 = vmatpush1.bf16.msra.mxu0 0
      %965 = vmatprep.subr.bf16.mxu0 0
      %966 = vmatpush1.bf16.msra.mxu0 0
      %967 = vmatprep.subr.bf16.mxu0 0
      %968 = vmatpush1.bf16.msra.mxu0 0
      %969 = vmatprep.subr.bf16.mxu0 0
      %970 = vmatpush1.bf16.msra.mxu0 0
      %971 = vmatprep.subr.bf16.mxu0 0
      %972 = vmatpush1.bf16.msra.mxu0 0
      %973 = vmatprep.subr.bf16.mxu0 0
      %974 = vmatpush1.bf16.msra.mxu0 0
      %975 = vmatprep.subr.bf16.mxu0 0
      %976 = vmatpush1.bf16.msra.mxu0 0
      %977 = vmatprep.mubr.bf16.mxu0 0
      %978 = vmatmul.mubr.bf16.gmra.mrb[0].mxu0 %v940
      %v979 = vpop.f32.mrb[0].mxu0
      %v980 = vadd.f32 0.0, %v979
      %v981 = vpop.f32.mrb[0].mxu0
      %v982 = vpop.f32.mrb[0].mxu0
      %v983 = vpop.f32.mrb[0].mxu0
      %984 = vdwg.mxu0
      %985 = vrot.lane.b32.xlu0 %v301, 56
      %v986 = vpop.permute.xlu0 %985
      %v988 = vsel %vm397, %v840, 0
      %v991 = vsel %vm401, %v986, 0
      %993 = vmatprep.subr.bf16.mxu0 0
      %994 = vmatpush1.bf16.msra.mxu0 %v991
      %995 = vmatprep.subr.bf16.mxu0 0
      %996 = vmatpush1.bf16.msra.mxu0 0
      %997 = vmatprep.subr.bf16.mxu0 0
      %998 = vmatpush1.bf16.msra.mxu0 0
      %999 = vmatprep.subr.bf16.mxu0 0
      %1000 = vmatpush1.bf16.msra.mxu0 0
      %1001 = vmatprep.subr.bf16.mxu0 0
      %1002 = vmatpush1.bf16.msra.mxu0 0
      %1003 = vmatprep.subr.bf16.mxu0 0
      %1004 = vmatpush1.bf16.msra.mxu0 0
      %1005 = vmatprep.subr.bf16.mxu0 0
      %1006 = vmatpush1.bf16.msra.mxu0 0
      %1007 = vmatprep.subr.bf16.mxu0 0
      %1008 = vmatpush1.bf16.msra.mxu0 0
      %1009 = vmatprep.subr.bf16.mxu0 0
      %1010 = vmatpush1.bf16.msra.mxu0 0
      %1011 = vmatprep.subr.bf16.mxu0 0
      %1012 = vmatpush1.bf16.msra.mxu0 0
      %1013 = vmatprep.subr.bf16.mxu0 0
      %1014 = vmatpush1.bf16.msra.mxu0 0
      %1015 = vmatprep.subr.bf16.mxu0 0
      %1016 = vmatpush1.bf16.msra.mxu0 0
      %1017 = vmatprep.subr.bf16.mxu0 0
      %1018 = vmatpush1.bf16.msra.mxu0 0
      %1019 = vmatprep.subr.bf16.mxu0 0
      %1020 = vmatpush1.bf16.msra.mxu0 0
      %1021 = vmatprep.subr.bf16.mxu0 0
      %1022 = vmatpush1.bf16.msra.mxu0 0
      %1023 = vmatprep.subr.bf16.mxu0 0
      %1024 = vmatpush1.bf16.msra.mxu0 0
      %1025 = vmatprep.mubr.bf16.mxu0 0
      %1026 = vmatmul.mubr.bf16.gmra.mrb[0].mxu0 %v988
      %v1027 = vpop.f32.mrb[0].mxu0
      %v1028 = vadd.f32 0.0, %v1027
      %v1029 = vpop.f32.mrb[0].mxu0
      %v1030 = vpop.f32.mrb[0].mxu0
      %v1031 = vpop.f32.mrb[0].mxu0
      %1032 = vdwg.mxu0
      %v1033 = vrcp.pop %v827
      %v1034 = vrcp.pop %v830
      %v1035 = vrcp.pop %v833
      %v1036 = vrcp.pop %v836
      %v1037 = vmul.f32 %v884, %v1033
      %v1038 = vmul.f32 %v932, %v1034
      %v1039 = vmul.f32 %v980, %v1035
      %v1040 = vmul.f32 %v1028, %v1036
      %1041 = vrot.lane.b32.xlu0 %v132, 112
      %v1042 = vpop.permute.xlu0 %1041
      %1043 = vrot.lane.b32.xlu0 %v132, 80
      %v1044 = vpop.permute.xlu0 %1043
      %v1046 = vsel %vm135, %v1042, 0
      %v1049 = vsel %vm135, %v1044, 0
      %1051 = vmatprep.subr.bf16.mxu0 0
      %1052 = vmatpush1.bf16.xpose.msra.mxu0 %v1049
      %1053 = vmatprep.subr.bf16.mxu0 0
      %1054 = vmatpush1.bf16.xpose.msra.mxu0 0
      %1055 = vmatprep.subr.bf16.mxu0 0
      %1056 = vmatpush1.bf16.xpose.msra.mxu0 0
      %1057 = vmatprep.subr.bf16.mxu0 0
      %1058 = vmatpush1.bf16.xpose.msra.mxu0 0
      %1059 = vmatprep.subr.bf16.mxu0 0
      %1060 = vmatpush1.bf16.xpose.msra.mxu0 0
      %1061 = vmatprep.subr.bf16.mxu0 0
      %1062 = vmatpush1.bf16.xpose.msra.mxu0 0
      %1063 = vmatprep.subr.bf16.mxu0 0
      %1064 = vmatpush1.bf16.xpose.msra.mxu0 0
      %1065 = vmatprep.subr.bf16.mxu0 0
      %1066 = vmatpush1.bf16.xpose.msra.mxu0 0
      %1067 = vmatprep.subr.bf16.mxu0 0
      %1068 = vmatpush1.bf16.xpose.msra.mxu0 0
      %1069 = vmatprep.subr.bf16.mxu0 0
      %1070 = vmatpush1.bf16.xpose.msra.mxu0 0
      %1071 = vmatprep.subr.bf16.mxu0 0
      %1072 = vmatpush1.bf16.xpose.msra.mxu0 0
      %1073 = vmatprep.subr.bf16.mxu0 0
      %1074 = vmatpush1.bf16.xpose.msra.mxu0 0
      %1075 = vmatprep.subr.bf16.mxu0 0
      %1076 = vmatpush1.bf16.xpose.msra.mxu0 0
      %1077 = vmatprep.subr.bf16.mxu0 0
      %1078 = vmatpush1.bf16.xpose.msra.mxu0 0
      %1079 = vmatprep.subr.bf16.mxu0 0
      %1080 = vmatpush1.bf16.xpose.msra.mxu0 0
      %1081 = vmatprep.subr.bf16.mxu0 0
      %1082 = vmatpush1.bf16.xpose.msra.mxu0 0
      %1083 = vmatprep.mubr.bf16.mxu0 0
      %1084 = vmatmul.mubr.bf16.gmra.mrb[0].mxu0 %v1046
      %v1085 = vpop.f32.mrb[0].mxu0
      %v1086 = vadd.f32 0.0, %v1085
      %v1087 = vpop.f32.mrb[0].mxu0
      %v1088 = vpop.f32.mrb[0].mxu0
      %v1089 = vpop.f32.mrb[0].mxu0
      %1090 = vdwg.mxu0
      %1091 = vrot.lane.b32.xlu0 %v189, 112
      %v1092 = vpop.permute.xlu0 %1091
      %1093 = vrot.lane.b32.xlu0 %v189, 80
      %v1094 = vpop.permute.xlu0 %1093
      %v1096 = vsel %vm135, %v1092, 0
      %v1099 = vsel %vm135, %v1094, 0
      %1101 = vmatprep.subr.bf16.mxu0 0
      %1102 = vmatpush1.bf16.xpose.msra.mxu0 %v1099
      %1103 = vmatprep.subr.bf16.mxu0 0
      %1104 = vmatpush1.bf16.xpose.msra.mxu0 0
      %1105 = vmatprep.subr.bf16.mxu0 0
      %1106 = vmatpush1.bf16.xpose.msra.mxu0 0
      %1107 = vmatprep.subr.bf16.mxu0 0
      %1108 = vmatpush1.bf16.xpose.msra.mxu0 0
      %1109 = vmatprep.subr.bf16.mxu0 0
      %1110 = vmatpush1.bf16.xpose.msra.mxu0 0
      %1111 = vmatprep.subr.bf16.mxu0 0
      %1112 = vmatpush1.bf16.xpose.msra.mxu0 0
      %1113 = vmatprep.subr.bf16.mxu0 0
      %1114 = vmatpush1.bf16.xpose.msra.mxu0 0
      %1115 = vmatprep.subr.bf16.mxu0 0
      %1116 = vmatpush1.bf16.xpose.msra.mxu0 0
      %1117 = vmatprep.subr.bf16.mxu0 0
      %1118 = vmatpush1.bf16.xpose.msra.mxu0 0
      %1119 = vmatprep.subr.bf16.mxu0 0
      %1120 = vmatpush1.bf16.xpose.msra.mxu0 0
      %1121 = vmatprep.subr.bf16.mxu0 0
      %1122 = vmatpush1.bf16.xpose.msra.mxu0 0
      %1123 = vmatprep.subr.bf16.mxu0 0
      %1124 = vmatpush1.bf16.xpose.msra.mxu0 0
      %1125 = vmatprep.subr.bf16.mxu0 0
      %1126 = vmatpush1.bf16.xpose.msra.mxu0 0
      %1127 = vmatprep.subr.bf16.mxu0 0
      %1128 = vmatpush1.bf16.xpose.msra.mxu0 0
      %1129 = vmatprep.subr.bf16.mxu0 0
      %1130 = vmatpush1.bf16.xpose.msra.mxu0 0
      %1131 = vmatprep.subr.bf16.mxu0 0
      %1132 = vmatpush1.bf16.xpose.msra.mxu0 0
      %1133 = vmatprep.mubr.bf16.mxu0 0
      %1134 = vmatmul.mubr.bf16.gmra.mrb[0].mxu0 %v1096
      %v1135 = vpop.f32.mrb[0].mxu0
      %v1136 = vadd.f32 0.0, %v1135
      %v1137 = vpop.f32.mrb[0].mxu0
      %v1138 = vpop.f32.mrb[0].mxu0
      %v1139 = vpop.f32.mrb[0].mxu0
      %1140 = vdwg.mxu0
      %1141 = vrot.lane.b32.xlu0 %v245, 112
      %v1142 = vpop.permute.xlu0 %1141
      %1143 = vrot.lane.b32.xlu0 %v245, 80
      %v1144 = vpop.permute.xlu0 %1143
      %v1146 = vsel %vm135, %v1142, 0
      %v1149 = vsel %vm135, %v1144, 0
      %1151 = vmatprep.subr.bf16.mxu0 0
      %1152 = vmatpush1.bf16.xpose.msra.mxu0 %v1149
      %1153 = vmatprep.subr.bf16.mxu0 0
      %1154 = vmatpush1.bf16.xpose.msra.mxu0 0
      %1155 = vmatprep.subr.bf16.mxu0 0
      %1156 = vmatpush1.bf16.xpose.msra.mxu0 0
      %1157 = vmatprep.subr.bf16.mxu0 0
      %1158 = vmatpush1.bf16.xpose.msra.mxu0 0
      %1159 = vmatprep.subr.bf16.mxu0 0
      %1160 = vmatpush1.bf16.xpose.msra.mxu0 0
      %1161 = vmatprep.subr.bf16.mxu0 0
      %1162 = vmatpush1.bf16.xpose.msra.mxu0 0
      %1163 = vmatprep.subr.bf16.mxu0 0
      %1164 = vmatpush1.bf16.xpose.msra.mxu0 0
      %1165 = vmatprep.subr.bf16.mxu0 0
      %1166 = vmatpush1.bf16.xpose.msra.mxu0 0
      %1167 = vmatprep.subr.bf16.mxu0 0
      %1168 = vmatpush1.bf16.xpose.msra.mxu0 0
      %1169 = vmatprep.subr.bf16.mxu0 0
      %1170 = vmatpush1.bf16.xpose.msra.mxu0 0
      %1171 = vmatprep.subr.bf16.mxu0 0
      %1172 = vmatpush1.bf16.xpose.msra.mxu0 0
      %1173 = vmatprep.subr.bf16.mxu0 0
      %1174 = vmatpush1.bf16.xpose.msra.mxu0 0
      %1175 = vmatprep.subr.bf16.mxu0 0
      %1176 = vmatpush1.bf16.xpose.msra.mxu0 0
      %1177 = vmatprep.subr.bf16.mxu0 0
      %1178 = vmatpush1.bf16.xpose.msra.mxu0 0
      %1179 = vmatprep.subr.bf16.mxu0 0
      %1180 = vmatpush1.bf16.xpose.msra.mxu0 0
      %1181 = vmatprep.subr.bf16.mxu0 0
      %1182 = vmatpush1.bf16.xpose.msra.mxu0 0
      %1183 = vmatprep.mubr.bf16.mxu0 0
      %1184 = vmatmul.mubr.bf16.gmra.mrb[0].mxu0 %v1146
      %v1185 = vpop.f32.mrb[0].mxu0
      %v1186 = vadd.f32 0.0, %v1185
      %v1187 = vpop.f32.mrb[0].mxu0
      %v1188 = vpop.f32.mrb[0].mxu0
      %v1189 = vpop.f32.mrb[0].mxu0
      %1190 = vdwg.mxu0
      %1191 = vrot.lane.b32.xlu0 %v301, 112
      %v1192 = vpop.permute.xlu0 %1191
      %1193 = vrot.lane.b32.xlu0 %v301, 80
      %v1194 = vpop.permute.xlu0 %1193
      %v1196 = vsel %vm135, %v1192, 0
      %v1199 = vsel %vm135, %v1194, 0
      %1201 = vmatprep.subr.bf16.mxu0 0
      %1202 = vmatpush1.bf16.xpose.msra.mxu0 %v1199
      %1203 = vmatprep.subr.bf16.mxu0 0
      %1204 = vmatpush1.bf16.xpose.msra.mxu0 0
      %1205 = vmatprep.subr.bf16.mxu0 0
      %1206 = vmatpush1.bf16.xpose.msra.mxu0 0
      %1207 = vmatprep.subr.bf16.mxu0 0
      %1208 = vmatpush1.bf16.xpose.msra.mxu0 0
      %1209 = vmatprep.subr.bf16.mxu0 0
      %1210 = vmatpush1.bf16.xpose.msra.mxu0 0
      %1211 = vmatprep.subr.bf16.mxu0 0
      %1212 = vmatpush1.bf16.xpose.msra.mxu0 0
      %1213 = vmatprep.subr.bf16.mxu0 0
      %1214 = vmatpush1.bf16.xpose.msra.mxu0 0
      %1215 = vmatprep.subr.bf16.mxu0 0
      %1216 = vmatpush1.bf16.xpose.msra.mxu0 0
      %1217 = vmatprep.subr.bf16.mxu0 0
      %1218 = vmatpush1.bf16.xpose.msra.mxu0 0
      %1219 = vmatprep.subr.bf16.mxu0 0
      %1220 = vmatpush1.bf16.xpose.msra.mxu0 0
      %1221 = vmatprep.subr.bf16.mxu0 0
      %1222 = vmatpush1.bf16.xpose.msra.mxu0 0
      %1223 = vmatprep.subr.bf16.mxu0 0
      %1224 = vmatpush1.bf16.xpose.msra.mxu0 0
      %1225 = vmatprep.subr.bf16.mxu0 0
      %1226 = vmatpush1.bf16.xpose.msra.mxu0 0
      %1227 = vmatprep.subr.bf16.mxu0 0
      %1228 = vmatpush1.bf16.xpose.msra.mxu0 0
      %1229 = vmatprep.subr.bf16.mxu0 0
      %1230 = vmatpush1.bf16.xpose.msra.mxu0 0
      %1231 = vmatprep.subr.bf16.mxu0 0
      %1232 = vmatpush1.bf16.xpose.msra.mxu0 0
      %1233 = vmatprep.mubr.bf16.mxu0 0
      %1234 = vmatmul.mubr.bf16.gmra.mrb[0].mxu0 %v1196
      %v1235 = vpop.f32.mrb[0].mxu0
      %v1236 = vadd.f32 0.0, %v1235
      %v1237 = vpop.f32.mrb[0].mxu0
      %v1238 = vpop.f32.mrb[0].mxu0
      %v1239 = vpop.f32.mrb[0].mxu0
      %1240 = vdwg.mxu0
      %v1241 = vmul.f32 %v1086, 0.35355338
      %v1242 = vmul.f32 %v1136, 0.35355338
      %v1243 = vmul.f32 %v1186, 0.35355338
      %v1244 = vmul.f32 %v1236, 0.35355338
      %v1245 = vsel %vm354, %v1241, -inf
      %1246 = vmax.xlane.f32.xlu0 %v1245
      %v1247 = vpop.xlane.xlu0 %1246
      %v1248 = vsel %vm354, %v1242, -inf
      %1249 = vmax.xlane.f32.xlu0 %v1248
      %v1250 = vpop.xlane.xlu0 %1249
      %v1251 = vsel %vm354, %v1243, -inf
      %1252 = vmax.xlane.f32.xlu0 %v1251
      %v1253 = vpop.xlane.xlu0 %1252
      %v1254 = vsel %vm354, %v1244, -inf
      %1255 = vmax.xlane.f32.xlu0 %v1254
      %v1256 = vpop.xlane.xlu0 %1255
      %v1257 = vsub.f32 %v1241, %v1247
      %v1258 = vsub.f32 %v1242, %v1250
      %v1259 = vsub.f32 %v1243, %v1253
      %v1260 = vsub.f32 %v1244, %v1256
      %v1261 = vmul.f32 %v1257, 1.442695
      %v1262 = vpow.pop %v1261
      %v1263 = vmul.f32 %v1258, 1.442695
      %v1264 = vpow.pop %v1263
      %v1265 = vmul.f32 %v1259, 1.442695
      %v1266 = vpow.pop %v1265
      %v1267 = vmul.f32 %v1260, 1.442695
      %v1268 = vpow.pop %v1267
      %v1269 = vsel %vm354, %v1262, 0.0
      %1270 = vadd.xlane.f32.xlu0 %v1269
      %v1271 = vpop.xlane.xlu0 %1270
      %v1272 = vsel %vm354, %v1264, 0.0
      %1273 = vadd.xlane.f32.xlu0 %v1272
      %v1274 = vpop.xlane.xlu0 %1273
      %v1275 = vsel %vm354, %v1266, 0.0
      %1276 = vadd.xlane.f32.xlu0 %v1275
      %v1277 = vpop.xlane.xlu0 %1276
      %v1278 = vsel %vm354, %v1268, 0.0
      %1279 = vadd.xlane.f32.xlu0 %v1278
      %v1280 = vpop.xlane.xlu0 %1279
      %v1281 = vpack.c.bf16 %v1262, %v1262
      %v1282 = vpack.c.bf16 %v1264, %v1264
      %v1283 = vpack.c.bf16 %v1266, %v1266
      %v1284 = vpack.c.bf16 %v1268, %v1268
      %1285 = vrot.lane.b32.xlu0 %v132, 48
      %v1286 = vpop.permute.xlu0 %1285
      %v1288 = vsel %vm397, %v1281, 0
      %v1291 = vsel %vm401, %v1286, 0
      %1293 = vmatprep.subr.bf16.mxu0 0
      %1294 = vmatpush1.bf16.msra.mxu0 %v1291
      %1295 = vmatprep.subr.bf16.mxu0 0
      %1296 = vmatpush1.bf16.msra.mxu0 0
      %1297 = vmatprep.subr.bf16.mxu0 0
      %1298 = vmatpush1.bf16.msra.mxu0 0
      %1299 = vmatprep.subr.bf16.mxu0 0
      %1300 = vmatpush1.bf16.msra.mxu0 0
      %1301 = vmatprep.subr.bf16.mxu0 0
      %1302 = vmatpush1.bf16.msra.mxu0 0
      %1303 = vmatprep.subr.bf16.mxu0 0
      %1304 = vmatpush1.bf16.msra.mxu0 0
      %1305 = vmatprep.subr.bf16.mxu0 0
      %1306 = vmatpush1.bf16.msra.mxu0 0
      %1307 = vmatprep.subr.bf16.mxu0 0
      %1308 = vmatpush1.bf16.msra.mxu0 0
      %1309 = vmatprep.subr.bf16.mxu0 0
      %1310 = vmatpush1.bf16.msra.mxu0 0
      %1311 = vmatprep.subr.bf16.mxu0 0
      %1312 = vmatpush1.bf16.msra.mxu0 0
      %1313 = vmatprep.subr.bf16.mxu0 0
      %1314 = vmatpush1.bf16.msra.mxu0 0
      %1315 = vmatprep.subr.bf16.mxu0 0
      %1316 = vmatpush1.bf16.msra.mxu0 0
      %1317 = vmatprep.subr.bf16.mxu0 0
      %1318 = vmatpush1.bf16.msra.mxu0 0
      %1319 = vmatprep.subr.bf16.mxu0 0
      %1320 = vmatpush1.bf16.msra.mxu0 0
      %1321 = vmatprep.subr.bf16.mxu0 0
      %1322 = vmatpush1.bf16.msra.mxu0 0
      %1323 = vmatprep.subr.bf16.mxu0 0
      %1324 = vmatpush1.bf16.msra.mxu0 0
      %1325 = vmatprep.mubr.bf16.mxu0 0
      %1326 = vmatmul.mubr.bf16.gmra.mrb[0].mxu0 %v1288
      %v1327 = vpop.f32.mrb[0].mxu0
      %v1328 = vadd.f32 0.0, %v1327
      %v1329 = vpop.f32.mrb[0].mxu0
      %v1330 = vpop.f32.mrb[0].mxu0
      %v1331 = vpop.f32.mrb[0].mxu0
      %1332 = vdwg.mxu0
      %1333 = vrot.lane.b32.xlu0 %v189, 48
      %v1334 = vpop.permute.xlu0 %1333
      %v1336 = vsel %vm397, %v1282, 0
      %v1339 = vsel %vm401, %v1334, 0
      %1341 = vmatprep.subr.bf16.mxu0 0
      %1342 = vmatpush1.bf16.msra.mxu0 %v1339
      %1343 = vmatprep.subr.bf16.mxu0 0
      %1344 = vmatpush1.bf16.msra.mxu0 0
      %1345 = vmatprep.subr.bf16.mxu0 0
      %1346 = vmatpush1.bf16.msra.mxu0 0
      %1347 = vmatprep.subr.bf16.mxu0 0
      %1348 = vmatpush1.bf16.msra.mxu0 0
      %1349 = vmatprep.subr.bf16.mxu0 0
      %1350 = vmatpush1.bf16.msra.mxu0 0
      %1351 = vmatprep.subr.bf16.mxu0 0
      %1352 = vmatpush1.bf16.msra.mxu0 0
      %1353 = vmatprep.subr.bf16.mxu0 0
      %1354 = vmatpush1.bf16.msra.mxu0 0
      %1355 = vmatprep.subr.bf16.mxu0 0
      %1356 = vmatpush1.bf16.msra.mxu0 0
      %1357 = vmatprep.subr.bf16.mxu0 0
      %1358 = vmatpush1.bf16.msra.mxu0 0
      %1359 = vmatprep.subr.bf16.mxu0 0
      %1360 = vmatpush1.bf16.msra.mxu0 0
      %1361 = vmatprep.subr.bf16.mxu0 0
      %1362 = vmatpush1.bf16.msra.mxu0 0
      %1363 = vmatprep.subr.bf16.mxu0 0
      %1364 = vmatpush1.bf16.msra.mxu0 0
      %1365 = vmatprep.subr.bf16.mxu0 0
      %1366 = vmatpush1.bf16.msra.mxu0 0
      %1367 = vmatprep.subr.bf16.mxu0 0
      %1368 = vmatpush1.bf16.msra.mxu0 0
      %1369 = vmatprep.subr.bf16.mxu0 0
      %1370 = vmatpush1.bf16.msra.mxu0 0
      %1371 = vmatprep.subr.bf16.mxu0 0
      %1372 = vmatpush1.bf16.msra.mxu0 0
      %1373 = vmatprep.mubr.bf16.mxu0 0
      %1374 = vmatmul.mubr.bf16.gmra.mrb[0].mxu0 %v1336
      %v1375 = vpop.f32.mrb[0].mxu0
      %v1376 = vadd.f32 0.0, %v1375
      %v1377 = vpop.f32.mrb[0].mxu0
      %v1378 = vpop.f32.mrb[0].mxu0
      %v1379 = vpop.f32.mrb[0].mxu0
      %1380 = vdwg.mxu0
      %1381 = vrot.lane.b32.xlu0 %v245, 48
      %v1382 = vpop.permute.xlu0 %1381
      %v1384 = vsel %vm397, %v1283, 0
      %v1387 = vsel %vm401, %v1382, 0
      %1389 = vmatprep.subr.bf16.mxu0 0
      %1390 = vmatpush1.bf16.msra.mxu0 %v1387
      %1391 = vmatprep.subr.bf16.mxu0 0
      %1392 = vmatpush1.bf16.msra.mxu0 0
      %1393 = vmatprep.subr.bf16.mxu0 0
      %1394 = vmatpush1.bf16.msra.mxu0 0
      %1395 = vmatprep.subr.bf16.mxu0 0
      %1396 = vmatpush1.bf16.msra.mxu0 0
      %1397 = vmatprep.subr.bf16.mxu0 0
      %1398 = vmatpush1.bf16.msra.mxu0 0
      %1399 = vmatprep.subr.bf16.mxu0 0
      %1400 = vmatpush1.bf16.msra.mxu0 0
      %1401 = vmatprep.subr.bf16.mxu0 0
      %1402 = vmatpush1.bf16.msra.mxu0 0
      %1403 = vmatprep.subr.bf16.mxu0 0
      %1404 = vmatpush1.bf16.msra.mxu0 0
      %1405 = vmatprep.subr.bf16.mxu0 0
      %1406 = vmatpush1.bf16.msra.mxu0 0
      %1407 = vmatprep.subr.bf16.mxu0 0
      %1408 = vmatpush1.bf16.msra.mxu0 0
      %1409 = vmatprep.subr.bf16.mxu0 0
      %1410 = vmatpush1.bf16.msra.mxu0 0
      %1411 = vmatprep.subr.bf16.mxu0 0
      %1412 = vmatpush1.bf16.msra.mxu0 0
      %1413 = vmatprep.subr.bf16.mxu0 0
      %1414 = vmatpush1.bf16.msra.mxu0 0
      %1415 = vmatprep.subr.bf16.mxu0 0
      %1416 = vmatpush1.bf16.msra.mxu0 0
      %1417 = vmatprep.subr.bf16.mxu0 0
      %1418 = vmatpush1.bf16.msra.mxu0 0
      %1419 = vmatprep.subr.bf16.mxu0 0
      %1420 = vmatpush1.bf16.msra.mxu0 0
      %1421 = vmatprep.mubr.bf16.mxu0 0
      %1422 = vmatmul.mubr.bf16.gmra.mrb[0].mxu0 %v1384
      %v1423 = vpop.f32.mrb[0].mxu0
      %v1424 = vadd.f32 0.0, %v1423
      %v1425 = vpop.f32.mrb[0].mxu0
      %v1426 = vpop.f32.mrb[0].mxu0
      %v1427 = vpop.f32.mrb[0].mxu0
      %1428 = vdwg.mxu0
      %1429 = vrot.lane.b32.xlu0 %v301, 48
      %v1430 = vpop.permute.xlu0 %1429
      %v1432 = vsel %vm397, %v1284, 0
      %v1435 = vsel %vm401, %v1430, 0
      %1437 = vmatprep.subr.bf16.mxu0 0
      %1438 = vmatpush1.bf16.msra.mxu0 %v1435
      %1439 = vmatprep.subr.bf16.mxu0 0
      %1440 = vmatpush1.bf16.msra.mxu0 0
      %1441 = vmatprep.subr.bf16.mxu0 0
      %1442 = vmatpush1.bf16.msra.mxu0 0
      %1443 = vmatprep.subr.bf16.mxu0 0
      %1444 = vmatpush1.bf16.msra.mxu0 0
      %1445 = vmatprep.subr.bf16.mxu0 0
      %1446 = vmatpush1.bf16.msra.mxu0 0
      %1447 = vmatprep.subr.bf16.mxu0 0
      %1448 = vmatpush1.bf16.msra.mxu0 0
      %1449 = vmatprep.subr.bf16.mxu0 0
      %1450 = vmatpush1.bf16.msra.mxu0 0
      %1451 = vmatprep.subr.bf16.mxu0 0
      %1452 = vmatpush1.bf16.msra.mxu0 0
      %1453 = vmatprep.subr.bf16.mxu0 0
      %1454 = vmatpush1.bf16.msra.mxu0 0
      %1455 = vmatprep.subr.bf16.mxu0 0
      %1456 = vmatpush1.bf16.msra.mxu0 0
      %1457 = vmatprep.subr.bf16.mxu0 0
      %1458 = vmatpush1.bf16.msra.mxu0 0
      %1459 = vmatprep.subr.bf16.mxu0 0
      %1460 = vmatpush1.bf16.msra.mxu0 0
      %1461 = vmatprep.subr.bf16.mxu0 0
      %1462 = vmatpush1.bf16.msra.mxu0 0
      %1463 = vmatprep.subr.bf16.mxu0 0
      %1464 = vmatpush1.bf16.msra.mxu0 0
      %1465 = vmatprep.subr.bf16.mxu0 0
      %1466 = vmatpush1.bf16.msra.mxu0 0
      %1467 = vmatprep.subr.bf16.mxu0 0
      %1468 = vmatpush1.bf16.msra.mxu0 0
      %1469 = vmatprep.mubr.bf16.mxu0 0
      %1470 = vmatmul.mubr.bf16.gmra.mrb[0].mxu0 %v1432
      %v1471 = vpop.f32.mrb[0].mxu0
      %v1472 = vadd.f32 0.0, %v1471
      %v1473 = vpop.f32.mrb[0].mxu0
      %v1474 = vpop.f32.mrb[0].mxu0
      %v1475 = vpop.f32.mrb[0].mxu0
      %1476 = vdwg.mxu0
      %v1477 = vrcp.pop %v1271
      %v1478 = vrcp.pop %v1274
      %v1479 = vrcp.pop %v1277
      %v1480 = vrcp.pop %v1280
      %v1481 = vmul.f32 %v1328, %v1477
      %v1482 = vmul.f32 %v1376, %v1478
      %v1483 = vmul.f32 %v1424, %v1479
      %v1484 = vmul.f32 %v1472, %v1480
      %1485 = vrot.lane.b32.xlu0 %v132, 104
      %v1486 = vpop.permute.xlu0 %1485
      %1487 = vrot.lane.b32.xlu0 %v132, 72
      %v1488 = vpop.permute.xlu0 %1487
      %v1490 = vsel %vm135, %v1486, 0
      %v1493 = vsel %vm135, %v1488, 0
      %1495 = vmatprep.subr.bf16.mxu0 0
      %1496 = vmatpush1.bf16.xpose.msra.mxu0 %v1493
      %1497 = vmatprep.subr.bf16.mxu0 0
      %1498 = vmatpush1.bf16.xpose.msra.mxu0 0
      %1499 = vmatprep.subr.bf16.mxu0 0
      %1500 = vmatpush1.bf16.xpose.msra.mxu0 0
      %1501 = vmatprep.subr.bf16.mxu0 0
      %1502 = vmatpush1.bf16.xpose.msra.mxu0 0
      %1503 = vmatprep.subr.bf16.mxu0 0
      %1504 = vmatpush1.bf16.xpose.msra.mxu0 0
      %1505 = vmatprep.subr.bf16.mxu0 0
      %1506 = vmatpush1.bf16.xpose.msra.mxu0 0
      %1507 = vmatprep.subr.bf16.mxu0 0
      %1508 = vmatpush1.bf16.xpose.msra.mxu0 0
      %1509 = vmatprep.subr.bf16.mxu0 0
      %1510 = vmatpush1.bf16.xpose.msra.mxu0 0
      %1511 = vmatprep.subr.bf16.mxu0 0
      %1512 = vmatpush1.bf16.xpose.msra.mxu0 0
      %1513 = vmatprep.subr.bf16.mxu0 0
      %1514 = vmatpush1.bf16.xpose.msra.mxu0 0
      %1515 = vmatprep.subr.bf16.mxu0 0
      %1516 = vmatpush1.bf16.xpose.msra.mxu0 0
      %1517 = vmatprep.subr.bf16.mxu0 0
      %1518 = vmatpush1.bf16.xpose.msra.mxu0 0
      %1519 = vmatprep.subr.bf16.mxu0 0
      %1520 = vmatpush1.bf16.xpose.msra.mxu0 0
      %1521 = vmatprep.subr.bf16.mxu0 0
      %1522 = vmatpush1.bf16.xpose.msra.mxu0 0
      %1523 = vmatprep.subr.bf16.mxu0 0
      %1524 = vmatpush1.bf16.xpose.msra.mxu0 0
      %1525 = vmatprep.subr.bf16.mxu0 0
      %1526 = vmatpush1.bf16.xpose.msra.mxu0 0
      %1527 = vmatprep.mubr.bf16.mxu0 0
      %1528 = vmatmul.mubr.bf16.gmra.mrb[0].mxu0 %v1490
      %v1529 = vpop.f32.mrb[0].mxu0
      %v1530 = vadd.f32 0.0, %v1529
      %v1531 = vpop.f32.mrb[0].mxu0
      %v1532 = vpop.f32.mrb[0].mxu0
      %v1533 = vpop.f32.mrb[0].mxu0
      %1534 = vdwg.mxu0
      %1535 = vrot.lane.b32.xlu0 %v189, 104
      %v1536 = vpop.permute.xlu0 %1535
      %1537 = vrot.lane.b32.xlu0 %v189, 72
      %v1538 = vpop.permute.xlu0 %1537
      %v1540 = vsel %vm135, %v1536, 0
      %v1543 = vsel %vm135, %v1538, 0
      %1545 = vmatprep.subr.bf16.mxu0 0
      %1546 = vmatpush1.bf16.xpose.msra.mxu0 %v1543
      %1547 = vmatprep.subr.bf16.mxu0 0
      %1548 = vmatpush1.bf16.xpose.msra.mxu0 0
      %1549 = vmatprep.subr.bf16.mxu0 0
      %1550 = vmatpush1.bf16.xpose.msra.mxu0 0
      %1551 = vmatprep.subr.bf16.mxu0 0
      %1552 = vmatpush1.bf16.xpose.msra.mxu0 0
      %1553 = vmatprep.subr.bf16.mxu0 0
      %1554 = vmatpush1.bf16.xpose.msra.mxu0 0
      %1555 = vmatprep.subr.bf16.mxu0 0
      %1556 = vmatpush1.bf16.xpose.msra.mxu0 0
      %1557 = vmatprep.subr.bf16.mxu0 0
      %1558 = vmatpush1.bf16.xpose.msra.mxu0 0
      %1559 = vmatprep.subr.bf16.mxu0 0
      %1560 = vmatpush1.bf16.xpose.msra.mxu0 0
      %1561 = vmatprep.subr.bf16.mxu0 0
      %1562 = vmatpush1.bf16.xpose.msra.mxu0 0
      %1563 = vmatprep.subr.bf16.mxu0 0
      %1564 = vmatpush1.bf16.xpose.msra.mxu0 0
      %1565 = vmatprep.subr.bf16.mxu0 0
      %1566 = vmatpush1.bf16.xpose.msra.mxu0 0
      %1567 = vmatprep.subr.bf16.mxu0 0
      %1568 = vmatpush1.bf16.xpose.msra.mxu0 0
      %1569 = vmatprep.subr.bf16.mxu0 0
      %1570 = vmatpush1.bf16.xpose.msra.mxu0 0
      %1571 = vmatprep.subr.bf16.mxu0 0
      %1572 = vmatpush1.bf16.xpose.msra.mxu0 0
      %1573 = vmatprep.subr.bf16.mxu0 0
      %1574 = vmatpush1.bf16.xpose.msra.mxu0 0
      %1575 = vmatprep.subr.bf16.mxu0 0
      %1576 = vmatpush1.bf16.xpose.msra.mxu0 0
      %1577 = vmatprep.mubr.bf16.mxu0 0
      %1578 = vmatmul.mubr.bf16.gmra.mrb[0].mxu0 %v1540
      %v1579 = vpop.f32.mrb[0].mxu0
      %v1580 = vadd.f32 0.0, %v1579
      %v1581 = vpop.f32.mrb[0].mxu0
      %v1582 = vpop.f32.mrb[0].mxu0
      %v1583 = vpop.f32.mrb[0].mxu0
      %1584 = vdwg.mxu0
      %1585 = vrot.lane.b32.xlu0 %v245, 104
      %v1586 = vpop.permute.xlu0 %1585
      %1587 = vrot.lane.b32.xlu0 %v245, 72
      %v1588 = vpop.permute.xlu0 %1587
      %v1590 = vsel %vm135, %v1586, 0
      %v1593 = vsel %vm135, %v1588, 0
      %1595 = vmatprep.subr.bf16.mxu0 0
      %1596 = vmatpush1.bf16.xpose.msra.mxu0 %v1593
      %1597 = vmatprep.subr.bf16.mxu0 0
      %1598 = vmatpush1.bf16.xpose.msra.mxu0 0
      %1599 = vmatprep.subr.bf16.mxu0 0
      %1600 = vmatpush1.bf16.xpose.msra.mxu0 0
      %1601 = vmatprep.subr.bf16.mxu0 0
      %1602 = vmatpush1.bf16.xpose.msra.mxu0 0
      %1603 = vmatprep.subr.bf16.mxu0 0
      %1604 = vmatpush1.bf16.xpose.msra.mxu0 0
      %1605 = vmatprep.subr.bf16.mxu0 0
      %1606 = vmatpush1.bf16.xpose.msra.mxu0 0
      %1607 = vmatprep.subr.bf16.mxu0 0
      %1608 = vmatpush1.bf16.xpose.msra.mxu0 0
      %1609 = vmatprep.subr.bf16.mxu0 0
      %1610 = vmatpush1.bf16.xpose.msra.mxu0 0
      %1611 = vmatprep.subr.bf16.mxu0 0
      %1612 = vmatpush1.bf16.xpose.msra.mxu0 0
      %1613 = vmatprep.subr.bf16.mxu0 0
      %1614 = vmatpush1.bf16.xpose.msra.mxu0 0
      %1615 = vmatprep.subr.bf16.mxu0 0
      %1616 = vmatpush1.bf16.xpose.msra.mxu0 0
      %1617 = vmatprep.subr.bf16.mxu0 0
      %1618 = vmatpush1.bf16.xpose.msra.mxu0 0
      %1619 = vmatprep.subr.bf16.mxu0 0
      %1620 = vmatpush1.bf16.xpose.msra.mxu0 0
      %1621 = vmatprep.subr.bf16.mxu0 0
      %1622 = vmatpush1.bf16.xpose.msra.mxu0 0
      %1623 = vmatprep.subr.bf16.mxu0 0
      %1624 = vmatpush1.bf16.xpose.msra.mxu0 0
      %1625 = vmatprep.subr.bf16.mxu0 0
      %1626 = vmatpush1.bf16.xpose.msra.mxu0 0
      %1627 = vmatprep.mubr.bf16.mxu0 0
      %1628 = vmatmul.mubr.bf16.gmra.mrb[0].mxu0 %v1590
      %v1629 = vpop.f32.mrb[0].mxu0
      %v1630 = vadd.f32 0.0, %v1629
      %v1631 = vpop.f32.mrb[0].mxu0
      %v1632 = vpop.f32.mrb[0].mxu0
      %v1633 = vpop.f32.mrb[0].mxu0
      %1634 = vdwg.mxu0
      %1635 = vrot.lane.b32.xlu0 %v301, 104
      %v1636 = vpop.permute.xlu0 %1635
      %1637 = vrot.lane.b32.xlu0 %v301, 72
      %v1638 = vpop.permute.xlu0 %1637
      %v1640 = vsel %vm135, %v1636, 0
      %v1643 = vsel %vm135, %v1638, 0
      %1645 = vmatprep.subr.bf16.mxu0 0
      %1646 = vmatpush1.bf16.xpose.msra.mxu0 %v1643
      %1647 = vmatprep.subr.bf16.mxu0 0
      %1648 = vmatpush1.bf16.xpose.msra.mxu0 0
      %1649 = vmatprep.subr.bf16.mxu0 0
      %1650 = vmatpush1.bf16.xpose.msra.mxu0 0
      %1651 = vmatprep.subr.bf16.mxu0 0
      %1652 = vmatpush1.bf16.xpose.msra.mxu0 0
      %1653 = vmatprep.subr.bf16.mxu0 0
      %1654 = vmatpush1.bf16.xpose.msra.mxu0 0
      %1655 = vmatprep.subr.bf16.mxu0 0
      %1656 = vmatpush1.bf16.xpose.msra.mxu0 0
      %1657 = vmatprep.subr.bf16.mxu0 0
      %1658 = vmatpush1.bf16.xpose.msra.mxu0 0
      %1659 = vmatprep.subr.bf16.mxu0 0
      %1660 = vmatpush1.bf16.xpose.msra.mxu0 0
      %1661 = vmatprep.subr.bf16.mxu0 0
      %1662 = vmatpush1.bf16.xpose.msra.mxu0 0
      %1663 = vmatprep.subr.bf16.mxu0 0
      %1664 = vmatpush1.bf16.xpose.msra.mxu0 0
      %1665 = vmatprep.subr.bf16.mxu0 0
      %1666 = vmatpush1.bf16.xpose.msra.mxu0 0
      %1667 = vmatprep.subr.bf16.mxu0 0
      %1668 = vmatpush1.bf16.xpose.msra.mxu0 0
      %1669 = vmatprep.subr.bf16.mxu0 0
      %1670 = vmatpush1.bf16.xpose.msra.mxu0 0
      %1671 = vmatprep.subr.bf16.mxu0 0
      %1672 = vmatpush1.bf16.xpose.msra.mxu0 0
      %1673 = vmatprep.subr.bf16.mxu0 0
      %1674 = vmatpush1.bf16.xpose.msra.mxu0 0
      %1675 = vmatprep.subr.bf16.mxu0 0
      %1676 = vmatpush1.bf16.xpose.msra.mxu0 0
      %1677 = vmatprep.mubr.bf16.mxu0 0
      %1678 = vmatmul.mubr.bf16.gmra.mrb[0].mxu0 %v1640
      %v1679 = vpop.f32.mrb[0].mxu0
      %v1680 = vadd.f32 0.0, %v1679
      %v1681 = vpop.f32.mrb[0].mxu0
      %v1682 = vpop.f32.mrb[0].mxu0
      %v1683 = vpop.f32.mrb[0].mxu0
      %1684 = vdwg.mxu0
      %v1685 = vmul.f32 %v1530, 0.35355338
      %v1686 = vmul.f32 %v1580, 0.35355338
      %v1687 = vmul.f32 %v1630, 0.35355338
      %v1688 = vmul.f32 %v1680, 0.35355338
      %v1689 = vsel %vm354, %v1685, -inf
      %1690 = vmax.xlane.f32.xlu0 %v1689
      %v1691 = vpop.xlane.xlu0 %1690
      %v1692 = vsel %vm354, %v1686, -inf
      %1693 = vmax.xlane.f32.xlu0 %v1692
      %v1694 = vpop.xlane.xlu0 %1693
      %v1695 = vsel %vm354, %v1687, -inf
      %1696 = vmax.xlane.f32.xlu0 %v1695
      %v1697 = vpop.xlane.xlu0 %1696
      %v1698 = vsel %vm354, %v1688, -inf
      %1699 = vmax.xlane.f32.xlu0 %v1698
      %v1700 = vpop.xlane.xlu0 %1699
      %v1701 = vsub.f32 %v1685, %v1691
      %v1702 = vsub.f32 %v1686, %v1694
      %v1703 = vsub.f32 %v1687, %v1697
      %v1704 = vsub.f32 %v1688, %v1700
      %v1705 = vmul.f32 %v1701, 1.442695
      %v1706 = vpow.pop %v1705
      %v1707 = vmul.f32 %v1702, 1.442695
      %v1708 = vpow.pop %v1707
      %v1709 = vmul.f32 %v1703, 1.442695
      %v1710 = vpow.pop %v1709
      %v1711 = vmul.f32 %v1704, 1.442695
      %v1712 = vpow.pop %v1711
      %v1713 = vsel %vm354, %v1706, 0.0
      %1714 = vadd.xlane.f32.xlu0 %v1713
      %v1715 = vpop.xlane.xlu0 %1714
      %v1716 = vsel %vm354, %v1708, 0.0
      %1717 = vadd.xlane.f32.xlu0 %v1716
      %v1718 = vpop.xlane.xlu0 %1717
      %v1719 = vsel %vm354, %v1710, 0.0
      %1720 = vadd.xlane.f32.xlu0 %v1719
      %v1721 = vpop.xlane.xlu0 %1720
      %v1722 = vsel %vm354, %v1712, 0.0
      %1723 = vadd.xlane.f32.xlu0 %v1722
      %v1724 = vpop.xlane.xlu0 %1723
      %v1725 = vpack.c.bf16 %v1706, %v1706
      %v1726 = vpack.c.bf16 %v1708, %v1708
      %v1727 = vpack.c.bf16 %v1710, %v1710
      %v1728 = vpack.c.bf16 %v1712, %v1712
      %1729 = vrot.lane.b32.xlu0 %v132, 40
      %v1730 = vpop.permute.xlu0 %1729
      %v1732 = vsel %vm397, %v1725, 0
      %v1735 = vsel %vm401, %v1730, 0
      %1737 = vmatprep.subr.bf16.mxu0 0
      %1738 = vmatpush1.bf16.msra.mxu0 %v1735
      %1739 = vmatprep.subr.bf16.mxu0 0
      %1740 = vmatpush1.bf16.msra.mxu0 0
      %1741 = vmatprep.subr.bf16.mxu0 0
      %1742 = vmatpush1.bf16.msra.mxu0 0
      %1743 = vmatprep.subr.bf16.mxu0 0
      %1744 = vmatpush1.bf16.msra.mxu0 0
      %1745 = vmatprep.subr.bf16.mxu0 0
      %1746 = vmatpush1.bf16.msra.mxu0 0
      %1747 = vmatprep.subr.bf16.mxu0 0
      %1748 = vmatpush1.bf16.msra.mxu0 0
      %1749 = vmatprep.subr.bf16.mxu0 0
      %1750 = vmatpush1.bf16.msra.mxu0 0
      %1751 = vmatprep.subr.bf16.mxu0 0
      %1752 = vmatpush1.bf16.msra.mxu0 0
      %1753 = vmatprep.subr.bf16.mxu0 0
      %1754 = vmatpush1.bf16.msra.mxu0 0
      %1755 = vmatprep.subr.bf16.mxu0 0
      %1756 = vmatpush1.bf16.msra.mxu0 0
      %1757 = vmatprep.subr.bf16.mxu0 0
      %1758 = vmatpush1.bf16.msra.mxu0 0
      %1759 = vmatprep.subr.bf16.mxu0 0
      %1760 = vmatpush1.bf16.msra.mxu0 0
      %1761 = vmatprep.subr.bf16.mxu0 0
      %1762 = vmatpush1.bf16.msra.mxu0 0
      %1763 = vmatprep.subr.bf16.mxu0 0
      %1764 = vmatpush1.bf16.msra.mxu0 0
      %1765 = vmatprep.subr.bf16.mxu0 0
      %1766 = vmatpush1.bf16.msra.mxu0 0
      %1767 = vmatprep.subr.bf16.mxu0 0
      %1768 = vmatpush1.bf16.msra.mxu0 0
      %1769 = vmatprep.mubr.bf16.mxu0 0
      %1770 = vmatmul.mubr.bf16.gmra.mrb[0].mxu0 %v1732
      %v1771 = vpop.f32.mrb[0].mxu0
      %v1772 = vadd.f32 0.0, %v1771
      %v1773 = vpop.f32.mrb[0].mxu0
      %v1774 = vpop.f32.mrb[0].mxu0
      %v1775 = vpop.f32.mrb[0].mxu0
      %1776 = vdwg.mxu0
      %1777 = vrot.lane.b32.xlu0 %v189, 40
      %v1778 = vpop.permute.xlu0 %1777
      %v1780 = vsel %vm397, %v1726, 0
      %v1783 = vsel %vm401, %v1778, 0
      %1785 = vmatprep.subr.bf16.mxu0 0
      %1786 = vmatpush1.bf16.msra.mxu0 %v1783
      %1787 = vmatprep.subr.bf16.mxu0 0
      %1788 = vmatpush1.bf16.msra.mxu0 0
      %1789 = vmatprep.subr.bf16.mxu0 0
      %1790 = vmatpush1.bf16.msra.mxu0 0
      %1791 = vmatprep.subr.bf16.mxu0 0
      %1792 = vmatpush1.bf16.msra.mxu0 0
      %1793 = vmatprep.subr.bf16.mxu0 0
      %1794 = vmatpush1.bf16.msra.mxu0 0
      %1795 = vmatprep.subr.bf16.mxu0 0
      %1796 = vmatpush1.bf16.msra.mxu0 0
      %1797 = vmatprep.subr.bf16.mxu0 0
      %1798 = vmatpush1.bf16.msra.mxu0 0
      %1799 = vmatprep.subr.bf16.mxu0 0
      %1800 = vmatpush1.bf16.msra.mxu0 0
      %1801 = vmatprep.subr.bf16.mxu0 0
      %1802 = vmatpush1.bf16.msra.mxu0 0
      %1803 = vmatprep.subr.bf16.mxu0 0
      %1804 = vmatpush1.bf16.msra.mxu0 0
      %1805 = vmatprep.subr.bf16.mxu0 0
      %1806 = vmatpush1.bf16.msra.mxu0 0
      %1807 = vmatprep.subr.bf16.mxu0 0
      %1808 = vmatpush1.bf16.msra.mxu0 0
      %1809 = vmatprep.subr.bf16.mxu0 0
      %1810 = vmatpush1.bf16.msra.mxu0 0
      %1811 = vmatprep.subr.bf16.mxu0 0
      %1812 = vmatpush1.bf16.msra.mxu0 0
      %1813 = vmatprep.subr.bf16.mxu0 0
      %1814 = vmatpush1.bf16.msra.mxu0 0
      %1815 = vmatprep.subr.bf16.mxu0 0
      %1816 = vmatpush1.bf16.msra.mxu0 0
      %1817 = vmatprep.mubr.bf16.mxu0 0
      %1818 = vmatmul.mubr.bf16.gmra.mrb[0].mxu0 %v1780
      %v1819 = vpop.f32.mrb[0].mxu0
      %v1820 = vadd.f32 0.0, %v1819
      %v1821 = vpop.f32.mrb[0].mxu0
      %v1822 = vpop.f32.mrb[0].mxu0
      %v1823 = vpop.f32.mrb[0].mxu0
      %1824 = vdwg.mxu0
      %1825 = vrot.lane.b32.xlu0 %v245, 40
      %v1826 = vpop.permute.xlu0 %1825
      %v1828 = vsel %vm397, %v1727, 0
      %v1831 = vsel %vm401, %v1826, 0
      %1833 = vmatprep.subr.bf16.mxu0 0
      %1834 = vmatpush1.bf16.msra.mxu0 %v1831
      %1835 = vmatprep.subr.bf16.mxu0 0
      %1836 = vmatpush1.bf16.msra.mxu0 0
      %1837 = vmatprep.subr.bf16.mxu0 0
      %1838 = vmatpush1.bf16.msra.mxu0 0
      %1839 = vmatprep.subr.bf16.mxu0 0
      %1840 = vmatpush1.bf16.msra.mxu0 0
      %1841 = vmatprep.subr.bf16.mxu0 0
      %1842 = vmatpush1.bf16.msra.mxu0 0
      %1843 = vmatprep.subr.bf16.mxu0 0
      %1844 = vmatpush1.bf16.msra.mxu0 0
      %1845 = vmatprep.subr.bf16.mxu0 0
      %1846 = vmatpush1.bf16.msra.mxu0 0
      %1847 = vmatprep.subr.bf16.mxu0 0
      %1848 = vmatpush1.bf16.msra.mxu0 0
      %1849 = vmatprep.subr.bf16.mxu0 0
      %1850 = vmatpush1.bf16.msra.mxu0 0
      %1851 = vmatprep.subr.bf16.mxu0 0
      %1852 = vmatpush1.bf16.msra.mxu0 0
      %1853 = vmatprep.subr.bf16.mxu0 0
      %1854 = vmatpush1.bf16.msra.mxu0 0
      %1855 = vmatprep.subr.bf16.mxu0 0
      %1856 = vmatpush1.bf16.msra.mxu0 0
      %1857 = vmatprep.subr.bf16.mxu0 0
      %1858 = vmatpush1.bf16.msra.mxu0 0
      %1859 = vmatprep.subr.bf16.mxu0 0
      %1860 = vmatpush1.bf16.msra.mxu0 0
      %1861 = vmatprep.subr.bf16.mxu0 0
      %1862 = vmatpush1.bf16.msra.mxu0 0
      %1863 = vmatprep.subr.bf16.mxu0 0
      %1864 = vmatpush1.bf16.msra.mxu0 0
      %1865 = vmatprep.mubr.bf16.mxu0 0
      %1866 = vmatmul.mubr.bf16.gmra.mrb[0].mxu0 %v1828
      %v1867 = vpop.f32.mrb[0].mxu0
      %v1868 = vadd.f32 0.0, %v1867
      %v1869 = vpop.f32.mrb[0].mxu0
      %v1870 = vpop.f32.mrb[0].mxu0
      %v1871 = vpop.f32.mrb[0].mxu0
      %1872 = vdwg.mxu0
      %1873 = vrot.lane.b32.xlu0 %v301, 40
      %v1874 = vpop.permute.xlu0 %1873
      %v1876 = vsel %vm397, %v1728, 0
      %v1879 = vsel %vm401, %v1874, 0
      %1881 = vmatprep.subr.bf16.mxu0 0
      %1882 = vmatpush1.bf16.msra.mxu0 %v1879
      %1883 = vmatprep.subr.bf16.mxu0 0
      %1884 = vmatpush1.bf16.msra.mxu0 0
      %1885 = vmatprep.subr.bf16.mxu0 0
      %1886 = vmatpush1.bf16.msra.mxu0 0
      %1887 = vmatprep.subr.bf16.mxu0 0
      %1888 = vmatpush1.bf16.msra.mxu0 0
      %1889 = vmatprep.subr.bf16.mxu0 0
      %1890 = vmatpush1.bf16.msra.mxu0 0
      %1891 = vmatprep.subr.bf16.mxu0 0
      %1892 = vmatpush1.bf16.msra.mxu0 0
      %1893 = vmatprep.subr.bf16.mxu0 0
      %1894 = vmatpush1.bf16.msra.mxu0 0
      %1895 = vmatprep.subr.bf16.mxu0 0
      %1896 = vmatpush1.bf16.msra.mxu0 0
      %1897 = vmatprep.subr.bf16.mxu0 0
      %1898 = vmatpush1.bf16.msra.mxu0 0
      %1899 = vmatprep.subr.bf16.mxu0 0
      %1900 = vmatpush1.bf16.msra.mxu0 0
      %1901 = vmatprep.subr.bf16.mxu0 0
      %1902 = vmatpush1.bf16.msra.mxu0 0
      %1903 = vmatprep.subr.bf16.mxu0 0
      %1904 = vmatpush1.bf16.msra.mxu0 0
      %1905 = vmatprep.subr.bf16.mxu0 0
      %1906 = vmatpush1.bf16.msra.mxu0 0
      %1907 = vmatprep.subr.bf16.mxu0 0
      %1908 = vmatpush1.bf16.msra.mxu0 0
      %1909 = vmatprep.subr.bf16.mxu0 0
      %1910 = vmatpush1.bf16.msra.mxu0 0
      %1911 = vmatprep.subr.bf16.mxu0 0
      %1912 = vmatpush1.bf16.msra.mxu0 0
      %1913 = vmatprep.mubr.bf16.mxu0 0
      %1914 = vmatmul.mubr.bf16.gmra.mrb[0].mxu0 %v1876
      %v1915 = vpop.f32.mrb[0].mxu0
      %v1916 = vadd.f32 0.0, %v1915
      %v1917 = vpop.f32.mrb[0].mxu0
      %v1918 = vpop.f32.mrb[0].mxu0
      %v1919 = vpop.f32.mrb[0].mxu0
      %1920 = vdwg.mxu0
      %v1921 = vrcp.pop %v1715
      %v1922 = vrcp.pop %v1718
      %v1923 = vrcp.pop %v1721
      %v1924 = vrcp.pop %v1724
      %v1925 = vmul.f32 %v1772, %v1921
      %v1926 = vmul.f32 %v1820, %v1922
      %v1927 = vmul.f32 %v1868, %v1923
      %v1928 = vmul.f32 %v1916, %v1924
      %1933 = vrot.lane.b32.xlu0 %v1037, 8
      %v1934 = vpop.permute.xlu0 %1933
      %1935 = vrot.lane.b32.xlu0 %v1038, 8
      %v1936 = vpop.permute.xlu0 %1935
      %1937 = vrot.lane.b32.xlu0 %v1039, 8
      %v1938 = vpop.permute.xlu0 %1937
      %1939 = vrot.lane.b32.xlu0 %v1040, 8
      %v1940 = vpop.permute.xlu0 %1939
      %1949 = vrot.lane.b32.xlu0 %v1481, 16
      %v1950 = vpop.permute.xlu0 %1949
      %1951 = vrot.lane.b32.xlu0 %v1482, 16
      %v1952 = vpop.permute.xlu0 %1951
      %1953 = vrot.lane.b32.xlu0 %v1483, 16
      %v1954 = vpop.permute.xlu0 %1953
      %1955 = vrot.lane.b32.xlu0 %v1484, 16
      %v1956 = vpop.permute.xlu0 %1955
      %1965 = vrot.lane.b32.xlu0 %v1925, 24
      %v1966 = vpop.permute.xlu0 %1965
      %1967 = vrot.lane.b32.xlu0 %v1926, 24
      %v1968 = vpop.permute.xlu0 %1967
      %1969 = vrot.lane.b32.xlu0 %v1927, 24
      %v1970 = vpop.permute.xlu0 %1969
      %1971 = vrot.lane.b32.xlu0 %v1928, 24
      %v1972 = vpop.permute.xlu0 %1971
      %v1977 = vsel %vm135, %v593, %v1934
      %v1978 = vsel %vm135, %v594, %v1936
      %v1979 = vsel %vm135, %v595, %v1938
      %v1980 = vsel %vm135, %v596, %v1940
      %vm1981 = vcmask 130048
      %v1982 = vsel %vm1981, %v1977, %v1950
      %v1983 = vsel %vm1981, %v1978, %v1952
      %v1984 = vsel %vm1981, %v1979, %v1954
      %v1985 = vsel %vm1981, %v1980, %v1956
      %vm1986 = vcmask 195584
      %v1987 = vsel %vm1986, %v1982, %v1966
      %v1988 = vsel %vm1986, %v1983, %v1968
      %v1989 = vsel %vm1986, %v1984, %v1970
      %v1990 = vsel %vm1986, %v1985, %v1972
      %v1991 = vpack.c.bf16 %v1987, %v1987
      %v1992 = vpack.c.bf16 %v1988, %v1988
      %v1993 = vpack.c.bf16 %v1989, %v1989
      %v1994 = vpack.c.bf16 %v1990, %v1990
      %vm1995 = vcmask 254976
      %1996 = vst.msk [vmem:[%s118] sm:$0x3] %vm1995, %v1991
      %1997 = vst.msk [vmem:[%s118 + $0x2] sm:$0x3] %vm1995, %v1992
      %1998 = vst.msk [vmem:[%s118 + $0x4] sm:$0x3] %vm1995, %v1993
      %1999 = vst.msk [vmem:[%s118 + $0x6] sm:$0x3] %vm1995, %v1994
      %s2000 = smul.u32 4, %s12
      %p2001 = scmp.lt.s32.totalorder %s2000, 7
      %s2002 = scalar_select %p2001, %s2000, 7
      %s2003 = smul.addr %s2002, 2
      %s2004 = scalar_lea.vmem %s1, %s2003
      // Predicated region
      $region25: #{_lambda_.22} parent=23 // pred_check
        %p2005 = pneg %p56
      $region26: #{_lambda_.22} parent=23 // pred_check_branch
        %2007 = sbr.rel (%p2005) target = $region28
      $region27: #{_lambda_.22} parent=23 // pred_region
        %s2008 = smul.u32 4, %s12
      $region28: #{_lambda_.22} parent=23 // pred_fallthru
        _
    $region24: #{_lambda_.22} parent=5 // pred_fallthru
      _
    %p2009 = scmp.le.s32.totalorder 2, %s7
    // Predicated region
    $region29: #{_lambda_.22} parent=5 // pred_check
      %p2010 = pneg %p2009
    $region30: #{_lambda_.22} parent=5 // pred_check_branch
      %2012 = sbr.rel (%p2010) target = $region32
    $region31: #{_lambda_.22} parent=5 // pred_region
      %s2013 = ssub.s32 %s7, 2
      // Predicated region
      $region33: #{_lambda_.22} parent=31 // pred_check
        %p2014 = pneg %p62
      $region34: #{_lambda_.22} parent=31 // pred_check_branch
        %2016 = sbr.rel (%p2014) target = $region36
      $region35: #{_lambda_.22} parent=31 // pred_region
        %s2017 = smul.u32 4, %s13
        %p2018 = scmp.lt.s32.totalorder %s2017, 7
        %s2019 = scalar_select %p2018, %s2017, 7
        %s2020 = smul.addr %s2019, 2
        %s2021 = scalar_lea.vmem %s1, %s2020
      $region36: #{_lambda_.22} parent=31 // pred_fallthru
        _
    $region32: #{_lambda_.22} parent=5 // pred_fallthru
      _
  $region6: #{_lambda_.22} parent=0 // loop_footer
    %s11 = sadd.s32 1, %s7
  $region7: #{_lambda_.22} parent=0 // loop_footer_branch
    %6 = sbr.rel target = $region3
  $region8: #{_lambda_.22} parent=0 // loop_exit
    _

// kernel: _lambda_.25
$region0: #{_lambda_.25}
  #allocation0 [shape = 'u32[]', space=smem, size = 0x4, offset = 0x4, fixed_abs, tag = 'smem constant byte address 0x4 - core index']
  #allocation1 [shape = 'u32[144,128]{1,0:T(1,128)}', space=vmem, size = 0x12000, scoped, tag = 'internal scratch']
  %s0 = inlined_call_operand.vmem [shape: f32[40,32], index: 0, kind: input, shape index: {}]
  %s1 = inlined_call_operand.vmem [shape: bf16[32,96], index: 1, kind: input, shape index: {}]
  %s2 = inlined_call_operand.vmem [shape: f32[1,96], index: 2, kind: input, shape index: {}]
  %s3 = inlined_call_operand.vmem [shape: f32[1,32], index: 3, kind: input, shape index: {}]
  %s4 = inlined_call_operand.vmem [shape: f32[1,32], index: 4, kind: input, shape index: {}]
  %s5 = inlined_call_operand.vmem [shape: bf16[40,96], index: 5, kind: output, shape index: {}]
  %s6 = sld [smem:[#allocation0]]
  $region30: #{_lambda_.25} parent=0
    _
  %s8 = ssub.s32 1, %s6
  %s9 = scalar_select 0, %s8, %s6
  // Predicated region
  $region2: #{_lambda_.25} parent=0 // pred_check
    _
  $region3: #{_lambda_.25} parent=0 // pred_check_branch
    %11 = sbr.rel (0) target = $region5
  $region4: #{_lambda_.25} parent=0 // pred_region
    _
  $region5: #{_lambda_.25} parent=0 // pred_fallthru
    _
  // Predicated region
  $region6: #{_lambda_.25} parent=0 // pred_check
    _
  $region7: #{_lambda_.25} parent=0 // pred_check_branch
    %13 = sbr.rel (0) target = $region9
  $region8: #{_lambda_.25} parent=0 // pred_region
    _
  $region9: #{_lambda_.25} parent=0 // pred_fallthru
    _
  // Predicated region
  $region10: #{_lambda_.25} parent=0 // pred_check
    _
  $region11: #{_lambda_.25} parent=0 // pred_check_branch
    %15 = sbr.rel (0) target = $region13
  $region12: #{_lambda_.25} parent=0 // pred_region
    _
  $region13: #{_lambda_.25} parent=0 // pred_fallthru
    _
  // Predicated region
  $region14: #{_lambda_.25} parent=0 // pred_check
    _
  $region15: #{_lambda_.25} parent=0 // pred_check_branch
    %17 = sbr.rel (0) target = $region17
  $region16: #{_lambda_.25} parent=0 // pred_region
    _
  $region17: #{_lambda_.25} parent=0 // pred_fallthru
    _
  // Predicated region
  $region18: #{_lambda_.25} parent=0 // pred_check
    _
  $region19: #{_lambda_.25} parent=0 // pred_check_branch
    %19 = sbr.rel (0) target = $region21
  $region20: #{_lambda_.25} parent=0 // pred_region
    _
  $region21: #{_lambda_.25} parent=0 // pred_fallthru
    _
  %v21 = vld [vmem:[%s0] sm:$0xff]
  %v22 = vld [vmem:[%s0 + $0x8] sm:$0xff]
  %v23 = vld [vmem:[%s0 + $0x10] sm:$0xff]
  %v24 = vld [vmem:[%s0 + $0x18] sm:$0xff]
  %v25 = vld [vmem:[%s0 + $0x20] sm:$0xff]
  %vm26 = vcmask 261120
  %v27 = vsel %vm26, %v21, 0.0
  %28 = vadd.xlane.f32.xlu0 %v27
  %v29 = vpop.xlane.xlu0 %28
  %v30 = vsel %vm26, %v22, 0.0
  %31 = vadd.xlane.f32.xlu0 %v30
  %v32 = vpop.xlane.xlu0 %31
  %v33 = vsel %vm26, %v23, 0.0
  %34 = vadd.xlane.f32.xlu0 %v33
  %v35 = vpop.xlane.xlu0 %34
  %v36 = vsel %vm26, %v24, 0.0
  %37 = vadd.xlane.f32.xlu0 %v36
  %v38 = vpop.xlane.xlu0 %37
  %v39 = vsel %vm26, %v25, 0.0
  %40 = vadd.xlane.f32.xlu0 %v39
  %v41 = vpop.xlane.xlu0 %40
  %v42 = vrcp.pop 32.0
  %v43 = vmul.f32 %v29, %v42
  %v44 = vmul.f32 %v32, %v42
  %v45 = vmul.f32 %v35, %v42
  %v46 = vmul.f32 %v38, %v42
  %v47 = vmul.f32 %v41, %v42
  %v48 = vsub.f32 %v21, %v43
  %v49 = vsub.f32 %v22, %v44
  %v50 = vsub.f32 %v23, %v45
  %v51 = vsub.f32 %v24, %v46
  %v52 = vsub.f32 %v25, %v47
  %v53 = vmul.f32 %v48, %v48
  %v54 = vmul.f32 %v49, %v49
  %v55 = vmul.f32 %v50, %v50
  %v56 = vmul.f32 %v51, %v51
  %v57 = vmul.f32 %v52, %v52
  %v58 = vsel %vm26, %v53, 0.0
  %59 = vadd.xlane.f32.xlu0 %v58
  %v60 = vpop.xlane.xlu0 %59
  %v61 = vsel %vm26, %v54, 0.0
  %62 = vadd.xlane.f32.xlu0 %v61
  %v63 = vpop.xlane.xlu0 %62
  %v64 = vsel %vm26, %v55, 0.0
  %65 = vadd.xlane.f32.xlu0 %v64
  %v66 = vpop.xlane.xlu0 %65
  %v67 = vsel %vm26, %v56, 0.0
  %68 = vadd.xlane.f32.xlu0 %v67
  %v69 = vpop.xlane.xlu0 %68
  %v70 = vsel %vm26, %v57, 0.0
  %71 = vadd.xlane.f32.xlu0 %v70
  %v72 = vpop.xlane.xlu0 %71
  %v73 = vmul.f32 %v60, %v42
  %v74 = vmul.f32 %v63, %v42
  %v75 = vmul.f32 %v66, %v42
  %v76 = vmul.f32 %v69, %v42
  %v77 = vmul.f32 %v72, %v42
  %v78 = vadd.f32 %v73, 1e-06
  %v79 = vadd.f32 %v74, 1e-06
  %v80 = vadd.f32 %v75, 1e-06
  %v81 = vadd.f32 %v76, 1e-06
  %v82 = vadd.f32 %v77, 1e-06
  %v83 = vrsqrt.pop %v78
  %v84 = vrsqrt.pop %v79
  %v85 = vrsqrt.pop %v80
  %v86 = vrsqrt.pop %v81
  %v87 = vrsqrt.pop %v82
  %v88 = vmul.f32 %v48, %v83
  %v89 = vmul.f32 %v49, %v84
  %v90 = vmul.f32 %v50, %v85
  %v91 = vmul.f32 %v51, %v86
  %v92 = vmul.f32 %v52, %v87
  %v93 = vld [vmem:[%s3] sm:$0x1]
  %v95 = vlaneseq
  %v96 = vshrl.u32 %v95, 7
  %v97 = vsub.s32 0, %v96
  %v98 = vrot.slane %v93, %v97
  %v100 = vmul.f32 %v88, %v98
  %v101 = vmul.f32 %v89, %v98
  %v102 = vmul.f32 %v90, %v98
  %v103 = vmul.f32 %v91, %v98
  %v104 = vmul.f32 %v92, %v98
  %v105 = vld [vmem:[%s4] sm:$0x1]
  %v107 = vlaneseq
  %v108 = vshrl.u32 %v107, 7
  %v109 = vsub.s32 0, %v108
  %v110 = vrot.slane %v105, %v109
  %v112 = vadd.f32 %v100, %v110
  %v113 = vadd.f32 %v101, %v110
  %v114 = vadd.f32 %v102, %v110
  %v115 = vadd.f32 %v103, %v110
  %v116 = vadd.f32 %v104, %v110
  %v117 = vpack.c.bf16 %v113, %v112
  %v118 = vpack.c.bf16 %v115, %v114
  %v119 = vpack.c.bf16 %v116, %v116
  %v120 = vld [vmem:[%s1] sm:$0xf]
  %v121 = vld [vmem:[%s1 + $0x4] sm:$0xf]
  %v122 = vld [vmem:[%s1 + $0x8] sm:$0xf]
  %v123 = vld [vmem:[%s1 + $0xc] sm:$0xf]
  %v124 = vld [vmem:[%s2] sm:$0x1]
  %v126 = vlaneseq
  %v127 = vshrl.u32 %v126, 7
  %v128 = vsub.s32 0, %v127
  %v129 = vrot.slane %v124, %v128
  %v135 = vunpack.c.l.b16 %v120
  %v136 = vunpack.c.l.b16 %v121
  %v137 = vunpack.c.l.b16 %v122
  %v138 = vunpack.c.l.b16 %v123
  %v139 = vpack.c.b16 %v136, %v135
  %v140 = vpack.c.b16 %v138, %v137
  %v144 = vsel %vm26, %v117, 0
  %v147 = vsel %vm26, %v118, 0
  %v150 = vsel %vm26, %v119, 0
  %152 = vmatprep.subr.bf16.mxu0 0
  %153 = vmatpush1.bf16.msra.mxu0 %v139
  %154 = vmatprep.subr.bf16.mxu0 0
  %155 = vmatpush1.bf16.msra.mxu0 %v140
  %156 = vmatprep.subr.bf16.mxu0 0
  %157 = vmatpush1.bf16.msra.mxu0 0
  %158 = vmatprep.subr.bf16.mxu0 0
  %159 = vmatpush1.bf16.msra.mxu0 0
  %160 = vmatprep.subr.bf16.mxu0 0
  %161 = vmatpush1.bf16.msra.mxu0 0
  %162 = vmatprep.subr.bf16.mxu0 0
  %163 = vmatpush1.bf16.msra.mxu0 0
  %164 = vmatprep.subr.bf16.mxu0 0
  %165 = vmatpush1.bf16.msra.mxu0 0
  %166 = vmatprep.subr.bf16.mxu0 0
  %167 = vmatpush1.bf16.msra.mxu0 0
  %168 = vmatprep.subr.bf16.mxu0 0
  %169 = vmatpush1.bf16.msra.mxu0 0
  %170 = vmatprep.subr.bf16.mxu0 0
  %171 = vmatpush1.bf16.msra.mxu0 0
  %172 = vmatprep.subr.bf16.mxu0 0
  %173 = vmatpush1.bf16.msra.mxu0 0
  %174 = vmatprep.subr.bf16.mxu0 0
  %175 = vmatpush1.bf16.msra.mxu0 0
  %176 = vmatprep.subr.bf16.mxu0 0
  %177 = vmatpush1.bf16.msra.mxu0 0
  %178 = vmatprep.subr.bf16.mxu0 0
  %179 = vmatpush1.bf16.msra.mxu0 0
  %180 = vmatprep.subr.bf16.mxu0 0
  %181 = vmatpush1.bf16.msra.mxu0 0
  %182 = vmatprep.subr.bf16.mxu0 0
  %183 = vmatpush1.bf16.msra.mxu0 0
  %184 = vmatprep.mubr.bf16.mxu0 0
  %185 = vmatmul.mubr.bf16.gmra.mrb[0].mxu0 %v144
  %v186 = vpop.f32.mrb[0].mxu0
  %v187 = vadd.f32 %v129, %v186
  %v188 = vpop.f32.mrb[0].mxu0
  %v189 = vpop.f32.mrb[0].mxu0
  %v190 = vadd.f32 %v129, %v189
  %v191 = vpop.f32.mrb[0].mxu0
  %192 = vmatprep.mubr.bf16.mxu0 0
  %193 = vmatmul.mubr.bf16.gmra.mrb[0].mxu0 %v147
  %v194 = vpop.f32.mrb[0].mxu0
  %v195 = vadd.f32 %v129, %v194
  %v196 = vpop.f32.mrb[0].mxu0
  %v197 = vpop.f32.mrb[0].mxu0
  %v198 = vadd.f32 %v129, %v197
  %v199 = vpop.f32.mrb[0].mxu0
  %200 = vmatprep.mubr.bf16.mxu0 0
  %201 = vmatmul.mubr.bf16.gmra.mrb[0].mxu0 %v150
  %v202 = vpop.f32.mrb[0].mxu0
  %v203 = vadd.f32 %v129, %v202
  %v204 = vpop.f32.mrb[0].mxu0
  %v205 = vpop.f32.mrb[0].mxu0
  %v206 = vpop.f32.mrb[0].mxu0
  %207 = vdwg.mxu0
  %v208 = vpack.c.bf16 %v190, %v187
  %v209 = vpack.c.bf16 %v198, %v195
  %v210 = vpack.c.bf16 %v203, %v203
  %v214 = vunpack.c.l.b16 %v208
  %v215 = vunpack.c.h.b16 %v208
  %v216 = vunpack.c.l.b16 %v209
  %v217 = vunpack.c.h.b16 %v209
  %v218 = vunpack.c.l.b16 %v210
  %v219 = vpack.c.b16 %v214, %v214
  %v220 = vpack.c.b16 %v215, %v215
  %v221 = vpack.c.b16 %v216, %v216
  %v222 = vpack.c.b16 %v217, %v217
  %v223 = vpack.c.b16 %v218, %v218
  %vm229 = vcmask 781312
  %230 = vst.msk [vmem:[%s5] sm:$0xf] %vm229, %v219
  %231 = vst.msk [vmem:[%s5 + $0x4] sm:$0xf] %vm229, %v220
  %232 = vst.msk [vmem:[%s5 + $0x8] sm:$0xf] %vm229, %v221
  %233 = vst.msk [vmem:[%s5 + $0xc] sm:$0xf] %vm229, %v222
  %234 = vst.msk [vmem:[%s5 + $0x10] sm:$0xf] %vm229, %v223
  // Predicated region
  $region22: #{_lambda_.25} parent=0 // pred_check
    _
  $region23: #{_lambda_.25} parent=0 // pred_check_branch
    %236 = sbr.rel (0) target = $region25
  $region24: #{_lambda_.25} parent=0 // pred_region
    _
  $region25: #{_lambda_.25} parent=0 // pred_fallthru
    _
  // Predicated region
  $region26: #{_lambda_.25} parent=0 // pred_check
    _
  $region27: #{_lambda_.25} parent=0 // pred_check_branch
    %238 = sbr.rel (0) target = $region29
  $region28: #{_lambda_.25} parent=0 // pred_region
    _
  $region29: #{_lambda_.25} parent=0 // pred_fallthru
    _

// kernel: _lambda_.27
$region0: #{_lambda_.27}
  #allocation0 [shape = 'u32[]', space=smem, size = 0x4, offset = 0x4, fixed_abs, tag = 'smem constant byte address 0x4 - core index']
  #allocation1 [shape = 'u32[144,128]{1,0:T(1,128)}', space=vmem, size = 0x12000, scoped, tag = 'internal scratch']
  %s0 = inlined_call_operand.vmem [shape: bf16[40,32], index: 0, kind: input, shape index: {}]
  %s1 = inlined_call_operand.vmem [shape: bf16[32,32], index: 1, kind: input, shape index: {}]
  %s2 = inlined_call_operand.vmem [shape: f32[1,32], index: 2, kind: input, shape index: {}]
  %s3 = inlined_call_operand.vmem [shape: f32[40,32], index: 3, kind: output, shape index: {}]
  %s4 = sld [smem:[#allocation0]]
  $region22: #{_lambda_.27} parent=0
    _
  %s6 = ssub.s32 1, %s4
  %s7 = scalar_select 0, %s6, %s4
  // Predicated region
  $region2: #{_lambda_.27} parent=0 // pred_check
    _
  $region3: #{_lambda_.27} parent=0 // pred_check_branch
    %9 = sbr.rel (0) target = $region5
  $region4: #{_lambda_.27} parent=0 // pred_region
    _
  $region5: #{_lambda_.27} parent=0 // pred_fallthru
    _
  // Predicated region
  $region6: #{_lambda_.27} parent=0 // pred_check
    _
  $region7: #{_lambda_.27} parent=0 // pred_check_branch
    %11 = sbr.rel (0) target = $region9
  $region8: #{_lambda_.27} parent=0 // pred_region
    _
  $region9: #{_lambda_.27} parent=0 // pred_fallthru
    _
  // Predicated region
  $region10: #{_lambda_.27} parent=0 // pred_check
    _
  $region11: #{_lambda_.27} parent=0 // pred_check_branch
    %13 = sbr.rel (0) target = $region13
  $region12: #{_lambda_.27} parent=0 // pred_region
    _
  $region13: #{_lambda_.27} parent=0 // pred_fallthru
    _
  %v15 = vld [vmem:[%s0] sm:$0xf]
  %v16 = vld [vmem:[%s0 + $0x4] sm:$0xf]
  %v17 = vld [vmem:[%s0 + $0x8] sm:$0xf]
  %v18 = vld [vmem:[%s0 + $0xc] sm:$0xf]
  %v19 = vld [vmem:[%s0 + $0x10] sm:$0xf]
  %v20 = vld [vmem:[%s1] sm:$0xf]
  %v21 = vld [vmem:[%s1 + $0x4] sm:$0xf]
  %v22 = vld [vmem:[%s1 + $0x8] sm:$0xf]
  %v23 = vld [vmem:[%s1 + $0xc] sm:$0xf]
  %v24 = vld [vmem:[%s2] sm:$0x1]
  %v26 = vlaneseq
  %v27 = vshrl.u32 %v26, 7
  %v28 = vsub.s32 0, %v27
  %v29 = vrot.slane %v24, %v28
  %v36 = vunpack.c.l.b16 %v15
  %v37 = vunpack.c.l.b16 %v16
  %v38 = vunpack.c.l.b16 %v17
  %v39 = vunpack.c.l.b16 %v18
  %v40 = vunpack.c.l.b16 %v19
  %v41 = vpack.c.b16 %v37, %v36
  %v42 = vpack.c.b16 %v39, %v38
  %v43 = vpack.c.b16 %v40, %v40
  %v48 = vunpack.c.l.b16 %v20
  %v49 = vunpack.c.l.b16 %v21
  %v50 = vunpack.c.l.b16 %v22
  %v51 = vunpack.c.l.b16 %v23
  %v52 = vpack.c.b16 %v49, %v48
  %v53 = vpack.c.b16 %v51, %v50
  %vm56 = vcmask 261120
  %v58 = vsel %vm56, %v41, 0
  %v61 = vsel %vm56, %v42, 0
  %v64 = vsel %vm56, %v43, 0
  %66 = vmatprep.subr.bf16.mxu0 0
  %67 = vmatpush1.bf16.msra.mxu0 %v52
  %68 = vmatprep.subr.bf16.mxu0 0
  %69 = vmatpush1.bf16.msra.mxu0 %v53
  %70 = vmatprep.subr.bf16.mxu0 0
  %71 = vmatpush1.bf16.msra.mxu0 0
  %72 = vmatprep.subr.bf16.mxu0 0
  %73 = vmatpush1.bf16.msra.mxu0 0
  %74 = vmatprep.subr.bf16.mxu0 0
  %75 = vmatpush1.bf16.msra.mxu0 0
  %76 = vmatprep.subr.bf16.mxu0 0
  %77 = vmatpush1.bf16.msra.mxu0 0
  %78 = vmatprep.subr.bf16.mxu0 0
  %79 = vmatpush1.bf16.msra.mxu0 0
  %80 = vmatprep.subr.bf16.mxu0 0
  %81 = vmatpush1.bf16.msra.mxu0 0
  %82 = vmatprep.subr.bf16.mxu0 0
  %83 = vmatpush1.bf16.msra.mxu0 0
  %84 = vmatprep.subr.bf16.mxu0 0
  %85 = vmatpush1.bf16.msra.mxu0 0
  %86 = vmatprep.subr.bf16.mxu0 0
  %87 = vmatpush1.bf16.msra.mxu0 0
  %88 = vmatprep.subr.bf16.mxu0 0
  %89 = vmatpush1.bf16.msra.mxu0 0
  %90 = vmatprep.subr.bf16.mxu0 0
  %91 = vmatpush1.bf16.msra.mxu0 0
  %92 = vmatprep.subr.bf16.mxu0 0
  %93 = vmatpush1.bf16.msra.mxu0 0
  %94 = vmatprep.subr.bf16.mxu0 0
  %95 = vmatpush1.bf16.msra.mxu0 0
  %96 = vmatprep.subr.bf16.mxu0 0
  %97 = vmatpush1.bf16.msra.mxu0 0
  %98 = vmatprep.mubr.bf16.mxu0 0
  %99 = vmatmul.mubr.bf16.gmra.mrb[0].mxu0 %v58
  %v100 = vpop.f32.mrb[0].mxu0
  %v101 = vadd.f32 %v29, %v100
  %v102 = vpop.f32.mrb[0].mxu0
  %v103 = vpop.f32.mrb[0].mxu0
  %v104 = vadd.f32 %v29, %v103
  %v105 = vpop.f32.mrb[0].mxu0
  %106 = vmatprep.mubr.bf16.mxu0 0
  %107 = vmatmul.mubr.bf16.gmra.mrb[0].mxu0 %v61
  %v108 = vpop.f32.mrb[0].mxu0
  %v109 = vadd.f32 %v29, %v108
  %v110 = vpop.f32.mrb[0].mxu0
  %v111 = vpop.f32.mrb[0].mxu0
  %v112 = vadd.f32 %v29, %v111
  %v113 = vpop.f32.mrb[0].mxu0
  %114 = vmatprep.mubr.bf16.mxu0 0
  %115 = vmatmul.mubr.bf16.gmra.mrb[0].mxu0 %v64
  %v116 = vpop.f32.mrb[0].mxu0
  %v117 = vadd.f32 %v29, %v116
  %v118 = vpop.f32.mrb[0].mxu0
  %v119 = vpop.f32.mrb[0].mxu0
  %v120 = vpop.f32.mrb[0].mxu0
  %121 = vdwg.mxu0
  %122 = vst.msk [vmem:[%s3] sm:$0xff] %vm56, %v101
  %123 = vst.msk [vmem:[%s3 + $0x8] sm:$0xff] %vm56, %v104
  %124 = vst.msk [vmem:[%s3 + $0x10] sm:$0xff] %vm56, %v109
  %125 = vst.msk [vmem:[%s3 + $0x18] sm:$0xff] %vm56, %v112
  %126 = vst.msk [vmem:[%s3 + $0x20] sm:$0xff] %vm56, %v117
  // Predicated region
  $region14: #{_lambda_.27} parent=0 // pred_check
    _
  $region15: #{_lambda_.27} parent=0 // pred_check_branch
    %128 = sbr.rel (0) target = $region17
  $region16: #{_lambda_.27} parent=0 // pred_region
    _
  $region17: #{_lambda_.27} parent=0 // pred_fallthru
    _
  // Predicated region
  $region18: #{_lambda_.27} parent=0 // pred_check
    _
  $region19: #{_lambda_.27} parent=0 // pred_check_branch
    %130 = sbr.rel (0) target = $region21
  $region20: #{_lambda_.27} parent=0 // pred_region
    _
  $region21: #{_lambda_.27} parent=0 // pred_fallthru
    _

// kernel: _lambda_.26
$region0: #{_lambda_.26}
  #allocation0 [shape = 'u32[]', space=smem, size = 0x4, offset = 0x4, fixed_abs, tag = 'smem constant byte address 0x4 - core index']
  #allocation1 [shape = 'u32[144,128]{1,0:T(1,128)}', space=vmem, size = 0x12000, scoped, tag = 'internal scratch']
  %s0 = inlined_call_operand.vmem [shape: bf16[8,5,96], index: 0, kind: input, shape index: {}]
  %s1 = inlined_call_operand.vmem [shape: bf16[8,5,32], index: 1, kind: output, shape index: {}]
  %s2 = sld [smem:[#allocation0]]
  $region37: #{_lambda_.26} parent=0
    _
  %s4 = ssub.s32 1, %s2
  %s5 = scalar_select 0, %s4, %s2
  loop: start=0, step=1, limit=4
  $region2: #{_lambda_.26} parent=0 // loop_pre_header
    _
  $region3: #{_lambda_.26} parent=0 // loop_header
    %s7 = sphi 0, %s11
    %p8 = scmp.ge.s32.totalorder %s7, 4
    %s17 = sphi 0, %s19
    %s20 = sphi 0, %s17
    %s21 = sphi 0, %s20
    %s37 = sphi 0, %s21
    %s43 = sphi 0, %s45
    %s46 = sphi 0, %s43
    %s47 = sphi 0, %s46
    %s63 = sphi 0, %s47
  $region4: #{_lambda_.26} parent=0 // loop_header_branch
    %10 = sbr.rel (%p8) target = $region8
  $region5: #{_lambda_.26} parent=0 // loop_body
    %s12 = ssub.s32 %s7, 1
    %s13 = ssub.s32 %s7, 2
    %s14 = sadd.s32 %s7, 1
    %s15 = ssub.s32 %s7, %s14
    %p16 = scmp.eq.s32.totalorder %s15, 0
    %s18 = sadd.s32 %s17, 1
    %s19 = scalar_select %p16, %s17, %s18
    %p22 = pneg %p16
    %p23 = scmp.eq.s32.totalorder %s7, 1
    %p24 = por %p22, %p23
    %p25 = scmp.ne.s32.totalorder %s17, %s20
    %p26 = scmp.eq.s32.totalorder %s7, 0
    %p27 = por %p25, %p26
    %p28 = scmp.ne.s32.totalorder %s17, %s20
    %p29 = scmp.eq.s32.totalorder %s12, 1
    %p30 = por %p28, %p29
    %p31 = scmp.ne.s32.totalorder %s20, %s21
    %p32 = scmp.eq.s32.totalorder %s12, 0
    %p33 = por %p31, %p32
    %p34 = scmp.ne.s32.totalorder %s20, %s21
    %p35 = scmp.eq.s32.totalorder %s13, 1
    %p36 = por %p34, %p35
    %p38 = scmp.ne.s32.totalorder %s21, %s37
    %p39 = scmp.eq.s32.totalorder %s13, 0
    %p40 = por %p38, %p39
    %s41 = ssub.s32 %s7, %s14
    %p42 = scmp.eq.s32.totalorder %s41, 0
    %s44 = sadd.s32 %s43, 1
    %s45 = scalar_select %p42, %s43, %s44
    %p48 = pneg %p42
    %p49 = scmp.eq.s32.totalorder %s7, 1
    %p50 = por %p48, %p49
    %p51 = scmp.ne.s32.totalorder %s43, %s46
    %p52 = scmp.eq.s32.totalorder %s7, 0
    %p53 = por %p51, %p52
    %p54 = scmp.ne.s32.totalorder %s43, %s46
    %p55 = scmp.eq.s32.totalorder %s12, 1
    %p56 = por %p54, %p55
    %p57 = scmp.ne.s32.totalorder %s46, %s47
    %p58 = scmp.eq.s32.totalorder %s12, 0
    %p59 = por %p57, %p58
    %p60 = scmp.ne.s32.totalorder %s46, %s47
    %p61 = scmp.eq.s32.totalorder %s13, 1
    %p62 = por %p60, %p61
    %p64 = scmp.ne.s32.totalorder %s47, %s63
    %p65 = scmp.eq.s32.totalorder %s13, 0
    %p66 = por %p64, %p65
    %p67 = scmp.le.s32.totalorder 1, %s7
    %p68 = scmp.lt.s32.totalorder %s7, 3
    %p69 = pnand %p67, %p68
    %p70 = pneg %p69
    // Predicated region
    $region9: #{_lambda_.26} parent=5 // pred_check
      _
    $region10: #{_lambda_.26} parent=5 // pred_check_branch
      %72 = sbr.rel (%p69) target = $region12
    $region11: #{_lambda_.26} parent=5 // pred_region
      %s73 = ssub.s32 %s7, 1
    $region12: #{_lambda_.26} parent=5 // pred_fallthru
      _
    %p74 = scmp.lt.s32.totalorder %s7, 2
    // Predicated region
    $region13: #{_lambda_.26} parent=5 // pred_check
      %p75 = pneg %p74
    $region14: #{_lambda_.26} parent=5 // pred_check_branch
      %77 = sbr.rel (%p75) target = $region16
    $region15: #{_lambda_.26} parent=5 // pred_region
      // Predicated region
      $region17: #{_lambda_.26} parent=15 // pred_check
        %p78 = pneg %p27
      $region18: #{_lambda_.26} parent=15 // pred_check_branch
        %80 = sbr.rel (%p78) target = $region20
      $region19: #{_lambda_.26} parent=15 // pred_region
        %s81 = smul.u32 4, %s7
        %p82 = scmp.lt.s32.totalorder %s81, 7
        %s83 = scalar_select %p82, %s81, 7
        %s84 = smul.addr %s83, 4
        %s85 = scalar_lea.vmem %s0, %s84
        %s86 = smul.u32 4, %s7
      $region20: #{_lambda_.26} parent=15 // pred_fallthru
        _
    $region16: #{_lambda_.26} parent=5 // pred_fallthru
      _
    %p87 = scmp.le.s32.totalorder 1, %s7
    %p88 = scmp.lt.s32.totalorder %s7, 3
    %p89 = pnand %p87, %p88
    %p90 = pneg %p89
    // Predicated region
    $region21: #{_lambda_.26} parent=5 // pred_check
      _
    $region22: #{_lambda_.26} parent=5 // pred_check_branch
      %92 = sbr.rel (%p89) target = $region24
    $region23: #{_lambda_.26} parent=5 // pred_region
      %s93 = ssub.s32 %s7, 1
      %s94 = smul.u32 4, %s12
      %p95 = scmp.lt.s32.totalorder %s94, 7
      %s96 = scalar_select %p95, %s94, 7
      %s97 = smul.addr %s96, 4
      %s98 = scalar_lea.vmem %s0, %s97
      %p99 = pneg %p33
      %p100 = pneg %p30
      %p101 = pneg %p59
      %p102 = pneg %p56
      %s103 = smul.u32 4, %s12
      %p104 = scmp.lt.s32.totalorder %s103, 7
      %s105 = scalar_select %p104, %s103, 7
      %s106 = smul.addr %s105, 4
      %s107 = scalar_lea.vmem %s1, %s106
      %s108 = smul.u32 4, %s12
      %p109 = scmp.lt.s32.totalorder %s108, 7
      %s110 = scalar_select %p109, %s108, 7
      %s111 = smul.addr %s110, 4
      %s112 = scalar_lea.vmem %s0, %s111
      %s113 = smul.u32 4, %s12
      %s114 = smul.u32 4, %s12
      %p115 = scmp.lt.s32.totalorder %s114, 7
      %s116 = scalar_select %p115, %s114, 7
      %s117 = smul.addr %s116, 4
      %s118 = scalar_lea.vmem %s1, %s117
      %s119 = smul.u32 4, %s12
      %v121 = vld [vmem:[%s112] sm:$0x7]
      %v122 = vld [vmem:[%s112 + $0x4] sm:$0x7]
      %v123 = vld [vmem:[%s112 + $0x8] sm:$0x7]
      %v124 = vld [vmem:[%s112 + $0xc] sm:$0x7]
      %v126 = vunpack.c.l.b16 %v121
      %v127 = vpack.c.b16 %v126, %v126
      %128 = vrot.lane.b32.xlu0 %v127, 96
      %v129 = vpop.permute.xlu0 %128
      %vm130 = vcmask 64512
      %v132 = vsel %vm130, %v121, 0
      %v135 = vsel %vm130, %v129, 0
      %137 = vmatprep.subr.bf16.mxu0 0
      %138 = vmatpush1.bf16.xpose.msra.mxu0 %v135
      %139 = vmatprep.subr.bf16.mxu0 0
      %140 = vmatpush1.bf16.xpose.msra.mxu0 0
      %141 = vmatprep.subr.bf16.mxu0 0
      %142 = vmatpush1.bf16.xpose.msra.mxu0 0
      %143 = vmatprep.subr.bf16.mxu0 0
      %144 = vmatpush1.bf16.xpose.msra.mxu0 0
      %145 = vmatprep.subr.bf16.mxu0 0
      %146 = vmatpush1.bf16.xpose.msra.mxu0 0
      %147 = vmatprep.subr.bf16.mxu0 0
      %148 = vmatpush1.bf16.xpose.msra.mxu0 0
      %149 = vmatprep.subr.bf16.mxu0 0
      %150 = vmatpush1.bf16.xpose.msra.mxu0 0
      %151 = vmatprep.subr.bf16.mxu0 0
      %152 = vmatpush1.bf16.xpose.msra.mxu0 0
      %153 = vmatprep.subr.bf16.mxu0 0
      %154 = vmatpush1.bf16.xpose.msra.mxu0 0
      %155 = vmatprep.subr.bf16.mxu0 0
      %156 = vmatpush1.bf16.xpose.msra.mxu0 0
      %157 = vmatprep.subr.bf16.mxu0 0
      %158 = vmatpush1.bf16.xpose.msra.mxu0 0
      %159 = vmatprep.subr.bf16.mxu0 0
      %160 = vmatpush1.bf16.xpose.msra.mxu0 0
      %161 = vmatprep.subr.bf16.mxu0 0
      %162 = vmatpush1.bf16.xpose.msra.mxu0 0
      %163 = vmatprep.subr.bf16.mxu0 0
      %164 = vmatpush1.bf16.xpose.msra.mxu0 0
      %165 = vmatprep.subr.bf16.mxu0 0
      %166 = vmatpush1.bf16.xpose.msra.mxu0 0
      %167 = vmatprep.subr.bf16.mxu0 0
      %168 = vmatpush1.bf16.xpose.msra.mxu0 0
      %169 = vmatprep.mubr.bf16.mxu0 0
      %170 = vmatmul.mubr.bf16.gmra.mrb[0].mxu0 %v132
      %v171 = vpop.f32.mrb[0].mxu0
      %v172 = vadd.f32 0.0, %v171
      %v173 = vpop.f32.mrb[0].mxu0
      %v174 = vpop.f32.mrb[0].mxu0
      %v175 = vpop.f32.mrb[0].mxu0
      %176 = vdwg.mxu0
      %v178 = vunpack.c.l.b16 %v122
      %v179 = vpack.c.b16 %v178, %v178
      %180 = vrot.lane.b32.xlu0 %v179, 96
      %v181 = vpop.permute.xlu0 %180
      %v183 = vsel %vm130, %v122, 0
      %v186 = vsel %vm130, %v181, 0
      %188 = vmatprep.subr.bf16.mxu0 0
      %189 = vmatpush1.bf16.xpose.msra.mxu0 %v186
      %190 = vmatprep.subr.bf16.mxu0 0
      %191 = vmatpush1.bf16.xpose.msra.mxu0 0
      %192 = vmatprep.subr.bf16.mxu0 0
      %193 = vmatpush1.bf16.xpose.msra.mxu0 0
      %194 = vmatprep.subr.bf16.mxu0 0
      %195 = vmatpush1.bf16.xpose.msra.mxu0 0
      %196 = vmatprep.subr.bf16.mxu0 0
      %197 = vmatpush1.bf16.xpose.msra.mxu0 0
      %198 = vmatprep.subr.bf16.mxu0 0
      %199 = vmatpush1.bf16.xpose.msra.mxu0 0
      %200 = vmatprep.subr.bf16.mxu0 0
      %201 = vmatpush1.bf16.xpose.msra.mxu0 0
      %202 = vmatprep.subr.bf16.mxu0 0
      %203 = vmatpush1.bf16.xpose.msra.mxu0 0
      %204 = vmatprep.subr.bf16.mxu0 0
      %205 = vmatpush1.bf16.xpose.msra.mxu0 0
      %206 = vmatprep.subr.bf16.mxu0 0
      %207 = vmatpush1.bf16.xpose.msra.mxu0 0
      %208 = vmatprep.subr.bf16.mxu0 0
      %209 = vmatpush1.bf16.xpose.msra.mxu0 0
      %210 = vmatprep.subr.bf16.mxu0 0
      %211 = vmatpush1.bf16.xpose.msra.mxu0 0
      %212 = vmatprep.subr.bf16.mxu0 0
      %213 = vmatpush1.bf16.xpose.msra.mxu0 0
      %214 = vmatprep.subr.bf16.mxu0 0
      %215 = vmatpush1.bf16.xpose.msra.mxu0 0
      %216 = vmatprep.subr.bf16.mxu0 0
      %217 = vmatpush1.bf16.xpose.msra.mxu0 0
      %218 = vmatprep.subr.bf16.mxu0 0
      %219 = vmatpush1.bf16.xpose.msra.mxu0 0
      %220 = vmatprep.mubr.bf16.mxu0 0
      %221 = vmatmul.mubr.bf16.gmra.mrb[0].mxu0 %v183
      %v222 = vpop.f32.mrb[0].mxu0
      %v223 = vadd.f32 0.0, %v222
      %v224 = vpop.f32.mrb[0].mxu0
      %v225 = vpop.f32.mrb[0].mxu0
      %v226 = vpop.f32.mrb[0].mxu0
      %227 = vdwg.mxu0
      %v229 = vunpack.c.l.b16 %v123
      %v230 = vpack.c.b16 %v229, %v229
      %231 = vrot.lane.b32.xlu0 %v230, 96
      %v232 = vpop.permute.xlu0 %231
      %v234 = vsel %vm130, %v123, 0
      %v237 = vsel %vm130, %v232, 0
      %239 = vmatprep.subr.bf16.mxu0 0
      %240 = vmatpush1.bf16.xpose.msra.mxu0 %v237
      %241 = vmatprep.subr.bf16.mxu0 0
      %242 = vmatpush1.bf16.xpose.msra.mxu0 0
      %243 = vmatprep.subr.bf16.mxu0 0
      %244 = vmatpush1.bf16.xpose.msra.mxu0 0
      %245 = vmatprep.subr.bf16.mxu0 0
      %246 = vmatpush1.bf16.xpose.msra.mxu0 0
      %247 = vmatprep.subr.bf16.mxu0 0
      %248 = vmatpush1.bf16.xpose.msra.mxu0 0
      %249 = vmatprep.subr.bf16.mxu0 0
      %250 = vmatpush1.bf16.xpose.msra.mxu0 0
      %251 = vmatprep.subr.bf16.mxu0 0
      %252 = vmatpush1.bf16.xpose.msra.mxu0 0
      %253 = vmatprep.subr.bf16.mxu0 0
      %254 = vmatpush1.bf16.xpose.msra.mxu0 0
      %255 = vmatprep.subr.bf16.mxu0 0
      %256 = vmatpush1.bf16.xpose.msra.mxu0 0
      %257 = vmatprep.subr.bf16.mxu0 0
      %258 = vmatpush1.bf16.xpose.msra.mxu0 0
      %259 = vmatprep.subr.bf16.mxu0 0
      %260 = vmatpush1.bf16.xpose.msra.mxu0 0
      %261 = vmatprep.subr.bf16.mxu0 0
      %262 = vmatpush1.bf16.xpose.msra.mxu0 0
      %263 = vmatprep.subr.bf16.mxu0 0
      %264 = vmatpush1.bf16.xpose.msra.mxu0 0
      %265 = vmatprep.subr.bf16.mxu0 0
      %266 = vmatpush1.bf16.xpose.msra.mxu0 0
      %267 = vmatprep.subr.bf16.mxu0 0
      %268 = vmatpush1.bf16.xpose.msra.mxu0 0
      %269 = vmatprep.subr.bf16.mxu0 0
      %270 = vmatpush1.bf16.xpose.msra.mxu0 0
      %271 = vmatprep.mubr.bf16.mxu0 0
      %272 = vmatmul.mubr.bf16.gmra.mrb[0].mxu0 %v234
      %v273 = vpop.f32.mrb[0].mxu0
      %v274 = vadd.f32 0.0, %v273
      %v275 = vpop.f32.mrb[0].mxu0
      %v276 = vpop.f32.mrb[0].mxu0
      %v277 = vpop.f32.mrb[0].mxu0
      %278 = vdwg.mxu0
      %v280 = vunpack.c.l.b16 %v124
      %v281 = vpack.c.b16 %v280, %v280
      %282 = vrot.lane.b32.xlu0 %v281, 96
      %v283 = vpop.permute.xlu0 %282
      %v285 = vsel %vm130, %v124, 0
      %v288 = vsel %vm130, %v283, 0
      %290 = vmatprep.subr.bf16.mxu0 0
      %291 = vmatpush1.bf16.xpose.msra.mxu0 %v288
      %292 = vmatprep.subr.bf16.mxu0 0
      %293 = vmatpush1.bf16.xpose.msra.mxu0 0
      %294 = vmatprep.subr.bf16.mxu0 0
      %295 = vmatpush1.bf16.xpose.msra.mxu0 0
      %296 = vmatprep.subr.bf16.mxu0 0
      %297 = vmatpush1.bf16.xpose.msra.mxu0 0
      %298 = vmatprep.subr.bf16.mxu0 0
      %299 = vmatpush1.bf16.xpose.msra.mxu0 0
      %300 = vmatprep.subr.bf16.mxu0 0
      %301 = vmatpush1.bf16.xpose.msra.mxu0 0
      %302 = vmatprep.subr.bf16.mxu0 0
      %303 = vmatpush1.bf16.xpose.msra.mxu0 0
      %304 = vmatprep.subr.bf16.mxu0 0
      %305 = vmatpush1.bf16.xpose.msra.mxu0 0
      %306 = vmatprep.subr.bf16.mxu0 0
      %307 = vmatpush1.bf16.xpose.msra.mxu0 0
      %308 = vmatprep.subr.bf16.mxu0 0
      %309 = vmatpush1.bf16.xpose.msra.mxu0 0
      %310 = vmatprep.subr.bf16.mxu0 0
      %311 = vmatpush1.bf16.xpose.msra.mxu0 0
      %312 = vmatprep.subr.bf16.mxu0 0
      %313 = vmatpush1.bf16.xpose.msra.mxu0 0
      %314 = vmatprep.subr.bf16.mxu0 0
      %315 = vmatpush1.bf16.xpose.msra.mxu0 0
      %316 = vmatprep.subr.bf16.mxu0 0
      %317 = vmatpush1.bf16.xpose.msra.mxu0 0
      %318 = vmatprep.subr.bf16.mxu0 0
      %319 = vmatpush1.bf16.xpose.msra.mxu0 0
      %320 = vmatprep.subr.bf16.mxu0 0
      %321 = vmatpush1.bf16.xpose.msra.mxu0 0
      %322 = vmatprep.mubr.bf16.mxu0 0
      %323 = vmatmul.mubr.bf16.gmra.mrb[0].mxu0 %v285
      %v324 = vpop.f32.mrb[0].mxu0
      %v325 = vadd.f32 0.0, %v324
      %v326 = vpop.f32.mrb[0].mxu0
      %v327 = vpop.f32.mrb[0].mxu0
      %v328 = vpop.f32.mrb[0].mxu0
      %329 = vdwg.mxu0
      %v330 = vmul.f32 %v172, 0.35355338
      %v331 = vmul.f32 %v223, 0.35355338
      %v332 = vmul.f32 %v274, 0.35355338
      %v333 = vmul.f32 %v325, 0.35355338
      %vm334 = vcmask 36864
      %v335 = vsel %vm334, %v330, -inf
      %336 = vmax.xlane.f32.xlu0 %v335
      %v337 = vpop.xlane.xlu0 %336
      %v338 = vsel %vm334, %v331, -inf
      %339 = vmax.xlane.f32.xlu0 %v338
      %v340 = vpop.xlane.xlu0 %339
      %v341 = vsel %vm334, %v332, -inf
      %342 = vmax.xlane.f32.xlu0 %v341
      %v343 = vpop.xlane.xlu0 %342
      %v344 = vsel %vm334, %v333, -inf
      %345 = vmax.xlane.f32.xlu0 %v344
      %v346 = vpop.xlane.xlu0 %345
      %v347 = vsub.f32 %v330, %v337
      %v348 = vsub.f32 %v331, %v340
      %v349 = vsub.f32 %v332, %v343
      %v350 = vsub.f32 %v333, %v346
      %v351 = vmul.f32 %v347, 1.442695
      %v352 = vpow.pop %v351
      %v353 = vmul.f32 %v348, 1.442695
      %v354 = vpow.pop %v353
      %v355 = vmul.f32 %v349, 1.442695
      %v356 = vpow.pop %v355
      %v357 = vmul.f32 %v350, 1.442695
      %v358 = vpow.pop %v357
      %v359 = vsel %vm334, %v352, 0.0
      %360 = vadd.xlane.f32.xlu0 %v359
      %v361 = vpop.xlane.xlu0 %360
      %v362 = vsel %vm334, %v354, 0.0
      %363 = vadd.xlane.f32.xlu0 %v362
      %v364 = vpop.xlane.xlu0 %363
      %v365 = vsel %vm334, %v356, 0.0
      %366 = vadd.xlane.f32.xlu0 %v365
      %v367 = vpop.xlane.xlu0 %366
      %v368 = vsel %vm334, %v358, 0.0
      %369 = vadd.xlane.f32.xlu0 %v368
      %v370 = vpop.xlane.xlu0 %369
      %v371 = vpack.c.bf16 %v352, %v352
      %v372 = vpack.c.bf16 %v354, %v354
      %v373 = vpack.c.bf16 %v356, %v356
      %v374 = vpack.c.bf16 %v358, %v358
      %375 = vrot.lane.b32.xlu0 %v127, 64
      %v376 = vpop.permute.xlu0 %375
      %vm377 = vcmask 39936
      %v379 = vsel %vm377, %v371, 0
      %vm381 = vcmask 1041408
      %vm382 = vcmask 1042432
      %v383 = vsel %vm381, 4294967295, 65535
      %v384 = vsel %vm382, %v383, 0
      %v386 = vand.u32 %v376, %v384
      %388 = vmatprep.subr.bf16.mxu0 0
      %389 = vmatpush1.bf16.msra.mxu0 %v386
      %390 = vmatprep.subr.bf16.mxu0 0
      %391 = vmatpush1.bf16.msra.mxu0 0
      %392 = vmatprep.subr.bf16.mxu0 0
      %393 = vmatpush1.bf16.msra.mxu0 0
      %394 = vmatprep.subr.bf16.mxu0 0
      %395 = vmatpush1.bf16.msra.mxu0 0
      %396 = vmatprep.subr.bf16.mxu0 0
      %397 = vmatpush1.bf16.msra.mxu0 0
      %398 = vmatprep.subr.bf16.mxu0 0
      %399 = vmatpush1.bf16.msra.mxu0 0
      %400 = vmatprep.subr.bf16.mxu0 0
      %401 = vmatpush1.bf16.msra.mxu0 0
      %402 = vmatprep.subr.bf16.mxu0 0
      %403 = vmatpush1.bf16.msra.mxu0 0
      %404 = vmatprep.subr.bf16.mxu0 0
      %405 = vmatpush1.bf16.msra.mxu0 0
      %406 = vmatprep.subr.bf16.mxu0 0
      %407 = vmatpush1.bf16.msra.mxu0 0
      %408 = vmatprep.subr.bf16.mxu0 0
      %409 = vmatpush1.bf16.msra.mxu0 0
      %410 = vmatprep.subr.bf16.mxu0 0
      %411 = vmatpush1.bf16.msra.mxu0 0
      %412 = vmatprep.subr.bf16.mxu0 0
      %413 = vmatpush1.bf16.msra.mxu0 0
      %414 = vmatprep.subr.bf16.mxu0 0
      %415 = vmatpush1.bf16.msra.mxu0 0
      %416 = vmatprep.subr.bf16.mxu0 0
      %417 = vmatpush1.bf16.msra.mxu0 0
      %418 = vmatprep.subr.bf16.mxu0 0
      %419 = vmatpush1.bf16.msra.mxu0 0
      %420 = vmatprep.mubr.bf16.mxu0 0
      %421 = vmatmul.mubr.bf16.gmra.mrb[0].mxu0 %v379
      %v422 = vpop.f32.mrb[0].mxu0
      %v423 = vadd.f32 0.0, %v422
      %v424 = vpop.f32.mrb[0].mxu0
      %v425 = vpop.f32.mrb[0].mxu0
      %v426 = vpop.f32.mrb[0].mxu0
      %427 = vdwg.mxu0
      %428 = vrot.lane.b32.xlu0 %v179, 64
      %v429 = vpop.permute.xlu0 %428
      %v431 = vsel %vm377, %v372, 0
      %v434 = vand.u32 %v429, %v384
      %436 = vmatprep.subr.bf16.mxu0 0
      %437 = vmatpush1.bf16.msra.mxu0 %v434
      %438 = vmatprep.subr.bf16.mxu0 0
      %439 = vmatpush1.bf16.msra.mxu0 0
      %440 = vmatprep.subr.bf16.mxu0 0
      %441 = vmatpush1.bf16.msra.mxu0 0
      %442 = vmatprep.subr.bf16.mxu0 0
      %443 = vmatpush1.bf16.msra.mxu0 0
      %444 = vmatprep.subr.bf16.mxu0 0
      %445 = vmatpush1.bf16.msra.mxu0 0
      %446 = vmatprep.subr.bf16.mxu0 0
      %447 = vmatpush1.bf16.msra.mxu0 0
      %448 = vmatprep.subr.bf16.mxu0 0
      %449 = vmatpush1.bf16.msra.mxu0 0
      %450 = vmatprep.subr.bf16.mxu0 0
      %451 = vmatpush1.bf16.msra.mxu0 0
      %452 = vmatprep.subr.bf16.mxu0 0
      %453 = vmatpush1.bf16.msra.mxu0 0
      %454 = vmatprep.subr.bf16.mxu0 0
      %455 = vmatpush1.bf16.msra.mxu0 0
      %456 = vmatprep.subr.bf16.mxu0 0
      %457 = vmatpush1.bf16.msra.mxu0 0
      %458 = vmatprep.subr.bf16.mxu0 0
      %459 = vmatpush1.bf16.msra.mxu0 0
      %460 = vmatprep.subr.bf16.mxu0 0
      %461 = vmatpush1.bf16.msra.mxu0 0
      %462 = vmatprep.subr.bf16.mxu0 0
      %463 = vmatpush1.bf16.msra.mxu0 0
      %464 = vmatprep.subr.bf16.mxu0 0
      %465 = vmatpush1.bf16.msra.mxu0 0
      %466 = vmatprep.subr.bf16.mxu0 0
      %467 = vmatpush1.bf16.msra.mxu0 0
      %468 = vmatprep.mubr.bf16.mxu0 0
      %469 = vmatmul.mubr.bf16.gmra.mrb[0].mxu0 %v431
      %v470 = vpop.f32.mrb[0].mxu0
      %v471 = vadd.f32 0.0, %v470
      %v472 = vpop.f32.mrb[0].mxu0
      %v473 = vpop.f32.mrb[0].mxu0
      %v474 = vpop.f32.mrb[0].mxu0
      %475 = vdwg.mxu0
      %476 = vrot.lane.b32.xlu0 %v230, 64
      %v477 = vpop.permute.xlu0 %476
      %v479 = vsel %vm377, %v373, 0
      %v482 = vand.u32 %v477, %v384
      %484 = vmatprep.subr.bf16.mxu0 0
      %485 = vmatpush1.bf16.msra.mxu0 %v482
      %486 = vmatprep.subr.bf16.mxu0 0
      %487 = vmatpush1.bf16.msra.mxu0 0
      %488 = vmatprep.subr.bf16.mxu0 0
      %489 = vmatpush1.bf16.msra.mxu0 0
      %490 = vmatprep.subr.bf16.mxu0 0
      %491 = vmatpush1.bf16.msra.mxu0 0
      %492 = vmatprep.subr.bf16.mxu0 0
      %493 = vmatpush1.bf16.msra.mxu0 0
      %494 = vmatprep.subr.bf16.mxu0 0
      %495 = vmatpush1.bf16.msra.mxu0 0
      %496 = vmatprep.subr.bf16.mxu0 0
      %497 = vmatpush1.bf16.msra.mxu0 0
      %498 = vmatprep.subr.bf16.mxu0 0
      %499 = vmatpush1.bf16.msra.mxu0 0
      %500 = vmatprep.subr.bf16.mxu0 0
      %501 = vmatpush1.bf16.msra.mxu0 0
      %502 = vmatprep.subr.bf16.mxu0 0
      %503 = vmatpush1.bf16.msra.mxu0 0
      %504 = vmatprep.subr.bf16.mxu0 0
      %505 = vmatpush1.bf16.msra.mxu0 0
      %506 = vmatprep.subr.bf16.mxu0 0
      %507 = vmatpush1.bf16.msra.mxu0 0
      %508 = vmatprep.subr.bf16.mxu0 0
      %509 = vmatpush1.bf16.msra.mxu0 0
      %510 = vmatprep.subr.bf16.mxu0 0
      %511 = vmatpush1.bf16.msra.mxu0 0
      %512 = vmatprep.subr.bf16.mxu0 0
      %513 = vmatpush1.bf16.msra.mxu0 0
      %514 = vmatprep.subr.bf16.mxu0 0
      %515 = vmatpush1.bf16.msra.mxu0 0
      %516 = vmatprep.mubr.bf16.mxu0 0
      %517 = vmatmul.mubr.bf16.gmra.mrb[0].mxu0 %v479
      %v518 = vpop.f32.mrb[0].mxu0
      %v519 = vadd.f32 0.0, %v518
      %v520 = vpop.f32.mrb[0].mxu0
      %v521 = vpop.f32.mrb[0].mxu0
      %v522 = vpop.f32.mrb[0].mxu0
      %523 = vdwg.mxu0
      %524 = vrot.lane.b32.xlu0 %v281, 64
      %v525 = vpop.permute.xlu0 %524
      %v527 = vsel %vm377, %v374, 0
      %v530 = vand.u32 %v525, %v384
      %532 = vmatprep.subr.bf16.mxu0 0
      %533 = vmatpush1.bf16.msra.mxu0 %v530
      %534 = vmatprep.subr.bf16.mxu0 0
      %535 = vmatpush1.bf16.msra.mxu0 0
      %536 = vmatprep.subr.bf16.mxu0 0
      %537 = vmatpush1.bf16.msra.mxu0 0
      %538 = vmatprep.subr.bf16.mxu0 0
      %539 = vmatpush1.bf16.msra.mxu0 0
      %540 = vmatprep.subr.bf16.mxu0 0
      %541 = vmatpush1.bf16.msra.mxu0 0
      %542 = vmatprep.subr.bf16.mxu0 0
      %543 = vmatpush1.bf16.msra.mxu0 0
      %544 = vmatprep.subr.bf16.mxu0 0
      %545 = vmatpush1.bf16.msra.mxu0 0
      %546 = vmatprep.subr.bf16.mxu0 0
      %547 = vmatpush1.bf16.msra.mxu0 0
      %548 = vmatprep.subr.bf16.mxu0 0
      %549 = vmatpush1.bf16.msra.mxu0 0
      %550 = vmatprep.subr.bf16.mxu0 0
      %551 = vmatpush1.bf16.msra.mxu0 0
      %552 = vmatprep.subr.bf16.mxu0 0
      %553 = vmatpush1.bf16.msra.mxu0 0
      %554 = vmatprep.subr.bf16.mxu0 0
      %555 = vmatpush1.bf16.msra.mxu0 0
      %556 = vmatprep.subr.bf16.mxu0 0
      %557 = vmatpush1.bf16.msra.mxu0 0
      %558 = vmatprep.subr.bf16.mxu0 0
      %559 = vmatpush1.bf16.msra.mxu0 0
      %560 = vmatprep.subr.bf16.mxu0 0
      %561 = vmatpush1.bf16.msra.mxu0 0
      %562 = vmatprep.subr.bf16.mxu0 0
      %563 = vmatpush1.bf16.msra.mxu0 0
      %564 = vmatprep.mubr.bf16.mxu0 0
      %565 = vmatmul.mubr.bf16.gmra.mrb[0].mxu0 %v527
      %v566 = vpop.f32.mrb[0].mxu0
      %v567 = vadd.f32 0.0, %v566
      %v568 = vpop.f32.mrb[0].mxu0
      %v569 = vpop.f32.mrb[0].mxu0
      %v570 = vpop.f32.mrb[0].mxu0
      %571 = vdwg.mxu0
      %v572 = vrcp.pop %v361
      %v573 = vrcp.pop %v364
      %v574 = vrcp.pop %v367
      %v575 = vrcp.pop %v370
      %v576 = vmul.f32 %v423, %v572
      %v577 = vmul.f32 %v471, %v573
      %v578 = vmul.f32 %v519, %v574
      %v579 = vmul.f32 %v567, %v575
      %580 = vrot.lane.b32.xlu0 %v127, 120
      %v581 = vpop.permute.xlu0 %580
      %582 = vrot.lane.b32.xlu0 %v127, 88
      %v583 = vpop.permute.xlu0 %582
      %v585 = vsel %vm130, %v581, 0
      %v588 = vsel %vm130, %v583, 0
      %590 = vmatprep.subr.bf16.mxu0 0
      %591 = vmatpush1.bf16.xpose.msra.mxu0 %v588
      %592 = vmatprep.subr.bf16.mxu0 0
      %593 = vmatpush1.bf16.xpose.msra.mxu0 0
      %594 = vmatprep.subr.bf16.mxu0 0
      %595 = vmatpush1.bf16.xpose.msra.mxu0 0
      %596 = vmatprep.subr.bf16.mxu0 0
      %597 = vmatpush1.bf16.xpose.msra.mxu0 0
      %598 = vmatprep.subr.bf16.mxu0 0
      %599 = vmatpush1.bf16.xpose.msra.mxu0 0
      %600 = vmatprep.subr.bf16.mxu0 0
      %601 = vmatpush1.bf16.xpose.msra.mxu0 0
      %602 = vmatprep.subr.bf16.mxu0 0
      %603 = vmatpush1.bf16.xpose.msra.mxu0 0
      %604 = vmatprep.subr.bf16.mxu0 0
      %605 = vmatpush1.bf16.xpose.msra.mxu0 0
      %606 = vmatprep.subr.bf16.mxu0 0
      %607 = vmatpush1.bf16.xpose.msra.mxu0 0
      %608 = vmatprep.subr.bf16.mxu0 0
      %609 = vmatpush1.bf16.xpose.msra.mxu0 0
      %610 = vmatprep.subr.bf16.mxu0 0
      %611 = vmatpush1.bf16.xpose.msra.mxu0 0
      %612 = vmatprep.subr.bf16.mxu0 0
      %613 = vmatpush1.bf16.xpose.msra.mxu0 0
      %614 = vmatprep.subr.bf16.mxu0 0
      %615 = vmatpush1.bf16.xpose.msra.mxu0 0
      %616 = vmatprep.subr.bf16.mxu0 0
      %617 = vmatpush1.bf16.xpose.msra.mxu0 0
      %618 = vmatprep.subr.bf16.mxu0 0
      %619 = vmatpush1.bf16.xpose.msra.mxu0 0
      %620 = vmatprep.subr.bf16.mxu0 0
      %621 = vmatpush1.bf16.xpose.msra.mxu0 0
      %622 = vmatprep.mubr.bf16.mxu0 0
      %623 = vmatmul.mubr.bf16.gmra.mrb[0].mxu0 %v585
      %v624 = vpop.f32.mrb[0].mxu0
      %v625 = vadd.f32 0.0, %v624
      %v626 = vpop.f32.mrb[0].mxu0
      %v627 = vpop.f32.mrb[0].mxu0
      %v628 = vpop.f32.mrb[0].mxu0
      %629 = vdwg.mxu0
      %630 = vrot.lane.b32.xlu0 %v179, 120
      %v631 = vpop.permute.xlu0 %630
      %632 = vrot.lane.b32.xlu0 %v179, 88
      %v633 = vpop.permute.xlu0 %632
      %v635 = vsel %vm130, %v631, 0
      %v638 = vsel %vm130, %v633, 0
      %640 = vmatprep.subr.bf16.mxu0 0
      %641 = vmatpush1.bf16.xpose.msra.mxu0 %v638
      %642 = vmatprep.subr.bf16.mxu0 0
      %643 = vmatpush1.bf16.xpose.msra.mxu0 0
      %644 = vmatprep.subr.bf16.mxu0 0
      %645 = vmatpush1.bf16.xpose.msra.mxu0 0
      %646 = vmatprep.subr.bf16.mxu0 0
      %647 = vmatpush1.bf16.xpose.msra.mxu0 0
      %648 = vmatprep.subr.bf16.mxu0 0
      %649 = vmatpush1.bf16.xpose.msra.mxu0 0
      %650 = vmatprep.subr.bf16.mxu0 0
      %651 = vmatpush1.bf16.xpose.msra.mxu0 0
      %652 = vmatprep.subr.bf16.mxu0 0
      %653 = vmatpush1.bf16.xpose.msra.mxu0 0
      %654 = vmatprep.subr.bf16.mxu0 0
      %655 = vmatpush1.bf16.xpose.msra.mxu0 0
      %656 = vmatprep.subr.bf16.mxu0 0
      %657 = vmatpush1.bf16.xpose.msra.mxu0 0
      %658 = vmatprep.subr.bf16.mxu0 0
      %659 = vmatpush1.bf16.xpose.msra.mxu0 0
      %660 = vmatprep.subr.bf16.mxu0 0
      %661 = vmatpush1.bf16.xpose.msra.mxu0 0
      %662 = vmatprep.subr.bf16.mxu0 0
      %663 = vmatpush1.bf16.xpose.msra.mxu0 0
      %664 = vmatprep.subr.bf16.mxu0 0
      %665 = vmatpush1.bf16.xpose.msra.mxu0 0
      %666 = vmatprep.subr.bf16.mxu0 0
      %667 = vmatpush1.bf16.xpose.msra.mxu0 0
      %668 = vmatprep.subr.bf16.mxu0 0
      %669 = vmatpush1.bf16.xpose.msra.mxu0 0
      %670 = vmatprep.subr.bf16.mxu0 0
      %671 = vmatpush1.bf16.xpose.msra.mxu0 0
      %672 = vmatprep.mubr.bf16.mxu0 0
      %673 = vmatmul.mubr.bf16.gmra.mrb[0].mxu0 %v635
      %v674 = vpop.f32.mrb[0].mxu0
      %v675 = vadd.f32 0.0, %v674
      %v676 = vpop.f32.mrb[0].mxu0
      %v677 = vpop.f32.mrb[0].mxu0
      %v678 = vpop.f32.mrb[0].mxu0
      %679 = vdwg.mxu0
      %680 = vrot.lane.b32.xlu0 %v230, 120
      %v681 = vpop.permute.xlu0 %680
      %682 = vrot.lane.b32.xlu0 %v230, 88
      %v683 = vpop.permute.xlu0 %682
      %v685 = vsel %vm130, %v681, 0
      %v688 = vsel %vm130, %v683, 0
      %690 = vmatprep.subr.bf16.mxu0 0
      %691 = vmatpush1.bf16.xpose.msra.mxu0 %v688
      %692 = vmatprep.subr.bf16.mxu0 0
      %693 = vmatpush1.bf16.xpose.msra.mxu0 0
      %694 = vmatprep.subr.bf16.mxu0 0
      %695 = vmatpush1.bf16.xpose.msra.mxu0 0
      %696 = vmatprep.subr.bf16.mxu0 0
      %697 = vmatpush1.bf16.xpose.msra.mxu0 0
      %698 = vmatprep.subr.bf16.mxu0 0
      %699 = vmatpush1.bf16.xpose.msra.mxu0 0
      %700 = vmatprep.subr.bf16.mxu0 0
      %701 = vmatpush1.bf16.xpose.msra.mxu0 0
      %702 = vmatprep.subr.bf16.mxu0 0
      %703 = vmatpush1.bf16.xpose.msra.mxu0 0
      %704 = vmatprep.subr.bf16.mxu0 0
      %705 = vmatpush1.bf16.xpose.msra.mxu0 0
      %706 = vmatprep.subr.bf16.mxu0 0
      %707 = vmatpush1.bf16.xpose.msra.mxu0 0
      %708 = vmatprep.subr.bf16.mxu0 0
      %709 = vmatpush1.bf16.xpose.msra.mxu0 0
      %710 = vmatprep.subr.bf16.mxu0 0
      %711 = vmatpush1.bf16.xpose.msra.mxu0 0
      %712 = vmatprep.subr.bf16.mxu0 0
      %713 = vmatpush1.bf16.xpose.msra.mxu0 0
      %714 = vmatprep.subr.bf16.mxu0 0
      %715 = vmatpush1.bf16.xpose.msra.mxu0 0
      %716 = vmatprep.subr.bf16.mxu0 0
      %717 = vmatpush1.bf16.xpose.msra.mxu0 0
      %718 = vmatprep.subr.bf16.mxu0 0
      %719 = vmatpush1.bf16.xpose.msra.mxu0 0
      %720 = vmatprep.subr.bf16.mxu0 0
      %721 = vmatpush1.bf16.xpose.msra.mxu0 0
      %722 = vmatprep.mubr.bf16.mxu0 0
      %723 = vmatmul.mubr.bf16.gmra.mrb[0].mxu0 %v685
      %v724 = vpop.f32.mrb[0].mxu0
      %v725 = vadd.f32 0.0, %v724
      %v726 = vpop.f32.mrb[0].mxu0
      %v727 = vpop.f32.mrb[0].mxu0
      %v728 = vpop.f32.mrb[0].mxu0
      %729 = vdwg.mxu0
      %730 = vrot.lane.b32.xlu0 %v281, 120
      %v731 = vpop.permute.xlu0 %730
      %732 = vrot.lane.b32.xlu0 %v281, 88
      %v733 = vpop.permute.xlu0 %732
      %v735 = vsel %vm130, %v731, 0
      %v738 = vsel %vm130, %v733, 0
      %740 = vmatprep.subr.bf16.mxu0 0
      %741 = vmatpush1.bf16.xpose.msra.mxu0 %v738
      %742 = vmatprep.subr.bf16.mxu0 0
      %743 = vmatpush1.bf16.xpose.msra.mxu0 0
      %744 = vmatprep.subr.bf16.mxu0 0
      %745 = vmatpush1.bf16.xpose.msra.mxu0 0
      %746 = vmatprep.subr.bf16.mxu0 0
      %747 = vmatpush1.bf16.xpose.msra.mxu0 0
      %748 = vmatprep.subr.bf16.mxu0 0
      %749 = vmatpush1.bf16.xpose.msra.mxu0 0
      %750 = vmatprep.subr.bf16.mxu0 0
      %751 = vmatpush1.bf16.xpose.msra.mxu0 0
      %752 = vmatprep.subr.bf16.mxu0 0
      %753 = vmatpush1.bf16.xpose.msra.mxu0 0
      %754 = vmatprep.subr.bf16.mxu0 0
      %755 = vmatpush1.bf16.xpose.msra.mxu0 0
      %756 = vmatprep.subr.bf16.mxu0 0
      %757 = vmatpush1.bf16.xpose.msra.mxu0 0
      %758 = vmatprep.subr.bf16.mxu0 0
      %759 = vmatpush1.bf16.xpose.msra.mxu0 0
      %760 = vmatprep.subr.bf16.mxu0 0
      %761 = vmatpush1.bf16.xpose.msra.mxu0 0
      %762 = vmatprep.subr.bf16.mxu0 0
      %763 = vmatpush1.bf16.xpose.msra.mxu0 0
      %764 = vmatprep.subr.bf16.mxu0 0
      %765 = vmatpush1.bf16.xpose.msra.mxu0 0
      %766 = vmatprep.subr.bf16.mxu0 0
      %767 = vmatpush1.bf16.xpose.msra.mxu0 0
      %768 = vmatprep.subr.bf16.mxu0 0
      %769 = vmatpush1.bf16.xpose.msra.mxu0 0
      %770 = vmatprep.subr.bf16.mxu0 0
      %771 = vmatpush1.bf16.xpose.msra.mxu0 0
      %772 = vmatprep.mubr.bf16.mxu0 0
      %773 = vmatmul.mubr.bf16.gmra.mrb[0].mxu0 %v735
      %v774 = vpop.f32.mrb[0].mxu0
      %v775 = vadd.f32 0.0, %v774
      %v776 = vpop.f32.mrb[0].mxu0
      %v777 = vpop.f32.mrb[0].mxu0
      %v778 = vpop.f32.mrb[0].mxu0
      %779 = vdwg.mxu0
      %v780 = vmul.f32 %v625, 0.35355338
      %v781 = vmul.f32 %v675, 0.35355338
      %v782 = vmul.f32 %v725, 0.35355338
      %v783 = vmul.f32 %v775, 0.35355338
      %v784 = vsel %vm334, %v780, -inf
      %785 = vmax.xlane.f32.xlu0 %v784
      %v786 = vpop.xlane.xlu0 %785
      %v787 = vsel %vm334, %v781, -inf
      %788 = vmax.xlane.f32.xlu0 %v787
      %v789 = vpop.xlane.xlu0 %788
      %v790 = vsel %vm334, %v782, -inf
      %791 = vmax.xlane.f32.xlu0 %v790
      %v792 = vpop.xlane.xlu0 %791
      %v793 = vsel %vm334, %v783, -inf
      %794 = vmax.xlane.f32.xlu0 %v793
      %v795 = vpop.xlane.xlu0 %794
      %v796 = vsub.f32 %v780, %v786
      %v797 = vsub.f32 %v781, %v789
      %v798 = vsub.f32 %v782, %v792
      %v799 = vsub.f32 %v783, %v795
      %v800 = vmul.f32 %v796, 1.442695
      %v801 = vpow.pop %v800
      %v802 = vmul.f32 %v797, 1.442695
      %v803 = vpow.pop %v802
      %v804 = vmul.f32 %v798, 1.442695
      %v805 = vpow.pop %v804
      %v806 = vmul.f32 %v799, 1.442695
      %v807 = vpow.pop %v806
      %v808 = vsel %vm334, %v801, 0.0
      %809 = vadd.xlane.f32.xlu0 %v808
      %v810 = vpop.xlane.xlu0 %809
      %v811 = vsel %vm334, %v803, 0.0
      %812 = vadd.xlane.f32.xlu0 %v811
      %v813 = vpop.xlane.xlu0 %812
      %v814 = vsel %vm334, %v805, 0.0
      %815 = vadd.xlane.f32.xlu0 %v814
      %v816 = vpop.xlane.xlu0 %815
      %v817 = vsel %vm334, %v807, 0.0
      %818 = vadd.xlane.f32.xlu0 %v817
      %v819 = vpop.xlane.xlu0 %818
      %v820 = vpack.c.bf16 %v801, %v801
      %v821 = vpack.c.bf16 %v803, %v803
      %v822 = vpack.c.bf16 %v805, %v805
      %v823 = vpack.c.bf16 %v807, %v807
      %824 = vrot.lane.b32.xlu0 %v127, 56
      %v825 = vpop.permute.xlu0 %824
      %v827 = vsel %vm377, %v820, 0
      %v830 = vand.u32 %v825, %v384
      %832 = vmatprep.subr.bf16.mxu0 0
      %833 = vmatpush1.bf16.msra.mxu0 %v830
      %834 = vmatprep.subr.bf16.mxu0 0
      %835 = vmatpush1.bf16.msra.mxu0 0
      %836 = vmatprep.subr.bf16.mxu0 0
      %837 = vmatpush1.bf16.msra.mxu0 0
      %838 = vmatprep.subr.bf16.mxu0 0
      %839 = vmatpush1.bf16.msra.mxu0 0
      %840 = vmatprep.subr.bf16.mxu0 0
      %841 = vmatpush1.bf16.msra.mxu0 0
      %842 = vmatprep.subr.bf16.mxu0 0
      %843 = vmatpush1.bf16.msra.mxu0 0
      %844 = vmatprep.subr.bf16.mxu0 0
      %845 = vmatpush1.bf16.msra.mxu0 0
      %846 = vmatprep.subr.bf16.mxu0 0
      %847 = vmatpush1.bf16.msra.mxu0 0
      %848 = vmatprep.subr.bf16.mxu0 0
      %849 = vmatpush1.bf16.msra.mxu0 0
      %850 = vmatprep.subr.bf16.mxu0 0
      %851 = vmatpush1.bf16.msra.mxu0 0
      %852 = vmatprep.subr.bf16.mxu0 0
      %853 = vmatpush1.bf16.msra.mxu0 0
      %854 = vmatprep.subr.bf16.mxu0 0
      %855 = vmatpush1.bf16.msra.mxu0 0
      %856 = vmatprep.subr.bf16.mxu0 0
      %857 = vmatpush1.bf16.msra.mxu0 0
      %858 = vmatprep.subr.bf16.mxu0 0
      %859 = vmatpush1.bf16.msra.mxu0 0
      %860 = vmatprep.subr.bf16.mxu0 0
      %861 = vmatpush1.bf16.msra.mxu0 0
      %862 = vmatprep.subr.bf16.mxu0 0
      %863 = vmatpush1.bf16.msra.mxu0 0
      %864 = vmatprep.mubr.bf16.mxu0 0
      %865 = vmatmul.mubr.bf16.gmra.mrb[0].mxu0 %v827
      %v866 = vpop.f32.mrb[0].mxu0
      %v867 = vadd.f32 0.0, %v866
      %v868 = vpop.f32.mrb[0].mxu0
      %v869 = vpop.f32.mrb[0].mxu0
      %v870 = vpop.f32.mrb[0].mxu0
      %871 = vdwg.mxu0
      %872 = vrot.lane.b32.xlu0 %v179, 56
      %v873 = vpop.permute.xlu0 %872
      %v875 = vsel %vm377, %v821, 0
      %v878 = vand.u32 %v873, %v384
      %880 = vmatprep.subr.bf16.mxu0 0
      %881 = vmatpush1.bf16.msra.mxu0 %v878
      %882 = vmatprep.subr.bf16.mxu0 0
      %883 = vmatpush1.bf16.msra.mxu0 0
      %884 = vmatprep.subr.bf16.mxu0 0
      %885 = vmatpush1.bf16.msra.mxu0 0
      %886 = vmatprep.subr.bf16.mxu0 0
      %887 = vmatpush1.bf16.msra.mxu0 0
      %888 = vmatprep.subr.bf16.mxu0 0
      %889 = vmatpush1.bf16.msra.mxu0 0
      %890 = vmatprep.subr.bf16.mxu0 0
      %891 = vmatpush1.bf16.msra.mxu0 0
      %892 = vmatprep.subr.bf16.mxu0 0
      %893 = vmatpush1.bf16.msra.mxu0 0
      %894 = vmatprep.subr.bf16.mxu0 0
      %895 = vmatpush1.bf16.msra.mxu0 0
      %896 = vmatprep.subr.bf16.mxu0 0
      %897 = vmatpush1.bf16.msra.mxu0 0
      %898 = vmatprep.subr.bf16.mxu0 0
      %899 = vmatpush1.bf16.msra.mxu0 0
      %900 = vmatprep.subr.bf16.mxu0 0
      %901 = vmatpush1.bf16.msra.mxu0 0
      %902 = vmatprep.subr.bf16.mxu0 0
      %903 = vmatpush1.bf16.msra.mxu0 0
      %904 = vmatprep.subr.bf16.mxu0 0
      %905 = vmatpush1.bf16.msra.mxu0 0
      %906 = vmatprep.subr.bf16.mxu0 0
      %907 = vmatpush1.bf16.msra.mxu0 0
      %908 = vmatprep.subr.bf16.mxu0 0
      %909 = vmatpush1.bf16.msra.mxu0 0
      %910 = vmatprep.subr.bf16.mxu0 0
      %911 = vmatpush1.bf16.msra.mxu0 0
      %912 = vmatprep.mubr.bf16.mxu0 0
      %913 = vmatmul.mubr.bf16.gmra.mrb[0].mxu0 %v875
      %v914 = vpop.f32.mrb[0].mxu0
      %v915 = vadd.f32 0.0, %v914
      %v916 = vpop.f32.mrb[0].mxu0
      %v917 = vpop.f32.mrb[0].mxu0
      %v918 = vpop.f32.mrb[0].mxu0
      %919 = vdwg.mxu0
      %920 = vrot.lane.b32.xlu0 %v230, 56
      %v921 = vpop.permute.xlu0 %920
      %v923 = vsel %vm377, %v822, 0
      %v926 = vand.u32 %v921, %v384
      %928 = vmatprep.subr.bf16.mxu0 0
      %929 = vmatpush1.bf16.msra.mxu0 %v926
      %930 = vmatprep.subr.bf16.mxu0 0
      %931 = vmatpush1.bf16.msra.mxu0 0
      %932 = vmatprep.subr.bf16.mxu0 0
      %933 = vmatpush1.bf16.msra.mxu0 0
      %934 = vmatprep.subr.bf16.mxu0 0
      %935 = vmatpush1.bf16.msra.mxu0 0
      %936 = vmatprep.subr.bf16.mxu0 0
      %937 = vmatpush1.bf16.msra.mxu0 0
      %938 = vmatprep.subr.bf16.mxu0 0
      %939 = vmatpush1.bf16.msra.mxu0 0
      %940 = vmatprep.subr.bf16.mxu0 0
      %941 = vmatpush1.bf16.msra.mxu0 0
      %942 = vmatprep.subr.bf16.mxu0 0
      %943 = vmatpush1.bf16.msra.mxu0 0
      %944 = vmatprep.subr.bf16.mxu0 0
      %945 = vmatpush1.bf16.msra.mxu0 0
      %946 = vmatprep.subr.bf16.mxu0 0
      %947 = vmatpush1.bf16.msra.mxu0 0
      %948 = vmatprep.subr.bf16.mxu0 0
      %949 = vmatpush1.bf16.msra.mxu0 0
      %950 = vmatprep.subr.bf16.mxu0 0
      %951 = vmatpush1.bf16.msra.mxu0 0
      %952 = vmatprep.subr.bf16.mxu0 0
      %953 = vmatpush1.bf16.msra.mxu0 0
      %954 = vmatprep.subr.bf16.mxu0 0
      %955 = vmatpush1.bf16.msra.mxu0 0
      %956 = vmatprep.subr.bf16.mxu0 0
      %957 = vmatpush1.bf16.msra.mxu0 0
      %958 = vmatprep.subr.bf16.mxu0 0
      %959 = vmatpush1.bf16.msra.mxu0 0
      %960 = vmatprep.mubr.bf16.mxu0 0
      %961 = vmatmul.mubr.bf16.gmra.mrb[0].mxu0 %v923
      %v962 = vpop.f32.mrb[0].mxu0
      %v963 = vadd.f32 0.0, %v962
      %v964 = vpop.f32.mrb[0].mxu0
      %v965 = vpop.f32.mrb[0].mxu0
      %v966 = vpop.f32.mrb[0].mxu0
      %967 = vdwg.mxu0
      %968 = vrot.lane.b32.xlu0 %v281, 56
      %v969 = vpop.permute.xlu0 %968
      %v971 = vsel %vm377, %v823, 0
      %v974 = vand.u32 %v969, %v384
      %976 = vmatprep.subr.bf16.mxu0 0
      %977 = vmatpush1.bf16.msra.mxu0 %v974
      %978 = vmatprep.subr.bf16.mxu0 0
      %979 = vmatpush1.bf16.msra.mxu0 0
      %980 = vmatprep.subr.bf16.mxu0 0
      %981 = vmatpush1.bf16.msra.mxu0 0
      %982 = vmatprep.subr.bf16.mxu0 0
      %983 = vmatpush1.bf16.msra.mxu0 0
      %984 = vmatprep.subr.bf16.mxu0 0
      %985 = vmatpush1.bf16.msra.mxu0 0
      %986 = vmatprep.subr.bf16.mxu0 0
      %987 = vmatpush1.bf16.msra.mxu0 0
      %988 = vmatprep.subr.bf16.mxu0 0
      %989 = vmatpush1.bf16.msra.mxu0 0
      %990 = vmatprep.subr.bf16.mxu0 0
      %991 = vmatpush1.bf16.msra.mxu0 0
      %992 = vmatprep.subr.bf16.mxu0 0
      %993 = vmatpush1.bf16.msra.mxu0 0
      %994 = vmatprep.subr.bf16.mxu0 0
      %995 = vmatpush1.bf16.msra.mxu0 0
      %996 = vmatprep.subr.bf16.mxu0 0
      %997 = vmatpush1.bf16.msra.mxu0 0
      %998 = vmatprep.subr.bf16.mxu0 0
      %999 = vmatpush1.bf16.msra.mxu0 0
      %1000 = vmatprep.subr.bf16.mxu0 0
      %1001 = vmatpush1.bf16.msra.mxu0 0
      %1002 = vmatprep.subr.bf16.mxu0 0
      %1003 = vmatpush1.bf16.msra.mxu0 0
      %1004 = vmatprep.subr.bf16.mxu0 0
      %1005 = vmatpush1.bf16.msra.mxu0 0
      %1006 = vmatprep.subr.bf16.mxu0 0
      %1007 = vmatpush1.bf16.msra.mxu0 0
      %1008 = vmatprep.mubr.bf16.mxu0 0
      %1009 = vmatmul.mubr.bf16.gmra.mrb[0].mxu0 %v971
      %v1010 = vpop.f32.mrb[0].mxu0
      %v1011 = vadd.f32 0.0, %v1010
      %v1012 = vpop.f32.mrb[0].mxu0
      %v1013 = vpop.f32.mrb[0].mxu0
      %v1014 = vpop.f32.mrb[0].mxu0
      %1015 = vdwg.mxu0
      %v1016 = vrcp.pop %v810
      %v1017 = vrcp.pop %v813
      %v1018 = vrcp.pop %v816
      %v1019 = vrcp.pop %v819
      %v1020 = vmul.f32 %v867, %v1016
      %v1021 = vmul.f32 %v915, %v1017
      %v1022 = vmul.f32 %v963, %v1018
      %v1023 = vmul.f32 %v1011, %v1019
      %1024 = vrot.lane.b32.xlu0 %v127, 112
      %v1025 = vpop.permute.xlu0 %1024
      %1026 = vrot.lane.b32.xlu0 %v127, 80
      %v1027 = vpop.permute.xlu0 %1026
      %v1029 = vsel %vm130, %v1025, 0
      %v1032 = vsel %vm130, %v1027, 0
      %1034 = vmatprep.subr.bf16.mxu0 0
      %1035 = vmatpush1.bf16.xpose.msra.mxu0 %v1032
      %1036 = vmatprep.subr.bf16.mxu0 0
      %1037 = vmatpush1.bf16.xpose.msra.mxu0 0
      %1038 = vmatprep.subr.bf16.mxu0 0
      %1039 = vmatpush1.bf16.xpose.msra.mxu0 0
      %1040 = vmatprep.subr.bf16.mxu0 0
      %1041 = vmatpush1.bf16.xpose.msra.mxu0 0
      %1042 = vmatprep.subr.bf16.mxu0 0
      %1043 = vmatpush1.bf16.xpose.msra.mxu0 0
      %1044 = vmatprep.subr.bf16.mxu0 0
      %1045 = vmatpush1.bf16.xpose.msra.mxu0 0
      %1046 = vmatprep.subr.bf16.mxu0 0
      %1047 = vmatpush1.bf16.xpose.msra.mxu0 0
      %1048 = vmatprep.subr.bf16.mxu0 0
      %1049 = vmatpush1.bf16.xpose.msra.mxu0 0
      %1050 = vmatprep.subr.bf16.mxu0 0
      %1051 = vmatpush1.bf16.xpose.msra.mxu0 0
      %1052 = vmatprep.subr.bf16.mxu0 0
      %1053 = vmatpush1.bf16.xpose.msra.mxu0 0
      %1054 = vmatprep.subr.bf16.mxu0 0
      %1055 = vmatpush1.bf16.xpose.msra.mxu0 0
      %1056 = vmatprep.subr.bf16.mxu0 0
      %1057 = vmatpush1.bf16.xpose.msra.mxu0 0
      %1058 = vmatprep.subr.bf16.mxu0 0
      %1059 = vmatpush1.bf16.xpose.msra.mxu0 0
      %1060 = vmatprep.subr.bf16.mxu0 0
      %1061 = vmatpush1.bf16.xpose.msra.mxu0 0
      %1062 = vmatprep.subr.bf16.mxu0 0
      %1063 = vmatpush1.bf16.xpose.msra.mxu0 0
      %1064 = vmatprep.subr.bf16.mxu0 0
      %1065 = vmatpush1.bf16.xpose.msra.mxu0 0
      %1066 = vmatprep.mubr.bf16.mxu0 0
      %1067 = vmatmul.mubr.bf16.gmra.mrb[0].mxu0 %v1029
      %v1068 = vpop.f32.mrb[0].mxu0
      %v1069 = vadd.f32 0.0, %v1068
      %v1070 = vpop.f32.mrb[0].mxu0
      %v1071 = vpop.f32.mrb[0].mxu0
      %v1072 = vpop.f32.mrb[0].mxu0
      %1073 = vdwg.mxu0
      %1074 = vrot.lane.b32.xlu0 %v179, 112
      %v1075 = vpop.permute.xlu0 %1074
      %1076 = vrot.lane.b32.xlu0 %v179, 80
      %v1077 = vpop.permute.xlu0 %1076
      %v1079 = vsel %vm130, %v1075, 0
      %v1082 = vsel %vm130, %v1077, 0
      %1084 = vmatprep.subr.bf16.mxu0 0
      %1085 = vmatpush1.bf16.xpose.msra.mxu0 %v1082
      %1086 = vmatprep.subr.bf16.mxu0 0
      %1087 = vmatpush1.bf16.xpose.msra.mxu0 0
      %1088 = vmatprep.subr.bf16.mxu0 0
      %1089 = vmatpush1.bf16.xpose.msra.mxu0 0
      %1090 = vmatprep.subr.bf16.mxu0 0
      %1091 = vmatpush1.bf16.xpose.msra.mxu0 0
      %1092 = vmatprep.subr.bf16.mxu0 0
      %1093 = vmatpush1.bf16.xpose.msra.mxu0 0
      %1094 = vmatprep.subr.bf16.mxu0 0
      %1095 = vmatpush1.bf16.xpose.msra.mxu0 0
      %1096 = vmatprep.subr.bf16.mxu0 0
      %1097 = vmatpush1.bf16.xpose.msra.mxu0 0
      %1098 = vmatprep.subr.bf16.mxu0 0
      %1099 = vmatpush1.bf16.xpose.msra.mxu0 0
      %1100 = vmatprep.subr.bf16.mxu0 0
      %1101 = vmatpush1.bf16.xpose.msra.mxu0 0
      %1102 = vmatprep.subr.bf16.mxu0 0
      %1103 = vmatpush1.bf16.xpose.msra.mxu0 0
      %1104 = vmatprep.subr.bf16.mxu0 0
      %1105 = vmatpush1.bf16.xpose.msra.mxu0 0
      %1106 = vmatprep.subr.bf16.mxu0 0
      %1107 = vmatpush1.bf16.xpose.msra.mxu0 0
      %1108 = vmatprep.subr.bf16.mxu0 0
      %1109 = vmatpush1.bf16.xpose.msra.mxu0 0
      %1110 = vmatprep.subr.bf16.mxu0 0
      %1111 = vmatpush1.bf16.xpose.msra.mxu0 0
      %1112 = vmatprep.subr.bf16.mxu0 0
      %1113 = vmatpush1.bf16.xpose.msra.mxu0 0
      %1114 = vmatprep.subr.bf16.mxu0 0
      %1115 = vmatpush1.bf16.xpose.msra.mxu0 0
      %1116 = vmatprep.mubr.bf16.mxu0 0
      %1117 = vmatmul.mubr.bf16.gmra.mrb[0].mxu0 %v1079
      %v1118 = vpop.f32.mrb[0].mxu0
      %v1119 = vadd.f32 0.0, %v1118
      %v1120 = vpop.f32.mrb[0].mxu0
      %v1121 = vpop.f32.mrb[0].mxu0
      %v1122 = vpop.f32.mrb[0].mxu0
      %1123 = vdwg.mxu0
      %1124 = vrot.lane.b32.xlu0 %v230, 112
      %v1125 = vpop.permute.xlu0 %1124
      %1126 = vrot.lane.b32.xlu0 %v230, 80
      %v1127 = vpop.permute.xlu0 %1126
      %v1129 = vsel %vm130, %v1125, 0
      %v1132 = vsel %vm130, %v1127, 0
      %1134 = vmatprep.subr.bf16.mxu0 0
      %1135 = vmatpush1.bf16.xpose.msra.mxu0 %v1132
      %1136 = vmatprep.subr.bf16.mxu0 0
      %1137 = vmatpush1.bf16.xpose.msra.mxu0 0
      %1138 = vmatprep.subr.bf16.mxu0 0
      %1139 = vmatpush1.bf16.xpose.msra.mxu0 0
      %1140 = vmatprep.subr.bf16.mxu0 0
      %1141 = vmatpush1.bf16.xpose.msra.mxu0 0
      %1142 = vmatprep.subr.bf16.mxu0 0
      %1143 = vmatpush1.bf16.xpose.msra.mxu0 0
      %1144 = vmatprep.subr.bf16.mxu0 0
      %1145 = vmatpush1.bf16.xpose.msra.mxu0 0
      %1146 = vmatprep.subr.bf16.mxu0 0
      %1147 = vmatpush1.bf16.xpose.msra.mxu0 0
      %1148 = vmatprep.subr.bf16.mxu0 0
      %1149 = vmatpush1.bf16.xpose.msra.mxu0 0
      %1150 = vmatprep.subr.bf16.mxu0 0
      %1151 = vmatpush1.bf16.xpose.msra.mxu0 0
      %1152 = vmatprep.subr.bf16.mxu0 0
      %1153 = vmatpush1.bf16.xpose.msra.mxu0 0
      %1154 = vmatprep.subr.bf16.mxu0 0
      %1155 = vmatpush1.bf16.xpose.msra.mxu0 0
      %1156 = vmatprep.subr.bf16.mxu0 0
      %1157 = vmatpush1.bf16.xpose.msra.mxu0 0
      %1158 = vmatprep.subr.bf16.mxu0 0
      %1159 = vmatpush1.bf16.xpose.msra.mxu0 0
      %1160 = vmatprep.subr.bf16.mxu0 0
      %1161 = vmatpush1.bf16.xpose.msra.mxu0 0
      %1162 = vmatprep.subr.bf16.mxu0 0
      %1163 = vmatpush1.bf16.xpose.msra.mxu0 0
      %1164 = vmatprep.subr.bf16.mxu0 0
      %1165 = vmatpush1.bf16.xpose.msra.mxu0 0
      %1166 = vmatprep.mubr.bf16.mxu0 0
      %1167 = vmatmul.mubr.bf16.gmra.mrb[0].mxu0 %v1129
      %v1168 = vpop.f32.mrb[0].mxu0
      %v1169 = vadd.f32 0.0, %v1168
      %v1170 = vpop.f32.mrb[0].mxu0
      %v1171 = vpop.f32.mrb[0].mxu0
      %v1172 = vpop.f32.mrb[0].mxu0
      %1173 = vdwg.mxu0
      %1174 = vrot.lane.b32.xlu0 %v281, 112
      %v1175 = vpop.permute.xlu0 %1174
      %1176 = vrot.lane.b32.xlu0 %v281, 80
      %v1177 = vpop.permute.xlu0 %1176
      %v1179 = vsel %vm130, %v1175, 0
      %v1182 = vsel %vm130, %v1177, 0
      %1184 = vmatprep.subr.bf16.mxu0 0
      %1185 = vmatpush1.bf16.xpose.msra.mxu0 %v1182
      %1186 = vmatprep.subr.bf16.mxu0 0
      %1187 = vmatpush1.bf16.xpose.msra.mxu0 0
      %1188 = vmatprep.subr.bf16.mxu0 0
      %1189 = vmatpush1.bf16.xpose.msra.mxu0 0
      %1190 = vmatprep.subr.bf16.mxu0 0
      %1191 = vmatpush1.bf16.xpose.msra.mxu0 0
      %1192 = vmatprep.subr.bf16.mxu0 0
      %1193 = vmatpush1.bf16.xpose.msra.mxu0 0
      %1194 = vmatprep.subr.bf16.mxu0 0
      %1195 = vmatpush1.bf16.xpose.msra.mxu0 0
      %1196 = vmatprep.subr.bf16.mxu0 0
      %1197 = vmatpush1.bf16.xpose.msra.mxu0 0
      %1198 = vmatprep.subr.bf16.mxu0 0
      %1199 = vmatpush1.bf16.xpose.msra.mxu0 0
      %1200 = vmatprep.subr.bf16.mxu0 0
      %1201 = vmatpush1.bf16.xpose.msra.mxu0 0
      %1202 = vmatprep.subr.bf16.mxu0 0
      %1203 = vmatpush1.bf16.xpose.msra.mxu0 0
      %1204 = vmatprep.subr.bf16.mxu0 0
      %1205 = vmatpush1.bf16.xpose.msra.mxu0 0
      %1206 = vmatprep.subr.bf16.mxu0 0
      %1207 = vmatpush1.bf16.xpose.msra.mxu0 0
      %1208 = vmatprep.subr.bf16.mxu0 0
      %1209 = vmatpush1.bf16.xpose.msra.mxu0 0
      %1210 = vmatprep.subr.bf16.mxu0 0
      %1211 = vmatpush1.bf16.xpose.msra.mxu0 0
      %1212 = vmatprep.subr.bf16.mxu0 0
      %1213 = vmatpush1.bf16.xpose.msra.mxu0 0
      %1214 = vmatprep.subr.bf16.mxu0 0
      %1215 = vmatpush1.bf16.xpose.msra.mxu0 0
      %1216 = vmatprep.mubr.bf16.mxu0 0
      %1217 = vmatmul.mubr.bf16.gmra.mrb[0].mxu0 %v1179
      %v1218 = vpop.f32.mrb[0].mxu0
      %v1219 = vadd.f32 0.0, %v1218
      %v1220 = vpop.f32.mrb[0].mxu0
      %v1221 = vpop.f32.mrb[0].mxu0
      %v1222 = vpop.f32.mrb[0].mxu0
      %1223 = vdwg.mxu0
      %v1224 = vmul.f32 %v1069, 0.35355338
      %v1225 = vmul.f32 %v1119, 0.35355338
      %v1226 = vmul.f32 %v1169, 0.35355338
      %v1227 = vmul.f32 %v1219, 0.35355338
      %v1228 = vsel %vm334, %v1224, -inf
      %1229 = vmax.xlane.f32.xlu0 %v1228
      %v1230 = vpop.xlane.xlu0 %1229
      %v1231 = vsel %vm334, %v1225, -inf
      %1232 = vmax.xlane.f32.xlu0 %v1231
      %v1233 = vpop.xlane.xlu0 %1232
      %v1234 = vsel %vm334, %v1226, -inf
      %1235 = vmax.xlane.f32.xlu0 %v1234
      %v1236 = vpop.xlane.xlu0 %1235
      %v1237 = vsel %vm334, %v1227, -inf
      %1238 = vmax.xlane.f32.xlu0 %v1237
      %v1239 = vpop.xlane.xlu0 %1238
      %v1240 = vsub.f32 %v1224, %v1230
      %v1241 = vsub.f32 %v1225, %v1233
      %v1242 = vsub.f32 %v1226, %v1236
      %v1243 = vsub.f32 %v1227, %v1239
      %v1244 = vmul.f32 %v1240, 1.442695
      %v1245 = vpow.pop %v1244
      %v1246 = vmul.f32 %v1241, 1.442695
      %v1247 = vpow.pop %v1246
      %v1248 = vmul.f32 %v1242, 1.442695
      %v1249 = vpow.pop %v1248
      %v1250 = vmul.f32 %v1243, 1.442695
      %v1251 = vpow.pop %v1250
      %v1252 = vsel %vm334, %v1245, 0.0
      %1253 = vadd.xlane.f32.xlu0 %v1252
      %v1254 = vpop.xlane.xlu0 %1253
      %v1255 = vsel %vm334, %v1247, 0.0
      %1256 = vadd.xlane.f32.xlu0 %v1255
      %v1257 = vpop.xlane.xlu0 %1256
      %v1258 = vsel %vm334, %v1249, 0.0
      %1259 = vadd.xlane.f32.xlu0 %v1258
      %v1260 = vpop.xlane.xlu0 %1259
      %v1261 = vsel %vm334, %v1251, 0.0
      %1262 = vadd.xlane.f32.xlu0 %v1261
      %v1263 = vpop.xlane.xlu0 %1262
      %v1264 = vpack.c.bf16 %v1245, %v1245
      %v1265 = vpack.c.bf16 %v1247, %v1247
      %v1266 = vpack.c.bf16 %v1249, %v1249
      %v1267 = vpack.c.bf16 %v1251, %v1251
      %1268 = vrot.lane.b32.xlu0 %v127, 48
      %v1269 = vpop.permute.xlu0 %1268
      %v1271 = vsel %vm377, %v1264, 0
      %v1274 = vand.u32 %v1269, %v384
      %1276 = vmatprep.subr.bf16.mxu0 0
      %1277 = vmatpush1.bf16.msra.mxu0 %v1274
      %1278 = vmatprep.subr.bf16.mxu0 0
      %1279 = vmatpush1.bf16.msra.mxu0 0
      %1280 = vmatprep.subr.bf16.mxu0 0
      %1281 = vmatpush1.bf16.msra.mxu0 0
      %1282 = vmatprep.subr.bf16.mxu0 0
      %1283 = vmatpush1.bf16.msra.mxu0 0
      %1284 = vmatprep.subr.bf16.mxu0 0
      %1285 = vmatpush1.bf16.msra.mxu0 0
      %1286 = vmatprep.subr.bf16.mxu0 0
      %1287 = vmatpush1.bf16.msra.mxu0 0
      %1288 = vmatprep.subr.bf16.mxu0 0
      %1289 = vmatpush1.bf16.msra.mxu0 0
      %1290 = vmatprep.subr.bf16.mxu0 0
      %1291 = vmatpush1.bf16.msra.mxu0 0
      %1292 = vmatprep.subr.bf16.mxu0 0
      %1293 = vmatpush1.bf16.msra.mxu0 0
      %1294 = vmatprep.subr.bf16.mxu0 0
      %1295 = vmatpush1.bf16.msra.mxu0 0
      %1296 = vmatprep.subr.bf16.mxu0 0
      %1297 = vmatpush1.bf16.msra.mxu0 0
      %1298 = vmatprep.subr.bf16.mxu0 0
      %1299 = vmatpush1.bf16.msra.mxu0 0
      %1300 = vmatprep.subr.bf16.mxu0 0
      %1301 = vmatpush1.bf16.msra.mxu0 0
      %1302 = vmatprep.subr.bf16.mxu0 0
      %1303 = vmatpush1.bf16.msra.mxu0 0
      %1304 = vmatprep.subr.bf16.mxu0 0
      %1305 = vmatpush1.bf16.msra.mxu0 0
      %1306 = vmatprep.subr.bf16.mxu0 0
      %1307 = vmatpush1.bf16.msra.mxu0 0
      %1308 = vmatprep.mubr.bf16.mxu0 0
      %1309 = vmatmul.mubr.bf16.gmra.mrb[0].mxu0 %v1271
      %v1310 = vpop.f32.mrb[0].mxu0
      %v1311 = vadd.f32 0.0, %v1310
      %v1312 = vpop.f32.mrb[0].mxu0
      %v1313 = vpop.f32.mrb[0].mxu0
      %v1314 = vpop.f32.mrb[0].mxu0
      %1315 = vdwg.mxu0
      %1316 = vrot.lane.b32.xlu0 %v179, 48
      %v1317 = vpop.permute.xlu0 %1316
      %v1319 = vsel %vm377, %v1265, 0
      %v1322 = vand.u32 %v1317, %v384
      %1324 = vmatprep.subr.bf16.mxu0 0
      %1325 = vmatpush1.bf16.msra.mxu0 %v1322
      %1326 = vmatprep.subr.bf16.mxu0 0
      %1327 = vmatpush1.bf16.msra.mxu0 0
      %1328 = vmatprep.subr.bf16.mxu0 0
      %1329 = vmatpush1.bf16.msra.mxu0 0
      %1330 = vmatprep.subr.bf16.mxu0 0
      %1331 = vmatpush1.bf16.msra.mxu0 0
      %1332 = vmatprep.subr.bf16.mxu0 0
      %1333 = vmatpush1.bf16.msra.mxu0 0
      %1334 = vmatprep.subr.bf16.mxu0 0
      %1335 = vmatpush1.bf16.msra.mxu0 0
      %1336 = vmatprep.subr.bf16.mxu0 0
      %1337 = vmatpush1.bf16.msra.mxu0 0
      %1338 = vmatprep.subr.bf16.mxu0 0
      %1339 = vmatpush1.bf16.msra.mxu0 0
      %1340 = vmatprep.subr.bf16.mxu0 0
      %1341 = vmatpush1.bf16.msra.mxu0 0
      %1342 = vmatprep.subr.bf16.mxu0 0
      %1343 = vmatpush1.bf16.msra.mxu0 0
      %1344 = vmatprep.subr.bf16.mxu0 0
      %1345 = vmatpush1.bf16.msra.mxu0 0
      %1346 = vmatprep.subr.bf16.mxu0 0
      %1347 = vmatpush1.bf16.msra.mxu0 0
      %1348 = vmatprep.subr.bf16.mxu0 0
      %1349 = vmatpush1.bf16.msra.mxu0 0
      %1350 = vmatprep.subr.bf16.mxu0 0
      %1351 = vmatpush1.bf16.msra.mxu0 0
      %1352 = vmatprep.subr.bf16.mxu0 0
      %1353 = vmatpush1.bf16.msra.mxu0 0
      %1354 = vmatprep.subr.bf16.mxu0 0
      %1355 = vmatpush1.bf16.msra.mxu0 0
      %1356 = vmatprep.mubr.bf16.mxu0 0
      %1357 = vmatmul.mubr.bf16.gmra.mrb[0].mxu0 %v1319
      %v1358 = vpop.f32.mrb[0].mxu0
      %v1359 = vadd.f32 0.0, %v1358
      %v1360 = vpop.f32.mrb[0].mxu0
      %v1361 = vpop.f32.mrb[0].mxu0
      %v1362 = vpop.f32.mrb[0].mxu0
      %1363 = vdwg.mxu0
      %1364 = vrot.lane.b32.xlu0 %v230, 48
      %v1365 = vpop.permute.xlu0 %1364
      %v1367 = vsel %vm377, %v1266, 0
      %v1370 = vand.u32 %v1365, %v384
      %1372 = vmatprep.subr.bf16.mxu0 0
      %1373 = vmatpush1.bf16.msra.mxu0 %v1370
      %1374 = vmatprep.subr.bf16.mxu0 0
      %1375 = vmatpush1.bf16.msra.mxu0 0
      %1376 = vmatprep.subr.bf16.mxu0 0
      %1377 = vmatpush1.bf16.msra.mxu0 0
      %1378 = vmatprep.subr.bf16.mxu0 0
      %1379 = vmatpush1.bf16.msra.mxu0 0
      %1380 = vmatprep.subr.bf16.mxu0 0
      %1381 = vmatpush1.bf16.msra.mxu0 0
      %1382 = vmatprep.subr.bf16.mxu0 0
      %1383 = vmatpush1.bf16.msra.mxu0 0
      %1384 = vmatprep.subr.bf16.mxu0 0
      %1385 = vmatpush1.bf16.msra.mxu0 0
      %1386 = vmatprep.subr.bf16.mxu0 0
      %1387 = vmatpush1.bf16.msra.mxu0 0
      %1388 = vmatprep.subr.bf16.mxu0 0
      %1389 = vmatpush1.bf16.msra.mxu0 0
      %1390 = vmatprep.subr.bf16.mxu0 0
      %1391 = vmatpush1.bf16.msra.mxu0 0
      %1392 = vmatprep.subr.bf16.mxu0 0
      %1393 = vmatpush1.bf16.msra.mxu0 0
      %1394 = vmatprep.subr.bf16.mxu0 0
      %1395 = vmatpush1.bf16.msra.mxu0 0
      %1396 = vmatprep.subr.bf16.mxu0 0
      %1397 = vmatpush1.bf16.msra.mxu0 0
      %1398 = vmatprep.subr.bf16.mxu0 0
      %1399 = vmatpush1.bf16.msra.mxu0 0
      %1400 = vmatprep.subr.bf16.mxu0 0
      %1401 = vmatpush1.bf16.msra.mxu0 0
      %1402 = vmatprep.subr.bf16.mxu0 0
      %1403 = vmatpush1.bf16.msra.mxu0 0
      %1404 = vmatprep.mubr.bf16.mxu0 0
      %1405 = vmatmul.mubr.bf16.gmra.mrb[0].mxu0 %v1367
      %v1406 = vpop.f32.mrb[0].mxu0
      %v1407 = vadd.f32 0.0, %v1406
      %v1408 = vpop.f32.mrb[0].mxu0
      %v1409 = vpop.f32.mrb[0].mxu0
      %v1410 = vpop.f32.mrb[0].mxu0
      %1411 = vdwg.mxu0
      %1412 = vrot.lane.b32.xlu0 %v281, 48
      %v1413 = vpop.permute.xlu0 %1412
      %v1415 = vsel %vm377, %v1267, 0
      %v1418 = vand.u32 %v1413, %v384
      %1420 = vmatprep.subr.bf16.mxu0 0
      %1421 = vmatpush1.bf16.msra.mxu0 %v1418
      %1422 = vmatprep.subr.bf16.mxu0 0
      %1423 = vmatpush1.bf16.msra.mxu0 0
      %1424 = vmatprep.subr.bf16.mxu0 0
      %1425 = vmatpush1.bf16.msra.mxu0 0
      %1426 = vmatprep.subr.bf16.mxu0 0
      %1427 = vmatpush1.bf16.msra.mxu0 0
      %1428 = vmatprep.subr.bf16.mxu0 0
      %1429 = vmatpush1.bf16.msra.mxu0 0
      %1430 = vmatprep.subr.bf16.mxu0 0
      %1431 = vmatpush1.bf16.msra.mxu0 0
      %1432 = vmatprep.subr.bf16.mxu0 0
      %1433 = vmatpush1.bf16.msra.mxu0 0
      %1434 = vmatprep.subr.bf16.mxu0 0
      %1435 = vmatpush1.bf16.msra.mxu0 0
      %1436 = vmatprep.subr.bf16.mxu0 0
      %1437 = vmatpush1.bf16.msra.mxu0 0
      %1438 = vmatprep.subr.bf16.mxu0 0
      %1439 = vmatpush1.bf16.msra.mxu0 0
      %1440 = vmatprep.subr.bf16.mxu0 0
      %1441 = vmatpush1.bf16.msra.mxu0 0
      %1442 = vmatprep.subr.bf16.mxu0 0
      %1443 = vmatpush1.bf16.msra.mxu0 0
      %1444 = vmatprep.subr.bf16.mxu0 0
      %1445 = vmatpush1.bf16.msra.mxu0 0
      %1446 = vmatprep.subr.bf16.mxu0 0
      %1447 = vmatpush1.bf16.msra.mxu0 0
      %1448 = vmatprep.subr.bf16.mxu0 0
      %1449 = vmatpush1.bf16.msra.mxu0 0
      %1450 = vmatprep.subr.bf16.mxu0 0
      %1451 = vmatpush1.bf16.msra.mxu0 0
      %1452 = vmatprep.mubr.bf16.mxu0 0
      %1453 = vmatmul.mubr.bf16.gmra.mrb[0].mxu0 %v1415
      %v1454 = vpop.f32.mrb[0].mxu0
      %v1455 = vadd.f32 0.0, %v1454
      %v1456 = vpop.f32.mrb[0].mxu0
      %v1457 = vpop.f32.mrb[0].mxu0
      %v1458 = vpop.f32.mrb[0].mxu0
      %1459 = vdwg.mxu0
      %v1460 = vrcp.pop %v1254
      %v1461 = vrcp.pop %v1257
      %v1462 = vrcp.pop %v1260
      %v1463 = vrcp.pop %v1263
      %v1464 = vmul.f32 %v1311, %v1460
      %v1465 = vmul.f32 %v1359, %v1461
      %v1466 = vmul.f32 %v1407, %v1462
      %v1467 = vmul.f32 %v1455, %v1463
      %1468 = vrot.lane.b32.xlu0 %v127, 104
      %v1469 = vpop.permute.xlu0 %1468
      %1470 = vrot.lane.b32.xlu0 %v127, 72
      %v1471 = vpop.permute.xlu0 %1470
      %v1473 = vsel %vm130, %v1469, 0
      %v1476 = vsel %vm130, %v1471, 0
      %1478 = vmatprep.subr.bf16.mxu0 0
      %1479 = vmatpush1.bf16.xpose.msra.mxu0 %v1476
      %1480 = vmatprep.subr.bf16.mxu0 0
      %1481 = vmatpush1.bf16.xpose.msra.mxu0 0
      %1482 = vmatprep.subr.bf16.mxu0 0
      %1483 = vmatpush1.bf16.xpose.msra.mxu0 0
      %1484 = vmatprep.subr.bf16.mxu0 0
      %1485 = vmatpush1.bf16.xpose.msra.mxu0 0
      %1486 = vmatprep.subr.bf16.mxu0 0
      %1487 = vmatpush1.bf16.xpose.msra.mxu0 0
      %1488 = vmatprep.subr.bf16.mxu0 0
      %1489 = vmatpush1.bf16.xpose.msra.mxu0 0
      %1490 = vmatprep.subr.bf16.mxu0 0
      %1491 = vmatpush1.bf16.xpose.msra.mxu0 0
      %1492 = vmatprep.subr.bf16.mxu0 0
      %1493 = vmatpush1.bf16.xpose.msra.mxu0 0
      %1494 = vmatprep.subr.bf16.mxu0 0
      %1495 = vmatpush1.bf16.xpose.msra.mxu0 0
      %1496 = vmatprep.subr.bf16.mxu0 0
      %1497 = vmatpush1.bf16.xpose.msra.mxu0 0
      %1498 = vmatprep.subr.bf16.mxu0 0
      %1499 = vmatpush1.bf16.xpose.msra.mxu0 0
      %1500 = vmatprep.subr.bf16.mxu0 0
      %1501 = vmatpush1.bf16.xpose.msra.mxu0 0
      %1502 = vmatprep.subr.bf16.mxu0 0
      %1503 = vmatpush1.bf16.xpose.msra.mxu0 0
      %1504 = vmatprep.subr.bf16.mxu0 0
      %1505 = vmatpush1.bf16.xpose.msra.mxu0 0
      %1506 = vmatprep.subr.bf16.mxu0 0
      %1507 = vmatpush1.bf16.xpose.msra.mxu0 0
      %1508 = vmatprep.subr.bf16.mxu0 0
      %1509 = vmatpush1.bf16.xpose.msra.mxu0 0
      %1510 = vmatprep.mubr.bf16.mxu0 0
      %1511 = vmatmul.mubr.bf16.gmra.mrb[0].mxu0 %v1473
      %v1512 = vpop.f32.mrb[0].mxu0
      %v1513 = vadd.f32 0.0, %v1512
      %v1514 = vpop.f32.mrb[0].mxu0
      %v1515 = vpop.f32.mrb[0].mxu0
      %v1516 = vpop.f32.mrb[0].mxu0
      %1517 = vdwg.mxu0
      %1518 = vrot.lane.b32.xlu0 %v179, 104
      %v1519 = vpop.permute.xlu0 %1518
      %1520 = vrot.lane.b32.xlu0 %v179, 72
      %v1521 = vpop.permute.xlu0 %1520
      %v1523 = vsel %vm130, %v1519, 0
      %v1526 = vsel %vm130, %v1521, 0
      %1528 = vmatprep.subr.bf16.mxu0 0
      %1529 = vmatpush1.bf16.xpose.msra.mxu0 %v1526
      %1530 = vmatprep.subr.bf16.mxu0 0
      %1531 = vmatpush1.bf16.xpose.msra.mxu0 0
      %1532 = vmatprep.subr.bf16.mxu0 0
      %1533 = vmatpush1.bf16.xpose.msra.mxu0 0
      %1534 = vmatprep.subr.bf16.mxu0 0
      %1535 = vmatpush1.bf16.xpose.msra.mxu0 0
      %1536 = vmatprep.subr.bf16.mxu0 0
      %1537 = vmatpush1.bf16.xpose.msra.mxu0 0
      %1538 = vmatprep.subr.bf16.mxu0 0
      %1539 = vmatpush1.bf16.xpose.msra.mxu0 0
      %1540 = vmatprep.subr.bf16.mxu0 0
      %1541 = vmatpush1.bf16.xpose.msra.mxu0 0
      %1542 = vmatprep.subr.bf16.mxu0 0
      %1543 = vmatpush1.bf16.xpose.msra.mxu0 0
      %1544 = vmatprep.subr.bf16.mxu0 0
      %1545 = vmatpush1.bf16.xpose.msra.mxu0 0
      %1546 = vmatprep.subr.bf16.mxu0 0
      %1547 = vmatpush1.bf16.xpose.msra.mxu0 0
      %1548 = vmatprep.subr.bf16.mxu0 0
      %1549 = vmatpush1.bf16.xpose.msra.mxu0 0
      %1550 = vmatprep.subr.bf16.mxu0 0
      %1551 = vmatpush1.bf16.xpose.msra.mxu0 0
      %1552 = vmatprep.subr.bf16.mxu0 0
      %1553 = vmatpush1.bf16.xpose.msra.mxu0 0
      %1554 = vmatprep.subr.bf16.mxu0 0
      %1555 = vmatpush1.bf16.xpose.msra.mxu0 0
      %1556 = vmatprep.subr.bf16.mxu0 0
      %1557 = vmatpush1.bf16.xpose.msra.mxu0 0
      %1558 = vmatprep.subr.bf16.mxu0 0
      %1559 = vmatpush1.bf16.xpose.msra.mxu0 0
      %1560 = vmatprep.mubr.bf16.mxu0 0
      %1561 = vmatmul.mubr.bf16.gmra.mrb[0].mxu0 %v1523
      %v1562 = vpop.f32.mrb[0].mxu0
      %v1563 = vadd.f32 0.0, %v1562
      %v1564 = vpop.f32.mrb[0].mxu0
      %v1565 = vpop.f32.mrb[0].mxu0
      %v1566 = vpop.f32.mrb[0].mxu0
      %1567 = vdwg.mxu0
      %1568 = vrot.lane.b32.xlu0 %v230, 104
      %v1569 = vpop.permute.xlu0 %1568
      %1570 = vrot.lane.b32.xlu0 %v230, 72
      %v1571 = vpop.permute.xlu0 %1570
      %v1573 = vsel %vm130, %v1569, 0
      %v1576 = vsel %vm130, %v1571, 0
      %1578 = vmatprep.subr.bf16.mxu0 0
      %1579 = vmatpush1.bf16.xpose.msra.mxu0 %v1576
      %1580 = vmatprep.subr.bf16.mxu0 0
      %1581 = vmatpush1.bf16.xpose.msra.mxu0 0
      %1582 = vmatprep.subr.bf16.mxu0 0
      %1583 = vmatpush1.bf16.xpose.msra.mxu0 0
      %1584 = vmatprep.subr.bf16.mxu0 0
      %1585 = vmatpush1.bf16.xpose.msra.mxu0 0
      %1586 = vmatprep.subr.bf16.mxu0 0
      %1587 = vmatpush1.bf16.xpose.msra.mxu0 0
      %1588 = vmatprep.subr.bf16.mxu0 0
      %1589 = vmatpush1.bf16.xpose.msra.mxu0 0
      %1590 = vmatprep.subr.bf16.mxu0 0
      %1591 = vmatpush1.bf16.xpose.msra.mxu0 0
      %1592 = vmatprep.subr.bf16.mxu0 0
      %1593 = vmatpush1.bf16.xpose.msra.mxu0 0
      %1594 = vmatprep.subr.bf16.mxu0 0
      %1595 = vmatpush1.bf16.xpose.msra.mxu0 0
      %1596 = vmatprep.subr.bf16.mxu0 0
      %1597 = vmatpush1.bf16.xpose.msra.mxu0 0
      %1598 = vmatprep.subr.bf16.mxu0 0
      %1599 = vmatpush1.bf16.xpose.msra.mxu0 0
      %1600 = vmatprep.subr.bf16.mxu0 0
      %1601 = vmatpush1.bf16.xpose.msra.mxu0 0
      %1602 = vmatprep.subr.bf16.mxu0 0
      %1603 = vmatpush1.bf16.xpose.msra.mxu0 0
      %1604 = vmatprep.subr.bf16.mxu0 0
      %1605 = vmatpush1.bf16.xpose.msra.mxu0 0
      %1606 = vmatprep.subr.bf16.mxu0 0
      %1607 = vmatpush1.bf16.xpose.msra.mxu0 0
      %1608 = vmatprep.subr.bf16.mxu0 0
      %1609 = vmatpush1.bf16.xpose.msra.mxu0 0
      %1610 = vmatprep.mubr.bf16.mxu0 0
      %1611 = vmatmul.mubr.bf16.gmra.mrb[0].mxu0 %v1573
      %v1612 = vpop.f32.mrb[0].mxu0
      %v1613 = vadd.f32 0.0, %v1612
      %v1614 = vpop.f32.mrb[0].mxu0
      %v1615 = vpop.f32.mrb[0].mxu0
      %v1616 = vpop.f32.mrb[0].mxu0
      %1617 = vdwg.mxu0
      %1618 = vrot.lane.b32.xlu0 %v281, 104
      %v1619 = vpop.permute.xlu0 %1618
      %1620 = vrot.lane.b32.xlu0 %v281, 72
      %v1621 = vpop.permute.xlu0 %1620
      %v1623 = vsel %vm130, %v1619, 0
      %v1626 = vsel %vm130, %v1621, 0
      %1628 = vmatprep.subr.bf16.mxu0 0
      %1629 = vmatpush1.bf16.xpose.msra.mxu0 %v1626
      %1630 = vmatprep.subr.bf16.mxu0 0
      %1631 = vmatpush1.bf16.xpose.msra.mxu0 0
      %1632 = vmatprep.subr.bf16.mxu0 0
      %1633 = vmatpush1.bf16.xpose.msra.mxu0 0
      %1634 = vmatprep.subr.bf16.mxu0 0
      %1635 = vmatpush1.bf16.xpose.msra.mxu0 0
      %1636 = vmatprep.subr.bf16.mxu0 0
      %1637 = vmatpush1.bf16.xpose.msra.mxu0 0
      %1638 = vmatprep.subr.bf16.mxu0 0
      %1639 = vmatpush1.bf16.xpose.msra.mxu0 0
      %1640 = vmatprep.subr.bf16.mxu0 0
      %1641 = vmatpush1.bf16.xpose.msra.mxu0 0
      %1642 = vmatprep.subr.bf16.mxu0 0
      %1643 = vmatpush1.bf16.xpose.msra.mxu0 0
      %1644 = vmatprep.subr.bf16.mxu0 0
      %1645 = vmatpush1.bf16.xpose.msra.mxu0 0
      %1646 = vmatprep.subr.bf16.mxu0 0
      %1647 = vmatpush1.bf16.xpose.msra.mxu0 0
      %1648 = vmatprep.subr.bf16.mxu0 0
      %1649 = vmatpush1.bf16.xpose.msra.mxu0 0
      %1650 = vmatprep.subr.bf16.mxu0 0
      %1651 = vmatpush1.bf16.xpose.msra.mxu0 0
      %1652 = vmatprep.subr.bf16.mxu0 0
      %1653 = vmatpush1.bf16.xpose.msra.mxu0 0
      %1654 = vmatprep.subr.bf16.mxu0 0
      %1655 = vmatpush1.bf16.xpose.msra.mxu0 0
      %1656 = vmatprep.subr.bf16.mxu0 0
      %1657 = vmatpush1.bf16.xpose.msra.mxu0 0
      %1658 = vmatprep.subr.bf16.mxu0 0
      %1659 = vmatpush1.bf16.xpose.msra.mxu0 0
      %1660 = vmatprep.mubr.bf16.mxu0 0
      %1661 = vmatmul.mubr.bf16.gmra.mrb[0].mxu0 %v1623
      %v1662 = vpop.f32.mrb[0].mxu0
      %v1663 = vadd.f32 0.0, %v1662
      %v1664 = vpop.f32.mrb[0].mxu0
      %v1665 = vpop.f32.mrb[0].mxu0
      %v1666 = vpop.f32.mrb[0].mxu0
      %1667 = vdwg.mxu0
      %v1668 = vmul.f32 %v1513, 0.35355338
      %v1669 = vmul.f32 %v1563, 0.35355338
      %v1670 = vmul.f32 %v1613, 0.35355338
      %v1671 = vmul.f32 %v1663, 0.35355338
      %v1672 = vsel %vm334, %v1668, -inf
      %1673 = vmax.xlane.f32.xlu0 %v1672
      %v1674 = vpop.xlane.xlu0 %1673
      %v1675 = vsel %vm334, %v1669, -inf
      %1676 = vmax.xlane.f32.xlu0 %v1675
      %v1677 = vpop.xlane.xlu0 %1676
      %v1678 = vsel %vm334, %v1670, -inf
      %1679 = vmax.xlane.f32.xlu0 %v1678
      %v1680 = vpop.xlane.xlu0 %1679
      %v1681 = vsel %vm334, %v1671, -inf
      %1682 = vmax.xlane.f32.xlu0 %v1681
      %v1683 = vpop.xlane.xlu0 %1682
      %v1684 = vsub.f32 %v1668, %v1674
      %v1685 = vsub.f32 %v1669, %v1677
      %v1686 = vsub.f32 %v1670, %v1680
      %v1687 = vsub.f32 %v1671, %v1683
      %v1688 = vmul.f32 %v1684, 1.442695
      %v1689 = vpow.pop %v1688
      %v1690 = vmul.f32 %v1685, 1.442695
      %v1691 = vpow.pop %v1690
      %v1692 = vmul.f32 %v1686, 1.442695
      %v1693 = vpow.pop %v1692
      %v1694 = vmul.f32 %v1687, 1.442695
      %v1695 = vpow.pop %v1694
      %v1696 = vsel %vm334, %v1689, 0.0
      %1697 = vadd.xlane.f32.xlu0 %v1696
      %v1698 = vpop.xlane.xlu0 %1697
      %v1699 = vsel %vm334, %v1691, 0.0
      %1700 = vadd.xlane.f32.xlu0 %v1699
      %v1701 = vpop.xlane.xlu0 %1700
      %v1702 = vsel %vm334, %v1693, 0.0
      %1703 = vadd.xlane.f32.xlu0 %v1702
      %v1704 = vpop.xlane.xlu0 %1703
      %v1705 = vsel %vm334, %v1695, 0.0
      %1706 = vadd.xlane.f32.xlu0 %v1705
      %v1707 = vpop.xlane.xlu0 %1706
      %v1708 = vpack.c.bf16 %v1689, %v1689
      %v1709 = vpack.c.bf16 %v1691, %v1691
      %v1710 = vpack.c.bf16 %v1693, %v1693
      %v1711 = vpack.c.bf16 %v1695, %v1695
      %1712 = vrot.lane.b32.xlu0 %v127, 40
      %v1713 = vpop.permute.xlu0 %1712
      %v1715 = vsel %vm377, %v1708, 0
      %v1718 = vand.u32 %v1713, %v384
      %1720 = vmatprep.subr.bf16.mxu0 0
      %1721 = vmatpush1.bf16.msra.mxu0 %v1718
      %1722 = vmatprep.subr.bf16.mxu0 0
      %1723 = vmatpush1.bf16.msra.mxu0 0
      %1724 = vmatprep.subr.bf16.mxu0 0
      %1725 = vmatpush1.bf16.msra.mxu0 0
      %1726 = vmatprep.subr.bf16.mxu0 0
      %1727 = vmatpush1.bf16.msra.mxu0 0
      %1728 = vmatprep.subr.bf16.mxu0 0
      %1729 = vmatpush1.bf16.msra.mxu0 0
      %1730 = vmatprep.subr.bf16.mxu0 0
      %1731 = vmatpush1.bf16.msra.mxu0 0
      %1732 = vmatprep.subr.bf16.mxu0 0
      %1733 = vmatpush1.bf16.msra.mxu0 0
      %1734 = vmatprep.subr.bf16.mxu0 0
      %1735 = vmatpush1.bf16.msra.mxu0 0
      %1736 = vmatprep.subr.bf16.mxu0 0
      %1737 = vmatpush1.bf16.msra.mxu0 0
      %1738 = vmatprep.subr.bf16.mxu0 0
      %1739 = vmatpush1.bf16.msra.mxu0 0
      %1740 = vmatprep.subr.bf16.mxu0 0
      %1741 = vmatpush1.bf16.msra.mxu0 0
      %1742 = vmatprep.subr.bf16.mxu0 0
      %1743 = vmatpush1.bf16.msra.mxu0 0
      %1744 = vmatprep.subr.bf16.mxu0 0
      %1745 = vmatpush1.bf16.msra.mxu0 0
      %1746 = vmatprep.subr.bf16.mxu0 0
      %1747 = vmatpush1.bf16.msra.mxu0 0
      %1748 = vmatprep.subr.bf16.mxu0 0
      %1749 = vmatpush1.bf16.msra.mxu0 0
      %1750 = vmatprep.subr.bf16.mxu0 0
      %1751 = vmatpush1.bf16.msra.mxu0 0
      %1752 = vmatprep.mubr.bf16.mxu0 0
      %1753 = vmatmul.mubr.bf16.gmra.mrb[0].mxu0 %v1715
      %v1754 = vpop.f32.mrb[0].mxu0
      %v1755 = vadd.f32 0.0, %v1754
      %v1756 = vpop.f32.mrb[0].mxu0
      %v1757 = vpop.f32.mrb[0].mxu0
      %v1758 = vpop.f32.mrb[0].mxu0
      %1759 = vdwg.mxu0
      %1760 = vrot.lane.b32.xlu0 %v179, 40
      %v1761 = vpop.permute.xlu0 %1760
      %v1763 = vsel %vm377, %v1709, 0
      %v1766 = vand.u32 %v1761, %v384
      %1768 = vmatprep.subr.bf16.mxu0 0
      %1769 = vmatpush1.bf16.msra.mxu0 %v1766
      %1770 = vmatprep.subr.bf16.mxu0 0
      %1771 = vmatpush1.bf16.msra.mxu0 0
      %1772 = vmatprep.subr.bf16.mxu0 0
      %1773 = vmatpush1.bf16.msra.mxu0 0
      %1774 = vmatprep.subr.bf16.mxu0 0
      %1775 = vmatpush1.bf16.msra.mxu0 0
      %1776 = vmatprep.subr.bf16.mxu0 0
      %1777 = vmatpush1.bf16.msra.mxu0 0
      %1778 = vmatprep.subr.bf16.mxu0 0
      %1779 = vmatpush1.bf16.msra.mxu0 0
      %1780 = vmatprep.subr.bf16.mxu0 0
      %1781 = vmatpush1.bf16.msra.mxu0 0
      %1782 = vmatprep.subr.bf16.mxu0 0
      %1783 = vmatpush1.bf16.msra.mxu0 0
      %1784 = vmatprep.subr.bf16.mxu0 0
      %1785 = vmatpush1.bf16.msra.mxu0 0
      %1786 = vmatprep.subr.bf16.mxu0 0
      %1787 = vmatpush1.bf16.msra.mxu0 0
      %1788 = vmatprep.subr.bf16.mxu0 0
      %1789 = vmatpush1.bf16.msra.mxu0 0
      %1790 = vmatprep.subr.bf16.mxu0 0
      %1791 = vmatpush1.bf16.msra.mxu0 0
      %1792 = vmatprep.subr.bf16.mxu0 0
      %1793 = vmatpush1.bf16.msra.mxu0 0
      %1794 = vmatprep.subr.bf16.mxu0 0
      %1795 = vmatpush1.bf16.msra.mxu0 0
      %1796 = vmatprep.subr.bf16.mxu0 0
      %1797 = vmatpush1.bf16.msra.mxu0 0
      %1798 = vmatprep.subr.bf16.mxu0 0
      %1799 = vmatpush1.bf16.msra.mxu0 0
      %1800 = vmatprep.mubr.bf16.mxu0 0
      %1801 = vmatmul.mubr.bf16.gmra.mrb[0].mxu0 %v1763
      %v1802 = vpop.f32.mrb[0].mxu0
      %v1803 = vadd.f32 0.0, %v1802
      %v1804 = vpop.f32.mrb[0].mxu0
      %v1805 = vpop.f32.mrb[0].mxu0
      %v1806 = vpop.f32.mrb[0].mxu0
      %1807 = vdwg.mxu0
      %1808 = vrot.lane.b32.xlu0 %v230, 40
      %v1809 = vpop.permute.xlu0 %1808
      %v1811 = vsel %vm377, %v1710, 0
      %v1814 = vand.u32 %v1809, %v384
      %1816 = vmatprep.subr.bf16.mxu0 0
      %1817 = vmatpush1.bf16.msra.mxu0 %v1814
      %1818 = vmatprep.subr.bf16.mxu0 0
      %1819 = vmatpush1.bf16.msra.mxu0 0
      %1820 = vmatprep.subr.bf16.mxu0 0
      %1821 = vmatpush1.bf16.msra.mxu0 0
      %1822 = vmatprep.subr.bf16.mxu0 0
      %1823 = vmatpush1.bf16.msra.mxu0 0
      %1824 = vmatprep.subr.bf16.mxu0 0
      %1825 = vmatpush1.bf16.msra.mxu0 0
      %1826 = vmatprep.subr.bf16.mxu0 0
      %1827 = vmatpush1.bf16.msra.mxu0 0
      %1828 = vmatprep.subr.bf16.mxu0 0
      %1829 = vmatpush1.bf16.msra.mxu0 0
      %1830 = vmatprep.subr.bf16.mxu0 0
      %1831 = vmatpush1.bf16.msra.mxu0 0
      %1832 = vmatprep.subr.bf16.mxu0 0
      %1833 = vmatpush1.bf16.msra.mxu0 0
      %1834 = vmatprep.subr.bf16.mxu0 0
      %1835 = vmatpush1.bf16.msra.mxu0 0
      %1836 = vmatprep.subr.bf16.mxu0 0
      %1837 = vmatpush1.bf16.msra.mxu0 0
      %1838 = vmatprep.subr.bf16.mxu0 0
      %1839 = vmatpush1.bf16.msra.mxu0 0
      %1840 = vmatprep.subr.bf16.mxu0 0
      %1841 = vmatpush1.bf16.msra.mxu0 0
      %1842 = vmatprep.subr.bf16.mxu0 0
      %1843 = vmatpush1.bf16.msra.mxu0 0
      %1844 = vmatprep.subr.bf16.mxu0 0
      %1845 = vmatpush1.bf16.msra.mxu0 0
      %1846 = vmatprep.subr.bf16.mxu0 0
      %1847 = vmatpush1.bf16.msra.mxu0 0
      %1848 = vmatprep.mubr.bf16.mxu0 0
      %1849 = vmatmul.mubr.bf16.gmra.mrb[0].mxu0 %v1811
      %v1850 = vpop.f32.mrb[0].mxu0
      %v1851 = vadd.f32 0.0, %v1850
      %v1852 = vpop.f32.mrb[0].mxu0
      %v1853 = vpop.f32.mrb[0].mxu0
      %v1854 = vpop.f32.mrb[0].mxu0
      %1855 = vdwg.mxu0
      %1856 = vrot.lane.b32.xlu0 %v281, 40
      %v1857 = vpop.permute.xlu0 %1856
      %v1859 = vsel %vm377, %v1711, 0
      %v1862 = vand.u32 %v1857, %v384
      %1864 = vmatprep.subr.bf16.mxu0 0
      %1865 = vmatpush1.bf16.msra.mxu0 %v1862
      %1866 = vmatprep.subr.bf16.mxu0 0
      %1867 = vmatpush1.bf16.msra.mxu0 0
      %1868 = vmatprep.subr.bf16.mxu0 0
      %1869 = vmatpush1.bf16.msra.mxu0 0
      %1870 = vmatprep.subr.bf16.mxu0 0
      %1871 = vmatpush1.bf16.msra.mxu0 0
      %1872 = vmatprep.subr.bf16.mxu0 0
      %1873 = vmatpush1.bf16.msra.mxu0 0
      %1874 = vmatprep.subr.bf16.mxu0 0
      %1875 = vmatpush1.bf16.msra.mxu0 0
      %1876 = vmatprep.subr.bf16.mxu0 0
      %1877 = vmatpush1.bf16.msra.mxu0 0
      %1878 = vmatprep.subr.bf16.mxu0 0
      %1879 = vmatpush1.bf16.msra.mxu0 0
      %1880 = vmatprep.subr.bf16.mxu0 0
      %1881 = vmatpush1.bf16.msra.mxu0 0
      %1882 = vmatprep.subr.bf16.mxu0 0
      %1883 = vmatpush1.bf16.msra.mxu0 0
      %1884 = vmatprep.subr.bf16.mxu0 0
      %1885 = vmatpush1.bf16.msra.mxu0 0
      %1886 = vmatprep.subr.bf16.mxu0 0
      %1887 = vmatpush1.bf16.msra.mxu0 0
      %1888 = vmatprep.subr.bf16.mxu0 0
      %1889 = vmatpush1.bf16.msra.mxu0 0
      %1890 = vmatprep.subr.bf16.mxu0 0
      %1891 = vmatpush1.bf16.msra.mxu0 0
      %1892 = vmatprep.subr.bf16.mxu0 0
      %1893 = vmatpush1.bf16.msra.mxu0 0
      %1894 = vmatprep.subr.bf16.mxu0 0
      %1895 = vmatpush1.bf16.msra.mxu0 0
      %1896 = vmatprep.mubr.bf16.mxu0 0
      %1897 = vmatmul.mubr.bf16.gmra.mrb[0].mxu0 %v1859
      %v1898 = vpop.f32.mrb[0].mxu0
      %v1899 = vadd.f32 0.0, %v1898
      %v1900 = vpop.f32.mrb[0].mxu0
      %v1901 = vpop.f32.mrb[0].mxu0
      %v1902 = vpop.f32.mrb[0].mxu0
      %1903 = vdwg.mxu0
      %v1904 = vrcp.pop %v1698
      %v1905 = vrcp.pop %v1701
      %v1906 = vrcp.pop %v1704
      %v1907 = vrcp.pop %v1707
      %v1908 = vmul.f32 %v1755, %v1904
      %v1909 = vmul.f32 %v1803, %v1905
      %v1910 = vmul.f32 %v1851, %v1906
      %v1911 = vmul.f32 %v1899, %v1907
      %1916 = vrot.lane.b32.xlu0 %v1020, 8
      %v1917 = vpop.permute.xlu0 %1916
      %1918 = vrot.lane.b32.xlu0 %v1021, 8
      %v1919 = vpop.permute.xlu0 %1918
      %1920 = vrot.lane.b32.xlu0 %v1022, 8
      %v1921 = vpop.permute.xlu0 %1920
      %1922 = vrot.lane.b32.xlu0 %v1023, 8
      %v1923 = vpop.permute.xlu0 %1922
      %1932 = vrot.lane.b32.xlu0 %v1464, 16
      %v1933 = vpop.permute.xlu0 %1932
      %1934 = vrot.lane.b32.xlu0 %v1465, 16
      %v1935 = vpop.permute.xlu0 %1934
      %1936 = vrot.lane.b32.xlu0 %v1466, 16
      %v1937 = vpop.permute.xlu0 %1936
      %1938 = vrot.lane.b32.xlu0 %v1467, 16
      %v1939 = vpop.permute.xlu0 %1938
      %1948 = vrot.lane.b32.xlu0 %v1908, 24
      %v1949 = vpop.permute.xlu0 %1948
      %1950 = vrot.lane.b32.xlu0 %v1909, 24
      %v1951 = vpop.permute.xlu0 %1950
      %1952 = vrot.lane.b32.xlu0 %v1910, 24
      %v1953 = vpop.permute.xlu0 %1952
      %1954 = vrot.lane.b32.xlu0 %v1911, 24
      %v1955 = vpop.permute.xlu0 %1954
      %v1960 = vsel %vm130, %v576, %v1917
      %v1961 = vsel %vm130, %v577, %v1919
      %v1962 = vsel %vm130, %v578, %v1921
      %v1963 = vsel %vm130, %v579, %v1923
      %vm1964 = vcmask 130048
      %v1965 = vsel %vm1964, %v1960, %v1933
      %v1966 = vsel %vm1964, %v1961, %v1935
      %v1967 = vsel %vm1964, %v1962, %v1937
      %v1968 = vsel %vm1964, %v1963, %v1939
      %vm1969 = vcmask 195584
      %v1970 = vsel %vm1969, %v1965, %v1949
      %v1971 = vsel %vm1969, %v1966, %v1951
      %v1972 = vsel %vm1969, %v1967, %v1953
      %v1973 = vsel %vm1969, %v1968, %v1955
      %v1974 = vpack.c.bf16 %v1970, %v1970
      %v1975 = vpack.c.bf16 %v1971, %v1971
      %v1976 = vpack.c.bf16 %v1972, %v1972
      %v1977 = vpack.c.bf16 %v1973, %v1973
      %vm1978 = vcmask 256000
      %vm1979 = vsmask.f32 2304
      %vm1980 = vmand %vm1978, %vm1979
      %v1981 = vld [vmem:[%s118] sm:$0x7]
      %v1982 = vsel %vm1980, %v1974, %v1981
      %1983 = vst [vmem:[%s118] sm:$0x7] %v1982
      %v1984 = vld [vmem:[%s118 + $0x4] sm:$0x7]
      %v1985 = vsel %vm1980, %v1975, %v1984
      %1986 = vst [vmem:[%s118 + $0x4] sm:$0x7] %v1985
      %v1987 = vld [vmem:[%s118 + $0x8] sm:$0x7]
      %v1988 = vsel %vm1980, %v1976, %v1987
      %1989 = vst [vmem:[%s118 + $0x8] sm:$0x7] %v1988
      %v1990 = vld [vmem:[%s118 + $0xc] sm:$0x7]
      %v1991 = vsel %vm1980, %v1977, %v1990
      %1992 = vst [vmem:[%s118 + $0xc] sm:$0x7] %v1991
      %s1993 = smul.u32 4, %s12
      %p1994 = scmp.lt.s32.totalorder %s1993, 7
      %s1995 = scalar_select %p1994, %s1993, 7
      %s1996 = smul.addr %s1995, 4
      %s1997 = scalar_lea.vmem %s1, %s1996
      // Predicated region
      $region25: #{_lambda_.26} parent=23 // pred_check
        %p1998 = pneg %p56
      $region26: #{_lambda_.26} parent=23 // pred_check_branch
        %2000 = sbr.rel (%p1998) target = $region28
      $region27: #{_lambda_.26} parent=23 // pred_region
        %s2001 = smul.u32 4, %s12
      $region28: #{_lambda_.26} parent=23 // pred_fallthru
        _
    $region24: #{_lambda_.26} parent=5 // pred_fallthru
      _
    %p2002 = scmp.le.s32.totalorder 2, %s7
    // Predicated region
    $region29: #{_lambda_.26} parent=5 // pred_check
      %p2003 = pneg %p2002
    $region30: #{_lambda_.26} parent=5 // pred_check_branch
      %2005 = sbr.rel (%p2003) target = $region32
    $region31: #{_lambda_.26} parent=5 // pred_region
      %s2006 = ssub.s32 %s7, 2
      // Predicated region
      $region33: #{_lambda_.26} parent=31 // pred_check
        %p2007 = pneg %p62
      $region34: #{_lambda_.26} parent=31 // pred_check_branch
        %2009 = sbr.rel (%p2007) target = $region36
      $region35: #{_lambda_.26} parent=31 // pred_region
        %s2010 = smul.u32 4, %s13
        %p2011 = scmp.lt.s32.totalorder %s2010, 7
        %s2012 = scalar_select %p2011, %s2010, 7
        %s2013 = smul.addr %s2012, 4
        %s2014 = scalar_lea.vmem %s1, %s2013
      $region36: #{_lambda_.26} parent=31 // pred_fallthru
        _
    $region32: #{_lambda_.26} parent=5 // pred_fallthru
      _
  $region6: #{_lambda_.26} parent=0 // loop_footer
    %s11 = sadd.s32 1, %s7
  $region7: #{_lambda_.26} parent=0 // loop_footer_branch
    %6 = sbr.rel target = $region3
  $region8: #{_lambda_.26} parent=0 // loop_exit
    _

// kernel: _lambda_.29
$region0: #{_lambda_.29}
  #allocation0 [shape = 'u32[]', space=smem, size = 0x4, offset = 0x4, fixed_abs, tag = 'smem constant byte address 0x4 - core index']
  #allocation1 [shape = 'u32[144,128]{1,0:T(1,128)}', space=vmem, size = 0x12000, scoped, tag = 'internal scratch']
  %s0 = inlined_call_operand.vmem [shape: bf16[34,128], index: 0, kind: input, shape index: {}]
  %s1 = inlined_call_operand.vmem [shape: bf16[128,32], index: 1, kind: input, shape index: {}]
  %s2 = inlined_call_operand.vmem [shape: f32[1,32], index: 2, kind: input, shape index: {}]
  %s3 = inlined_call_operand.vmem [shape: f32[34,32], index: 3, kind: input, shape index: {}]
  %s4 = inlined_call_operand.vmem [shape: f32[34,32], index: 4, kind: output, shape index: {}]
  %s5 = sld [smem:[#allocation0]]
  $region26: #{_lambda_.29} parent=0
    _
  %s7 = ssub.s32 1, %s5
  %s8 = scalar_select 0, %s7, %s5
  // Predicated region
  $region2: #{_lambda_.29} parent=0 // pred_check
    _
  $region3: #{_lambda_.29} parent=0 // pred_check_branch
    %10 = sbr.rel (0) target = $region5
  $region4: #{_lambda_.29} parent=0 // pred_region
    _
  $region5: #{_lambda_.29} parent=0 // pred_fallthru
    _
  // Predicated region
  $region6: #{_lambda_.29} parent=0 // pred_check
    _
  $region7: #{_lambda_.29} parent=0 // pred_check_branch
    %12 = sbr.rel (0) target = $region9
  $region8: #{_lambda_.29} parent=0 // pred_region
    _
  $region9: #{_lambda_.29} parent=0 // pred_fallthru
    _
  // Predicated region
  $region10: #{_lambda_.29} parent=0 // pred_check
    _
  $region11: #{_lambda_.29} parent=0 // pred_check_branch
    %14 = sbr.rel (0) target = $region13
  $region12: #{_lambda_.29} parent=0 // pred_region
    _
  $region13: #{_lambda_.29} parent=0 // pred_fallthru
    _
  // Predicated region
  $region14: #{_lambda_.29} parent=0 // pred_check
    _
  $region15: #{_lambda_.29} parent=0 // pred_check_branch
    %16 = sbr.rel (0) target = $region17
  $region16: #{_lambda_.29} parent=0 // pred_region
    _
  $region17: #{_lambda_.29} parent=0 // pred_fallthru
    _
  %v18 = vld [vmem:[%s0] sm:$0xf]
  %v19 = vld [vmem:[%s0 + $0x4] sm:$0xf]
  %v20 = vld [vmem:[%s0 + $0x8] sm:$0xf]
  %v21 = vld [vmem:[%s0 + $0xc] sm:$0xf]
  %v22 = vld [vmem:[%s0 + $0x10] sm:$0x1]
  %v23 = vld [vmem:[%s1] sm:$0xf]
  %v24 = vld [vmem:[%s1 + $0x4] sm:$0xf]
  %v25 = vld [vmem:[%s1 + $0x8] sm:$0xf]
  %v26 = vld [vmem:[%s1 + $0xc] sm:$0xf]
  %v27 = vld [vmem:[%s1 + $0x10] sm:$0xf]
  %v28 = vld [vmem:[%s1 + $0x14] sm:$0xf]
  %v29 = vld [vmem:[%s1 + $0x18] sm:$0xf]
  %v30 = vld [vmem:[%s1 + $0x1c] sm:$0xf]
  %v31 = vld [vmem:[%s1 + $0x20] sm:$0xf]
  %v32 = vld [vmem:[%s1 + $0x24] sm:$0xf]
  %v33 = vld [vmem:[%s1 + $0x28] sm:$0xf]
  %v34 = vld [vmem:[%s1 + $0x2c] sm:$0xf]
  %v35 = vld [vmem:[%s1 + $0x30] sm:$0xf]
  %v36 = vld [vmem:[%s1 + $0x34] sm:$0xf]
  %v37 = vld [vmem:[%s1 + $0x38] sm:$0xf]
  %v38 = vld [vmem:[%s1 + $0x3c] sm:$0xf]
  %v39 = vld [vmem:[%s2] sm:$0x1]
  %v41 = vlaneseq
  %v42 = vshrl.u32 %v41, 7
  %v43 = vsub.s32 0, %v42
  %v44 = vrot.slane %v39, %v43
  %v51 = vunpack.c.l.b16 %v18
  %v52 = vunpack.c.l.b16 %v19
  %v53 = vunpack.c.l.b16 %v20
  %v54 = vunpack.c.l.b16 %v21
  %v55 = vunpack.c.l.b16 %v22
  %v56 = vpack.c.b16 %v52, %v51
  %v57 = vpack.c.b16 %v54, %v53
  %v58 = vpack.c.b16 %v55, %v55
  %v78 = vunpack.c.l.b16 %v23
  %v79 = vunpack.c.l.b16 %v24
  %v80 = vunpack.c.l.b16 %v25
  %v81 = vunpack.c.l.b16 %v26
  %v82 = vunpack.c.l.b16 %v27
  %v83 = vunpack.c.l.b16 %v28
  %v84 = vunpack.c.l.b16 %v29
  %v85 = vunpack.c.l.b16 %v30
  %v86 = vunpack.c.l.b16 %v31
  %v87 = vunpack.c.l.b16 %v32
  %v88 = vunpack.c.l.b16 %v33
  %v89 = vunpack.c.l.b16 %v34
  %v90 = vunpack.c.l.b16 %v35
  %v91 = vunpack.c.l.b16 %v36
  %v92 = vunpack.c.l.b16 %v37
  %v93 = vunpack.c.l.b16 %v38
  %v94 = vpack.c.b16 %v79, %v78
  %v95 = vpack.c.b16 %v81, %v80
  %v96 = vpack.c.b16 %v83, %v82
  %v97 = vpack.c.b16 %v85, %v84
  %v98 = vpack.c.b16 %v87, %v86
  %v99 = vpack.c.b16 %v89, %v88
  %v100 = vpack.c.b16 %v91, %v90
  %v101 = vpack.c.b16 %v93, %v92
  %110 = vmatprep.subr.bf16.mxu0 0
  %111 = vmatpush1.bf16.msra.mxu0 %v94
  %112 = vmatprep.subr.bf16.mxu0 0
  %113 = vmatpush1.bf16.msra.mxu0 %v95
  %114 = vmatprep.subr.bf16.mxu0 0
  %115 = vmatpush1.bf16.msra.mxu0 %v96
  %116 = vmatprep.subr.bf16.mxu0 0
  %117 = vmatpush1.bf16.msra.mxu0 %v97
  %118 = vmatprep.subr.bf16.mxu0 0
  %119 = vmatpush1.bf16.msra.mxu0 %v98
  %120 = vmatprep.subr.bf16.mxu0 0
  %121 = vmatpush1.bf16.msra.mxu0 %v99
  %122 = vmatprep.subr.bf16.mxu0 0
  %123 = vmatpush1.bf16.msra.mxu0 %v100
  %124 = vmatprep.subr.bf16.mxu0 0
  %125 = vmatpush1.bf16.msra.mxu0 %v101
  %126 = vmatprep.subr.bf16.mxu0 0
  %127 = vmatpush1.bf16.msra.mxu0 0
  %128 = vmatprep.subr.bf16.mxu0 0
  %129 = vmatpush1.bf16.msra.mxu0 0
  %130 = vmatprep.subr.bf16.mxu0 0
  %131 = vmatpush1.bf16.msra.mxu0 0
  %132 = vmatprep.subr.bf16.mxu0 0
  %133 = vmatpush1.bf16.msra.mxu0 0
  %134 = vmatprep.subr.bf16.mxu0 0
  %135 = vmatpush1.bf16.msra.mxu0 0
  %136 = vmatprep.subr.bf16.mxu0 0
  %137 = vmatpush1.bf16.msra.mxu0 0
  %138 = vmatprep.subr.bf16.mxu0 0
  %139 = vmatpush1.bf16.msra.mxu0 0
  %140 = vmatprep.subr.bf16.mxu0 0
  %141 = vmatpush1.bf16.msra.mxu0 0
  %142 = vmatprep.mubr.bf16.mxu0 0
  %143 = vmatmul.mubr.bf16.gmra.mrb[0].mxu0 %v56
  %v144 = vpop.f32.mrb[0].mxu0
  %v145 = vadd.f32 %v44, %v144
  %v146 = vpop.f32.mrb[0].mxu0
  %v147 = vpop.f32.mrb[0].mxu0
  %v148 = vadd.f32 %v44, %v147
  %v149 = vpop.f32.mrb[0].mxu0
  %150 = vmatprep.mubr.bf16.mxu0 0
  %151 = vmatmul.mubr.bf16.gmra.mrb[0].mxu0 %v57
  %v152 = vpop.f32.mrb[0].mxu0
  %v153 = vadd.f32 %v44, %v152
  %v154 = vpop.f32.mrb[0].mxu0
  %v155 = vpop.f32.mrb[0].mxu0
  %v156 = vadd.f32 %v44, %v155
  %v157 = vpop.f32.mrb[0].mxu0
  %158 = vmatprep.mubr.bf16.mxu0 0
  %159 = vmatmul.mubr.bf16.gmra.mrb[0].mxu0 %v58
  %v160 = vpop.f32.mrb[0].mxu0
  %v161 = vadd.f32 %v44, %v160
  %v162 = vpop.f32.mrb[0].mxu0
  %v163 = vpop.f32.mrb[0].mxu0
  %v164 = vpop.f32.mrb[0].mxu0
  %165 = vdwg.mxu0
  %v166 = vld [vmem:[%s3] sm:$0xff]
  %v167 = vld [vmem:[%s3 + $0x8] sm:$0xff]
  %v168 = vld [vmem:[%s3 + $0x10] sm:$0xff]
  %v169 = vld [vmem:[%s3 + $0x18] sm:$0xff]
  %v170 = vld [vmem:[%s3 + $0x20] sm:$0x3]
  %v171 = vadd.f32 %v145, %v166
  %v172 = vadd.f32 %v148, %v167
  %v173 = vadd.f32 %v153, %v168
  %v174 = vadd.f32 %v156, %v169
  %v175 = vadd.f32 %v161, %v170
  %vm176 = vcmask 261120
  %177 = vst.msk [vmem:[%s4] sm:$0xff] %vm176, %v171
  %178 = vst.msk [vmem:[%s4 + $0x8] sm:$0xff] %vm176, %v172
  %179 = vst.msk [vmem:[%s4 + $0x10] sm:$0xff] %vm176, %v173
  %180 = vst.msk [vmem:[%s4 + $0x18] sm:$0xff] %vm176, %v174
  %vm181 = vcmask 254976
  %182 = vst.msk [vmem:[%s4 + $0x20] sm:$0x3] %vm181, %v175
  // Predicated region
  $region18: #{_lambda_.29} parent=0 // pred_check
    _
  $region19: #{_lambda_.29} parent=0 // pred_check_branch
    %184 = sbr.rel (0) target = $region21
  $region20: #{_lambda_.29} parent=0 // pred_region
    _
  $region21: #{_lambda_.29} parent=0 // pred_fallthru
    _
  // Predicated region
  $region22: #{_lambda_.29} parent=0 // pred_check
    _
  $region23: #{_lambda_.29} parent=0 // pred_check_branch
    %186 = sbr.rel (0) target = $region25
  $region24: #{_lambda_.29} parent=0 // pred_region
    _
  $region25: #{_lambda_.29} parent=0 // pred_fallthru
    _

// kernel: _lambda_.39
$region0: #{_lambda_.39}
  #allocation0 [shape = 'u32[]', space=smem, size = 0x4, offset = 0x4, fixed_abs, tag = 'smem constant byte address 0x4 - core index']
  #allocation1 [shape = 'u32[144,128]{1,0:T(1,128)}', space=vmem, size = 0x12000, scoped, tag = 'internal scratch']
  %s0 = inlined_call_operand.vmem [shape: f32[2,32], index: 0, kind: input, shape index: {}]
  %s1 = inlined_call_operand.vmem [shape: bf16[32,8], index: 1, kind: input, shape index: {}]
  %s2 = inlined_call_operand.vmem [shape: f32[1,8], index: 2, kind: input, shape index: {}]
  %s3 = inlined_call_operand.vmem [shape: f32[1,32], index: 3, kind: input, shape index: {}]
  %s4 = inlined_call_operand.vmem [shape: f32[1,32], index: 4, kind: input, shape index: {}]
  %s5 = inlined_call_operand.hbm [shape: f32[2,8], index: 5, kind: output, shape index: {}]
  %s6 = sld [smem:[#allocation0]]
  $region30: #{_lambda_.39} parent=0
    _
  %s8 = ssub.s32 1, %s6
  %s9 = scalar_select 0, %s8, %s6
  $region1: #{_lambda_.39} parent=0
    #allocation2 [shape = 'u8[1024]{0}', space=vmem, size = 0x400, scoped, tag = 'output window, operand 0, single buffered']
    #allocation3 [shape = 's32[1]{0}', space=sflag, size = 0x4, scoped, tag = 'scoped memory for _lambda_.39']
    %10 = vsyncpa [#allocation3], 0
    // Predicated region
    $region2: #{_lambda_.39} parent=1 // pred_check
      _
    $region3: #{_lambda_.39} parent=1 // pred_check_branch
      %12 = sbr.rel (0) target = $region5
    $region4: #{_lambda_.39} parent=1 // pred_region
      _
    $region5: #{_lambda_.39} parent=1 // pred_fallthru
      _
    // Predicated region
    $region6: #{_lambda_.39} parent=1 // pred_check
      _
    $region7: #{_lambda_.39} parent=1 // pred_check_branch
      %14 = sbr.rel (0) target = $region9
    $region8: #{_lambda_.39} parent=1 // pred_region
      _
    $region9: #{_lambda_.39} parent=1 // pred_fallthru
      _
    // Predicated region
    $region10: #{_lambda_.39} parent=1 // pred_check
      _
    $region11: #{_lambda_.39} parent=1 // pred_check_branch
      %16 = sbr.rel (0) target = $region13
    $region12: #{_lambda_.39} parent=1 // pred_region
      _
    $region13: #{_lambda_.39} parent=1 // pred_fallthru
      _
    // Predicated region
    $region14: #{_lambda_.39} parent=1 // pred_check
      _
    $region15: #{_lambda_.39} parent=1 // pred_check_branch
      %18 = sbr.rel (0) target = $region17
    $region16: #{_lambda_.39} parent=1 // pred_region
      _
    $region17: #{_lambda_.39} parent=1 // pred_fallthru
      _
    // Predicated region
    $region18: #{_lambda_.39} parent=1 // pred_check
      _
    $region19: #{_lambda_.39} parent=1 // pred_check_branch
      %20 = sbr.rel (0) target = $region21
    $region20: #{_lambda_.39} parent=1 // pred_region
      _
    $region21: #{_lambda_.39} parent=1 // pred_fallthru
      _
    %v22 = vld [vmem:[%s0] sm:$0x3]
    %vm23 = vcmask 254976
    %v24 = vsel %vm23, %v22, 0.0
    %25 = vadd.xlane.f32.xlu0 %v24
    %v26 = vpop.xlane.xlu0 %25
    %v27 = vrcp.pop 32.0
    %v28 = vmul.f32 %v26, %v27
    %v29 = vsub.f32 %v22, %v28
    %v30 = vmul.f32 %v29, %v29
    %v31 = vsel %vm23, %v30, 0.0
    %32 = vadd.xlane.f32.xlu0 %v31
    %v33 = vpop.xlane.xlu0 %32
    %v34 = vmul.f32 %v33, %v27
    %v35 = vadd.f32 %v34, 1e-06
    %v36 = vrsqrt.pop %v35
    %v37 = vmul.f32 %v29, %v36
    %v38 = vld [vmem:[%s3] sm:$0x1]
    %v40 = vlaneseq
    %v41 = vshrl.u32 %v40, 7
    %v42 = vsub.s32 0, %v41
    %v43 = vrot.slane %v38, %v42
    %v45 = vmul.f32 %v37, %v43
    %v46 = vld [vmem:[%s4] sm:$0x1]
    %v48 = vlaneseq
    %v49 = vshrl.u32 %v48, 7
    %v50 = vsub.s32 0, %v49
    %v51 = vrot.slane %v46, %v50
    %v53 = vadd.f32 %v45, %v51
    %v54 = vpack.c.bf16 %v53, %v53
    %v55 = vld [vmem:[%s1] sm:$0xf]
    %v56 = vld [vmem:[%s1 + $0x4] sm:$0xf]
    %v57 = vld [vmem:[%s1 + $0x8] sm:$0xf]
    %v58 = vld [vmem:[%s1 + $0xc] sm:$0xf]
    %v59 = vld [vmem:[%s2] sm:$0x1]
    %v61 = vlaneseq
    %v62 = vshrl.u32 %v61, 7
    %v63 = vsub.s32 0, %v62
    %v64 = vrot.slane %v59, %v63
    %v70 = vunpack.c.l.b16 %v55
    %v71 = vunpack.c.l.b16 %v56
    %v72 = vunpack.c.l.b16 %v57
    %v73 = vunpack.c.l.b16 %v58
    %v74 = vpack.c.b16 %v71, %v70
    %v75 = vpack.c.b16 %v73, %v72
    %vm78 = vcmask 261120
    %v80 = vsel %vm78, %v54, 0
    %82 = vmatprep.subr.bf16.mxu0 0
    %83 = vmatpush1.bf16.msra.mxu0 %v74
    %84 = vmatprep.subr.bf16.mxu0 0
    %85 = vmatpush1.bf16.msra.mxu0 %v75
    %86 = vmatprep.subr.bf16.mxu0 0
    %87 = vmatpush1.bf16.msra.mxu0 0
    %88 = vmatprep.subr.bf16.mxu0 0
    %89 = vmatpush1.bf16.msra.mxu0 0
    %90 = vmatprep.subr.bf16.mxu0 0
    %91 = vmatpush1.bf16.msra.mxu0 0
    %92 = vmatprep.subr.bf16.mxu0 0
    %93 = vmatpush1.bf16.msra.mxu0 0
    %94 = vmatprep.subr.bf16.mxu0 0
    %95 = vmatpush1.bf16.msra.mxu0 0
    %96 = vmatprep.subr.bf16.mxu0 0
    %97 = vmatpush1.bf16.msra.mxu0 0
    %98 = vmatprep.subr.bf16.mxu0 0
    %99 = vmatpush1.bf16.msra.mxu0 0
    %100 = vmatprep.subr.bf16.mxu0 0
    %101 = vmatpush1.bf16.msra.mxu0 0
    %102 = vmatprep.subr.bf16.mxu0 0
    %103 = vmatpush1.bf16.msra.mxu0 0
    %104 = vmatprep.subr.bf16.mxu0 0
    %105 = vmatpush1.bf16.msra.mxu0 0
    %106 = vmatprep.subr.bf16.mxu0 0
    %107 = vmatpush1.bf16.msra.mxu0 0
    %108 = vmatprep.subr.bf16.mxu0 0
    %109 = vmatpush1.bf16.msra.mxu0 0
    %110 = vmatprep.subr.bf16.mxu0 0
    %111 = vmatpush1.bf16.msra.mxu0 0
    %112 = vmatprep.subr.bf16.mxu0 0
    %113 = vmatpush1.bf16.msra.mxu0 0
    %114 = vmatprep.mubr.bf16.mxu0 0
    %115 = vmatmul.mubr.bf16.gmra.mrb[0].mxu0 %v80
    %v116 = vpop.f32.mrb[0].mxu0
    %v117 = vadd.f32 %v64, %v116
    %v118 = vpop.f32.mrb[0].mxu0
    %v119 = vpop.f32.mrb[0].mxu0
    %v120 = vpop.f32.mrb[0].mxu0
    %121 = vdwg.mxu0
    %vm122 = vcmask 58368
    %123 = vst.msk [vmem:[#allocation2] sm:$0x3] %vm122, %v117
    // Predicated region
    $region22: #{_lambda_.39} parent=1 // pred_check
      _
    $region23: #{_lambda_.39} parent=1 // pred_check_branch
      %125 = sbr.rel (0) target = $region25
    $region24: #{_lambda_.39} parent=1 // pred_region
      %s127 = ssub.s32 32, 32
      %128 = vsyncadd [#allocation3], %s127
      %s130 = sshll.u32 [#allocation2], 4
      %s131 = int_to_ptr.vmem [resolvable:$true] %s130
      %133 = dma.vmem_to_hbm [thread:$0]  %s131, 32, %s5, [#allocation3]
    $region25: #{_lambda_.39} parent=1 // pred_fallthru
      _
    // Predicated region
    $region26: #{_lambda_.39} parent=1 // pred_check
      _
    $region27: #{_lambda_.39} parent=1 // pred_check_branch
      %135 = sbr.rel (0) target = $region29
    $region28: #{_lambda_.39} parent=1 // pred_region
      %136 = dma.done [#allocation3], 32
    $region29: #{_lambda_.39} parent=1 // pred_fallthru
      _
    %137 = vsyncpa [#allocation3], 1

// kernel: _lambda_.28
$region0: #{_lambda_.28}
  #allocation0 [shape = 'u32[]', space=smem, size = 0x4, offset = 0x4, fixed_abs, tag = 'smem constant byte address 0x4 - core index']
  #allocation1 [shape = 'u32[144,128]{1,0:T(1,128)}', space=vmem, size = 0x12000, scoped, tag = 'internal scratch']
  %s0 = inlined_call_operand.vmem [shape: f32[34,32], index: 0, kind: input, shape index: {}]
  %s1 = inlined_call_operand.vmem [shape: bf16[32,128], index: 1, kind: input, shape index: {}]
  %s2 = inlined_call_operand.vmem [shape: f32[1,128], index: 2, kind: input, shape index: {}]
  %s3 = inlined_call_operand.vmem [shape: f32[1,32], index: 3, kind: input, shape index: {}]
  %s4 = inlined_call_operand.vmem [shape: f32[1,32], index: 4, kind: input, shape index: {}]
  %s5 = inlined_call_operand.vmem [shape: bf16[34,128], index: 5, kind: output, shape index: {}]
  %s6 = sld [smem:[#allocation0]]
  $region30: #{_lambda_.28} parent=0
    _
  %s8 = ssub.s32 1, %s6
  %s9 = scalar_select 0, %s8, %s6
  // Predicated region
  $region2: #{_lambda_.28} parent=0 // pred_check
    _
  $region3: #{_lambda_.28} parent=0 // pred_check_branch
    %11 = sbr.rel (0) target = $region5
  $region4: #{_lambda_.28} parent=0 // pred_region
    _
  $region5: #{_lambda_.28} parent=0 // pred_fallthru
    _
  // Predicated region
  $region6: #{_lambda_.28} parent=0 // pred_check
    _
  $region7: #{_lambda_.28} parent=0 // pred_check_branch
    %13 = sbr.rel (0) target = $region9
  $region8: #{_lambda_.28} parent=0 // pred_region
    _
  $region9: #{_lambda_.28} parent=0 // pred_fallthru
    _
  // Predicated region
  $region10: #{_lambda_.28} parent=0 // pred_check
    _
  $region11: #{_lambda_.28} parent=0 // pred_check_branch
    %15 = sbr.rel (0) target = $region13
  $region12: #{_lambda_.28} parent=0 // pred_region
    _
  $region13: #{_lambda_.28} parent=0 // pred_fallthru
    _
  // Predicated region
  $region14: #{_lambda_.28} parent=0 // pred_check
    _
  $region15: #{_lambda_.28} parent=0 // pred_check_branch
    %17 = sbr.rel (0) target = $region17
  $region16: #{_lambda_.28} parent=0 // pred_region
    _
  $region17: #{_lambda_.28} parent=0 // pred_fallthru
    _
  // Predicated region
  $region18: #{_lambda_.28} parent=0 // pred_check
    _
  $region19: #{_lambda_.28} parent=0 // pred_check_branch
    %19 = sbr.rel (0) target = $region21
  $region20: #{_lambda_.28} parent=0 // pred_region
    _
  $region21: #{_lambda_.28} parent=0 // pred_fallthru
    _
  %v21 = vld [vmem:[%s0] sm:$0xff]
  %v22 = vld [vmem:[%s0 + $0x8] sm:$0xff]
  %v23 = vld [vmem:[%s0 + $0x10] sm:$0xff]
  %v24 = vld [vmem:[%s0 + $0x18] sm:$0xff]
  %v25 = vld [vmem:[%s0 + $0x20] sm:$0x3]
  %vm26 = vcmask 261120
  %v27 = vsel %vm26, %v21, 0.0
  %28 = vadd.xlane.f32.xlu0 %v27
  %v29 = vpop.xlane.xlu0 %28
  %v30 = vsel %vm26, %v22, 0.0
  %31 = vadd.xlane.f32.xlu0 %v30
  %v32 = vpop.xlane.xlu0 %31
  %v33 = vsel %vm26, %v23, 0.0
  %34 = vadd.xlane.f32.xlu0 %v33
  %v35 = vpop.xlane.xlu0 %34
  %v36 = vsel %vm26, %v24, 0.0
  %37 = vadd.xlane.f32.xlu0 %v36
  %v38 = vpop.xlane.xlu0 %37
  %vm39 = vcmask 254976
  %v40 = vsel %vm39, %v25, 0.0
  %41 = vadd.xlane.f32.xlu0 %v40
  %v42 = vpop.xlane.xlu0 %41
  %v43 = vrcp.pop 32.0
  %v44 = vmul.f32 %v29, %v43
  %v45 = vmul.f32 %v32, %v43
  %v46 = vmul.f32 %v35, %v43
  %v47 = vmul.f32 %v38, %v43
  %v48 = vmul.f32 %v42, %v43
  %v49 = vsub.f32 %v21, %v44
  %v50 = vsub.f32 %v22, %v45
  %v51 = vsub.f32 %v23, %v46
  %v52 = vsub.f32 %v24, %v47
  %v53 = vsub.f32 %v25, %v48
  %v54 = vmul.f32 %v49, %v49
  %v55 = vmul.f32 %v50, %v50
  %v56 = vmul.f32 %v51, %v51
  %v57 = vmul.f32 %v52, %v52
  %v58 = vmul.f32 %v53, %v53
  %v59 = vsel %vm26, %v54, 0.0
  %60 = vadd.xlane.f32.xlu0 %v59
  %v61 = vpop.xlane.xlu0 %60
  %v62 = vsel %vm26, %v55, 0.0
  %63 = vadd.xlane.f32.xlu0 %v62
  %v64 = vpop.xlane.xlu0 %63
  %v65 = vsel %vm26, %v56, 0.0
  %66 = vadd.xlane.f32.xlu0 %v65
  %v67 = vpop.xlane.xlu0 %66
  %v68 = vsel %vm26, %v57, 0.0
  %69 = vadd.xlane.f32.xlu0 %v68
  %v70 = vpop.xlane.xlu0 %69
  %v71 = vsel %vm39, %v58, 0.0
  %72 = vadd.xlane.f32.xlu0 %v71
  %v73 = vpop.xlane.xlu0 %72
  %v74 = vmul.f32 %v61, %v43
  %v75 = vmul.f32 %v64, %v43
  %v76 = vmul.f32 %v67, %v43
  %v77 = vmul.f32 %v70, %v43
  %v78 = vmul.f32 %v73, %v43
  %v79 = vadd.f32 %v74, 1e-06
  %v80 = vadd.f32 %v75, 1e-06
  %v81 = vadd.f32 %v76, 1e-06
  %v82 = vadd.f32 %v77, 1e-06
  %v83 = vadd.f32 %v78, 1e-06
  %v84 = vrsqrt.pop %v79
  %v85 = vrsqrt.pop %v80
  %v86 = vrsqrt.pop %v81
  %v87 = vrsqrt.pop %v82
  %v88 = vrsqrt.pop %v83
  %v89 = vmul.f32 %v49, %v84
  %v90 = vmul.f32 %v50, %v85
  %v91 = vmul.f32 %v51, %v86
  %v92 = vmul.f32 %v52, %v87
  %v93 = vmul.f32 %v53, %v88
  %v94 = vld [vmem:[%s3] sm:$0x1]
  %v96 = vlaneseq
  %v97 = vshrl.u32 %v96, 7
  %v98 = vsub.s32 0, %v97
  %v99 = vrot.slane %v94, %v98
  %v101 = vmul.f32 %v89, %v99
  %v102 = vmul.f32 %v90, %v99
  %v103 = vmul.f32 %v91, %v99
  %v104 = vmul.f32 %v92, %v99
  %v105 = vmul.f32 %v93, %v99
  %v106 = vld [vmem:[%s4] sm:$0x1]
  %v108 = vlaneseq
  %v109 = vshrl.u32 %v108, 7
  %v110 = vsub.s32 0, %v109
  %v111 = vrot.slane %v106, %v110
  %v113 = vadd.f32 %v101, %v111
  %v114 = vadd.f32 %v102, %v111
  %v115 = vadd.f32 %v103, %v111
  %v116 = vadd.f32 %v104, %v111
  %v117 = vadd.f32 %v105, %v111
  %v118 = vpack.c.bf16 %v114, %v113
  %v119 = vpack.c.bf16 %v116, %v115
  %v120 = vpack.c.bf16 %v117, %v117
  %v121 = vld [vmem:[%s1] sm:$0xf]
  %v122 = vld [vmem:[%s1 + $0x4] sm:$0xf]
  %v123 = vld [vmem:[%s1 + $0x8] sm:$0xf]
  %v124 = vld [vmem:[%s1 + $0xc] sm:$0xf]
  %v125 = vld [vmem:[%s2] sm:$0x1]
  %v127 = vlaneseq
  %v128 = vshrl.u32 %v127, 7
  %v129 = vsub.s32 0, %v128
  %v130 = vrot.slane %v125, %v129
  %v136 = vunpack.c.l.b16 %v121
  %v137 = vunpack.c.l.b16 %v122
  %v138 = vunpack.c.l.b16 %v123
  %v139 = vunpack.c.l.b16 %v124
  %v140 = vpack.c.b16 %v137, %v136
  %v141 = vpack.c.b16 %v139, %v138
  %v145 = vsel %vm26, %v118, 0
  %v148 = vsel %vm26, %v119, 0
  %v151 = vsel %vm26, %v120, 0
  %153 = vmatprep.subr.bf16.mxu0 0
  %154 = vmatpush1.bf16.msra.mxu0 %v140
  %155 = vmatprep.subr.bf16.mxu0 0
  %156 = vmatpush1.bf16.msra.mxu0 %v141
  %157 = vmatprep.subr.bf16.mxu0 0
  %158 = vmatpush1.bf16.msra.mxu0 0
  %159 = vmatprep.subr.bf16.mxu0 0
  %160 = vmatpush1.bf16.msra.mxu0 0
  %161 = vmatprep.subr.bf16.mxu0 0
  %162 = vmatpush1.bf16.msra.mxu0 0
  %163 = vmatprep.subr.bf16.mxu0 0
  %164 = vmatpush1.bf16.msra.mxu0 0
  %165 = vmatprep.subr.bf16.mxu0 0
  %166 = vmatpush1.bf16.msra.mxu0 0
  %167 = vmatprep.subr.bf16.mxu0 0
  %168 = vmatpush1.bf16.msra.mxu0 0
  %169 = vmatprep.subr.bf16.mxu0 0
  %170 = vmatpush1.bf16.msra.mxu0 0
  %171 = vmatprep.subr.bf16.mxu0 0
  %172 = vmatpush1.bf16.msra.mxu0 0
  %173 = vmatprep.subr.bf16.mxu0 0
  %174 = vmatpush1.bf16.msra.mxu0 0
  %175 = vmatprep.subr.bf16.mxu0 0
  %176 = vmatpush1.bf16.msra.mxu0 0
  %177 = vmatprep.subr.bf16.mxu0 0
  %178 = vmatpush1.bf16.msra.mxu0 0
  %179 = vmatprep.subr.bf16.mxu0 0
  %180 = vmatpush1.bf16.msra.mxu0 0
  %181 = vmatprep.subr.bf16.mxu0 0
  %182 = vmatpush1.bf16.msra.mxu0 0
  %183 = vmatprep.subr.bf16.mxu0 0
  %184 = vmatpush1.bf16.msra.mxu0 0
  %185 = vmatprep.mubr.bf16.mxu0 0
  %186 = vmatmul.mubr.bf16.gmra.mrb[0].mxu0 %v145
  %v187 = vpop.f32.mrb[0].mxu0
  %v188 = vadd.f32 %v130, %v187
  %v189 = vpop.f32.mrb[0].mxu0
  %v190 = vpop.f32.mrb[0].mxu0
  %v191 = vadd.f32 %v130, %v190
  %v192 = vpop.f32.mrb[0].mxu0
  %193 = vmatprep.mubr.bf16.mxu0 0
  %194 = vmatmul.mubr.bf16.gmra.mrb[0].mxu0 %v148
  %v195 = vpop.f32.mrb[0].mxu0
  %v196 = vadd.f32 %v130, %v195
  %v197 = vpop.f32.mrb[0].mxu0
  %v198 = vpop.f32.mrb[0].mxu0
  %v199 = vadd.f32 %v130, %v198
  %v200 = vpop.f32.mrb[0].mxu0
  %201 = vmatprep.mubr.bf16.mxu0 0
  %202 = vmatmul.mubr.bf16.gmra.mrb[0].mxu0 %v151
  %v203 = vpop.f32.mrb[0].mxu0
  %v204 = vadd.f32 %v130, %v203
  %v205 = vpop.f32.mrb[0].mxu0
  %v206 = vpop.f32.mrb[0].mxu0
  %v207 = vpop.f32.mrb[0].mxu0
  %208 = vdwg.mxu0
  %v209 = vmul.f32 %v188, 0.5
  %v210 = vmul.f32 %v191, 0.5
  %v211 = vmul.f32 %v196, 0.5
  %v212 = vmul.f32 %v199, 0.5
  %v213 = vmul.f32 %v204, 0.5
  %v214 = vmul.f32 %v188, 0.70710677
  %v215 = vmul.f32 %v191, 0.70710677
  %v216 = vmul.f32 %v196, 0.70710677
  %v217 = vmul.f32 %v199, 0.70710677
  %v218 = vmul.f32 %v204, 0.70710677
  %v219 = vand.u32 2147483647, %v214
  %v220 = vand.u32 2147483647, %v215
  %v221 = vand.u32 2147483647, %v216
  %v222 = vand.u32 2147483647, %v217
  %v223 = vand.u32 2147483647, %v218
  %v224 = vmul.f32 %v219, 0.3275911
  %v225 = vmul.f32 %v220, 0.3275911
  %v226 = vmul.f32 %v221, 0.3275911
  %v227 = vmul.f32 %v222, 0.3275911
  %v228 = vmul.f32 %v223, 0.3275911
  %v229 = vadd.f32 %v224, 1.0
  %v230 = vadd.f32 %v225, 1.0
  %v231 = vadd.f32 %v226, 1.0
  %v232 = vadd.f32 %v227, 1.0
  %v233 = vadd.f32 %v228, 1.0
  %v234 = vrcp.pop %v229
  %v235 = vmul.f32 1.0, %v234
  %v236 = vrcp.pop %v230
  %v237 = vmul.f32 1.0, %v236
  %v238 = vrcp.pop %v231
  %v239 = vmul.f32 1.0, %v238
  %v240 = vrcp.pop %v232
  %v241 = vmul.f32 1.0, %v240
  %v242 = vrcp.pop %v233
  %v243 = vmul.f32 1.0, %v242
  %v244 = vmul.f32 %v235, 1.0614054
  %v245 = vmul.f32 %v237, 1.0614054
  %v246 = vmul.f32 %v239, 1.0614054
  %v247 = vmul.f32 %v241, 1.0614054
  %v248 = vmul.f32 %v243, 1.0614054
  %v249 = vadd.f32 %v244, -1.4531521
  %v250 = vadd.f32 %v245, -1.4531521
  %v251 = vadd.f32 %v246, -1.4531521
  %v252 = vadd.f32 %v247, -1.4531521
  %v253 = vadd.f32 %v248, -1.4531521
  %v254 = vmul.f32 %v249, %v235
  %v255 = vmul.f32 %v250, %v237
  %v256 = vmul.f32 %v251, %v239
  %v257 = vmul.f32 %v252, %v241
  %v258 = vmul.f32 %v253, %v243
  %v259 = vadd.f32 %v254, 1.4214138
  %v260 = vadd.f32 %v255, 1.4214138
  %v261 = vadd.f32 %v256, 1.4214138
  %v262 = vadd.f32 %v257, 1.4214138
  %v263 = vadd.f32 %v258, 1.4214138
  %v264 = vmul.f32 %v259, %v235
  %v265 = vmul.f32 %v260, %v237
  %v266 = vmul.f32 %v261, %v239
  %v267 = vmul.f32 %v262, %v241
  %v268 = vmul.f32 %v263, %v243
  %v269 = vadd.f32 %v264, -0.28449672
  %v270 = vadd.f32 %v265, -0.28449672
  %v271 = vadd.f32 %v266, -0.28449672
  %v272 = vadd.f32 %v267, -0.28449672
  %v273 = vadd.f32 %v268, -0.28449672
  %v274 = vmul.f32 %v269, %v235
  %v275 = vmul.f32 %v270, %v237
  %v276 = vmul.f32 %v271, %v239
  %v277 = vmul.f32 %v272, %v241
  %v278 = vmul.f32 %v273, %v243
  %v279 = vadd.f32 %v274, 0.2548296
  %v280 = vadd.f32 %v275, 0.2548296
  %v281 = vadd.f32 %v276, 0.2548296
  %v282 = vadd.f32 %v277, 0.2548296
  %v283 = vadd.f32 %v278, 0.2548296
  %v284 = vmul.f32 %v279, %v235
  %v285 = vmul.f32 %v280, %v237
  %v286 = vmul.f32 %v281, %v239
  %v287 = vmul.f32 %v282, %v241
  %v288 = vmul.f32 %v283, %v243
  %v289 = vsub.f32 0.0, %v219
  %v290 = vsub.f32 0.0, %v220
  %v291 = vsub.f32 0.0, %v221
  %v292 = vsub.f32 0.0, %v222
  %v293 = vsub.f32 0.0, %v223
  %v294 = vmul.f32 %v289, %v219
  %v295 = vmul.f32 %v290, %v220
  %v296 = vmul.f32 %v291, %v221
  %v297 = vmul.f32 %v292, %v222
  %v298 = vmul.f32 %v293, %v223
  %v299 = vmul.f32 %v294, 1.442695
  %v300 = vpow.pop %v299
  %v301 = vmul.f32 %v295, 1.442695
  %v302 = vpow.pop %v301
  %v303 = vmul.f32 %v296, 1.442695
  %v304 = vpow.pop %v303
  %v305 = vmul.f32 %v297, 1.442695
  %v306 = vpow.pop %v305
  %v307 = vmul.f32 %v298, 1.442695
  %v308 = vpow.pop %v307
  %v309 = vmul.f32 %v284, %v300
  %v310 = vmul.f32 %v285, %v302
  %v311 = vmul.f32 %v286, %v304
  %v312 = vmul.f32 %v287, %v306
  %v313 = vmul.f32 %v288, %v308
  %v314 = vsub.f32 1.0, %v309
  %v315 = vsub.f32 1.0, %v310
  %v316 = vsub.f32 1.0, %v311
  %v317 = vsub.f32 1.0, %v312
  %v318 = vsub.f32 1.0, %v313
  %vm319 = vcmp.ge.f32.partialorder %v214, 0.0
  %vm320 = vcmp.ge.f32.partialorder %v215, 0.0
  %vm321 = vcmp.ge.f32.partialorder %v216, 0.0
  %vm322 = vcmp.ge.f32.partialorder %v217, 0.0
  %vm323 = vcmp.ge.f32.partialorder %v218, 0.0
  %v324 = vsub.f32 0.0, %v314
  %v325 = vsub.f32 0.0, %v315
  %v326 = vsub.f32 0.0, %v316
  %v327 = vsub.f32 0.0, %v317
  %v328 = vsub.f32 0.0, %v318
  %v329 = vsel %vm319, %v314, %v324
  %v330 = vsel %vm320, %v315, %v325
  %v331 = vsel %vm321, %v316, %v326
  %v332 = vsel %vm322, %v317, %v327
  %v333 = vsel %vm323, %v318, %v328
  %v334 = vadd.f32 %v329, 1.0
  %v335 = vadd.f32 %v330, 1.0
  %v336 = vadd.f32 %v331, 1.0
  %v337 = vadd.f32 %v332, 1.0
  %v338 = vadd.f32 %v333, 1.0
  %v339 = vmul.f32 %v209, %v334
  %v340 = vmul.f32 %v210, %v335
  %v341 = vmul.f32 %v211, %v336
  %v342 = vmul.f32 %v212, %v337
  %v343 = vmul.f32 %v213, %v338
  %v344 = vpack.c.bf16 %v340, %v339
  %v345 = vpack.c.bf16 %v342, %v341
  %v346 = vpack.c.bf16 %v343, %v343
  %v350 = vunpack.c.l.b16 %v344
  %v351 = vunpack.c.h.b16 %v344
  %v352 = vunpack.c.l.b16 %v345
  %v353 = vunpack.c.h.b16 %v345
  %v354 = vunpack.c.l.b16 %v346
  %v355 = vpack.c.b16 %v350, %v350
  %v356 = vpack.c.b16 %v351, %v351
  %v357 = vpack.c.b16 %v352, %v352
  %v358 = vpack.c.b16 %v353, %v353
  %v359 = vpack.c.b16 %v354, %v354
  %365 = vst [vmem:[%s5] sm:$0xf] %v355
  %366 = vst [vmem:[%s5 + $0x4] sm:$0xf] %v356
  %367 = vst [vmem:[%s5 + $0x8] sm:$0xf] %v357
  %368 = vst [vmem:[%s5 + $0xc] sm:$0xf] %v358
  %369 = vst [vmem:[%s5 + $0x10] sm:$0x1] %v359
  // Predicated region
  $region22: #{_lambda_.28} parent=0 // pred_check
    _
  $region23: #{_lambda_.28} parent=0 // pred_check_branch
    %371 = sbr.rel (0) target = $region25
  $region24: #{_lambda_.28} parent=0 // pred_region
    _
  $region25: #{_lambda_.28} parent=0 // pred_fallthru
    _
  // Predicated region
  $region26: #{_lambda_.28} parent=0 // pred_check
    _
  $region27: #{_lambda_.28} parent=0 // pred_check_branch
    %373 = sbr.rel (0) target = $region29
  $region28: #{_lambda_.28} parent=0 // pred_region
    _
  $region29: #{_lambda_.28} parent=0 // pred_fallthru
    _

</llo_original>
